<compile_context>
chip_gen: v5e
topology: v5e:2x2
jax: 0.10.0
libtpu: 0.0.40
codegen_flags: <defaults>
</compile_context>

<pallas_src>
import math

import jax
import jax.numpy as jnp
import numpy as np
from jax.experimental import pallas as pl
from jax.experimental.pallas import tpu as pltpu

N = 16             # nodes per graph (self-loops guarantee in-degree >= 1, as the module requires)
IN_FEATS = 32
OUT_FEATS = 16
NUM_HEADS = 4
EMB = 32           # self.embeding (mode != 'cross')
EDGE_FEATS = 8     # self.edge_feats

H_EMB = NUM_HEADS * EMB        # 128  (q / k / edge_key lane width, all heads)
H_OUT = NUM_HEADS * OUT_FEATS  # 64   (v / edge_fc / output lane width, all heads)

# Graphs fused per grid step: node-proj M = 128 rows (fills v5e MXU rows, half a v6e/v7x
# pass), edge rows = 2048.  Per-step live f32 intermediates ~6 MiB << 32 MiB scoped VMEM.
G_PER_STEP = 8


def _gatconv_kernel(feat_ref, bond_ref, mask_ref, wn_ref, we_ref, b_ref, hs_ref, out_ref):
    g = feat_ref.shape[0] // N                 # graphs in this step (static)
    feat = feat_ref[...]                       # [g*N, IN]           bf16
    bond = bond_ref[...]                       # [g*N*N, EF]         bf16  (row = graph*N*N + dst*N + src)
    mask = mask_ref[...].astype(jnp.float32)   # [g*N*N, H_OUT]      additive softmax mask (0 / -1e30)
    w_node = wn_ref[...]                       # [IN, 2*H_EMB+H_OUT] bf16  (q | k | v)
    w_edge = we_ref[...]                       # [EF, H_EMB+H_OUT]   bf16  (edge_k | edge_fc)
    biases = b_ref[...]                        # [2, H_EMB+H_OUT]    f32   (row0: edge biases, row1: out bias)
    head_sum = hs_ref[...]                     # [H_EMB, H_OUT]      bf16  block-diagonal 0/1

    # --- fused node projections (all heads, one MXU pass): q | k | v -----------------
    proj = jnp.dot(feat, w_node, preferred_element_type=jnp.float32)     # [g*N, 320]
    q = proj[:, :H_EMB].reshape(g, N, H_EMB)
    k = proj[:, H_EMB:2 * H_EMB].reshape(g, N, H_EMB)
    v = proj[:, 2 * H_EMB:].reshape(g, N, H_OUT)

    # --- fused per-edge projections: edge_k | edge_fc, plus their f32 biases ----------
    eproj = jnp.dot(bond, w_edge, preferred_element_type=jnp.float32) + biases[0:1, :]
    ekey = eproj[:, :H_EMB].reshape(g, N, N, H_EMB)                      # [g, dst, src, 128]
    efeat = eproj[:, H_EMB:].reshape(g, N, N, H_OUT)                     # [g, dst, src, 64]

    # --- mode='mul' per-edge score terms: prod[g,dst,src,:] = q[src] * k[dst] * edge_key
    #     (leading-dim broadcast for q, sublane broadcast for k — no gather matmuls)
    prod = q[:, None, :, :] * k[:, :, None, :] * ekey                    # [g, N, N, 128] f32

    # --- per-head lane-group sum, broadcast to that head's OUT lanes: one bf16 MXU matmul
    e_full = jnp.dot(prod.reshape(g * N * N, H_EMB).astype(jnp.bfloat16),
                     head_sum, preferred_element_type=jnp.float32)       # [g*N*N, 64]
    e4 = (e_full + mask).reshape(g, N, N, H_OUT)                         # [g, dst, src, 64]

    # --- edge_softmax over incoming edges of each destination node (src axis) ---------
    m4 = jnp.max(e4, axis=2, keepdims=True)                              # [g, N, 1, 64]
    p4 = jnp.exp(e4 - m4)                                                # masked entries -> exactly 0
    denom = jnp.sum(p4, axis=2)                                          # [g, N, 64]

    # --- message = ft_src * edge_feat * attention, aggregated over src ----------------
    msg = p4 * v[:, None, :, :] * efeat
    agg = jnp.sum(msg, axis=2)                                           # [g, N, 64]

    # exact divide (approx reciprocal broke 2e-3 parity), then explicit bias
    rst = agg / denom + biases[1:2, :H_OUT]
    out_ref[...] = rst.reshape(g * N, H_OUT)                             # lane-dense store


@jax.jit
def gatconv_forward(feat, bond_dense, adj, kp):
    """feat [B,N,IN] f32, bond_dense [B,N,N,EF] f32, adj [B,N,N] f32 (0/1, dst x src)."""
    b = feat.shape[0]
    g = math.gcd(b, G_PER_STEP)                # graphs fused per grid step
    steps = b // g

    feat_b = feat.reshape(b * N, IN_FEATS).astype(jnp.bfloat16)
    bond_b = bond_dense.reshape(b * N * N, EDGE_FEATS).astype(jnp.bfloat16)
    # Pre-expanded, lane-dense additive softmax mask: 0 on edges, -1e30 elsewhere.
    mask_b = jnp.broadcast_to((adj.reshape(b * N * N, 1) - 1.0) * 1e30,
                              (b * N * N, H_OUT)).astype(jnp.bfloat16)

    flops = (2 * b * N * IN_FEATS * (2 * H_EMB + H_OUT)
             + 2 * b * N * N * EDGE_FEATS * (H_EMB + H_OUT)
             + 2 * b * N * N * H_EMB * H_OUT
             + 10 * b * N * N * H_OUT)
    bytes_accessed = ((feat_b.size + bond_b.size + mask_b.size + kp["w_node"].size
                       + kp["w_edge"].size + kp["head_sum"].size) * 2
                      + kp["biases"].size * 4 + b * N * H_OUT * 4)

    out = pl.pallas_call(
        _gatconv_kernel,
        out_shape=jax.ShapeDtypeStruct((b * N, H_OUT), jnp.float32),
        grid=(steps,),
        in_specs=[
            pl.BlockSpec((g * N, IN_FEATS), lambda i: (i, 0)),
            pl.BlockSpec((g * N * N, EDGE_FEATS), lambda i: (i, 0)),
            pl.BlockSpec((g * N * N, H_OUT), lambda i: (i, 0)),
            pl.BlockSpec((IN_FEATS, 2 * H_EMB + H_OUT), lambda i: (0, 0)),
            pl.BlockSpec((EDGE_FEATS, H_EMB + H_OUT), lambda i: (0, 0)),
            pl.BlockSpec((2, H_EMB + H_OUT), lambda i: (0, 0)),
            pl.BlockSpec((H_EMB, H_OUT), lambda i: (0, 0)),
        ],
        out_specs=pl.BlockSpec((g * N, H_OUT), lambda i: (i, 0)),
        compiler_params=pltpu.CompilerParams(dimension_semantics=("parallel",)),
        cost_estimate=pl.CostEstimate(flops=flops,
                                      transcendentals=b * N * N * H_OUT,
                                      bytes_accessed=bytes_accessed),
    )(feat_b, bond_b, mask_b, kp["w_node"], kp["w_edge"], kp["biases"], kp["head_sum"])

    # lane-dense [B*N, H*OUT] -> module layout [B, N, H, OUT]; free reshape, no transpose.
    return out.reshape(b, N, NUM_HEADS, OUT_FEATS)


def init_params(key):
    gain = float(np.sqrt(2.0))                 # nn.init.calculate_gain('relu')
    ks = jax.random.split(key, 7)

    def xavier(k, fan_in, fan_out):
        std = gain * np.sqrt(2.0 / (fan_in + fan_out))
        return (std * jax.random.normal(k, (fan_in, fan_out))).astype(jnp.float32)

    # stored as [in, out] so y = x @ W (== nn.Linear weight.T); columns are head-major.
    Wq = xavier(ks[0], IN_FEATS, NUM_HEADS * EMB)
    Wk = xavier(ks[1], IN_FEATS, NUM_HEADS * EMB)
    Wv = xavier(ks[2], IN_FEATS, NUM_HEADS * OUT_FEATS)
    bnd = 1.0 / np.sqrt(EDGE_FEATS)            # nn.Linear default init range
    Wek = jax.random.uniform(ks[3], (EDGE_FEATS, NUM_HEADS * EMB), jnp.float32, -bnd, bnd)
    bek = jax.random.uniform(ks[4], (NUM_HEADS * EMB,), jnp.float32, -bnd, bnd)
    Wef = jax.random.uniform(ks[5], (EDGE_FEATS, NUM_HEADS * OUT_FEATS), jnp.float32, -bnd, bnd)
    bef = jax.random.uniform(ks[6], (NUM_HEADS * OUT_FEATS,), jnp.float32, -bnd, bnd)
    bias = jnp.zeros((NUM_HEADS * OUT_FEATS,), jnp.float32)   # reset_parameters: constant 0

    full = dict(Wq=Wq, Wk=Wk, Wv=Wv, Wek=Wek, bek=bek, Wef=Wef, bef=bef, bias=bias)

    # Constant block-diagonal per-head summation indicator, precomputed on the host
    # (loaded once via a constant index_map, fed to the MXU in bf16).
    row = np.arange(H_EMB)[:, None]
    col = np.arange(H_OUT)[None, :]
    head_sum = ((row // EMB) == (col // OUT_FEATS)).astype(np.float32)

    # Fused, lane-dense kernel operands (bf16 MXU feeds; biases stay f32).
    kp = dict(
        w_node=jnp.concatenate([Wq, Wk, Wv], axis=1).astype(jnp.bfloat16),   # [32, 320]
        w_edge=jnp.concatenate([Wek, Wef], axis=1).astype(jnp.bfloat16),     # [8, 192]
        biases=jnp.stack([
            jnp.concatenate([bek, bef]),
            jnp.concatenate([bias, jnp.zeros((H_EMB,), jnp.float32)]),
        ]).astype(jnp.float32),                                              # [2, 192]
        head_sum=jnp.asarray(head_sum, dtype=jnp.bfloat16),                  # [128, 64]
    )
    return full, kp


def reference(feat, bond_dense, adj, fp):
    """Pure-JAX dense reference mirroring the kernel's MXU feed precision
    (bf16 matmul operands, f32 accumulation; per-head score reduction fed in bf16)."""
    b = feat.shape[0]
    fb = feat.astype(jnp.bfloat16)
    bb = bond_dense.reshape(b, N * N, EDGE_FEATS).astype(jnp.bfloat16)

    def mm(x, w):
        return jnp.matmul(x, w.astype(jnp.bfloat16), preferred_element_type=jnp.float32)

    q = mm(fb, fp["Wq"]).reshape(b, N, NUM_HEADS, EMB)
    k = mm(fb, fp["Wk"]).reshape(b, N, NUM_HEADS, EMB)
    v = mm(fb, fp["Wv"]).reshape(b, N, NUM_HEADS, OUT_FEATS)
    ekey = (mm(bb, fp["Wek"]) + fp["bek"]).reshape(b, N, N, NUM_HEADS, EMB)
    efeat = (mm(bb, fp["Wef"]) + fp["bef"]).reshape(b, N, N, NUM_HEADS, OUT_FEATS)

    # e[b, dst, src, h] = sum_c q[src] * k[dst] * edge_key   (mode='mul')
    prod = q[:, None, :, :, :] * k[:, :, None, :, :] * ekey
    prod = prod.astype(jnp.bfloat16).astype(jnp.float32)   # kernel feeds this reduction to the MXU in bf16
    e = jnp.sum(prod, axis=-1)
    mask = (adj > 0.5)[..., None]                            # [B, dst, src, 1]
    e_m = jnp.where(mask, e, -1e30)
    p = jnp.where(mask, jnp.exp(e_m - e_m.max(axis=2, keepdims=True)), 0.0)
    a = p / p.sum(axis=2, keepdims=True)
    msg = v[:, None, :, :, :] * efeat * a[..., None]
    return msg.sum(axis=2) + fp["bias"].reshape(1, 1, NUM_HEADS, OUT_FEATS)


if __name__ == "__main__":
    key = jax.random.PRNGKey(0)
    k_param, k_feat, k_adj, k_bond = jax.random.split(key, 4)

    B = 16   # molecules; G_PER_STEP=8 -> grid of 2 steps (>= 2 keeps v7x megacore busy)

    full_params, kernel_params = init_params(k_param)

    feat = jax.random.normal(k_feat, (B, N, IN_FEATS), dtype=jnp.float32)
    adj_rand = jax.random.uniform(k_adj, (B, N, N)) < 0.3
    adj = jnp.logical_or(adj_rand, jnp.eye(N, dtype=bool)[None]).astype(jnp.float32)  # self-loops
    bond_dense = jax.random.normal(k_bond, (B, N, N, EDGE_FEATS), dtype=jnp.float32)

    rst = jax.block_until_ready(gatconv_forward(feat, bond_dense, adj, kernel_params))
    assert rst.shape == (B, N, NUM_HEADS, OUT_FEATS)

    ref = reference(feat, bond_dense, adj, full_params)
    np.testing.assert_allclose(np.asarray(rst), np.asarray(ref), rtol=2e-3, atol=2e-3)

    print("KERNEL_OK")
</pallas_src>

<mosaic_0001>
module attributes {stable_mosaic.version = 11 : i64} {
  func.func @_gatconv_kernel(%arg0: i32, %arg1: memref<128x32xbf16, #tpu.memory_space<vmem>>, %arg2: memref<2048x8xbf16, #tpu.memory_space<vmem>>, %arg3: memref<2048x64xbf16, #tpu.memory_space<vmem>>, %arg4: memref<32x320xbf16, #tpu.memory_space<vmem>>, %arg5: memref<8x192xbf16, #tpu.memory_space<vmem>>, %arg6: memref<2x192xf32, #tpu.memory_space<vmem>>, %arg7: memref<128x64xbf16, #tpu.memory_space<vmem>>, %arg8: memref<128x64xf32, #tpu.memory_space<vmem>>) attributes {dimension_semantics = [#tpu.dimension_semantics<parallel>], iteration_bounds = array<i64: 2>, scalar_prefetch = 0 : i64, scratch_operands = 0 : i64, tpu.core_type = #tpu.core_type<tc>, window_params = [{transform_indices = @transform_0, window_bounds = array<i64: 128, 32>}, {transform_indices = @transform_1, window_bounds = array<i64: 2048, 8>}, {transform_indices = @transform_2, window_bounds = array<i64: 2048, 64>}, {pipeline_mode = #tpu.pipeline_mode<synchronous>, transform_indices = @transform_3, window_bounds = array<i64: 32, 320>}, {pipeline_mode = #tpu.pipeline_mode<synchronous>, transform_indices = @transform_4, window_bounds = array<i64: 8, 192>}, {pipeline_mode = #tpu.pipeline_mode<synchronous>, transform_indices = @transform_5, window_bounds = array<i64: 2, 192>}, {pipeline_mode = #tpu.pipeline_mode<synchronous>, transform_indices = @transform_6, window_bounds = array<i64: 128, 64>}, {transform_indices = @transform_7, window_bounds = array<i64: 128, 64>}]} {
    %c0 = arith.constant 0 : index
    %c0_0 = arith.constant 0 : index
    %0 = vector.load %arg1[%c0, %c0_0] : memref<128x32xbf16, #tpu.memory_space<vmem>>, vector<128x32xbf16>
    %c0_1 = arith.constant 0 : index
    %c0_2 = arith.constant 0 : index
    %1 = vector.load %arg2[%c0_1, %c0_2] : memref<2048x8xbf16, #tpu.memory_space<vmem>>, vector<2048x8xbf16>
    %c0_3 = arith.constant 0 : index
    %c0_4 = arith.constant 0 : index
    %2 = vector.load %arg3[%c0_3, %c0_4] : memref<2048x64xbf16, #tpu.memory_space<vmem>>, vector<2048x64xbf16>
    %3 = arith.extf %2 : vector<2048x64xbf16> to vector<2048x64xf32>
    %c0_5 = arith.constant 0 : index
    %c0_6 = arith.constant 0 : index
    %4 = vector.load %arg4[%c0_5, %c0_6] : memref<32x320xbf16, #tpu.memory_space<vmem>>, vector<32x320xbf16>
    %c0_7 = arith.constant 0 : index
    %c0_8 = arith.constant 0 : index
    %5 = vector.load %arg5[%c0_7, %c0_8] : memref<8x192xbf16, #tpu.memory_space<vmem>>, vector<8x192xbf16>
    %c0_9 = arith.constant 0 : index
    %c0_10 = arith.constant 0 : index
    %6 = vector.load %arg6[%c0_9, %c0_10] : memref<2x192xf32, #tpu.memory_space<vmem>>, vector<2x192xf32>
    %c0_11 = arith.constant 0 : index
    %c0_12 = arith.constant 0 : index
    %7 = vector.load %arg7[%c0_11, %c0_12] : memref<128x64xbf16, #tpu.memory_space<vmem>>, vector<128x64xbf16>
    %cst = arith.constant dense<0.000000e+00> : vector<128x320xf32>
    %8 = tpu.matmul %0, %4, %cst {dimension_numbers = #tpu.dot_dimension_numbers<[1], [0], [0], [1], [0, 0, 1, 1], [], []>} : vector<128x32xbf16>, vector<32x320xbf16>, vector<128x320xf32> -> vector<128x320xf32>
    %9 = vector.extract_strided_slice %8 {offsets = [0, 0], sizes = [128, 128], strides = [1, 1]} : vector<128x320xf32> to vector<128x128xf32>
    %10 = vector.shape_cast %9 : vector<128x128xf32> to vector<8x16x128xf32>
    %11 = vector.extract_strided_slice %8 {offsets = [0, 128], sizes = [128, 128], strides = [1, 1]} : vector<128x320xf32> to vector<128x128xf32>
    %12 = vector.shape_cast %11 : vector<128x128xf32> to vector<8x16x128xf32>
    %13 = vector.extract_strided_slice %8 {offsets = [0, 256], sizes = [128, 64], strides = [1, 1]} : vector<128x320xf32> to vector<128x64xf32>
    %14 = vector.shape_cast %13 : vector<128x64xf32> to vector<8x16x64xf32>
    %cst_13 = arith.constant dense<0.000000e+00> : vector<2048x192xf32>
    %15 = tpu.matmul %1, %5, %cst_13 {dimension_numbers = #tpu.dot_dimension_numbers<[1], [0], [0], [1], [0, 0, 1, 1], [], []>} : vector<2048x8xbf16>, vector<8x192xbf16>, vector<2048x192xf32> -> vector<2048x192xf32>
    %16 = vector.extract_strided_slice %6 {offsets = [0, 0], sizes = [1, 192], strides = [1, 1]} : vector<2x192xf32> to vector<1x192xf32>
    %17 = vector.broadcast %16 : vector<1x192xf32> to vector<2048x192xf32>
    %18 = arith.addf %15, %17 : vector<2048x192xf32>
    %19 = vector.extract_strided_slice %18 {offsets = [0, 0], sizes = [2048, 128], strides = [1, 1]} : vector<2048x192xf32> to vector<2048x128xf32>
    %20 = vector.shape_cast %19 : vector<2048x128xf32> to vector<8x16x16x128xf32>
    %21 = vector.extract_strided_slice %18 {offsets = [0, 128], sizes = [2048, 64], strides = [1, 1]} : vector<2048x192xf32> to vector<2048x64xf32>
    %22 = vector.shape_cast %21 : vector<2048x64xf32> to vector<8x16x16x64xf32>
    %23 = vector.shape_cast %10 : vector<8x16x128xf32> to vector<8x1x16x128xf32>
    %24 = vector.shape_cast %12 : vector<8x16x128xf32> to vector<8x16x1x128xf32>
    %25 = vector.broadcast %23 : vector<8x1x16x128xf32> to vector<8x16x16x128xf32>
    %26 = vector.broadcast %24 : vector<8x16x1x128xf32> to vector<8x16x16x128xf32>
    %27 = arith.mulf %25, %26 : vector<8x16x16x128xf32>
    %28 = arith.mulf %27, %20 : vector<8x16x16x128xf32>
    %29 = vector.shape_cast %28 : vector<8x16x16x128xf32> to vector<2048x128xf32>
    %30 = arith.truncf %29 : vector<2048x128xf32> to vector<2048x128xbf16>
    %cst_14 = arith.constant dense<0.000000e+00> : vector<2048x64xf32>
    %31 = tpu.matmul %30, %7, %cst_14 {dimension_numbers = #tpu.dot_dimension_numbers<[1], [0], [0], [1], [0, 0, 1, 1], [], []>} : vector<2048x128xbf16>, vector<128x64xbf16>, vector<2048x64xf32> -> vector<2048x64xf32>
    %32 = arith.addf %31, %3 : vector<2048x64xf32>
    %33 = vector.shape_cast %32 : vector<2048x64xf32> to vector<8x16x16x64xf32>
    %cst_15 = arith.constant dense<0xFF800000> : vector<8x16x64xf32>
    %34 = vector.multi_reduction <maximumf>, %33, %cst_15 [2] : vector<8x16x16x64xf32> to vector<8x16x64xf32>
    %35 = vector.shape_cast %34 : vector<8x16x64xf32> to vector<8x16x1x64xf32>
    %36 = vector.broadcast %35 : vector<8x16x1x64xf32> to vector<8x16x16x64xf32>
    %37 = arith.subf %33, %36 : vector<8x16x16x64xf32>
    %38 = math.exp %37 : vector<8x16x16x64xf32>
    %cst_16 = arith.constant dense<0.000000e+00> : vector<8x16x64xf32>
    %39 = vector.multi_reduction <add>, %38, %cst_16 [2] : vector<8x16x16x64xf32> to vector<8x16x64xf32>
    %40 = vector.shape_cast %14 : vector<8x16x64xf32> to vector<8x1x16x64xf32>
    %41 = vector.broadcast %40 : vector<8x1x16x64xf32> to vector<8x16x16x64xf32>
    %42 = arith.mulf %38, %41 : vector<8x16x16x64xf32>
    %43 = arith.mulf %42, %22 : vector<8x16x16x64xf32>
    %cst_17 = arith.constant dense<0.000000e+00> : vector<8x16x64xf32>
    %44 = vector.multi_reduction <add>, %43, %cst_17 [2] : vector<8x16x16x64xf32> to vector<8x16x64xf32>
    %45 = arith.divf %44, %39 : vector<8x16x64xf32>
    %46 = vector.extract_strided_slice %6 {offsets = [1, 0], sizes = [1, 64], strides = [1, 1]} : vector<2x192xf32> to vector<1x64xf32>
    %47 = vector.shape_cast %46 : vector<1x64xf32> to vector<1x1x64xf32>
    %48 = vector.broadcast %47 : vector<1x1x64xf32> to vector<8x16x64xf32>
    %49 = arith.addf %45, %48 : vector<8x16x64xf32>
    %50 = vector.shape_cast %49 : vector<8x16x64xf32> to vector<128x64xf32>
    %c0_18 = arith.constant 0 : index
    %c0_19 = arith.constant 0 : index
    %51 = vector.load %arg8[%c0_18, %c0_19] : memref<128x64xf32, #tpu.memory_space<vmem>>, vector<128x64xf32>
    tpu.vector_store %arg8[%c0_18, %c0_19], %50 {strides = array<i32>} : memref<128x64xf32, #tpu.memory_space<vmem>>, vector<128x64xf32>,
    return
  }
  func.func @transform_0(%arg0: i32) -> (i32, i32) {
    %c0_i32 = arith.constant 0 : i32
    %c0_i32_0 = arith.constant 0 : i32
    return %arg0, %c0_i32 : i32, i32
  }
  func.func @transform_1(%arg0: i32) -> (i32, i32) {
    %c0_i32 = arith.constant 0 : i32
    %c0_i32_0 = arith.constant 0 : i32
    return %arg0, %c0_i32 : i32, i32
  }
  func.func @transform_2(%arg0: i32) -> (i32, i32) {
    %c0_i32 = arith.constant 0 : i32
    %c0_i32_0 = arith.constant 0 : i32
    return %arg0, %c0_i32 : i32, i32
  }
  func.func @transform_3(%arg0: i32) -> (i32, i32) {
    %c0_i32 = arith.constant 0 : i32
    %c0_i32_0 = arith.constant 0 : i32
    %c0_i32_1 = arith.constant 0 : i32
    return %c0_i32, %c0_i32_0 : i32, i32
  }
  func.func @transform_4(%arg0: i32) -> (i32, i32) {
    %c0_i32 = arith.constant 0 : i32
    %c0_i32_0 = arith.constant 0 : i32
    %c0_i32_1 = arith.constant 0 : i32
    return %c0_i32, %c0_i32_0 : i32, i32
  }
  func.func @transform_5(%arg0: i32) -> (i32, i32) {
    %c0_i32 = arith.constant 0 : i32
    %c0_i32_0 = arith.constant 0 : i32
    %c0_i32_1 = arith.constant 0 : i32
    return %c0_i32, %c0_i32_0 : i32, i32
  }
  func.func @transform_6(%arg0: i32) -> (i32, i32) {
    %c0_i32 = arith.constant 0 : i32
    %c0_i32_0 = arith.constant 0 : i32
    %c0_i32_1 = arith.constant 0 : i32
    return %c0_i32, %c0_i32_0 : i32, i32
  }
  func.func @transform_7(%arg0: i32) -> (i32, i32) {
    %c0_i32 = arith.constant 0 : i32
    %c0_i32_0 = arith.constant 0 : i32
    return %arg0, %c0_i32 : i32, i32
  }
}

</mosaic_0001>

<llo_original>
// kernel: gatconv_forward.1
$region0: #{gatconv_forward.1}
  #allocation0 [shape = 'u32[]', space=smem, size = 0x4, offset = 0x4, fixed_abs, tag = 'smem constant byte address 0x4 - core index']
  #allocation1 [shape = 'u32[72,128]{1,0:T(1,128)}', space=vmem, size = 0x9000, scoped, tag = 'internal scratch']
  %s0 = inlined_call_operand.vmem [shape: bf16[256,32], index: 0, kind: input, shape index: {}]
  %s1 = inlined_call_operand.vmem [shape: bf16[4096,8], index: 1, kind: input, shape index: {}]
  %s2 = inlined_call_operand.vmem [shape: bf16[4096,64], index: 2, kind: input, shape index: {}]
  %s3 = inlined_call_operand.vmem [shape: bf16[32,320], index: 3, kind: input, shape index: {}]
  %s4 = inlined_call_operand.vmem [shape: bf16[8,192], index: 4, kind: input, shape index: {}]
  %s5 = inlined_call_operand.vmem [shape: f32[2,192], index: 5, kind: input, shape index: {}]
  %s6 = inlined_call_operand.vmem [shape: bf16[128,64], index: 6, kind: input, shape index: {}]
  %s7 = inlined_call_operand.vmem [shape: f32[256,64], index: 7, kind: output, shape index: {}]
  %s8 = sld [smem:[#allocation0]]
  $region61: #{gatconv_forward.1} parent=0
    _
  %s10 = ssub.s32 1, %s8
  %s11 = scalar_select 0, %s10, %s8
  loop: start=0, step=1, limit=4
  $region2: #{gatconv_forward.1} parent=0 // loop_pre_header
    _
  $region3: #{gatconv_forward.1} parent=0 // loop_header
    %s13 = sphi 0, %s17
    %p14 = scmp.ge.s32.totalorder %s13, 4
    %s23 = sphi 0, %s25
    %s26 = sphi 0, %s23
    %s27 = sphi 0, %s26
    %s43 = sphi 0, %s27
    %s49 = sphi 0, %s51
    %s52 = sphi 0, %s49
    %s53 = sphi 0, %s52
    %s69 = sphi 0, %s53
    %s75 = sphi 0, %s77
    %s78 = sphi 0, %s75
    %s79 = sphi 0, %s78
    %s95 = sphi 0, %s79
    %s99 = sphi 0, %s99
    %s101 = sphi 0, %s99
    %s102 = sphi 0, %s101
    %s116 = sphi 0, %s102
    %s120 = sphi 0, %s120
    %s122 = sphi 0, %s120
    %s123 = sphi 0, %s122
    %s137 = sphi 0, %s123
    %s141 = sphi 0, %s141
    %s143 = sphi 0, %s141
    %s144 = sphi 0, %s143
    %s158 = sphi 0, %s144
    %s162 = sphi 0, %s162
    %s164 = sphi 0, %s162
    %s165 = sphi 0, %s164
    %s179 = sphi 0, %s165
    %s185 = sphi 0, %s187
    %s188 = sphi 0, %s185
    %s189 = sphi 0, %s188
    %s205 = sphi 0, %s189
  $region4: #{gatconv_forward.1} parent=0 // loop_header_branch
    %16 = sbr.rel (%p14) target = $region8
  $region5: #{gatconv_forward.1} parent=0 // loop_body
    %s18 = ssub.s32 %s13, 1
    %s19 = ssub.s32 %s13, 2
    %s20 = sadd.s32 %s13, 1
    %s21 = ssub.s32 %s13, %s20
    %p22 = scmp.eq.s32.totalorder %s21, 0
    %s24 = sadd.s32 %s23, 1
    %s25 = scalar_select %p22, %s23, %s24
    %p28 = pneg %p22
    %p29 = scmp.eq.s32.totalorder %s13, 1
    %p30 = por %p28, %p29
    %p31 = scmp.ne.s32.totalorder %s23, %s26
    %p32 = scmp.eq.s32.totalorder %s13, 0
    %p33 = por %p31, %p32
    %p34 = scmp.ne.s32.totalorder %s23, %s26
    %p35 = scmp.eq.s32.totalorder %s18, 1
    %p36 = por %p34, %p35
    %p37 = scmp.ne.s32.totalorder %s26, %s27
    %p38 = scmp.eq.s32.totalorder %s18, 0
    %p39 = por %p37, %p38
    %p40 = scmp.ne.s32.totalorder %s26, %s27
    %p41 = scmp.eq.s32.totalorder %s19, 1
    %p42 = por %p40, %p41
    %p44 = scmp.ne.s32.totalorder %s27, %s43
    %p45 = scmp.eq.s32.totalorder %s19, 0
    %p46 = por %p44, %p45
    %s47 = ssub.s32 %s13, %s20
    %p48 = scmp.eq.s32.totalorder %s47, 0
    %s50 = sadd.s32 %s49, 1
    %s51 = scalar_select %p48, %s49, %s50
    %p54 = pneg %p48
    %p55 = scmp.eq.s32.totalorder %s13, 1
    %p56 = por %p54, %p55
    %p57 = scmp.ne.s32.totalorder %s49, %s52
    %p58 = scmp.eq.s32.totalorder %s13, 0
    %p59 = por %p57, %p58
    %p60 = scmp.ne.s32.totalorder %s49, %s52
    %p61 = scmp.eq.s32.totalorder %s18, 1
    %p62 = por %p60, %p61
    %p63 = scmp.ne.s32.totalorder %s52, %s53
    %p64 = scmp.eq.s32.totalorder %s18, 0
    %p65 = por %p63, %p64
    %p66 = scmp.ne.s32.totalorder %s52, %s53
    %p67 = scmp.eq.s32.totalorder %s19, 1
    %p68 = por %p66, %p67
    %p70 = scmp.ne.s32.totalorder %s53, %s69
    %p71 = scmp.eq.s32.totalorder %s19, 0
    %p72 = por %p70, %p71
    %s73 = ssub.s32 %s13, %s20
    %p74 = scmp.eq.s32.totalorder %s73, 0
    %s76 = sadd.s32 %s75, 1
    %s77 = scalar_select %p74, %s75, %s76
    %p80 = pneg %p74
    %p81 = scmp.eq.s32.totalorder %s13, 1
    %p82 = por %p80, %p81
    %p83 = scmp.ne.s32.totalorder %s75, %s78
    %p84 = scmp.eq.s32.totalorder %s13, 0
    %p85 = por %p83, %p84
    %p86 = scmp.ne.s32.totalorder %s75, %s78
    %p87 = scmp.eq.s32.totalorder %s18, 1
    %p88 = por %p86, %p87
    %p89 = scmp.ne.s32.totalorder %s78, %s79
    %p90 = scmp.eq.s32.totalorder %s18, 0
    %p91 = por %p89, %p90
    %p92 = scmp.ne.s32.totalorder %s78, %s79
    %p93 = scmp.eq.s32.totalorder %s19, 1
    %p94 = por %p92, %p93
    %p96 = scmp.ne.s32.totalorder %s79, %s95
    %p97 = scmp.eq.s32.totalorder %s19, 0
    %p98 = por %p96, %p97
    %s100 = sadd.s32 %s99, 1
    %p103 = scmp.eq.s32.totalorder %s13, 1
    %p104 = scmp.ne.s32.totalorder %s99, %s101
    %p105 = scmp.eq.s32.totalorder %s13, 0
    %p106 = por %p104, %p105
    %p107 = scmp.ne.s32.totalorder %s99, %s101
    %p108 = scmp.eq.s32.totalorder %s18, 1
    %p109 = por %p107, %p108
    %p110 = scmp.ne.s32.totalorder %s101, %s102
    %p111 = scmp.eq.s32.totalorder %s18, 0
    %p112 = por %p110, %p111
    %p113 = scmp.ne.s32.totalorder %s101, %s102
    %p114 = scmp.eq.s32.totalorder %s19, 1
    %p115 = por %p113, %p114
    %p117 = scmp.ne.s32.totalorder %s102, %s116
    %p118 = scmp.eq.s32.totalorder %s19, 0
    %p119 = por %p117, %p118
    %s121 = sadd.s32 %s120, 1
    %p124 = scmp.eq.s32.totalorder %s13, 1
    %p125 = scmp.ne.s32.totalorder %s120, %s122
    %p126 = scmp.eq.s32.totalorder %s13, 0
    %p127 = por %p125, %p126
    %p128 = scmp.ne.s32.totalorder %s120, %s122
    %p129 = scmp.eq.s32.totalorder %s18, 1
    %p130 = por %p128, %p129
    %p131 = scmp.ne.s32.totalorder %s122, %s123
    %p132 = scmp.eq.s32.totalorder %s18, 0
    %p133 = por %p131, %p132
    %p134 = scmp.ne.s32.totalorder %s122, %s123
    %p135 = scmp.eq.s32.totalorder %s19, 1
    %p136 = por %p134, %p135
    %p138 = scmp.ne.s32.totalorder %s123, %s137
    %p139 = scmp.eq.s32.totalorder %s19, 0
    %p140 = por %p138, %p139
    %s142 = sadd.s32 %s141, 1
    %p145 = scmp.eq.s32.totalorder %s13, 1
    %p146 = scmp.ne.s32.totalorder %s141, %s143
    %p147 = scmp.eq.s32.totalorder %s13, 0
    %p148 = por %p146, %p147
    %p149 = scmp.ne.s32.totalorder %s141, %s143
    %p150 = scmp.eq.s32.totalorder %s18, 1
    %p151 = por %p149, %p150
    %p152 = scmp.ne.s32.totalorder %s143, %s144
    %p153 = scmp.eq.s32.totalorder %s18, 0
    %p154 = por %p152, %p153
    %p155 = scmp.ne.s32.totalorder %s143, %s144
    %p156 = scmp.eq.s32.totalorder %s19, 1
    %p157 = por %p155, %p156
    %p159 = scmp.ne.s32.totalorder %s144, %s158
    %p160 = scmp.eq.s32.totalorder %s19, 0
    %p161 = por %p159, %p160
    %s163 = sadd.s32 %s162, 1
    %p166 = scmp.eq.s32.totalorder %s13, 1
    %p167 = scmp.ne.s32.totalorder %s162, %s164
    %p168 = scmp.eq.s32.totalorder %s13, 0
    %p169 = por %p167, %p168
    %p170 = scmp.ne.s32.totalorder %s162, %s164
    %p171 = scmp.eq.s32.totalorder %s18, 1
    %p172 = por %p170, %p171
    %p173 = scmp.ne.s32.totalorder %s164, %s165
    %p174 = scmp.eq.s32.totalorder %s18, 0
    %p175 = por %p173, %p174
    %p176 = scmp.ne.s32.totalorder %s164, %s165
    %p177 = scmp.eq.s32.totalorder %s19, 1
    %p178 = por %p176, %p177
    %p180 = scmp.ne.s32.totalorder %s165, %s179
    %p181 = scmp.eq.s32.totalorder %s19, 0
    %p182 = por %p180, %p181
    %s183 = ssub.s32 %s13, %s20
    %p184 = scmp.eq.s32.totalorder %s183, 0
    %s186 = sadd.s32 %s185, 1
    %s187 = scalar_select %p184, %s185, %s186
    %p190 = pneg %p184
    %p191 = scmp.eq.s32.totalorder %s13, 1
    %p192 = por %p190, %p191
    %p193 = scmp.ne.s32.totalorder %s185, %s188
    %p194 = scmp.eq.s32.totalorder %s13, 0
    %p195 = por %p193, %p194
    %p196 = scmp.ne.s32.totalorder %s185, %s188
    %p197 = scmp.eq.s32.totalorder %s18, 1
    %p198 = por %p196, %p197
    %p199 = scmp.ne.s32.totalorder %s188, %s189
    %p200 = scmp.eq.s32.totalorder %s18, 0
    %p201 = por %p199, %p200
    %p202 = scmp.ne.s32.totalorder %s188, %s189
    %p203 = scmp.eq.s32.totalorder %s19, 1
    %p204 = por %p202, %p203
    %p206 = scmp.ne.s32.totalorder %s189, %s205
    %p207 = scmp.eq.s32.totalorder %s19, 0
    %p208 = por %p206, %p207
    %p209 = scmp.le.s32.totalorder 1, %s13
    %p210 = scmp.lt.s32.totalorder %s13, 3
    %p211 = pnand %p209, %p210
    %p212 = pneg %p211
    // Predicated region
    $region9: #{gatconv_forward.1} parent=5 // pred_check
      _
    $region10: #{gatconv_forward.1} parent=5 // pred_check_branch
      %214 = sbr.rel (%p211) target = $region12
    $region11: #{gatconv_forward.1} parent=5 // pred_region
      %s215 = ssub.s32 %s13, 1
      // Predicated region
      $region13: #{gatconv_forward.1} parent=11 // pred_check
        %p216 = pneg %p112
      $region14: #{gatconv_forward.1} parent=11 // pred_check_branch
        %218 = sbr.rel (%p216) target = $region16
      $region15: #{gatconv_forward.1} parent=11 // pred_region
        _
      $region16: #{gatconv_forward.1} parent=11 // pred_fallthru
        _
      // Predicated region
      $region17: #{gatconv_forward.1} parent=11 // pred_check
        %p219 = pneg %p133
      $region18: #{gatconv_forward.1} parent=11 // pred_check_branch
        %221 = sbr.rel (%p219) target = $region20
      $region19: #{gatconv_forward.1} parent=11 // pred_region
        _
      $region20: #{gatconv_forward.1} parent=11 // pred_fallthru
        _
      // Predicated region
      $region21: #{gatconv_forward.1} parent=11 // pred_check
        %p222 = pneg %p154
      $region22: #{gatconv_forward.1} parent=11 // pred_check_branch
        %224 = sbr.rel (%p222) target = $region24
      $region23: #{gatconv_forward.1} parent=11 // pred_region
        _
      $region24: #{gatconv_forward.1} parent=11 // pred_fallthru
        _
      // Predicated region
      $region25: #{gatconv_forward.1} parent=11 // pred_check
        %p225 = pneg %p175
      $region26: #{gatconv_forward.1} parent=11 // pred_check_branch
        %227 = sbr.rel (%p225) target = $region28
      $region27: #{gatconv_forward.1} parent=11 // pred_region
        _
      $region28: #{gatconv_forward.1} parent=11 // pred_fallthru
        _
    $region12: #{gatconv_forward.1} parent=5 // pred_fallthru
      _
    %p228 = scmp.lt.s32.totalorder %s13, 2
    // Predicated region
    $region29: #{gatconv_forward.1} parent=5 // pred_check
      %p229 = pneg %p228
    $region30: #{gatconv_forward.1} parent=5 // pred_check_branch
      %231 = sbr.rel (%p229) target = $region32
    $region31: #{gatconv_forward.1} parent=5 // pred_region
      // Predicated region
      $region33: #{gatconv_forward.1} parent=31 // pred_check
        %p232 = pneg %p33
      $region34: #{gatconv_forward.1} parent=31 // pred_check_branch
        %234 = sbr.rel (%p232) target = $region36
      $region35: #{gatconv_forward.1} parent=31 // pred_region
        %s235 = smul.u32 16, %s13
        %p236 = scmp.lt.s32.totalorder %s235, 31
        %s237 = scalar_select %p236, %s235, 31
        %s238 = smul.addr %s237, 4
        %s239 = scalar_lea.vmem %s0, %s238
        %s240 = smul.u32 16, %s13
      $region36: #{gatconv_forward.1} parent=31 // pred_fallthru
        _
      // Predicated region
      $region37: #{gatconv_forward.1} parent=31 // pred_check
        %p241 = pneg %p59
      $region38: #{gatconv_forward.1} parent=31 // pred_check_branch
        %243 = sbr.rel (%p241) target = $region40
      $region39: #{gatconv_forward.1} parent=31 // pred_region
        %s244 = smul.u32 256, %s13
        %p245 = scmp.lt.s32.totalorder %s244, 511
        %s246 = scalar_select %p245, %s244, 511
        %s247 = smul.addr %s246, 4
        %s248 = scalar_lea.vmem %s1, %s247
        %s249 = smul.u32 256, %s13
      $region40: #{gatconv_forward.1} parent=31 // pred_fallthru
        _
      // Predicated region
      $region41: #{gatconv_forward.1} parent=31 // pred_check
        %p250 = pneg %p85
      $region42: #{gatconv_forward.1} parent=31 // pred_check_branch
        %252 = sbr.rel (%p250) target = $region44
      $region43: #{gatconv_forward.1} parent=31 // pred_region
        %s253 = smul.u32 256, %s13
        %p254 = scmp.lt.s32.totalorder %s253, 511
        %s255 = scalar_select %p254, %s253, 511
        %s256 = smul.addr %s255, 4
        %s257 = scalar_lea.vmem %s2, %s256
        %s258 = smul.u32 256, %s13
      $region44: #{gatconv_forward.1} parent=31 // pred_fallthru
        _
    $region32: #{gatconv_forward.1} parent=5 // pred_fallthru
      _
    %p259 = scmp.le.s32.totalorder 1, %s13
    %p260 = scmp.lt.s32.totalorder %s13, 3
    %p261 = pnand %p259, %p260
    %p262 = pneg %p261
    // Predicated region
    $region45: #{gatconv_forward.1} parent=5 // pred_check
      _
    $region46: #{gatconv_forward.1} parent=5 // pred_check_branch
      %264 = sbr.rel (%p261) target = $region48
    $region47: #{gatconv_forward.1} parent=5 // pred_region
      %s265 = ssub.s32 %s13, 1
      %s266 = smul.u32 16, %s18
      %p267 = scmp.lt.s32.totalorder %s266, 31
      %s268 = scalar_select %p267, %s266, 31
      %s269 = smul.addr %s268, 4
      %s270 = scalar_lea.vmem %s0, %s269
      %p271 = pneg %p39
      %p272 = pneg %p36
      %s273 = smul.u32 256, %s18
      %p274 = scmp.lt.s32.totalorder %s273, 511
      %s275 = scalar_select %p274, %s273, 511
      %s276 = smul.addr %s275, 4
      %s277 = scalar_lea.vmem %s1, %s276
      %p278 = pneg %p65
      %p279 = pneg %p62
      %s280 = smul.u32 256, %s18
      %p281 = scmp.lt.s32.totalorder %s280, 511
      %s282 = scalar_select %p281, %s280, 511
      %s283 = smul.addr %s282, 4
      %s284 = scalar_lea.vmem %s2, %s283
      %p285 = pneg %p91
      %p286 = pneg %p88
      %p287 = pneg %p112
      %p288 = pneg %p109
      %p289 = pneg %p133
      %p290 = pneg %p130
      %p291 = pneg %p154
      %p292 = pneg %p151
      %p293 = pneg %p175
      %p294 = pneg %p172
      %p295 = pneg %p201
      %p296 = pneg %p198
      %s297 = smul.u32 16, %s18
      %p298 = scmp.lt.s32.totalorder %s297, 31
      %s299 = scalar_select %p298, %s297, 31
      %s300 = smul.addr %s299, 8
      %s301 = scalar_lea.vmem %s7, %s300
      %s302 = smul.u32 16, %s18
      %p303 = scmp.lt.s32.totalorder %s302, 31
      %s304 = scalar_select %p303, %s302, 31
      %s305 = smul.addr %s304, 4
      %s306 = scalar_lea.vmem %s0, %s305
      %s307 = smul.u32 16, %s18
      %s308 = smul.u32 256, %s18
      %p309 = scmp.lt.s32.totalorder %s308, 511
      %s310 = scalar_select %p309, %s308, 511
      %s311 = smul.addr %s310, 4
      %s312 = scalar_lea.vmem %s1, %s311
      %s313 = smul.u32 256, %s18
      %s314 = smul.u32 256, %s18
      %p315 = scmp.lt.s32.totalorder %s314, 511
      %s316 = scalar_select %p315, %s314, 511
      %s317 = smul.addr %s316, 4
      %s318 = scalar_lea.vmem %s2, %s317
      %s319 = smul.u32 256, %s18
      %s320 = smul.u32 16, %s18
      %p321 = scmp.lt.s32.totalorder %s320, 31
      %s322 = scalar_select %p321, %s320, 31
      %s323 = smul.addr %s322, 8
      %s324 = scalar_lea.vmem %s7, %s323
      %s325 = smul.u32 16, %s18
      %v327 = vld [vmem:[%s306] sm:$0xf]
      %v328 = vld [vmem:[%s306 + $0x4] sm:$0xf]
      %v329 = vld [vmem:[%s306 + $0x8] sm:$0xf]
      %v330 = vld [vmem:[%s306 + $0xc] sm:$0xf]
      %v331 = vld [vmem:[%s306 + $0x10] sm:$0xf]
      %v332 = vld [vmem:[%s306 + $0x14] sm:$0xf]
      %v333 = vld [vmem:[%s306 + $0x18] sm:$0xf]
      %v334 = vld [vmem:[%s306 + $0x1c] sm:$0xf]
      %v335 = vld [vmem:[%s306 + $0x20] sm:$0xf]
      %v336 = vld [vmem:[%s306 + $0x24] sm:$0xf]
      %v337 = vld [vmem:[%s306 + $0x28] sm:$0xf]
      %v338 = vld [vmem:[%s306 + $0x2c] sm:$0xf]
      %v339 = vld [vmem:[%s306 + $0x30] sm:$0xf]
      %v340 = vld [vmem:[%s306 + $0x34] sm:$0xf]
      %v341 = vld [vmem:[%s306 + $0x38] sm:$0xf]
      %v342 = vld [vmem:[%s306 + $0x3c] sm:$0xf]
      %v343 = vld [vmem:[%s312] sm:$0xf]
      %v344 = vld [vmem:[%s312 + $0x4] sm:$0xf]
      %v345 = vld [vmem:[%s312 + $0x8] sm:$0xf]
      %v346 = vld [vmem:[%s312 + $0xc] sm:$0xf]
      %v347 = vld [vmem:[%s312 + $0x10] sm:$0xf]
      %v348 = vld [vmem:[%s312 + $0x14] sm:$0xf]
      %v349 = vld [vmem:[%s312 + $0x18] sm:$0xf]
      %v350 = vld [vmem:[%s312 + $0x1c] sm:$0xf]
      %v351 = vld [vmem:[%s312 + $0x20] sm:$0xf]
      %v352 = vld [vmem:[%s312 + $0x24] sm:$0xf]
      %v353 = vld [vmem:[%s312 + $0x28] sm:$0xf]
      %v354 = vld [vmem:[%s312 + $0x2c] sm:$0xf]
      %v355 = vld [vmem:[%s312 + $0x30] sm:$0xf]
      %v356 = vld [vmem:[%s312 + $0x34] sm:$0xf]
      %v357 = vld [vmem:[%s312 + $0x38] sm:$0xf]
      %v358 = vld [vmem:[%s312 + $0x3c] sm:$0xf]
      %v359 = vld [vmem:[%s312 + $0x40] sm:$0xf]
      %v360 = vld [vmem:[%s312 + $0x44] sm:$0xf]
      %v361 = vld [vmem:[%s312 + $0x48] sm:$0xf]
      %v362 = vld [vmem:[%s312 + $0x4c] sm:$0xf]
      %v363 = vld [vmem:[%s312 + $0x50] sm:$0xf]
      %v364 = vld [vmem:[%s312 + $0x54] sm:$0xf]
      %v365 = vld [vmem:[%s312 + $0x58] sm:$0xf]
      %v366 = vld [vmem:[%s312 + $0x5c] sm:$0xf]
      %v367 = vld [vmem:[%s312 + $0x60] sm:$0xf]
      %v368 = vld [vmem:[%s312 + $0x64] sm:$0xf]
      %v369 = vld [vmem:[%s312 + $0x68] sm:$0xf]
      %v370 = vld [vmem:[%s312 + $0x6c] sm:$0xf]
      %v371 = vld [vmem:[%s312 + $0x70] sm:$0xf]
      %v372 = vld [vmem:[%s312 + $0x74] sm:$0xf]
      %v373 = vld [vmem:[%s312 + $0x78] sm:$0xf]
      %v374 = vld [vmem:[%s312 + $0x7c] sm:$0xf]
      %v375 = vld [vmem:[%s312 + $0x80] sm:$0xf]
      %v376 = vld [vmem:[%s312 + $0x84] sm:$0xf]
      %v377 = vld [vmem:[%s312 + $0x88] sm:$0xf]
      %v378 = vld [vmem:[%s312 + $0x8c] sm:$0xf]
      %v379 = vld [vmem:[%s312 + $0x90] sm:$0xf]
      %v380 = vld [vmem:[%s312 + $0x94] sm:$0xf]
      %v381 = vld [vmem:[%s312 + $0x98] sm:$0xf]
      %v382 = vld [vmem:[%s312 + $0x9c] sm:$0xf]
      %v383 = vld [vmem:[%s312 + $0xa0] sm:$0xf]
      %v384 = vld [vmem:[%s312 + $0xa4] sm:$0xf]
      %v385 = vld [vmem:[%s312 + $0xa8] sm:$0xf]
      %v386 = vld [vmem:[%s312 + $0xac] sm:$0xf]
      %v387 = vld [vmem:[%s312 + $0xb0] sm:$0xf]
      %v388 = vld [vmem:[%s312 + $0xb4] sm:$0xf]
      %v389 = vld [vmem:[%s312 + $0xb8] sm:$0xf]
      %v390 = vld [vmem:[%s312 + $0xbc] sm:$0xf]
      %v391 = vld [vmem:[%s312 + $0xc0] sm:$0xf]
      %v392 = vld [vmem:[%s312 + $0xc4] sm:$0xf]
      %v393 = vld [vmem:[%s312 + $0xc8] sm:$0xf]
      %v394 = vld [vmem:[%s312 + $0xcc] sm:$0xf]
      %v395 = vld [vmem:[%s312 + $0xd0] sm:$0xf]
      %v396 = vld [vmem:[%s312 + $0xd4] sm:$0xf]
      %v397 = vld [vmem:[%s312 + $0xd8] sm:$0xf]
      %v398 = vld [vmem:[%s312 + $0xdc] sm:$0xf]
      %v399 = vld [vmem:[%s312 + $0xe0] sm:$0xf]
      %v400 = vld [vmem:[%s312 + $0xe4] sm:$0xf]
      %v401 = vld [vmem:[%s312 + $0xe8] sm:$0xf]
      %v402 = vld [vmem:[%s312 + $0xec] sm:$0xf]
      %v403 = vld [vmem:[%s312 + $0xf0] sm:$0xf]
      %v404 = vld [vmem:[%s312 + $0xf4] sm:$0xf]
      %v405 = vld [vmem:[%s312 + $0xf8] sm:$0xf]
      %v406 = vld [vmem:[%s312 + $0xfc] sm:$0xf]
      %v407 = vld [vmem:[%s312 + $0x100] sm:$0xf]
      %v408 = vld [vmem:[%s312 + $0x104] sm:$0xf]
      %v409 = vld [vmem:[%s312 + $0x108] sm:$0xf]
      %v410 = vld [vmem:[%s312 + $0x10c] sm:$0xf]
      %v411 = vld [vmem:[%s312 + $0x110] sm:$0xf]
      %v412 = vld [vmem:[%s312 + $0x114] sm:$0xf]
      %v413 = vld [vmem:[%s312 + $0x118] sm:$0xf]
      %v414 = vld [vmem:[%s312 + $0x11c] sm:$0xf]
      %v415 = vld [vmem:[%s312 + $0x120] sm:$0xf]
      %v416 = vld [vmem:[%s312 + $0x124] sm:$0xf]
      %v417 = vld [vmem:[%s312 + $0x128] sm:$0xf]
      %v418 = vld [vmem:[%s312 + $0x12c] sm:$0xf]
      %v419 = vld [vmem:[%s312 + $0x130] sm:$0xf]
      %v420 = vld [vmem:[%s312 + $0x134] sm:$0xf]
      %v421 = vld [vmem:[%s312 + $0x138] sm:$0xf]
      %v422 = vld [vmem:[%s312 + $0x13c] sm:$0xf]
      %v423 = vld [vmem:[%s312 + $0x140] sm:$0xf]
      %v424 = vld [vmem:[%s312 + $0x144] sm:$0xf]
      %v425 = vld [vmem:[%s312 + $0x148] sm:$0xf]
      %v426 = vld [vmem:[%s312 + $0x14c] sm:$0xf]
      %v427 = vld [vmem:[%s312 + $0x150] sm:$0xf]
      %v428 = vld [vmem:[%s312 + $0x154] sm:$0xf]
      %v429 = vld [vmem:[%s312 + $0x158] sm:$0xf]
      %v430 = vld [vmem:[%s312 + $0x15c] sm:$0xf]
      %v431 = vld [vmem:[%s312 + $0x160] sm:$0xf]
      %v432 = vld [vmem:[%s312 + $0x164] sm:$0xf]
      %v433 = vld [vmem:[%s312 + $0x168] sm:$0xf]
      %v434 = vld [vmem:[%s312 + $0x16c] sm:$0xf]
      %v435 = vld [vmem:[%s312 + $0x170] sm:$0xf]
      %v436 = vld [vmem:[%s312 + $0x174] sm:$0xf]
      %v437 = vld [vmem:[%s312 + $0x178] sm:$0xf]
      %v438 = vld [vmem:[%s312 + $0x17c] sm:$0xf]
      %v439 = vld [vmem:[%s312 + $0x180] sm:$0xf]
      %v440 = vld [vmem:[%s312 + $0x184] sm:$0xf]
      %v441 = vld [vmem:[%s312 + $0x188] sm:$0xf]
      %v442 = vld [vmem:[%s312 + $0x18c] sm:$0xf]
      %v443 = vld [vmem:[%s312 + $0x190] sm:$0xf]
      %v444 = vld [vmem:[%s312 + $0x194] sm:$0xf]
      %v445 = vld [vmem:[%s312 + $0x198] sm:$0xf]
      %v446 = vld [vmem:[%s312 + $0x19c] sm:$0xf]
      %v447 = vld [vmem:[%s312 + $0x1a0] sm:$0xf]
      %v448 = vld [vmem:[%s312 + $0x1a4] sm:$0xf]
      %v449 = vld [vmem:[%s312 + $0x1a8] sm:$0xf]
      %v450 = vld [vmem:[%s312 + $0x1ac] sm:$0xf]
      %v451 = vld [vmem:[%s312 + $0x1b0] sm:$0xf]
      %v452 = vld [vmem:[%s312 + $0x1b4] sm:$0xf]
      %v453 = vld [vmem:[%s312 + $0x1b8] sm:$0xf]
      %v454 = vld [vmem:[%s312 + $0x1bc] sm:$0xf]
      %v455 = vld [vmem:[%s312 + $0x1c0] sm:$0xf]
      %v456 = vld [vmem:[%s312 + $0x1c4] sm:$0xf]
      %v457 = vld [vmem:[%s312 + $0x1c8] sm:$0xf]
      %v458 = vld [vmem:[%s312 + $0x1cc] sm:$0xf]
      %v459 = vld [vmem:[%s312 + $0x1d0] sm:$0xf]
      %v460 = vld [vmem:[%s312 + $0x1d4] sm:$0xf]
      %v461 = vld [vmem:[%s312 + $0x1d8] sm:$0xf]
      %v462 = vld [vmem:[%s312 + $0x1dc] sm:$0xf]
      %v463 = vld [vmem:[%s312 + $0x1e0] sm:$0xf]
      %v464 = vld [vmem:[%s312 + $0x1e4] sm:$0xf]
      %v465 = vld [vmem:[%s312 + $0x1e8] sm:$0xf]
      %v466 = vld [vmem:[%s312 + $0x1ec] sm:$0xf]
      %v467 = vld [vmem:[%s312 + $0x1f0] sm:$0xf]
      %v468 = vld [vmem:[%s312 + $0x1f4] sm:$0xf]
      %v469 = vld [vmem:[%s312 + $0x1f8] sm:$0xf]
      %v470 = vld [vmem:[%s312 + $0x1fc] sm:$0xf]
      %v471 = vld [vmem:[%s312 + $0x200] sm:$0xf]
      %v472 = vld [vmem:[%s312 + $0x204] sm:$0xf]
      %v473 = vld [vmem:[%s312 + $0x208] sm:$0xf]
      %v474 = vld [vmem:[%s312 + $0x20c] sm:$0xf]
      %v475 = vld [vmem:[%s312 + $0x210] sm:$0xf]
      %v476 = vld [vmem:[%s312 + $0x214] sm:$0xf]
      %v477 = vld [vmem:[%s312 + $0x218] sm:$0xf]
      %v478 = vld [vmem:[%s312 + $0x21c] sm:$0xf]
      %v479 = vld [vmem:[%s312 + $0x220] sm:$0xf]
      %v480 = vld [vmem:[%s312 + $0x224] sm:$0xf]
      %v481 = vld [vmem:[%s312 + $0x228] sm:$0xf]
      %v482 = vld [vmem:[%s312 + $0x22c] sm:$0xf]
      %v483 = vld [vmem:[%s312 + $0x230] sm:$0xf]
      %v484 = vld [vmem:[%s312 + $0x234] sm:$0xf]
      %v485 = vld [vmem:[%s312 + $0x238] sm:$0xf]
      %v486 = vld [vmem:[%s312 + $0x23c] sm:$0xf]
      %v487 = vld [vmem:[%s312 + $0x240] sm:$0xf]
      %v488 = vld [vmem:[%s312 + $0x244] sm:$0xf]
      %v489 = vld [vmem:[%s312 + $0x248] sm:$0xf]
      %v490 = vld [vmem:[%s312 + $0x24c] sm:$0xf]
      %v491 = vld [vmem:[%s312 + $0x250] sm:$0xf]
      %v492 = vld [vmem:[%s312 + $0x254] sm:$0xf]
      %v493 = vld [vmem:[%s312 + $0x258] sm:$0xf]
      %v494 = vld [vmem:[%s312 + $0x25c] sm:$0xf]
      %v495 = vld [vmem:[%s312 + $0x260] sm:$0xf]
      %v496 = vld [vmem:[%s312 + $0x264] sm:$0xf]
      %v497 = vld [vmem:[%s312 + $0x268] sm:$0xf]
      %v498 = vld [vmem:[%s312 + $0x26c] sm:$0xf]
      %v499 = vld [vmem:[%s312 + $0x270] sm:$0xf]
      %v500 = vld [vmem:[%s312 + $0x274] sm:$0xf]
      %v501 = vld [vmem:[%s312 + $0x278] sm:$0xf]
      %v502 = vld [vmem:[%s312 + $0x27c] sm:$0xf]
      %v503 = vld [vmem:[%s312 + $0x280] sm:$0xf]
      %v504 = vld [vmem:[%s312 + $0x284] sm:$0xf]
      %v505 = vld [vmem:[%s312 + $0x288] sm:$0xf]
      %v506 = vld [vmem:[%s312 + $0x28c] sm:$0xf]
      %v507 = vld [vmem:[%s312 + $0x290] sm:$0xf]
      %v508 = vld [vmem:[%s312 + $0x294] sm:$0xf]
      %v509 = vld [vmem:[%s312 + $0x298] sm:$0xf]
      %v510 = vld [vmem:[%s312 + $0x29c] sm:$0xf]
      %v511 = vld [vmem:[%s312 + $0x2a0] sm:$0xf]
      %v512 = vld [vmem:[%s312 + $0x2a4] sm:$0xf]
      %v513 = vld [vmem:[%s312 + $0x2a8] sm:$0xf]
      %v514 = vld [vmem:[%s312 + $0x2ac] sm:$0xf]
      %v515 = vld [vmem:[%s312 + $0x2b0] sm:$0xf]
      %v516 = vld [vmem:[%s312 + $0x2b4] sm:$0xf]
      %v517 = vld [vmem:[%s312 + $0x2b8] sm:$0xf]
      %v518 = vld [vmem:[%s312 + $0x2bc] sm:$0xf]
      %v519 = vld [vmem:[%s312 + $0x2c0] sm:$0xf]
      %v520 = vld [vmem:[%s312 + $0x2c4] sm:$0xf]
      %v521 = vld [vmem:[%s312 + $0x2c8] sm:$0xf]
      %v522 = vld [vmem:[%s312 + $0x2cc] sm:$0xf]
      %v523 = vld [vmem:[%s312 + $0x2d0] sm:$0xf]
      %v524 = vld [vmem:[%s312 + $0x2d4] sm:$0xf]
      %v525 = vld [vmem:[%s312 + $0x2d8] sm:$0xf]
      %v526 = vld [vmem:[%s312 + $0x2dc] sm:$0xf]
      %v527 = vld [vmem:[%s312 + $0x2e0] sm:$0xf]
      %v528 = vld [vmem:[%s312 + $0x2e4] sm:$0xf]
      %v529 = vld [vmem:[%s312 + $0x2e8] sm:$0xf]
      %v530 = vld [vmem:[%s312 + $0x2ec] sm:$0xf]
      %v531 = vld [vmem:[%s312 + $0x2f0] sm:$0xf]
      %v532 = vld [vmem:[%s312 + $0x2f4] sm:$0xf]
      %v533 = vld [vmem:[%s312 + $0x2f8] sm:$0xf]
      %v534 = vld [vmem:[%s312 + $0x2fc] sm:$0xf]
      %v535 = vld [vmem:[%s312 + $0x300] sm:$0xf]
      %v536 = vld [vmem:[%s312 + $0x304] sm:$0xf]
      %v537 = vld [vmem:[%s312 + $0x308] sm:$0xf]
      %v538 = vld [vmem:[%s312 + $0x30c] sm:$0xf]
      %v539 = vld [vmem:[%s312 + $0x310] sm:$0xf]
      %v540 = vld [vmem:[%s312 + $0x314] sm:$0xf]
      %v541 = vld [vmem:[%s312 + $0x318] sm:$0xf]
      %v542 = vld [vmem:[%s312 + $0x31c] sm:$0xf]
      %v543 = vld [vmem:[%s312 + $0x320] sm:$0xf]
      %v544 = vld [vmem:[%s312 + $0x324] sm:$0xf]
      %v545 = vld [vmem:[%s312 + $0x328] sm:$0xf]
      %v546 = vld [vmem:[%s312 + $0x32c] sm:$0xf]
      %v547 = vld [vmem:[%s312 + $0x330] sm:$0xf]
      %v548 = vld [vmem:[%s312 + $0x334] sm:$0xf]
      %v549 = vld [vmem:[%s312 + $0x338] sm:$0xf]
      %v550 = vld [vmem:[%s312 + $0x33c] sm:$0xf]
      %v551 = vld [vmem:[%s312 + $0x340] sm:$0xf]
      %v552 = vld [vmem:[%s312 + $0x344] sm:$0xf]
      %v553 = vld [vmem:[%s312 + $0x348] sm:$0xf]
      %v554 = vld [vmem:[%s312 + $0x34c] sm:$0xf]
      %v555 = vld [vmem:[%s312 + $0x350] sm:$0xf]
      %v556 = vld [vmem:[%s312 + $0x354] sm:$0xf]
      %v557 = vld [vmem:[%s312 + $0x358] sm:$0xf]
      %v558 = vld [vmem:[%s312 + $0x35c] sm:$0xf]
      %v559 = vld [vmem:[%s312 + $0x360] sm:$0xf]
      %v560 = vld [vmem:[%s312 + $0x364] sm:$0xf]
      %v561 = vld [vmem:[%s312 + $0x368] sm:$0xf]
      %v562 = vld [vmem:[%s312 + $0x36c] sm:$0xf]
      %v563 = vld [vmem:[%s312 + $0x370] sm:$0xf]
      %v564 = vld [vmem:[%s312 + $0x374] sm:$0xf]
      %v565 = vld [vmem:[%s312 + $0x378] sm:$0xf]
      %v566 = vld [vmem:[%s312 + $0x37c] sm:$0xf]
      %v567 = vld [vmem:[%s312 + $0x380] sm:$0xf]
      %v568 = vld [vmem:[%s312 + $0x384] sm:$0xf]
      %v569 = vld [vmem:[%s312 + $0x388] sm:$0xf]
      %v570 = vld [vmem:[%s312 + $0x38c] sm:$0xf]
      %v571 = vld [vmem:[%s312 + $0x390] sm:$0xf]
      %v572 = vld [vmem:[%s312 + $0x394] sm:$0xf]
      %v573 = vld [vmem:[%s312 + $0x398] sm:$0xf]
      %v574 = vld [vmem:[%s312 + $0x39c] sm:$0xf]
      %v575 = vld [vmem:[%s312 + $0x3a0] sm:$0xf]
      %v576 = vld [vmem:[%s312 + $0x3a4] sm:$0xf]
      %v577 = vld [vmem:[%s312 + $0x3a8] sm:$0xf]
      %v578 = vld [vmem:[%s312 + $0x3ac] sm:$0xf]
      %v579 = vld [vmem:[%s312 + $0x3b0] sm:$0xf]
      %v580 = vld [vmem:[%s312 + $0x3b4] sm:$0xf]
      %v581 = vld [vmem:[%s312 + $0x3b8] sm:$0xf]
      %v582 = vld [vmem:[%s312 + $0x3bc] sm:$0xf]
      %v583 = vld [vmem:[%s312 + $0x3c0] sm:$0xf]
      %v584 = vld [vmem:[%s312 + $0x3c4] sm:$0xf]
      %v585 = vld [vmem:[%s312 + $0x3c8] sm:$0xf]
      %v586 = vld [vmem:[%s312 + $0x3cc] sm:$0xf]
      %v587 = vld [vmem:[%s312 + $0x3d0] sm:$0xf]
      %v588 = vld [vmem:[%s312 + $0x3d4] sm:$0xf]
      %v589 = vld [vmem:[%s312 + $0x3d8] sm:$0xf]
      %v590 = vld [vmem:[%s312 + $0x3dc] sm:$0xf]
      %v591 = vld [vmem:[%s312 + $0x3e0] sm:$0xf]
      %v592 = vld [vmem:[%s312 + $0x3e4] sm:$0xf]
      %v593 = vld [vmem:[%s312 + $0x3e8] sm:$0xf]
      %v594 = vld [vmem:[%s312 + $0x3ec] sm:$0xf]
      %v595 = vld [vmem:[%s312 + $0x3f0] sm:$0xf]
      %v596 = vld [vmem:[%s312 + $0x3f4] sm:$0xf]
      %v597 = vld [vmem:[%s312 + $0x3f8] sm:$0xf]
      %v598 = vld [vmem:[%s312 + $0x3fc] sm:$0xf]
      %v599 = vld [vmem:[%s318] sm:$0xf]
      %v600 = vld [vmem:[%s318 + $0x4] sm:$0xf]
      %v601 = vld [vmem:[%s318 + $0x8] sm:$0xf]
      %v602 = vld [vmem:[%s318 + $0xc] sm:$0xf]
      %v603 = vld [vmem:[%s318 + $0x10] sm:$0xf]
      %v604 = vld [vmem:[%s318 + $0x14] sm:$0xf]
      %v605 = vld [vmem:[%s318 + $0x18] sm:$0xf]
      %v606 = vld [vmem:[%s318 + $0x1c] sm:$0xf]
      %v607 = vld [vmem:[%s318 + $0x20] sm:$0xf]
      %v608 = vld [vmem:[%s318 + $0x24] sm:$0xf]
      %v609 = vld [vmem:[%s318 + $0x28] sm:$0xf]
      %v610 = vld [vmem:[%s318 + $0x2c] sm:$0xf]
      %v611 = vld [vmem:[%s318 + $0x30] sm:$0xf]
      %v612 = vld [vmem:[%s318 + $0x34] sm:$0xf]
      %v613 = vld [vmem:[%s318 + $0x38] sm:$0xf]
      %v614 = vld [vmem:[%s318 + $0x3c] sm:$0xf]
      %v615 = vld [vmem:[%s318 + $0x40] sm:$0xf]
      %v616 = vld [vmem:[%s318 + $0x44] sm:$0xf]
      %v617 = vld [vmem:[%s318 + $0x48] sm:$0xf]
      %v618 = vld [vmem:[%s318 + $0x4c] sm:$0xf]
      %v619 = vld [vmem:[%s318 + $0x50] sm:$0xf]
      %v620 = vld [vmem:[%s318 + $0x54] sm:$0xf]
      %v621 = vld [vmem:[%s318 + $0x58] sm:$0xf]
      %v622 = vld [vmem:[%s318 + $0x5c] sm:$0xf]
      %v623 = vld [vmem:[%s318 + $0x60] sm:$0xf]
      %v624 = vld [vmem:[%s318 + $0x64] sm:$0xf]
      %v625 = vld [vmem:[%s318 + $0x68] sm:$0xf]
      %v626 = vld [vmem:[%s318 + $0x6c] sm:$0xf]
      %v627 = vld [vmem:[%s318 + $0x70] sm:$0xf]
      %v628 = vld [vmem:[%s318 + $0x74] sm:$0xf]
      %v629 = vld [vmem:[%s318 + $0x78] sm:$0xf]
      %v630 = vld [vmem:[%s318 + $0x7c] sm:$0xf]
      %v631 = vld [vmem:[%s318 + $0x80] sm:$0xf]
      %v632 = vld [vmem:[%s318 + $0x84] sm:$0xf]
      %v633 = vld [vmem:[%s318 + $0x88] sm:$0xf]
      %v634 = vld [vmem:[%s318 + $0x8c] sm:$0xf]
      %v635 = vld [vmem:[%s318 + $0x90] sm:$0xf]
      %v636 = vld [vmem:[%s318 + $0x94] sm:$0xf]
      %v637 = vld [vmem:[%s318 + $0x98] sm:$0xf]
      %v638 = vld [vmem:[%s318 + $0x9c] sm:$0xf]
      %v639 = vld [vmem:[%s318 + $0xa0] sm:$0xf]
      %v640 = vld [vmem:[%s318 + $0xa4] sm:$0xf]
      %v641 = vld [vmem:[%s318 + $0xa8] sm:$0xf]
      %v642 = vld [vmem:[%s318 + $0xac] sm:$0xf]
      %v643 = vld [vmem:[%s318 + $0xb0] sm:$0xf]
      %v644 = vld [vmem:[%s318 + $0xb4] sm:$0xf]
      %v645 = vld [vmem:[%s318 + $0xb8] sm:$0xf]
      %v646 = vld [vmem:[%s318 + $0xbc] sm:$0xf]
      %v647 = vld [vmem:[%s318 + $0xc0] sm:$0xf]
      %v648 = vld [vmem:[%s318 + $0xc4] sm:$0xf]
      %v649 = vld [vmem:[%s318 + $0xc8] sm:$0xf]
      %v650 = vld [vmem:[%s318 + $0xcc] sm:$0xf]
      %v651 = vld [vmem:[%s318 + $0xd0] sm:$0xf]
      %v652 = vld [vmem:[%s318 + $0xd4] sm:$0xf]
      %v653 = vld [vmem:[%s318 + $0xd8] sm:$0xf]
      %v654 = vld [vmem:[%s318 + $0xdc] sm:$0xf]
      %v655 = vld [vmem:[%s318 + $0xe0] sm:$0xf]
      %v656 = vld [vmem:[%s318 + $0xe4] sm:$0xf]
      %v657 = vld [vmem:[%s318 + $0xe8] sm:$0xf]
      %v658 = vld [vmem:[%s318 + $0xec] sm:$0xf]
      %v659 = vld [vmem:[%s318 + $0xf0] sm:$0xf]
      %v660 = vld [vmem:[%s318 + $0xf4] sm:$0xf]
      %v661 = vld [vmem:[%s318 + $0xf8] sm:$0xf]
      %v662 = vld [vmem:[%s318 + $0xfc] sm:$0xf]
      %v663 = vld [vmem:[%s318 + $0x100] sm:$0xf]
      %v664 = vld [vmem:[%s318 + $0x104] sm:$0xf]
      %v665 = vld [vmem:[%s318 + $0x108] sm:$0xf]
      %v666 = vld [vmem:[%s318 + $0x10c] sm:$0xf]
      %v667 = vld [vmem:[%s318 + $0x110] sm:$0xf]
      %v668 = vld [vmem:[%s318 + $0x114] sm:$0xf]
      %v669 = vld [vmem:[%s318 + $0x118] sm:$0xf]
      %v670 = vld [vmem:[%s318 + $0x11c] sm:$0xf]
      %v671 = vld [vmem:[%s318 + $0x120] sm:$0xf]
      %v672 = vld [vmem:[%s318 + $0x124] sm:$0xf]
      %v673 = vld [vmem:[%s318 + $0x128] sm:$0xf]
      %v674 = vld [vmem:[%s318 + $0x12c] sm:$0xf]
      %v675 = vld [vmem:[%s318 + $0x130] sm:$0xf]
      %v676 = vld [vmem:[%s318 + $0x134] sm:$0xf]
      %v677 = vld [vmem:[%s318 + $0x138] sm:$0xf]
      %v678 = vld [vmem:[%s318 + $0x13c] sm:$0xf]
      %v679 = vld [vmem:[%s318 + $0x140] sm:$0xf]
      %v680 = vld [vmem:[%s318 + $0x144] sm:$0xf]
      %v681 = vld [vmem:[%s318 + $0x148] sm:$0xf]
      %v682 = vld [vmem:[%s318 + $0x14c] sm:$0xf]
      %v683 = vld [vmem:[%s318 + $0x150] sm:$0xf]
      %v684 = vld [vmem:[%s318 + $0x154] sm:$0xf]
      %v685 = vld [vmem:[%s318 + $0x158] sm:$0xf]
      %v686 = vld [vmem:[%s318 + $0x15c] sm:$0xf]
      %v687 = vld [vmem:[%s318 + $0x160] sm:$0xf]
      %v688 = vld [vmem:[%s318 + $0x164] sm:$0xf]
      %v689 = vld [vmem:[%s318 + $0x168] sm:$0xf]
      %v690 = vld [vmem:[%s318 + $0x16c] sm:$0xf]
      %v691 = vld [vmem:[%s318 + $0x170] sm:$0xf]
      %v692 = vld [vmem:[%s318 + $0x174] sm:$0xf]
      %v693 = vld [vmem:[%s318 + $0x178] sm:$0xf]
      %v694 = vld [vmem:[%s318 + $0x17c] sm:$0xf]
      %v695 = vld [vmem:[%s318 + $0x180] sm:$0xf]
      %v696 = vld [vmem:[%s318 + $0x184] sm:$0xf]
      %v697 = vld [vmem:[%s318 + $0x188] sm:$0xf]
      %v698 = vld [vmem:[%s318 + $0x18c] sm:$0xf]
      %v699 = vld [vmem:[%s318 + $0x190] sm:$0xf]
      %v700 = vld [vmem:[%s318 + $0x194] sm:$0xf]
      %v701 = vld [vmem:[%s318 + $0x198] sm:$0xf]
      %v702 = vld [vmem:[%s318 + $0x19c] sm:$0xf]
      %v703 = vld [vmem:[%s318 + $0x1a0] sm:$0xf]
      %v704 = vld [vmem:[%s318 + $0x1a4] sm:$0xf]
      %v705 = vld [vmem:[%s318 + $0x1a8] sm:$0xf]
      %v706 = vld [vmem:[%s318 + $0x1ac] sm:$0xf]
      %v707 = vld [vmem:[%s318 + $0x1b0] sm:$0xf]
      %v708 = vld [vmem:[%s318 + $0x1b4] sm:$0xf]
      %v709 = vld [vmem:[%s318 + $0x1b8] sm:$0xf]
      %v710 = vld [vmem:[%s318 + $0x1bc] sm:$0xf]
      %v711 = vld [vmem:[%s318 + $0x1c0] sm:$0xf]
      %v712 = vld [vmem:[%s318 + $0x1c4] sm:$0xf]
      %v713 = vld [vmem:[%s318 + $0x1c8] sm:$0xf]
      %v714 = vld [vmem:[%s318 + $0x1cc] sm:$0xf]
      %v715 = vld [vmem:[%s318 + $0x1d0] sm:$0xf]
      %v716 = vld [vmem:[%s318 + $0x1d4] sm:$0xf]
      %v717 = vld [vmem:[%s318 + $0x1d8] sm:$0xf]
      %v718 = vld [vmem:[%s318 + $0x1dc] sm:$0xf]
      %v719 = vld [vmem:[%s318 + $0x1e0] sm:$0xf]
      %v720 = vld [vmem:[%s318 + $0x1e4] sm:$0xf]
      %v721 = vld [vmem:[%s318 + $0x1e8] sm:$0xf]
      %v722 = vld [vmem:[%s318 + $0x1ec] sm:$0xf]
      %v723 = vld [vmem:[%s318 + $0x1f0] sm:$0xf]
      %v724 = vld [vmem:[%s318 + $0x1f4] sm:$0xf]
      %v725 = vld [vmem:[%s318 + $0x1f8] sm:$0xf]
      %v726 = vld [vmem:[%s318 + $0x1fc] sm:$0xf]
      %v727 = vld [vmem:[%s318 + $0x200] sm:$0xf]
      %v728 = vld [vmem:[%s318 + $0x204] sm:$0xf]
      %v729 = vld [vmem:[%s318 + $0x208] sm:$0xf]
      %v730 = vld [vmem:[%s318 + $0x20c] sm:$0xf]
      %v731 = vld [vmem:[%s318 + $0x210] sm:$0xf]
      %v732 = vld [vmem:[%s318 + $0x214] sm:$0xf]
      %v733 = vld [vmem:[%s318 + $0x218] sm:$0xf]
      %v734 = vld [vmem:[%s318 + $0x21c] sm:$0xf]
      %v735 = vld [vmem:[%s318 + $0x220] sm:$0xf]
      %v736 = vld [vmem:[%s318 + $0x224] sm:$0xf]
      %v737 = vld [vmem:[%s318 + $0x228] sm:$0xf]
      %v738 = vld [vmem:[%s318 + $0x22c] sm:$0xf]
      %v739 = vld [vmem:[%s318 + $0x230] sm:$0xf]
      %v740 = vld [vmem:[%s318 + $0x234] sm:$0xf]
      %v741 = vld [vmem:[%s318 + $0x238] sm:$0xf]
      %v742 = vld [vmem:[%s318 + $0x23c] sm:$0xf]
      %v743 = vld [vmem:[%s318 + $0x240] sm:$0xf]
      %v744 = vld [vmem:[%s318 + $0x244] sm:$0xf]
      %v745 = vld [vmem:[%s318 + $0x248] sm:$0xf]
      %v746 = vld [vmem:[%s318 + $0x24c] sm:$0xf]
      %v747 = vld [vmem:[%s318 + $0x250] sm:$0xf]
      %v748 = vld [vmem:[%s318 + $0x254] sm:$0xf]
      %v749 = vld [vmem:[%s318 + $0x258] sm:$0xf]
      %v750 = vld [vmem:[%s318 + $0x25c] sm:$0xf]
      %v751 = vld [vmem:[%s318 + $0x260] sm:$0xf]
      %v752 = vld [vmem:[%s318 + $0x264] sm:$0xf]
      %v753 = vld [vmem:[%s318 + $0x268] sm:$0xf]
      %v754 = vld [vmem:[%s318 + $0x26c] sm:$0xf]
      %v755 = vld [vmem:[%s318 + $0x270] sm:$0xf]
      %v756 = vld [vmem:[%s318 + $0x274] sm:$0xf]
      %v757 = vld [vmem:[%s318 + $0x278] sm:$0xf]
      %v758 = vld [vmem:[%s318 + $0x27c] sm:$0xf]
      %v759 = vld [vmem:[%s318 + $0x280] sm:$0xf]
      %v760 = vld [vmem:[%s318 + $0x284] sm:$0xf]
      %v761 = vld [vmem:[%s318 + $0x288] sm:$0xf]
      %v762 = vld [vmem:[%s318 + $0x28c] sm:$0xf]
      %v763 = vld [vmem:[%s318 + $0x290] sm:$0xf]
      %v764 = vld [vmem:[%s318 + $0x294] sm:$0xf]
      %v765 = vld [vmem:[%s318 + $0x298] sm:$0xf]
      %v766 = vld [vmem:[%s318 + $0x29c] sm:$0xf]
      %v767 = vld [vmem:[%s318 + $0x2a0] sm:$0xf]
      %v768 = vld [vmem:[%s318 + $0x2a4] sm:$0xf]
      %v769 = vld [vmem:[%s318 + $0x2a8] sm:$0xf]
      %v770 = vld [vmem:[%s318 + $0x2ac] sm:$0xf]
      %v771 = vld [vmem:[%s318 + $0x2b0] sm:$0xf]
      %v772 = vld [vmem:[%s318 + $0x2b4] sm:$0xf]
      %v773 = vld [vmem:[%s318 + $0x2b8] sm:$0xf]
      %v774 = vld [vmem:[%s318 + $0x2bc] sm:$0xf]
      %v775 = vld [vmem:[%s318 + $0x2c0] sm:$0xf]
      %v776 = vld [vmem:[%s318 + $0x2c4] sm:$0xf]
      %v777 = vld [vmem:[%s318 + $0x2c8] sm:$0xf]
      %v778 = vld [vmem:[%s318 + $0x2cc] sm:$0xf]
      %v779 = vld [vmem:[%s318 + $0x2d0] sm:$0xf]
      %v780 = vld [vmem:[%s318 + $0x2d4] sm:$0xf]
      %v781 = vld [vmem:[%s318 + $0x2d8] sm:$0xf]
      %v782 = vld [vmem:[%s318 + $0x2dc] sm:$0xf]
      %v783 = vld [vmem:[%s318 + $0x2e0] sm:$0xf]
      %v784 = vld [vmem:[%s318 + $0x2e4] sm:$0xf]
      %v785 = vld [vmem:[%s318 + $0x2e8] sm:$0xf]
      %v786 = vld [vmem:[%s318 + $0x2ec] sm:$0xf]
      %v787 = vld [vmem:[%s318 + $0x2f0] sm:$0xf]
      %v788 = vld [vmem:[%s318 + $0x2f4] sm:$0xf]
      %v789 = vld [vmem:[%s318 + $0x2f8] sm:$0xf]
      %v790 = vld [vmem:[%s318 + $0x2fc] sm:$0xf]
      %v791 = vld [vmem:[%s318 + $0x300] sm:$0xf]
      %v792 = vld [vmem:[%s318 + $0x304] sm:$0xf]
      %v793 = vld [vmem:[%s318 + $0x308] sm:$0xf]
      %v794 = vld [vmem:[%s318 + $0x30c] sm:$0xf]
      %v795 = vld [vmem:[%s318 + $0x310] sm:$0xf]
      %v796 = vld [vmem:[%s318 + $0x314] sm:$0xf]
      %v797 = vld [vmem:[%s318 + $0x318] sm:$0xf]
      %v798 = vld [vmem:[%s318 + $0x31c] sm:$0xf]
      %v799 = vld [vmem:[%s318 + $0x320] sm:$0xf]
      %v800 = vld [vmem:[%s318 + $0x324] sm:$0xf]
      %v801 = vld [vmem:[%s318 + $0x328] sm:$0xf]
      %v802 = vld [vmem:[%s318 + $0x32c] sm:$0xf]
      %v803 = vld [vmem:[%s318 + $0x330] sm:$0xf]
      %v804 = vld [vmem:[%s318 + $0x334] sm:$0xf]
      %v805 = vld [vmem:[%s318 + $0x338] sm:$0xf]
      %v806 = vld [vmem:[%s318 + $0x33c] sm:$0xf]
      %v807 = vld [vmem:[%s318 + $0x340] sm:$0xf]
      %v808 = vld [vmem:[%s318 + $0x344] sm:$0xf]
      %v809 = vld [vmem:[%s318 + $0x348] sm:$0xf]
      %v810 = vld [vmem:[%s318 + $0x34c] sm:$0xf]
      %v811 = vld [vmem:[%s318 + $0x350] sm:$0xf]
      %v812 = vld [vmem:[%s318 + $0x354] sm:$0xf]
      %v813 = vld [vmem:[%s318 + $0x358] sm:$0xf]
      %v814 = vld [vmem:[%s318 + $0x35c] sm:$0xf]
      %v815 = vld [vmem:[%s318 + $0x360] sm:$0xf]
      %v816 = vld [vmem:[%s318 + $0x364] sm:$0xf]
      %v817 = vld [vmem:[%s318 + $0x368] sm:$0xf]
      %v818 = vld [vmem:[%s318 + $0x36c] sm:$0xf]
      %v819 = vld [vmem:[%s318 + $0x370] sm:$0xf]
      %v820 = vld [vmem:[%s318 + $0x374] sm:$0xf]
      %v821 = vld [vmem:[%s318 + $0x378] sm:$0xf]
      %v822 = vld [vmem:[%s318 + $0x37c] sm:$0xf]
      %v823 = vld [vmem:[%s318 + $0x380] sm:$0xf]
      %v824 = vld [vmem:[%s318 + $0x384] sm:$0xf]
      %v825 = vld [vmem:[%s318 + $0x388] sm:$0xf]
      %v826 = vld [vmem:[%s318 + $0x38c] sm:$0xf]
      %v827 = vld [vmem:[%s318 + $0x390] sm:$0xf]
      %v828 = vld [vmem:[%s318 + $0x394] sm:$0xf]
      %v829 = vld [vmem:[%s318 + $0x398] sm:$0xf]
      %v830 = vld [vmem:[%s318 + $0x39c] sm:$0xf]
      %v831 = vld [vmem:[%s318 + $0x3a0] sm:$0xf]
      %v832 = vld [vmem:[%s318 + $0x3a4] sm:$0xf]
      %v833 = vld [vmem:[%s318 + $0x3a8] sm:$0xf]
      %v834 = vld [vmem:[%s318 + $0x3ac] sm:$0xf]
      %v835 = vld [vmem:[%s318 + $0x3b0] sm:$0xf]
      %v836 = vld [vmem:[%s318 + $0x3b4] sm:$0xf]
      %v837 = vld [vmem:[%s318 + $0x3b8] sm:$0xf]
      %v838 = vld [vmem:[%s318 + $0x3bc] sm:$0xf]
      %v839 = vld [vmem:[%s318 + $0x3c0] sm:$0xf]
      %v840 = vld [vmem:[%s318 + $0x3c4] sm:$0xf]
      %v841 = vld [vmem:[%s318 + $0x3c8] sm:$0xf]
      %v842 = vld [vmem:[%s318 + $0x3cc] sm:$0xf]
      %v843 = vld [vmem:[%s318 + $0x3d0] sm:$0xf]
      %v844 = vld [vmem:[%s318 + $0x3d4] sm:$0xf]
      %v845 = vld [vmem:[%s318 + $0x3d8] sm:$0xf]
      %v846 = vld [vmem:[%s318 + $0x3dc] sm:$0xf]
      %v847 = vld [vmem:[%s318 + $0x3e0] sm:$0xf]
      %v848 = vld [vmem:[%s318 + $0x3e4] sm:$0xf]
      %v849 = vld [vmem:[%s318 + $0x3e8] sm:$0xf]
      %v850 = vld [vmem:[%s318 + $0x3ec] sm:$0xf]
      %v851 = vld [vmem:[%s318 + $0x3f0] sm:$0xf]
      %v852 = vld [vmem:[%s318 + $0x3f4] sm:$0xf]
      %v853 = vld [vmem:[%s318 + $0x3f8] sm:$0xf]
      %v854 = vld [vmem:[%s318 + $0x3fc] sm:$0xf]
      %v855 = vunpack.c.l.bf16 %v599
      %v856 = vunpack.c.l.bf16 %v600
      %v857 = vunpack.c.l.bf16 %v601
      %v858 = vunpack.c.l.bf16 %v602
      %v859 = vunpack.c.l.bf16 %v603
      %v860 = vunpack.c.l.bf16 %v604
      %v861 = vunpack.c.l.bf16 %v605
      %v862 = vunpack.c.l.bf16 %v606
      %v863 = vunpack.c.l.bf16 %v607
      %v864 = vunpack.c.l.bf16 %v608
      %v865 = vunpack.c.l.bf16 %v609
      %v866 = vunpack.c.l.bf16 %v610
      %v867 = vunpack.c.l.bf16 %v611
      %v868 = vunpack.c.l.bf16 %v612
      %v869 = vunpack.c.l.bf16 %v613
      %v870 = vunpack.c.l.bf16 %v614
      %v871 = vunpack.c.l.bf16 %v615
      %v872 = vunpack.c.l.bf16 %v616
      %v873 = vunpack.c.l.bf16 %v617
      %v874 = vunpack.c.l.bf16 %v618
      %v875 = vunpack.c.l.bf16 %v619
      %v876 = vunpack.c.l.bf16 %v620
      %v877 = vunpack.c.l.bf16 %v621
      %v878 = vunpack.c.l.bf16 %v622
      %v879 = vunpack.c.l.bf16 %v623
      %v880 = vunpack.c.l.bf16 %v624
      %v881 = vunpack.c.l.bf16 %v625
      %v882 = vunpack.c.l.bf16 %v626
      %v883 = vunpack.c.l.bf16 %v627
      %v884 = vunpack.c.l.bf16 %v628
      %v885 = vunpack.c.l.bf16 %v629
      %v886 = vunpack.c.l.bf16 %v630
      %v887 = vunpack.c.l.bf16 %v631
      %v888 = vunpack.c.l.bf16 %v632
      %v889 = vunpack.c.l.bf16 %v633
      %v890 = vunpack.c.l.bf16 %v634
      %v891 = vunpack.c.l.bf16 %v635
      %v892 = vunpack.c.l.bf16 %v636
      %v893 = vunpack.c.l.bf16 %v637
      %v894 = vunpack.c.l.bf16 %v638
      %v895 = vunpack.c.l.bf16 %v639
      %v896 = vunpack.c.l.bf16 %v640
      %v897 = vunpack.c.l.bf16 %v641
      %v898 = vunpack.c.l.bf16 %v642
      %v899 = vunpack.c.l.bf16 %v643
      %v900 = vunpack.c.l.bf16 %v644
      %v901 = vunpack.c.l.bf16 %v645
      %v902 = vunpack.c.l.bf16 %v646
      %v903 = vunpack.c.l.bf16 %v647
      %v904 = vunpack.c.l.bf16 %v648
      %v905 = vunpack.c.l.bf16 %v649
      %v906 = vunpack.c.l.bf16 %v650
      %v907 = vunpack.c.l.bf16 %v651
      %v908 = vunpack.c.l.bf16 %v652
      %v909 = vunpack.c.l.bf16 %v653
      %v910 = vunpack.c.l.bf16 %v654
      %v911 = vunpack.c.l.bf16 %v655
      %v912 = vunpack.c.l.bf16 %v656
      %v913 = vunpack.c.l.bf16 %v657
      %v914 = vunpack.c.l.bf16 %v658
      %v915 = vunpack.c.l.bf16 %v659
      %v916 = vunpack.c.l.bf16 %v660
      %v917 = vunpack.c.l.bf16 %v661
      %v918 = vunpack.c.l.bf16 %v662
      %v919 = vunpack.c.l.bf16 %v663
      %v920 = vunpack.c.l.bf16 %v664
      %v921 = vunpack.c.l.bf16 %v665
      %v922 = vunpack.c.l.bf16 %v666
      %v923 = vunpack.c.l.bf16 %v667
      %v924 = vunpack.c.l.bf16 %v668
      %v925 = vunpack.c.l.bf16 %v669
      %v926 = vunpack.c.l.bf16 %v670
      %v927 = vunpack.c.l.bf16 %v671
      %v928 = vunpack.c.l.bf16 %v672
      %v929 = vunpack.c.l.bf16 %v673
      %v930 = vunpack.c.l.bf16 %v674
      %v931 = vunpack.c.l.bf16 %v675
      %v932 = vunpack.c.l.bf16 %v676
      %v933 = vunpack.c.l.bf16 %v677
      %v934 = vunpack.c.l.bf16 %v678
      %v935 = vunpack.c.l.bf16 %v679
      %v936 = vunpack.c.l.bf16 %v680
      %v937 = vunpack.c.l.bf16 %v681
      %v938 = vunpack.c.l.bf16 %v682
      %v939 = vunpack.c.l.bf16 %v683
      %v940 = vunpack.c.l.bf16 %v684
      %v941 = vunpack.c.l.bf16 %v685
      %v942 = vunpack.c.l.bf16 %v686
      %v943 = vunpack.c.l.bf16 %v687
      %v944 = vunpack.c.l.bf16 %v688
      %v945 = vunpack.c.l.bf16 %v689
      %v946 = vunpack.c.l.bf16 %v690
      %v947 = vunpack.c.l.bf16 %v691
      %v948 = vunpack.c.l.bf16 %v692
      %v949 = vunpack.c.l.bf16 %v693
      %v950 = vunpack.c.l.bf16 %v694
      %v951 = vunpack.c.l.bf16 %v695
      %v952 = vunpack.c.l.bf16 %v696
      %v953 = vunpack.c.l.bf16 %v697
      %v954 = vunpack.c.l.bf16 %v698
      %v955 = vunpack.c.l.bf16 %v699
      %v956 = vunpack.c.l.bf16 %v700
      %v957 = vunpack.c.l.bf16 %v701
      %v958 = vunpack.c.l.bf16 %v702
      %v959 = vunpack.c.l.bf16 %v703
      %v960 = vunpack.c.l.bf16 %v704
      %v961 = vunpack.c.l.bf16 %v705
      %v962 = vunpack.c.l.bf16 %v706
      %v963 = vunpack.c.l.bf16 %v707
      %v964 = vunpack.c.l.bf16 %v708
      %v965 = vunpack.c.l.bf16 %v709
      %v966 = vunpack.c.l.bf16 %v710
      %v967 = vunpack.c.l.bf16 %v711
      %v968 = vunpack.c.l.bf16 %v712
      %v969 = vunpack.c.l.bf16 %v713
      %v970 = vunpack.c.l.bf16 %v714
      %v971 = vunpack.c.l.bf16 %v715
      %v972 = vunpack.c.l.bf16 %v716
      %v973 = vunpack.c.l.bf16 %v717
      %v974 = vunpack.c.l.bf16 %v718
      %v975 = vunpack.c.l.bf16 %v719
      %v976 = vunpack.c.l.bf16 %v720
      %v977 = vunpack.c.l.bf16 %v721
      %v978 = vunpack.c.l.bf16 %v722
      %v979 = vunpack.c.l.bf16 %v723
      %v980 = vunpack.c.l.bf16 %v724
      %v981 = vunpack.c.l.bf16 %v725
      %v982 = vunpack.c.l.bf16 %v726
      %v983 = vunpack.c.l.bf16 %v727
      %v984 = vunpack.c.l.bf16 %v728
      %v985 = vunpack.c.l.bf16 %v729
      %v986 = vunpack.c.l.bf16 %v730
      %v987 = vunpack.c.l.bf16 %v731
      %v988 = vunpack.c.l.bf16 %v732
      %v989 = vunpack.c.l.bf16 %v733
      %v990 = vunpack.c.l.bf16 %v734
      %v991 = vunpack.c.l.bf16 %v735
      %v992 = vunpack.c.l.bf16 %v736
      %v993 = vunpack.c.l.bf16 %v737
      %v994 = vunpack.c.l.bf16 %v738
      %v995 = vunpack.c.l.bf16 %v739
      %v996 = vunpack.c.l.bf16 %v740
      %v997 = vunpack.c.l.bf16 %v741
      %v998 = vunpack.c.l.bf16 %v742
      %v999 = vunpack.c.l.bf16 %v743
      %v1000 = vunpack.c.l.bf16 %v744
      %v1001 = vunpack.c.l.bf16 %v745
      %v1002 = vunpack.c.l.bf16 %v746
      %v1003 = vunpack.c.l.bf16 %v747
      %v1004 = vunpack.c.l.bf16 %v748
      %v1005 = vunpack.c.l.bf16 %v749
      %v1006 = vunpack.c.l.bf16 %v750
      %v1007 = vunpack.c.l.bf16 %v751
      %v1008 = vunpack.c.l.bf16 %v752
      %v1009 = vunpack.c.l.bf16 %v753
      %v1010 = vunpack.c.l.bf16 %v754
      %v1011 = vunpack.c.l.bf16 %v755
      %v1012 = vunpack.c.l.bf16 %v756
      %v1013 = vunpack.c.l.bf16 %v757
      %v1014 = vunpack.c.l.bf16 %v758
      %v1015 = vunpack.c.l.bf16 %v759
      %v1016 = vunpack.c.l.bf16 %v760
      %v1017 = vunpack.c.l.bf16 %v761
      %v1018 = vunpack.c.l.bf16 %v762
      %v1019 = vunpack.c.l.bf16 %v763
      %v1020 = vunpack.c.l.bf16 %v764
      %v1021 = vunpack.c.l.bf16 %v765
      %v1022 = vunpack.c.l.bf16 %v766
      %v1023 = vunpack.c.l.bf16 %v767
      %v1024 = vunpack.c.l.bf16 %v768
      %v1025 = vunpack.c.l.bf16 %v769
      %v1026 = vunpack.c.l.bf16 %v770
      %v1027 = vunpack.c.l.bf16 %v771
      %v1028 = vunpack.c.l.bf16 %v772
      %v1029 = vunpack.c.l.bf16 %v773
      %v1030 = vunpack.c.l.bf16 %v774
      %v1031 = vunpack.c.l.bf16 %v775
      %v1032 = vunpack.c.l.bf16 %v776
      %v1033 = vunpack.c.l.bf16 %v777
      %v1034 = vunpack.c.l.bf16 %v778
      %v1035 = vunpack.c.l.bf16 %v779
      %v1036 = vunpack.c.l.bf16 %v780
      %v1037 = vunpack.c.l.bf16 %v781
      %v1038 = vunpack.c.l.bf16 %v782
      %v1039 = vunpack.c.l.bf16 %v783
      %v1040 = vunpack.c.l.bf16 %v784
      %v1041 = vunpack.c.l.bf16 %v785
      %v1042 = vunpack.c.l.bf16 %v786
      %v1043 = vunpack.c.l.bf16 %v787
      %v1044 = vunpack.c.l.bf16 %v788
      %v1045 = vunpack.c.l.bf16 %v789
      %v1046 = vunpack.c.l.bf16 %v790
      %v1047 = vunpack.c.l.bf16 %v791
      %v1048 = vunpack.c.l.bf16 %v792
      %v1049 = vunpack.c.l.bf16 %v793
      %v1050 = vunpack.c.l.bf16 %v794
      %v1051 = vunpack.c.l.bf16 %v795
      %v1052 = vunpack.c.l.bf16 %v796
      %v1053 = vunpack.c.l.bf16 %v797
      %v1054 = vunpack.c.l.bf16 %v798
      %v1055 = vunpack.c.l.bf16 %v799
      %v1056 = vunpack.c.l.bf16 %v800
      %v1057 = vunpack.c.l.bf16 %v801
      %v1058 = vunpack.c.l.bf16 %v802
      %v1059 = vunpack.c.l.bf16 %v803
      %v1060 = vunpack.c.l.bf16 %v804
      %v1061 = vunpack.c.l.bf16 %v805
      %v1062 = vunpack.c.l.bf16 %v806
      %v1063 = vunpack.c.l.bf16 %v807
      %v1064 = vunpack.c.l.bf16 %v808
      %v1065 = vunpack.c.l.bf16 %v809
      %v1066 = vunpack.c.l.bf16 %v810
      %v1067 = vunpack.c.l.bf16 %v811
      %v1068 = vunpack.c.l.bf16 %v812
      %v1069 = vunpack.c.l.bf16 %v813
      %v1070 = vunpack.c.l.bf16 %v814
      %v1071 = vunpack.c.l.bf16 %v815
      %v1072 = vunpack.c.l.bf16 %v816
      %v1073 = vunpack.c.l.bf16 %v817
      %v1074 = vunpack.c.l.bf16 %v818
      %v1075 = vunpack.c.l.bf16 %v819
      %v1076 = vunpack.c.l.bf16 %v820
      %v1077 = vunpack.c.l.bf16 %v821
      %v1078 = vunpack.c.l.bf16 %v822
      %v1079 = vunpack.c.l.bf16 %v823
      %v1080 = vunpack.c.l.bf16 %v824
      %v1081 = vunpack.c.l.bf16 %v825
      %v1082 = vunpack.c.l.bf16 %v826
      %v1083 = vunpack.c.l.bf16 %v827
      %v1084 = vunpack.c.l.bf16 %v828
      %v1085 = vunpack.c.l.bf16 %v829
      %v1086 = vunpack.c.l.bf16 %v830
      %v1087 = vunpack.c.l.bf16 %v831
      %v1088 = vunpack.c.l.bf16 %v832
      %v1089 = vunpack.c.l.bf16 %v833
      %v1090 = vunpack.c.l.bf16 %v834
      %v1091 = vunpack.c.l.bf16 %v835
      %v1092 = vunpack.c.l.bf16 %v836
      %v1093 = vunpack.c.l.bf16 %v837
      %v1094 = vunpack.c.l.bf16 %v838
      %v1095 = vunpack.c.l.bf16 %v839
      %v1096 = vunpack.c.l.bf16 %v840
      %v1097 = vunpack.c.l.bf16 %v841
      %v1098 = vunpack.c.l.bf16 %v842
      %v1099 = vunpack.c.l.bf16 %v843
      %v1100 = vunpack.c.l.bf16 %v844
      %v1101 = vunpack.c.l.bf16 %v845
      %v1102 = vunpack.c.l.bf16 %v846
      %v1103 = vunpack.c.l.bf16 %v847
      %v1104 = vunpack.c.l.bf16 %v848
      %v1105 = vunpack.c.l.bf16 %v849
      %v1106 = vunpack.c.l.bf16 %v850
      %v1107 = vunpack.c.l.bf16 %v851
      %v1108 = vunpack.c.l.bf16 %v852
      %v1109 = vunpack.c.l.bf16 %v853
      %v1110 = vunpack.c.l.bf16 %v854
      %v1111 = vld [vmem:[%s3] sm:$0xff]
      %v1112 = vld [vmem:[%s3 + $0x8] sm:$0xf]
      %v1113 = vld [vmem:[%s3 + $0xc] sm:$0xff]
      %v1114 = vld [vmem:[%s3 + $0x14] sm:$0xf]
      %v1115 = vld [vmem:[%s3 + $0x18] sm:$0xff]
      %v1116 = vld [vmem:[%s3 + $0x20] sm:$0xf]
      %v1117 = vld [vmem:[%s3 + $0x24] sm:$0xff]
      %v1118 = vld [vmem:[%s3 + $0x2c] sm:$0xf]
      %v1119 = vld [vmem:[%s4] sm:$0xff]
      %v1120 = vld [vmem:[%s5] sm:$0xf]
      %v1121 = vld [vmem:[%s6] sm:$0xf]
      %v1122 = vld [vmem:[%s6 + $0x4] sm:$0xf]
      %v1123 = vld [vmem:[%s6 + $0x8] sm:$0xf]
      %v1124 = vld [vmem:[%s6 + $0xc] sm:$0xf]
      %v1125 = vld [vmem:[%s6 + $0x10] sm:$0xf]
      %v1126 = vld [vmem:[%s6 + $0x14] sm:$0xf]
      %v1127 = vld [vmem:[%s6 + $0x18] sm:$0xf]
      %v1128 = vld [vmem:[%s6 + $0x1c] sm:$0xf]
      %v1129 = vld [vmem:[%s6 + $0x20] sm:$0xf]
      %v1130 = vld [vmem:[%s6 + $0x24] sm:$0xf]
      %v1131 = vld [vmem:[%s6 + $0x28] sm:$0xf]
      %v1132 = vld [vmem:[%s6 + $0x2c] sm:$0xf]
      %v1133 = vld [vmem:[%s6 + $0x30] sm:$0xf]
      %v1134 = vld [vmem:[%s6 + $0x34] sm:$0xf]
      %v1135 = vld [vmem:[%s6 + $0x38] sm:$0xf]
      %v1136 = vld [vmem:[%s6 + $0x3c] sm:$0xf]
      %v1153 = vunpack.c.l.b16 %v327
      %v1154 = vunpack.c.l.b16 %v328
      %v1155 = vunpack.c.l.b16 %v329
      %v1156 = vunpack.c.l.b16 %v330
      %v1157 = vunpack.c.l.b16 %v331
      %v1158 = vunpack.c.l.b16 %v332
      %v1159 = vunpack.c.l.b16 %v333
      %v1160 = vunpack.c.l.b16 %v334
      %v1161 = vunpack.c.l.b16 %v335
      %v1162 = vunpack.c.l.b16 %v336
      %v1163 = vunpack.c.l.b16 %v337
      %v1164 = vunpack.c.l.b16 %v338
      %v1165 = vunpack.c.l.b16 %v339
      %v1166 = vunpack.c.l.b16 %v340
      %v1167 = vunpack.c.l.b16 %v341
      %v1168 = vunpack.c.l.b16 %v342
      %v1169 = vpack.c.b16 %v1154, %v1153
      %v1170 = vpack.c.b16 %v1156, %v1155
      %v1171 = vpack.c.b16 %v1158, %v1157
      %v1172 = vpack.c.b16 %v1160, %v1159
      %v1173 = vpack.c.b16 %v1162, %v1161
      %v1174 = vpack.c.b16 %v1164, %v1163
      %v1175 = vpack.c.b16 %v1166, %v1165
      %v1176 = vpack.c.b16 %v1168, %v1167
      %v1185 = vunpack.c.l.b16 %v1111
      %v1186 = vunpack.c.h.b16 %v1111
      %v1187 = vunpack.c.l.b16 %v1112
      %v1188 = vunpack.c.l.b16 %v1113
      %v1189 = vunpack.c.h.b16 %v1113
      %v1190 = vunpack.c.l.b16 %v1114
      %v1191 = vunpack.c.l.b16 %v1115
      %v1192 = vunpack.c.h.b16 %v1115
      %v1193 = vunpack.c.l.b16 %v1116
      %v1194 = vunpack.c.l.b16 %v1117
      %v1195 = vunpack.c.h.b16 %v1117
      %v1196 = vunpack.c.l.b16 %v1118
      %v1197 = vpack.c.b16 %v1188, %v1185
      %v1198 = vpack.c.b16 %v1189, %v1186
      %v1199 = vpack.c.b16 %v1190, %v1187
      %v1200 = vpack.c.b16 %v1194, %v1191
      %v1201 = vpack.c.b16 %v1195, %v1192
      %v1202 = vpack.c.b16 %v1196, %v1193
      %vm1209 = vcmask 261120
      %v1211 = vsel %vm1209, %v1169, 0
      %v1214 = vsel %vm1209, %v1170, 0
      %v1217 = vsel %vm1209, %v1171, 0
      %v1220 = vsel %vm1209, %v1172, 0
      %v1223 = vsel %vm1209, %v1173, 0
      %v1226 = vsel %vm1209, %v1174, 0
      %v1229 = vsel %vm1209, %v1175, 0
      %v1232 = vsel %vm1209, %v1176, 0
      %1234 = vmatpush.bf16.msra.mxu0 0
      %1235 = vmatpush.bf16.msra.mxu0 0
      %1236 = vmatpush.bf16.msra.mxu0 0
      %1237 = vmatpush.bf16.msra.mxu0 0
      %1238 = vmatpush.bf16.msra.mxu0 0
      %1239 = vmatpush.bf16.msra.mxu0 0
      %1240 = vmatpush.bf16.msra.mxu0 %v1200
      %1241 = vmatpush.bf16.msra.mxu0 %v1197
      %1242 = vmatmul.bf16.gmra.mxu0 %v1211
      %v1243 = vpop.f32.mrf.mxu0
      %v1244 = vadd.f32 0.0, %v1243
      %v1245 = vpop.f32.mrf.mxu0
      %v1246 = vadd.f32 0.0, %v1245
      %1247 = vmatmul.bf16.gmra.mxu0 %v1214
      %v1248 = vpop.f32.mrf.mxu0
      %v1249 = vadd.f32 0.0, %v1248
      %v1250 = vpop.f32.mrf.mxu0
      %v1251 = vadd.f32 0.0, %v1250
      %1252 = vmatmul.bf16.gmra.mxu0 %v1217
      %v1253 = vpop.f32.mrf.mxu0
      %v1254 = vadd.f32 0.0, %v1253
      %v1255 = vpop.f32.mrf.mxu0
      %v1256 = vadd.f32 0.0, %v1255
      %1257 = vmatmul.bf16.gmra.mxu0 %v1220
      %v1258 = vpop.f32.mrf.mxu0
      %v1259 = vadd.f32 0.0, %v1258
      %v1260 = vpop.f32.mrf.mxu0
      %v1261 = vadd.f32 0.0, %v1260
      %1262 = vmatmul.bf16.gmra.mxu0 %v1223
      %v1263 = vpop.f32.mrf.mxu0
      %v1264 = vadd.f32 0.0, %v1263
      %v1265 = vpop.f32.mrf.mxu0
      %v1266 = vadd.f32 0.0, %v1265
      %1267 = vmatmul.bf16.gmra.mxu0 %v1226
      %v1268 = vpop.f32.mrf.mxu0
      %v1269 = vadd.f32 0.0, %v1268
      %v1270 = vpop.f32.mrf.mxu0
      %v1271 = vadd.f32 0.0, %v1270
      %1272 = vmatmul.bf16.gmra.mxu0 %v1229
      %v1273 = vpop.f32.mrf.mxu0
      %v1274 = vadd.f32 0.0, %v1273
      %v1275 = vpop.f32.mrf.mxu0
      %v1276 = vadd.f32 0.0, %v1275
      %1277 = vmatmul.bf16.gmra.mxu0 %v1232
      %v1278 = vpop.f32.mrf.mxu0
      %v1279 = vadd.f32 0.0, %v1278
      %v1280 = vpop.f32.mrf.mxu0
      %v1281 = vadd.f32 0.0, %v1280
      %1282 = vdwg.mxu0
      %1283 = vmatpush.bf16.msra.mxu0 0
      %1284 = vmatpush.bf16.msra.mxu0 0
      %1285 = vmatpush.bf16.msra.mxu0 0
      %1286 = vmatpush.bf16.msra.mxu0 0
      %1287 = vmatpush.bf16.msra.mxu0 0
      %1288 = vmatpush.bf16.msra.mxu0 0
      %1289 = vmatpush.bf16.msra.mxu0 %v1201
      %1290 = vmatpush.bf16.msra.mxu0 %v1198
      %1291 = vmatmul.bf16.gmra.mxu0 %v1211
      %v1292 = vpop.f32.mrf.mxu0
      %v1293 = vadd.f32 0.0, %v1292
      %v1294 = vpop.f32.mrf.mxu0
      %v1295 = vadd.f32 0.0, %v1294
      %1296 = vmatmul.bf16.gmra.mxu0 %v1214
      %v1297 = vpop.f32.mrf.mxu0
      %v1298 = vadd.f32 0.0, %v1297
      %v1299 = vpop.f32.mrf.mxu0
      %v1300 = vadd.f32 0.0, %v1299
      %1301 = vmatmul.bf16.gmra.mxu0 %v1217
      %v1302 = vpop.f32.mrf.mxu0
      %v1303 = vadd.f32 0.0, %v1302
      %v1304 = vpop.f32.mrf.mxu0
      %v1305 = vadd.f32 0.0, %v1304
      %1306 = vmatmul.bf16.gmra.mxu0 %v1220
      %v1307 = vpop.f32.mrf.mxu0
      %v1308 = vadd.f32 0.0, %v1307
      %v1309 = vpop.f32.mrf.mxu0
      %v1310 = vadd.f32 0.0, %v1309
      %1311 = vmatmul.bf16.gmra.mxu0 %v1223
      %v1312 = vpop.f32.mrf.mxu0
      %v1313 = vadd.f32 0.0, %v1312
      %v1314 = vpop.f32.mrf.mxu0
      %v1315 = vadd.f32 0.0, %v1314
      %1316 = vmatmul.bf16.gmra.mxu0 %v1226
      %v1317 = vpop.f32.mrf.mxu0
      %v1318 = vadd.f32 0.0, %v1317
      %v1319 = vpop.f32.mrf.mxu0
      %v1320 = vadd.f32 0.0, %v1319
      %1321 = vmatmul.bf16.gmra.mxu0 %v1229
      %v1322 = vpop.f32.mrf.mxu0
      %v1323 = vadd.f32 0.0, %v1322
      %v1324 = vpop.f32.mrf.mxu0
      %v1325 = vadd.f32 0.0, %v1324
      %1326 = vmatmul.bf16.gmra.mxu0 %v1232
      %v1327 = vpop.f32.mrf.mxu0
      %v1328 = vadd.f32 0.0, %v1327
      %v1329 = vpop.f32.mrf.mxu0
      %v1330 = vadd.f32 0.0, %v1329
      %1331 = vdwg.mxu0
      %1332 = vmatpush.bf16.msra.mxu0 0
      %1333 = vmatpush.bf16.msra.mxu0 0
      %1334 = vmatpush.bf16.msra.mxu0 0
      %1335 = vmatpush.bf16.msra.mxu0 0
      %1336 = vmatpush.bf16.msra.mxu0 0
      %1337 = vmatpush.bf16.msra.mxu0 0
      %1338 = vmatpush.bf16.msra.mxu0 %v1202
      %1339 = vmatpush.bf16.msra.mxu0 %v1199
      %1340 = vmatmul.bf16.gmra.mxu0 %v1211
      %v1341 = vpop.f32.mrf.mxu0
      %v1342 = vadd.f32 0.0, %v1341
      %v1343 = vpop.f32.mrf.mxu0
      %v1344 = vadd.f32 0.0, %v1343
      %1345 = vmatmul.bf16.gmra.mxu0 %v1214
      %v1346 = vpop.f32.mrf.mxu0
      %v1347 = vadd.f32 0.0, %v1346
      %v1348 = vpop.f32.mrf.mxu0
      %v1349 = vadd.f32 0.0, %v1348
      %1350 = vmatmul.bf16.gmra.mxu0 %v1217
      %v1351 = vpop.f32.mrf.mxu0
      %v1352 = vadd.f32 0.0, %v1351
      %v1353 = vpop.f32.mrf.mxu0
      %v1354 = vadd.f32 0.0, %v1353
      %1355 = vmatmul.bf16.gmra.mxu0 %v1220
      %v1356 = vpop.f32.mrf.mxu0
      %v1357 = vadd.f32 0.0, %v1356
      %v1358 = vpop.f32.mrf.mxu0
      %v1359 = vadd.f32 0.0, %v1358
      %1360 = vmatmul.bf16.gmra.mxu0 %v1223
      %v1361 = vpop.f32.mrf.mxu0
      %v1362 = vadd.f32 0.0, %v1361
      %v1363 = vpop.f32.mrf.mxu0
      %v1364 = vadd.f32 0.0, %v1363
      %1365 = vmatmul.bf16.gmra.mxu0 %v1226
      %v1366 = vpop.f32.mrf.mxu0
      %v1367 = vadd.f32 0.0, %v1366
      %v1368 = vpop.f32.mrf.mxu0
      %v1369 = vadd.f32 0.0, %v1368
      %1370 = vmatmul.bf16.gmra.mxu0 %v1229
      %v1371 = vpop.f32.mrf.mxu0
      %v1372 = vadd.f32 0.0, %v1371
      %v1373 = vpop.f32.mrf.mxu0
      %v1374 = vadd.f32 0.0, %v1373
      %1375 = vmatmul.bf16.gmra.mxu0 %v1232
      %v1376 = vpop.f32.mrf.mxu0
      %v1377 = vadd.f32 0.0, %v1376
      %v1378 = vpop.f32.mrf.mxu0
      %v1379 = vadd.f32 0.0, %v1378
      %1380 = vdwg.mxu0
      %v1382 = vperm.slane %v1120, 0
      %v1383 = vperm.slane %v1120, 2
      %v1386 = vperm.slane %v1382, 0
      %v1387 = vperm.slane %v1383, 0
      %v1644 = vunpack.c.l.b16 %v343
      %v1645 = vunpack.c.l.b16 %v344
      %v1646 = vunpack.c.l.b16 %v345
      %v1647 = vunpack.c.l.b16 %v346
      %v1648 = vunpack.c.l.b16 %v347
      %v1649 = vunpack.c.l.b16 %v348
      %v1650 = vunpack.c.l.b16 %v349
      %v1651 = vunpack.c.l.b16 %v350
      %v1652 = vunpack.c.l.b16 %v351
      %v1653 = vunpack.c.l.b16 %v352
      %v1654 = vunpack.c.l.b16 %v353
      %v1655 = vunpack.c.l.b16 %v354
      %v1656 = vunpack.c.l.b16 %v355
      %v1657 = vunpack.c.l.b16 %v356
      %v1658 = vunpack.c.l.b16 %v357
      %v1659 = vunpack.c.l.b16 %v358
      %v1660 = vunpack.c.l.b16 %v359
      %v1661 = vunpack.c.l.b16 %v360
      %v1662 = vunpack.c.l.b16 %v361
      %v1663 = vunpack.c.l.b16 %v362
      %v1664 = vunpack.c.l.b16 %v363
      %v1665 = vunpack.c.l.b16 %v364
      %v1666 = vunpack.c.l.b16 %v365
      %v1667 = vunpack.c.l.b16 %v366
      %v1668 = vunpack.c.l.b16 %v367
      %v1669 = vunpack.c.l.b16 %v368
      %v1670 = vunpack.c.l.b16 %v369
      %v1671 = vunpack.c.l.b16 %v370
      %v1672 = vunpack.c.l.b16 %v371
      %v1673 = vunpack.c.l.b16 %v372
      %v1674 = vunpack.c.l.b16 %v373
      %v1675 = vunpack.c.l.b16 %v374
      %v1676 = vunpack.c.l.b16 %v375
      %v1677 = vunpack.c.l.b16 %v376
      %v1678 = vunpack.c.l.b16 %v377
      %v1679 = vunpack.c.l.b16 %v378
      %v1680 = vunpack.c.l.b16 %v379
      %v1681 = vunpack.c.l.b16 %v380
      %v1682 = vunpack.c.l.b16 %v381
      %v1683 = vunpack.c.l.b16 %v382
      %v1684 = vunpack.c.l.b16 %v383
      %v1685 = vunpack.c.l.b16 %v384
      %v1686 = vunpack.c.l.b16 %v385
      %v1687 = vunpack.c.l.b16 %v386
      %v1688 = vunpack.c.l.b16 %v387
      %v1689 = vunpack.c.l.b16 %v388
      %v1690 = vunpack.c.l.b16 %v389
      %v1691 = vunpack.c.l.b16 %v390
      %v1692 = vunpack.c.l.b16 %v391
      %v1693 = vunpack.c.l.b16 %v392
      %v1694 = vunpack.c.l.b16 %v393
      %v1695 = vunpack.c.l.b16 %v394
      %v1696 = vunpack.c.l.b16 %v395
      %v1697 = vunpack.c.l.b16 %v396
      %v1698 = vunpack.c.l.b16 %v397
      %v1699 = vunpack.c.l.b16 %v398
      %v1700 = vunpack.c.l.b16 %v399
      %v1701 = vunpack.c.l.b16 %v400
      %v1702 = vunpack.c.l.b16 %v401
      %v1703 = vunpack.c.l.b16 %v402
      %v1704 = vunpack.c.l.b16 %v403
      %v1705 = vunpack.c.l.b16 %v404
      %v1706 = vunpack.c.l.b16 %v405
      %v1707 = vunpack.c.l.b16 %v406
      %v1708 = vunpack.c.l.b16 %v407
      %v1709 = vunpack.c.l.b16 %v408
      %v1710 = vunpack.c.l.b16 %v409
      %v1711 = vunpack.c.l.b16 %v410
      %v1712 = vunpack.c.l.b16 %v411
      %v1713 = vunpack.c.l.b16 %v412
      %v1714 = vunpack.c.l.b16 %v413
      %v1715 = vunpack.c.l.b16 %v414
      %v1716 = vunpack.c.l.b16 %v415
      %v1717 = vunpack.c.l.b16 %v416
      %v1718 = vunpack.c.l.b16 %v417
      %v1719 = vunpack.c.l.b16 %v418
      %v1720 = vunpack.c.l.b16 %v419
      %v1721 = vunpack.c.l.b16 %v420
      %v1722 = vunpack.c.l.b16 %v421
      %v1723 = vunpack.c.l.b16 %v422
      %v1724 = vunpack.c.l.b16 %v423
      %v1725 = vunpack.c.l.b16 %v424
      %v1726 = vunpack.c.l.b16 %v425
      %v1727 = vunpack.c.l.b16 %v426
      %v1728 = vunpack.c.l.b16 %v427
      %v1729 = vunpack.c.l.b16 %v428
      %v1730 = vunpack.c.l.b16 %v429
      %v1731 = vunpack.c.l.b16 %v430
      %v1732 = vunpack.c.l.b16 %v431
      %v1733 = vunpack.c.l.b16 %v432
      %v1734 = vunpack.c.l.b16 %v433
      %v1735 = vunpack.c.l.b16 %v434
      %v1736 = vunpack.c.l.b16 %v435
      %v1737 = vunpack.c.l.b16 %v436
      %v1738 = vunpack.c.l.b16 %v437
      %v1739 = vunpack.c.l.b16 %v438
      %v1740 = vunpack.c.l.b16 %v439
      %v1741 = vunpack.c.l.b16 %v440
      %v1742 = vunpack.c.l.b16 %v441
      %v1743 = vunpack.c.l.b16 %v442
      %v1744 = vunpack.c.l.b16 %v443
      %v1745 = vunpack.c.l.b16 %v444
      %v1746 = vunpack.c.l.b16 %v445
      %v1747 = vunpack.c.l.b16 %v446
      %v1748 = vunpack.c.l.b16 %v447
      %v1749 = vunpack.c.l.b16 %v448
      %v1750 = vunpack.c.l.b16 %v449
      %v1751 = vunpack.c.l.b16 %v450
      %v1752 = vunpack.c.l.b16 %v451
      %v1753 = vunpack.c.l.b16 %v452
      %v1754 = vunpack.c.l.b16 %v453
      %v1755 = vunpack.c.l.b16 %v454
      %v1756 = vunpack.c.l.b16 %v455
      %v1757 = vunpack.c.l.b16 %v456
      %v1758 = vunpack.c.l.b16 %v457
      %v1759 = vunpack.c.l.b16 %v458
      %v1760 = vunpack.c.l.b16 %v459
      %v1761 = vunpack.c.l.b16 %v460
      %v1762 = vunpack.c.l.b16 %v461
      %v1763 = vunpack.c.l.b16 %v462
      %v1764 = vunpack.c.l.b16 %v463
      %v1765 = vunpack.c.l.b16 %v464
      %v1766 = vunpack.c.l.b16 %v465
      %v1767 = vunpack.c.l.b16 %v466
      %v1768 = vunpack.c.l.b16 %v467
      %v1769 = vunpack.c.l.b16 %v468
      %v1770 = vunpack.c.l.b16 %v469
      %v1771 = vunpack.c.l.b16 %v470
      %v1772 = vunpack.c.l.b16 %v471
      %v1773 = vunpack.c.l.b16 %v472
      %v1774 = vunpack.c.l.b16 %v473
      %v1775 = vunpack.c.l.b16 %v474
      %v1776 = vunpack.c.l.b16 %v475
      %v1777 = vunpack.c.l.b16 %v476
      %v1778 = vunpack.c.l.b16 %v477
      %v1779 = vunpack.c.l.b16 %v478
      %v1780 = vunpack.c.l.b16 %v479
      %v1781 = vunpack.c.l.b16 %v480
      %v1782 = vunpack.c.l.b16 %v481
      %v1783 = vunpack.c.l.b16 %v482
      %v1784 = vunpack.c.l.b16 %v483
      %v1785 = vunpack.c.l.b16 %v484
      %v1786 = vunpack.c.l.b16 %v485
      %v1787 = vunpack.c.l.b16 %v486
      %v1788 = vunpack.c.l.b16 %v487
      %v1789 = vunpack.c.l.b16 %v488
      %v1790 = vunpack.c.l.b16 %v489
      %v1791 = vunpack.c.l.b16 %v490
      %v1792 = vunpack.c.l.b16 %v491
      %v1793 = vunpack.c.l.b16 %v492
      %v1794 = vunpack.c.l.b16 %v493
      %v1795 = vunpack.c.l.b16 %v494
      %v1796 = vunpack.c.l.b16 %v495
      %v1797 = vunpack.c.l.b16 %v496
      %v1798 = vunpack.c.l.b16 %v497
      %v1799 = vunpack.c.l.b16 %v498
      %v1800 = vunpack.c.l.b16 %v499
      %v1801 = vunpack.c.l.b16 %v500
      %v1802 = vunpack.c.l.b16 %v501
      %v1803 = vunpack.c.l.b16 %v502
      %v1804 = vunpack.c.l.b16 %v503
      %v1805 = vunpack.c.l.b16 %v504
      %v1806 = vunpack.c.l.b16 %v505
      %v1807 = vunpack.c.l.b16 %v506
      %v1808 = vunpack.c.l.b16 %v507
      %v1809 = vunpack.c.l.b16 %v508
      %v1810 = vunpack.c.l.b16 %v509
      %v1811 = vunpack.c.l.b16 %v510
      %v1812 = vunpack.c.l.b16 %v511
      %v1813 = vunpack.c.l.b16 %v512
      %v1814 = vunpack.c.l.b16 %v513
      %v1815 = vunpack.c.l.b16 %v514
      %v1816 = vunpack.c.l.b16 %v515
      %v1817 = vunpack.c.l.b16 %v516
      %v1818 = vunpack.c.l.b16 %v517
      %v1819 = vunpack.c.l.b16 %v518
      %v1820 = vunpack.c.l.b16 %v519
      %v1821 = vunpack.c.l.b16 %v520
      %v1822 = vunpack.c.l.b16 %v521
      %v1823 = vunpack.c.l.b16 %v522
      %v1824 = vunpack.c.l.b16 %v523
      %v1825 = vunpack.c.l.b16 %v524
      %v1826 = vunpack.c.l.b16 %v525
      %v1827 = vunpack.c.l.b16 %v526
      %v1828 = vunpack.c.l.b16 %v527
      %v1829 = vunpack.c.l.b16 %v528
      %v1830 = vunpack.c.l.b16 %v529
      %v1831 = vunpack.c.l.b16 %v530
      %v1832 = vunpack.c.l.b16 %v531
      %v1833 = vunpack.c.l.b16 %v532
      %v1834 = vunpack.c.l.b16 %v533
      %v1835 = vunpack.c.l.b16 %v534
      %v1836 = vunpack.c.l.b16 %v535
      %v1837 = vunpack.c.l.b16 %v536
      %v1838 = vunpack.c.l.b16 %v537
      %v1839 = vunpack.c.l.b16 %v538
      %v1840 = vunpack.c.l.b16 %v539
      %v1841 = vunpack.c.l.b16 %v540
      %v1842 = vunpack.c.l.b16 %v541
      %v1843 = vunpack.c.l.b16 %v542
      %v1844 = vunpack.c.l.b16 %v543
      %v1845 = vunpack.c.l.b16 %v544
      %v1846 = vunpack.c.l.b16 %v545
      %v1847 = vunpack.c.l.b16 %v546
      %v1848 = vunpack.c.l.b16 %v547
      %v1849 = vunpack.c.l.b16 %v548
      %v1850 = vunpack.c.l.b16 %v549
      %v1851 = vunpack.c.l.b16 %v550
      %v1852 = vunpack.c.l.b16 %v551
      %v1853 = vunpack.c.l.b16 %v552
      %v1854 = vunpack.c.l.b16 %v553
      %v1855 = vunpack.c.l.b16 %v554
      %v1856 = vunpack.c.l.b16 %v555
      %v1857 = vunpack.c.l.b16 %v556
      %v1858 = vunpack.c.l.b16 %v557
      %v1859 = vunpack.c.l.b16 %v558
      %v1860 = vunpack.c.l.b16 %v559
      %v1861 = vunpack.c.l.b16 %v560
      %v1862 = vunpack.c.l.b16 %v561
      %v1863 = vunpack.c.l.b16 %v562
      %v1864 = vunpack.c.l.b16 %v563
      %v1865 = vunpack.c.l.b16 %v564
      %v1866 = vunpack.c.l.b16 %v565
      %v1867 = vunpack.c.l.b16 %v566
      %v1868 = vunpack.c.l.b16 %v567
      %v1869 = vunpack.c.l.b16 %v568
      %v1870 = vunpack.c.l.b16 %v569
      %v1871 = vunpack.c.l.b16 %v570
      %v1872 = vunpack.c.l.b16 %v571
      %v1873 = vunpack.c.l.b16 %v572
      %v1874 = vunpack.c.l.b16 %v573
      %v1875 = vunpack.c.l.b16 %v574
      %v1876 = vunpack.c.l.b16 %v575
      %v1877 = vunpack.c.l.b16 %v576
      %v1878 = vunpack.c.l.b16 %v577
      %v1879 = vunpack.c.l.b16 %v578
      %v1880 = vunpack.c.l.b16 %v579
      %v1881 = vunpack.c.l.b16 %v580
      %v1882 = vunpack.c.l.b16 %v581
      %v1883 = vunpack.c.l.b16 %v582
      %v1884 = vunpack.c.l.b16 %v583
      %v1885 = vunpack.c.l.b16 %v584
      %v1886 = vunpack.c.l.b16 %v585
      %v1887 = vunpack.c.l.b16 %v586
      %v1888 = vunpack.c.l.b16 %v587
      %v1889 = vunpack.c.l.b16 %v588
      %v1890 = vunpack.c.l.b16 %v589
      %v1891 = vunpack.c.l.b16 %v590
      %v1892 = vunpack.c.l.b16 %v591
      %v1893 = vunpack.c.l.b16 %v592
      %v1894 = vunpack.c.l.b16 %v593
      %v1895 = vunpack.c.l.b16 %v594
      %v1896 = vunpack.c.l.b16 %v595
      %v1897 = vunpack.c.l.b16 %v596
      %v1898 = vunpack.c.l.b16 %v597
      %v1899 = vunpack.c.l.b16 %v598
      %v1900 = vpack.c.b16 %v1645, %v1644
      %v1901 = vpack.c.b16 %v1647, %v1646
      %v1902 = vpack.c.b16 %v1649, %v1648
      %v1903 = vpack.c.b16 %v1651, %v1650
      %v1904 = vpack.c.b16 %v1653, %v1652
      %v1905 = vpack.c.b16 %v1655, %v1654
      %v1906 = vpack.c.b16 %v1657, %v1656
      %v1907 = vpack.c.b16 %v1659, %v1658
      %v1908 = vpack.c.b16 %v1661, %v1660
      %v1909 = vpack.c.b16 %v1663, %v1662
      %v1910 = vpack.c.b16 %v1665, %v1664
      %v1911 = vpack.c.b16 %v1667, %v1666
      %v1912 = vpack.c.b16 %v1669, %v1668
      %v1913 = vpack.c.b16 %v1671, %v1670
      %v1914 = vpack.c.b16 %v1673, %v1672
      %v1915 = vpack.c.b16 %v1675, %v1674
      %v1916 = vpack.c.b16 %v1677, %v1676
      %v1917 = vpack.c.b16 %v1679, %v1678
      %v1918 = vpack.c.b16 %v1681, %v1680
      %v1919 = vpack.c.b16 %v1683, %v1682
      %v1920 = vpack.c.b16 %v1685, %v1684
      %v1921 = vpack.c.b16 %v1687, %v1686
      %v1922 = vpack.c.b16 %v1689, %v1688
      %v1923 = vpack.c.b16 %v1691, %v1690
      %v1924 = vpack.c.b16 %v1693, %v1692
      %v1925 = vpack.c.b16 %v1695, %v1694
      %v1926 = vpack.c.b16 %v1697, %v1696
      %v1927 = vpack.c.b16 %v1699, %v1698
      %v1928 = vpack.c.b16 %v1701, %v1700
      %v1929 = vpack.c.b16 %v1703, %v1702
      %v1930 = vpack.c.b16 %v1705, %v1704
      %v1931 = vpack.c.b16 %v1707, %v1706
      %v1932 = vpack.c.b16 %v1709, %v1708
      %v1933 = vpack.c.b16 %v1711, %v1710
      %v1934 = vpack.c.b16 %v1713, %v1712
      %v1935 = vpack.c.b16 %v1715, %v1714
      %v1936 = vpack.c.b16 %v1717, %v1716
      %v1937 = vpack.c.b16 %v1719, %v1718
      %v1938 = vpack.c.b16 %v1721, %v1720
      %v1939 = vpack.c.b16 %v1723, %v1722
      %v1940 = vpack.c.b16 %v1725, %v1724
      %v1941 = vpack.c.b16 %v1727, %v1726
      %v1942 = vpack.c.b16 %v1729, %v1728
      %v1943 = vpack.c.b16 %v1731, %v1730
      %v1944 = vpack.c.b16 %v1733, %v1732
      %v1945 = vpack.c.b16 %v1735, %v1734
      %v1946 = vpack.c.b16 %v1737, %v1736
      %v1947 = vpack.c.b16 %v1739, %v1738
      %v1948 = vpack.c.b16 %v1741, %v1740
      %v1949 = vpack.c.b16 %v1743, %v1742
      %v1950 = vpack.c.b16 %v1745, %v1744
      %v1951 = vpack.c.b16 %v1747, %v1746
      %v1952 = vpack.c.b16 %v1749, %v1748
      %v1953 = vpack.c.b16 %v1751, %v1750
      %v1954 = vpack.c.b16 %v1753, %v1752
      %v1955 = vpack.c.b16 %v1755, %v1754
      %v1956 = vpack.c.b16 %v1757, %v1756
      %v1957 = vpack.c.b16 %v1759, %v1758
      %v1958 = vpack.c.b16 %v1761, %v1760
      %v1959 = vpack.c.b16 %v1763, %v1762
      %v1960 = vpack.c.b16 %v1765, %v1764
      %v1961 = vpack.c.b16 %v1767, %v1766
      %v1962 = vpack.c.b16 %v1769, %v1768
      %v1963 = vpack.c.b16 %v1771, %v1770
      %v1964 = vpack.c.b16 %v1773, %v1772
      %v1965 = vpack.c.b16 %v1775, %v1774
      %v1966 = vpack.c.b16 %v1777, %v1776
      %v1967 = vpack.c.b16 %v1779, %v1778
      %v1968 = vpack.c.b16 %v1781, %v1780
      %v1969 = vpack.c.b16 %v1783, %v1782
      %v1970 = vpack.c.b16 %v1785, %v1784
      %v1971 = vpack.c.b16 %v1787, %v1786
      %v1972 = vpack.c.b16 %v1789, %v1788
      %v1973 = vpack.c.b16 %v1791, %v1790
      %v1974 = vpack.c.b16 %v1793, %v1792
      %v1975 = vpack.c.b16 %v1795, %v1794
      %v1976 = vpack.c.b16 %v1797, %v1796
      %v1977 = vpack.c.b16 %v1799, %v1798
      %v1978 = vpack.c.b16 %v1801, %v1800
      %v1979 = vpack.c.b16 %v1803, %v1802
      %v1980 = vpack.c.b16 %v1805, %v1804
      %v1981 = vpack.c.b16 %v1807, %v1806
      %v1982 = vpack.c.b16 %v1809, %v1808
      %v1983 = vpack.c.b16 %v1811, %v1810
      %v1984 = vpack.c.b16 %v1813, %v1812
      %v1985 = vpack.c.b16 %v1815, %v1814
      %v1986 = vpack.c.b16 %v1817, %v1816
      %v1987 = vpack.c.b16 %v1819, %v1818
      %v1988 = vpack.c.b16 %v1821, %v1820
      %v1989 = vpack.c.b16 %v1823, %v1822
      %v1990 = vpack.c.b16 %v1825, %v1824
      %v1991 = vpack.c.b16 %v1827, %v1826
      %v1992 = vpack.c.b16 %v1829, %v1828
      %v1993 = vpack.c.b16 %v1831, %v1830
      %v1994 = vpack.c.b16 %v1833, %v1832
      %v1995 = vpack.c.b16 %v1835, %v1834
      %v1996 = vpack.c.b16 %v1837, %v1836
      %v1997 = vpack.c.b16 %v1839, %v1838
      %v1998 = vpack.c.b16 %v1841, %v1840
      %v1999 = vpack.c.b16 %v1843, %v1842
      %v2000 = vpack.c.b16 %v1845, %v1844
      %v2001 = vpack.c.b16 %v1847, %v1846
      %v2002 = vpack.c.b16 %v1849, %v1848
      %v2003 = vpack.c.b16 %v1851, %v1850
      %v2004 = vpack.c.b16 %v1853, %v1852
      %v2005 = vpack.c.b16 %v1855, %v1854
      %v2006 = vpack.c.b16 %v1857, %v1856
      %v2007 = vpack.c.b16 %v1859, %v1858
      %v2008 = vpack.c.b16 %v1861, %v1860
      %v2009 = vpack.c.b16 %v1863, %v1862
      %v2010 = vpack.c.b16 %v1865, %v1864
      %v2011 = vpack.c.b16 %v1867, %v1866
      %v2012 = vpack.c.b16 %v1869, %v1868
      %v2013 = vpack.c.b16 %v1871, %v1870
      %v2014 = vpack.c.b16 %v1873, %v1872
      %v2015 = vpack.c.b16 %v1875, %v1874
      %v2016 = vpack.c.b16 %v1877, %v1876
      %v2017 = vpack.c.b16 %v1879, %v1878
      %v2018 = vpack.c.b16 %v1881, %v1880
      %v2019 = vpack.c.b16 %v1883, %v1882
      %v2020 = vpack.c.b16 %v1885, %v1884
      %v2021 = vpack.c.b16 %v1887, %v1886
      %v2022 = vpack.c.b16 %v1889, %v1888
      %v2023 = vpack.c.b16 %v1891, %v1890
      %v2024 = vpack.c.b16 %v1893, %v1892
      %v2025 = vpack.c.b16 %v1895, %v1894
      %v2026 = vpack.c.b16 %v1897, %v1896
      %v2027 = vpack.c.b16 %v1899, %v1898
      %v2029 = vunpack.c.l.b16 %v1119
      %v2030 = vunpack.c.h.b16 %v1119
      %v2031 = vpack.c.b16 %v2029, %v2029
      %v2032 = vpack.c.b16 %v2030, %v2030
      %vm2033 = vcmask 64512
      %v2035 = vsel %vm2033, %v1900, 0
      %v2038 = vsel %vm2033, %v1901, 0
      %v2041 = vsel %vm2033, %v1902, 0
      %v2044 = vsel %vm2033, %v1903, 0
      %v2047 = vsel %vm2033, %v1904, 0
      %v2050 = vsel %vm2033, %v1905, 0
      %v2053 = vsel %vm2033, %v1906, 0
      %v2056 = vsel %vm2033, %v1907, 0
      %v2059 = vsel %vm2033, %v1908, 0
      %v2062 = vsel %vm2033, %v1909, 0
      %v2065 = vsel %vm2033, %v1910, 0
      %v2068 = vsel %vm2033, %v1911, 0
      %v2071 = vsel %vm2033, %v1912, 0
      %v2074 = vsel %vm2033, %v1913, 0
      %v2077 = vsel %vm2033, %v1914, 0
      %v2080 = vsel %vm2033, %v1915, 0
      %v2083 = vsel %vm2033, %v1916, 0
      %v2086 = vsel %vm2033, %v1917, 0
      %v2089 = vsel %vm2033, %v1918, 0
      %v2092 = vsel %vm2033, %v1919, 0
      %v2095 = vsel %vm2033, %v1920, 0
      %v2098 = vsel %vm2033, %v1921, 0
      %v2101 = vsel %vm2033, %v1922, 0
      %v2104 = vsel %vm2033, %v1923, 0
      %v2107 = vsel %vm2033, %v1924, 0
      %v2110 = vsel %vm2033, %v1925, 0
      %v2113 = vsel %vm2033, %v1926, 0
      %v2116 = vsel %vm2033, %v1927, 0
      %v2119 = vsel %vm2033, %v1928, 0
      %v2122 = vsel %vm2033, %v1929, 0
      %v2125 = vsel %vm2033, %v1930, 0
      %v2128 = vsel %vm2033, %v1931, 0
      %v2131 = vsel %vm2033, %v1932, 0
      %v2134 = vsel %vm2033, %v1933, 0
      %v2137 = vsel %vm2033, %v1934, 0
      %v2140 = vsel %vm2033, %v1935, 0
      %v2143 = vsel %vm2033, %v1936, 0
      %v2146 = vsel %vm2033, %v1937, 0
      %v2149 = vsel %vm2033, %v1938, 0
      %v2152 = vsel %vm2033, %v1939, 0
      %v2155 = vsel %vm2033, %v1940, 0
      %v2158 = vsel %vm2033, %v1941, 0
      %v2161 = vsel %vm2033, %v1942, 0
      %v2164 = vsel %vm2033, %v1943, 0
      %v2167 = vsel %vm2033, %v1944, 0
      %v2170 = vsel %vm2033, %v1945, 0
      %v2173 = vsel %vm2033, %v1946, 0
      %v2176 = vsel %vm2033, %v1947, 0
      %v2179 = vsel %vm2033, %v1948, 0
      %v2182 = vsel %vm2033, %v1949, 0
      %v2185 = vsel %vm2033, %v1950, 0
      %v2188 = vsel %vm2033, %v1951, 0
      %v2191 = vsel %vm2033, %v1952, 0
      %v2194 = vsel %vm2033, %v1953, 0
      %v2197 = vsel %vm2033, %v1954, 0
      %v2200 = vsel %vm2033, %v1955, 0
      %v2203 = vsel %vm2033, %v1956, 0
      %v2206 = vsel %vm2033, %v1957, 0
      %v2209 = vsel %vm2033, %v1958, 0
      %v2212 = vsel %vm2033, %v1959, 0
      %v2215 = vsel %vm2033, %v1960, 0
      %v2218 = vsel %vm2033, %v1961, 0
      %v2221 = vsel %vm2033, %v1962, 0
      %v2224 = vsel %vm2033, %v1963, 0
      %v2227 = vsel %vm2033, %v1964, 0
      %v2230 = vsel %vm2033, %v1965, 0
      %v2233 = vsel %vm2033, %v1966, 0
      %v2236 = vsel %vm2033, %v1967, 0
      %v2239 = vsel %vm2033, %v1968, 0
      %v2242 = vsel %vm2033, %v1969, 0
      %v2245 = vsel %vm2033, %v1970, 0
      %v2248 = vsel %vm2033, %v1971, 0
      %v2251 = vsel %vm2033, %v1972, 0
      %v2254 = vsel %vm2033, %v1973, 0
      %v2257 = vsel %vm2033, %v1974, 0
      %v2260 = vsel %vm2033, %v1975, 0
      %v2263 = vsel %vm2033, %v1976, 0
      %v2266 = vsel %vm2033, %v1977, 0
      %v2269 = vsel %vm2033, %v1978, 0
      %v2272 = vsel %vm2033, %v1979, 0
      %v2275 = vsel %vm2033, %v1980, 0
      %v2278 = vsel %vm2033, %v1981, 0
      %v2281 = vsel %vm2033, %v1982, 0
      %v2284 = vsel %vm2033, %v1983, 0
      %v2287 = vsel %vm2033, %v1984, 0
      %v2290 = vsel %vm2033, %v1985, 0
      %v2293 = vsel %vm2033, %v1986, 0
      %v2296 = vsel %vm2033, %v1987, 0
      %v2299 = vsel %vm2033, %v1988, 0
      %v2302 = vsel %vm2033, %v1989, 0
      %v2305 = vsel %vm2033, %v1990, 0
      %v2308 = vsel %vm2033, %v1991, 0
      %v2311 = vsel %vm2033, %v1992, 0
      %v2314 = vsel %vm2033, %v1993, 0
      %v2317 = vsel %vm2033, %v1994, 0
      %v2320 = vsel %vm2033, %v1995, 0
      %v2323 = vsel %vm2033, %v1996, 0
      %v2326 = vsel %vm2033, %v1997, 0
      %v2329 = vsel %vm2033, %v1998, 0
      %v2332 = vsel %vm2033, %v1999, 0
      %v2335 = vsel %vm2033, %v2000, 0
      %v2338 = vsel %vm2033, %v2001, 0
      %v2341 = vsel %vm2033, %v2002, 0
      %v2344 = vsel %vm2033, %v2003, 0
      %v2347 = vsel %vm2033, %v2004, 0
      %v2350 = vsel %vm2033, %v2005, 0
      %v2353 = vsel %vm2033, %v2006, 0
      %v2356 = vsel %vm2033, %v2007, 0
      %v2359 = vsel %vm2033, %v2008, 0
      %v2362 = vsel %vm2033, %v2009, 0
      %v2365 = vsel %vm2033, %v2010, 0
      %v2368 = vsel %vm2033, %v2011, 0
      %v2371 = vsel %vm2033, %v2012, 0
      %v2374 = vsel %vm2033, %v2013, 0
      %v2377 = vsel %vm2033, %v2014, 0
      %v2380 = vsel %vm2033, %v2015, 0
      %v2383 = vsel %vm2033, %v2016, 0
      %v2386 = vsel %vm2033, %v2017, 0
      %v2389 = vsel %vm2033, %v2018, 0
      %v2392 = vsel %vm2033, %v2019, 0
      %v2395 = vsel %vm2033, %v2020, 0
      %v2398 = vsel %vm2033, %v2021, 0
      %v2401 = vsel %vm2033, %v2022, 0
      %v2404 = vsel %vm2033, %v2023, 0
      %v2407 = vsel %vm2033, %v2024, 0
      %v2410 = vsel %vm2033, %v2025, 0
      %v2413 = vsel %vm2033, %v2026, 0
      %v2416 = vsel %vm2033, %v2027, 0
      %vm2418 = vcmask 1043456
      %v2420 = vsel %vm2418, %v2031, 0
      %v2423 = vsel %vm2418, %v2032, 0
      %2425 = vmatpush.bf16.msra.mxu0 0
      %2426 = vmatpush.bf16.msra.mxu0 0
      %2427 = vmatpush.bf16.msra.mxu0 0
      %2428 = vmatpush.bf16.msra.mxu0 0
      %2429 = vmatpush.bf16.msra.mxu0 0
      %2430 = vmatpush.bf16.msra.mxu0 0
      %2431 = vmatpush.bf16.msra.mxu0 0
      %2432 = vmatpush.bf16.msra.mxu0 %v2420
      %2433 = vmatmul.bf16.gmra.mxu0 %v2035
      %v2434 = vpop.f32.mrf.mxu0
      %v2435 = vadd.f32 %v1386, %v2434
      %v2436 = vpop.f32.mrf.mxu0
      %v2437 = vadd.f32 %v1386, %v2436
      %2438 = vmatmul.bf16.gmra.mxu0 %v2038
      %v2439 = vpop.f32.mrf.mxu0
      %v2440 = vadd.f32 %v1386, %v2439
      %v2441 = vpop.f32.mrf.mxu0
      %v2442 = vadd.f32 %v1386, %v2441
      %2443 = vmatmul.bf16.gmra.mxu0 %v2041
      %v2444 = vpop.f32.mrf.mxu0
      %v2445 = vadd.f32 %v1386, %v2444
      %v2446 = vpop.f32.mrf.mxu0
      %v2447 = vadd.f32 %v1386, %v2446
      %2448 = vmatmul.bf16.gmra.mxu0 %v2044
      %v2449 = vpop.f32.mrf.mxu0
      %v2450 = vadd.f32 %v1386, %v2449
      %v2451 = vpop.f32.mrf.mxu0
      %v2452 = vadd.f32 %v1386, %v2451
      %2453 = vmatmul.bf16.gmra.mxu0 %v2047
      %v2454 = vpop.f32.mrf.mxu0
      %v2455 = vadd.f32 %v1386, %v2454
      %v2456 = vpop.f32.mrf.mxu0
      %v2457 = vadd.f32 %v1386, %v2456
      %2458 = vmatmul.bf16.gmra.mxu0 %v2050
      %v2459 = vpop.f32.mrf.mxu0
      %v2460 = vadd.f32 %v1386, %v2459
      %v2461 = vpop.f32.mrf.mxu0
      %v2462 = vadd.f32 %v1386, %v2461
      %2463 = vmatmul.bf16.gmra.mxu0 %v2053
      %v2464 = vpop.f32.mrf.mxu0
      %v2465 = vadd.f32 %v1386, %v2464
      %v2466 = vpop.f32.mrf.mxu0
      %v2467 = vadd.f32 %v1386, %v2466
      %2468 = vmatmul.bf16.gmra.mxu0 %v2056
      %v2469 = vpop.f32.mrf.mxu0
      %v2470 = vadd.f32 %v1386, %v2469
      %v2471 = vpop.f32.mrf.mxu0
      %v2472 = vadd.f32 %v1386, %v2471
      %2473 = vmatmul.bf16.gmra.mxu0 %v2059
      %v2474 = vpop.f32.mrf.mxu0
      %v2475 = vadd.f32 %v1386, %v2474
      %v2476 = vpop.f32.mrf.mxu0
      %v2477 = vadd.f32 %v1386, %v2476
      %2478 = vmatmul.bf16.gmra.mxu0 %v2062
      %v2479 = vpop.f32.mrf.mxu0
      %v2480 = vadd.f32 %v1386, %v2479
      %v2481 = vpop.f32.mrf.mxu0
      %v2482 = vadd.f32 %v1386, %v2481
      %2483 = vmatmul.bf16.gmra.mxu0 %v2065
      %v2484 = vpop.f32.mrf.mxu0
      %v2485 = vadd.f32 %v1386, %v2484
      %v2486 = vpop.f32.mrf.mxu0
      %v2487 = vadd.f32 %v1386, %v2486
      %2488 = vmatmul.bf16.gmra.mxu0 %v2068
      %v2489 = vpop.f32.mrf.mxu0
      %v2490 = vadd.f32 %v1386, %v2489
      %v2491 = vpop.f32.mrf.mxu0
      %v2492 = vadd.f32 %v1386, %v2491
      %2493 = vmatmul.bf16.gmra.mxu0 %v2071
      %v2494 = vpop.f32.mrf.mxu0
      %v2495 = vadd.f32 %v1386, %v2494
      %v2496 = vpop.f32.mrf.mxu0
      %v2497 = vadd.f32 %v1386, %v2496
      %2498 = vmatmul.bf16.gmra.mxu0 %v2074
      %v2499 = vpop.f32.mrf.mxu0
      %v2500 = vadd.f32 %v1386, %v2499
      %v2501 = vpop.f32.mrf.mxu0
      %v2502 = vadd.f32 %v1386, %v2501
      %2503 = vmatmul.bf16.gmra.mxu0 %v2077
      %v2504 = vpop.f32.mrf.mxu0
      %v2505 = vadd.f32 %v1386, %v2504
      %v2506 = vpop.f32.mrf.mxu0
      %v2507 = vadd.f32 %v1386, %v2506
      %2508 = vmatmul.bf16.gmra.mxu0 %v2080
      %v2509 = vpop.f32.mrf.mxu0
      %v2510 = vadd.f32 %v1386, %v2509
      %v2511 = vpop.f32.mrf.mxu0
      %v2512 = vadd.f32 %v1386, %v2511
      %2513 = vmatmul.bf16.gmra.mxu0 %v2083
      %v2514 = vpop.f32.mrf.mxu0
      %v2515 = vadd.f32 %v1386, %v2514
      %v2516 = vpop.f32.mrf.mxu0
      %v2517 = vadd.f32 %v1386, %v2516
      %2518 = vmatmul.bf16.gmra.mxu0 %v2086
      %v2519 = vpop.f32.mrf.mxu0
      %v2520 = vadd.f32 %v1386, %v2519
      %v2521 = vpop.f32.mrf.mxu0
      %v2522 = vadd.f32 %v1386, %v2521
      %2523 = vmatmul.bf16.gmra.mxu0 %v2089
      %v2524 = vpop.f32.mrf.mxu0
      %v2525 = vadd.f32 %v1386, %v2524
      %v2526 = vpop.f32.mrf.mxu0
      %v2527 = vadd.f32 %v1386, %v2526
      %2528 = vmatmul.bf16.gmra.mxu0 %v2092
      %v2529 = vpop.f32.mrf.mxu0
      %v2530 = vadd.f32 %v1386, %v2529
      %v2531 = vpop.f32.mrf.mxu0
      %v2532 = vadd.f32 %v1386, %v2531
      %2533 = vmatmul.bf16.gmra.mxu0 %v2095
      %v2534 = vpop.f32.mrf.mxu0
      %v2535 = vadd.f32 %v1386, %v2534
      %v2536 = vpop.f32.mrf.mxu0
      %v2537 = vadd.f32 %v1386, %v2536
      %2538 = vmatmul.bf16.gmra.mxu0 %v2098
      %v2539 = vpop.f32.mrf.mxu0
      %v2540 = vadd.f32 %v1386, %v2539
      %v2541 = vpop.f32.mrf.mxu0
      %v2542 = vadd.f32 %v1386, %v2541
      %2543 = vmatmul.bf16.gmra.mxu0 %v2101
      %v2544 = vpop.f32.mrf.mxu0
      %v2545 = vadd.f32 %v1386, %v2544
      %v2546 = vpop.f32.mrf.mxu0
      %v2547 = vadd.f32 %v1386, %v2546
      %2548 = vmatmul.bf16.gmra.mxu0 %v2104
      %v2549 = vpop.f32.mrf.mxu0
      %v2550 = vadd.f32 %v1386, %v2549
      %v2551 = vpop.f32.mrf.mxu0
      %v2552 = vadd.f32 %v1386, %v2551
      %2553 = vmatmul.bf16.gmra.mxu0 %v2107
      %v2554 = vpop.f32.mrf.mxu0
      %v2555 = vadd.f32 %v1386, %v2554
      %v2556 = vpop.f32.mrf.mxu0
      %v2557 = vadd.f32 %v1386, %v2556
      %2558 = vmatmul.bf16.gmra.mxu0 %v2110
      %v2559 = vpop.f32.mrf.mxu0
      %v2560 = vadd.f32 %v1386, %v2559
      %v2561 = vpop.f32.mrf.mxu0
      %v2562 = vadd.f32 %v1386, %v2561
      %2563 = vmatmul.bf16.gmra.mxu0 %v2113
      %v2564 = vpop.f32.mrf.mxu0
      %v2565 = vadd.f32 %v1386, %v2564
      %v2566 = vpop.f32.mrf.mxu0
      %v2567 = vadd.f32 %v1386, %v2566
      %2568 = vmatmul.bf16.gmra.mxu0 %v2116
      %v2569 = vpop.f32.mrf.mxu0
      %v2570 = vadd.f32 %v1386, %v2569
      %v2571 = vpop.f32.mrf.mxu0
      %v2572 = vadd.f32 %v1386, %v2571
      %2573 = vmatmul.bf16.gmra.mxu0 %v2119
      %v2574 = vpop.f32.mrf.mxu0
      %v2575 = vadd.f32 %v1386, %v2574
      %v2576 = vpop.f32.mrf.mxu0
      %v2577 = vadd.f32 %v1386, %v2576
      %2578 = vmatmul.bf16.gmra.mxu0 %v2122
      %v2579 = vpop.f32.mrf.mxu0
      %v2580 = vadd.f32 %v1386, %v2579
      %v2581 = vpop.f32.mrf.mxu0
      %v2582 = vadd.f32 %v1386, %v2581
      %2583 = vmatmul.bf16.gmra.mxu0 %v2125
      %v2584 = vpop.f32.mrf.mxu0
      %v2585 = vadd.f32 %v1386, %v2584
      %v2586 = vpop.f32.mrf.mxu0
      %v2587 = vadd.f32 %v1386, %v2586
      %2588 = vmatmul.bf16.gmra.mxu0 %v2128
      %v2589 = vpop.f32.mrf.mxu0
      %v2590 = vadd.f32 %v1386, %v2589
      %v2591 = vpop.f32.mrf.mxu0
      %v2592 = vadd.f32 %v1386, %v2591
      %2593 = vmatmul.bf16.gmra.mxu0 %v2131
      %v2594 = vpop.f32.mrf.mxu0
      %v2595 = vadd.f32 %v1386, %v2594
      %v2596 = vpop.f32.mrf.mxu0
      %v2597 = vadd.f32 %v1386, %v2596
      %2598 = vmatmul.bf16.gmra.mxu0 %v2134
      %v2599 = vpop.f32.mrf.mxu0
      %v2600 = vadd.f32 %v1386, %v2599
      %v2601 = vpop.f32.mrf.mxu0
      %v2602 = vadd.f32 %v1386, %v2601
      %2603 = vmatmul.bf16.gmra.mxu0 %v2137
      %v2604 = vpop.f32.mrf.mxu0
      %v2605 = vadd.f32 %v1386, %v2604
      %v2606 = vpop.f32.mrf.mxu0
      %v2607 = vadd.f32 %v1386, %v2606
      %2608 = vmatmul.bf16.gmra.mxu0 %v2140
      %v2609 = vpop.f32.mrf.mxu0
      %v2610 = vadd.f32 %v1386, %v2609
      %v2611 = vpop.f32.mrf.mxu0
      %v2612 = vadd.f32 %v1386, %v2611
      %2613 = vmatmul.bf16.gmra.mxu0 %v2143
      %v2614 = vpop.f32.mrf.mxu0
      %v2615 = vadd.f32 %v1386, %v2614
      %v2616 = vpop.f32.mrf.mxu0
      %v2617 = vadd.f32 %v1386, %v2616
      %2618 = vmatmul.bf16.gmra.mxu0 %v2146
      %v2619 = vpop.f32.mrf.mxu0
      %v2620 = vadd.f32 %v1386, %v2619
      %v2621 = vpop.f32.mrf.mxu0
      %v2622 = vadd.f32 %v1386, %v2621
      %2623 = vmatmul.bf16.gmra.mxu0 %v2149
      %v2624 = vpop.f32.mrf.mxu0
      %v2625 = vadd.f32 %v1386, %v2624
      %v2626 = vpop.f32.mrf.mxu0
      %v2627 = vadd.f32 %v1386, %v2626
      %2628 = vmatmul.bf16.gmra.mxu0 %v2152
      %v2629 = vpop.f32.mrf.mxu0
      %v2630 = vadd.f32 %v1386, %v2629
      %v2631 = vpop.f32.mrf.mxu0
      %v2632 = vadd.f32 %v1386, %v2631
      %2633 = vmatmul.bf16.gmra.mxu0 %v2155
      %v2634 = vpop.f32.mrf.mxu0
      %v2635 = vadd.f32 %v1386, %v2634
      %v2636 = vpop.f32.mrf.mxu0
      %v2637 = vadd.f32 %v1386, %v2636
      %2638 = vmatmul.bf16.gmra.mxu0 %v2158
      %v2639 = vpop.f32.mrf.mxu0
      %v2640 = vadd.f32 %v1386, %v2639
      %v2641 = vpop.f32.mrf.mxu0
      %v2642 = vadd.f32 %v1386, %v2641
      %2643 = vmatmul.bf16.gmra.mxu0 %v2161
      %v2644 = vpop.f32.mrf.mxu0
      %v2645 = vadd.f32 %v1386, %v2644
      %v2646 = vpop.f32.mrf.mxu0
      %v2647 = vadd.f32 %v1386, %v2646
      %2648 = vmatmul.bf16.gmra.mxu0 %v2164
      %v2649 = vpop.f32.mrf.mxu0
      %v2650 = vadd.f32 %v1386, %v2649
      %v2651 = vpop.f32.mrf.mxu0
      %v2652 = vadd.f32 %v1386, %v2651
      %2653 = vmatmul.bf16.gmra.mxu0 %v2167
      %v2654 = vpop.f32.mrf.mxu0
      %v2655 = vadd.f32 %v1386, %v2654
      %v2656 = vpop.f32.mrf.mxu0
      %v2657 = vadd.f32 %v1386, %v2656
      %2658 = vmatmul.bf16.gmra.mxu0 %v2170
      %v2659 = vpop.f32.mrf.mxu0
      %v2660 = vadd.f32 %v1386, %v2659
      %v2661 = vpop.f32.mrf.mxu0
      %v2662 = vadd.f32 %v1386, %v2661
      %2663 = vmatmul.bf16.gmra.mxu0 %v2173
      %v2664 = vpop.f32.mrf.mxu0
      %v2665 = vadd.f32 %v1386, %v2664
      %v2666 = vpop.f32.mrf.mxu0
      %v2667 = vadd.f32 %v1386, %v2666
      %2668 = vmatmul.bf16.gmra.mxu0 %v2176
      %v2669 = vpop.f32.mrf.mxu0
      %v2670 = vadd.f32 %v1386, %v2669
      %v2671 = vpop.f32.mrf.mxu0
      %v2672 = vadd.f32 %v1386, %v2671
      %2673 = vmatmul.bf16.gmra.mxu0 %v2179
      %v2674 = vpop.f32.mrf.mxu0
      %v2675 = vadd.f32 %v1386, %v2674
      %v2676 = vpop.f32.mrf.mxu0
      %v2677 = vadd.f32 %v1386, %v2676
      %2678 = vmatmul.bf16.gmra.mxu0 %v2182
      %v2679 = vpop.f32.mrf.mxu0
      %v2680 = vadd.f32 %v1386, %v2679
      %v2681 = vpop.f32.mrf.mxu0
      %v2682 = vadd.f32 %v1386, %v2681
      %2683 = vmatmul.bf16.gmra.mxu0 %v2185
      %v2684 = vpop.f32.mrf.mxu0
      %v2685 = vadd.f32 %v1386, %v2684
      %v2686 = vpop.f32.mrf.mxu0
      %v2687 = vadd.f32 %v1386, %v2686
      %2688 = vmatmul.bf16.gmra.mxu0 %v2188
      %v2689 = vpop.f32.mrf.mxu0
      %v2690 = vadd.f32 %v1386, %v2689
      %v2691 = vpop.f32.mrf.mxu0
      %v2692 = vadd.f32 %v1386, %v2691
      %2693 = vmatmul.bf16.gmra.mxu0 %v2191
      %v2694 = vpop.f32.mrf.mxu0
      %v2695 = vadd.f32 %v1386, %v2694
      %v2696 = vpop.f32.mrf.mxu0
      %v2697 = vadd.f32 %v1386, %v2696
      %2698 = vmatmul.bf16.gmra.mxu0 %v2194
      %v2699 = vpop.f32.mrf.mxu0
      %v2700 = vadd.f32 %v1386, %v2699
      %v2701 = vpop.f32.mrf.mxu0
      %v2702 = vadd.f32 %v1386, %v2701
      %2703 = vmatmul.bf16.gmra.mxu0 %v2197
      %v2704 = vpop.f32.mrf.mxu0
      %v2705 = vadd.f32 %v1386, %v2704
      %v2706 = vpop.f32.mrf.mxu0
      %v2707 = vadd.f32 %v1386, %v2706
      %2708 = vmatmul.bf16.gmra.mxu0 %v2200
      %v2709 = vpop.f32.mrf.mxu0
      %v2710 = vadd.f32 %v1386, %v2709
      %v2711 = vpop.f32.mrf.mxu0
      %v2712 = vadd.f32 %v1386, %v2711
      %2713 = vmatmul.bf16.gmra.mxu0 %v2203
      %v2714 = vpop.f32.mrf.mxu0
      %v2715 = vadd.f32 %v1386, %v2714
      %v2716 = vpop.f32.mrf.mxu0
      %v2717 = vadd.f32 %v1386, %v2716
      %2718 = vmatmul.bf16.gmra.mxu0 %v2206
      %v2719 = vpop.f32.mrf.mxu0
      %v2720 = vadd.f32 %v1386, %v2719
      %v2721 = vpop.f32.mrf.mxu0
      %v2722 = vadd.f32 %v1386, %v2721
      %2723 = vmatmul.bf16.gmra.mxu0 %v2209
      %v2724 = vpop.f32.mrf.mxu0
      %v2725 = vadd.f32 %v1386, %v2724
      %v2726 = vpop.f32.mrf.mxu0
      %v2727 = vadd.f32 %v1386, %v2726
      %2728 = vmatmul.bf16.gmra.mxu0 %v2212
      %v2729 = vpop.f32.mrf.mxu0
      %v2730 = vadd.f32 %v1386, %v2729
      %v2731 = vpop.f32.mrf.mxu0
      %v2732 = vadd.f32 %v1386, %v2731
      %2733 = vmatmul.bf16.gmra.mxu0 %v2215
      %v2734 = vpop.f32.mrf.mxu0
      %v2735 = vadd.f32 %v1386, %v2734
      %v2736 = vpop.f32.mrf.mxu0
      %v2737 = vadd.f32 %v1386, %v2736
      %2738 = vmatmul.bf16.gmra.mxu0 %v2218
      %v2739 = vpop.f32.mrf.mxu0
      %v2740 = vadd.f32 %v1386, %v2739
      %v2741 = vpop.f32.mrf.mxu0
      %v2742 = vadd.f32 %v1386, %v2741
      %2743 = vmatmul.bf16.gmra.mxu0 %v2221
      %v2744 = vpop.f32.mrf.mxu0
      %v2745 = vadd.f32 %v1386, %v2744
      %v2746 = vpop.f32.mrf.mxu0
      %v2747 = vadd.f32 %v1386, %v2746
      %2748 = vmatmul.bf16.gmra.mxu0 %v2224
      %v2749 = vpop.f32.mrf.mxu0
      %v2750 = vadd.f32 %v1386, %v2749
      %v2751 = vpop.f32.mrf.mxu0
      %v2752 = vadd.f32 %v1386, %v2751
      %2753 = vmatmul.bf16.gmra.mxu0 %v2227
      %v2754 = vpop.f32.mrf.mxu0
      %v2755 = vadd.f32 %v1386, %v2754
      %v2756 = vpop.f32.mrf.mxu0
      %v2757 = vadd.f32 %v1386, %v2756
      %2758 = vmatmul.bf16.gmra.mxu0 %v2230
      %v2759 = vpop.f32.mrf.mxu0
      %v2760 = vadd.f32 %v1386, %v2759
      %v2761 = vpop.f32.mrf.mxu0
      %v2762 = vadd.f32 %v1386, %v2761
      %2763 = vmatmul.bf16.gmra.mxu0 %v2233
      %v2764 = vpop.f32.mrf.mxu0
      %v2765 = vadd.f32 %v1386, %v2764
      %v2766 = vpop.f32.mrf.mxu0
      %v2767 = vadd.f32 %v1386, %v2766
      %2768 = vmatmul.bf16.gmra.mxu0 %v2236
      %v2769 = vpop.f32.mrf.mxu0
      %v2770 = vadd.f32 %v1386, %v2769
      %v2771 = vpop.f32.mrf.mxu0
      %v2772 = vadd.f32 %v1386, %v2771
      %2773 = vmatmul.bf16.gmra.mxu0 %v2239
      %v2774 = vpop.f32.mrf.mxu0
      %v2775 = vadd.f32 %v1386, %v2774
      %v2776 = vpop.f32.mrf.mxu0
      %v2777 = vadd.f32 %v1386, %v2776
      %2778 = vmatmul.bf16.gmra.mxu0 %v2242
      %v2779 = vpop.f32.mrf.mxu0
      %v2780 = vadd.f32 %v1386, %v2779
      %v2781 = vpop.f32.mrf.mxu0
      %v2782 = vadd.f32 %v1386, %v2781
      %2783 = vmatmul.bf16.gmra.mxu0 %v2245
      %v2784 = vpop.f32.mrf.mxu0
      %v2785 = vadd.f32 %v1386, %v2784
      %v2786 = vpop.f32.mrf.mxu0
      %v2787 = vadd.f32 %v1386, %v2786
      %2788 = vmatmul.bf16.gmra.mxu0 %v2248
      %v2789 = vpop.f32.mrf.mxu0
      %v2790 = vadd.f32 %v1386, %v2789
      %v2791 = vpop.f32.mrf.mxu0
      %v2792 = vadd.f32 %v1386, %v2791
      %2793 = vmatmul.bf16.gmra.mxu0 %v2251
      %v2794 = vpop.f32.mrf.mxu0
      %v2795 = vadd.f32 %v1386, %v2794
      %v2796 = vpop.f32.mrf.mxu0
      %v2797 = vadd.f32 %v1386, %v2796
      %2798 = vmatmul.bf16.gmra.mxu0 %v2254
      %v2799 = vpop.f32.mrf.mxu0
      %v2800 = vadd.f32 %v1386, %v2799
      %v2801 = vpop.f32.mrf.mxu0
      %v2802 = vadd.f32 %v1386, %v2801
      %2803 = vmatmul.bf16.gmra.mxu0 %v2257
      %v2804 = vpop.f32.mrf.mxu0
      %v2805 = vadd.f32 %v1386, %v2804
      %v2806 = vpop.f32.mrf.mxu0
      %v2807 = vadd.f32 %v1386, %v2806
      %2808 = vmatmul.bf16.gmra.mxu0 %v2260
      %v2809 = vpop.f32.mrf.mxu0
      %v2810 = vadd.f32 %v1386, %v2809
      %v2811 = vpop.f32.mrf.mxu0
      %v2812 = vadd.f32 %v1386, %v2811
      %2813 = vmatmul.bf16.gmra.mxu0 %v2263
      %v2814 = vpop.f32.mrf.mxu0
      %v2815 = vadd.f32 %v1386, %v2814
      %v2816 = vpop.f32.mrf.mxu0
      %v2817 = vadd.f32 %v1386, %v2816
      %2818 = vmatmul.bf16.gmra.mxu0 %v2266
      %v2819 = vpop.f32.mrf.mxu0
      %v2820 = vadd.f32 %v1386, %v2819
      %v2821 = vpop.f32.mrf.mxu0
      %v2822 = vadd.f32 %v1386, %v2821
      %2823 = vmatmul.bf16.gmra.mxu0 %v2269
      %v2824 = vpop.f32.mrf.mxu0
      %v2825 = vadd.f32 %v1386, %v2824
      %v2826 = vpop.f32.mrf.mxu0
      %v2827 = vadd.f32 %v1386, %v2826
      %2828 = vmatmul.bf16.gmra.mxu0 %v2272
      %v2829 = vpop.f32.mrf.mxu0
      %v2830 = vadd.f32 %v1386, %v2829
      %v2831 = vpop.f32.mrf.mxu0
      %v2832 = vadd.f32 %v1386, %v2831
      %2833 = vmatmul.bf16.gmra.mxu0 %v2275
      %v2834 = vpop.f32.mrf.mxu0
      %v2835 = vadd.f32 %v1386, %v2834
      %v2836 = vpop.f32.mrf.mxu0
      %v2837 = vadd.f32 %v1386, %v2836
      %2838 = vmatmul.bf16.gmra.mxu0 %v2278
      %v2839 = vpop.f32.mrf.mxu0
      %v2840 = vadd.f32 %v1386, %v2839
      %v2841 = vpop.f32.mrf.mxu0
      %v2842 = vadd.f32 %v1386, %v2841
      %2843 = vmatmul.bf16.gmra.mxu0 %v2281
      %v2844 = vpop.f32.mrf.mxu0
      %v2845 = vadd.f32 %v1386, %v2844
      %v2846 = vpop.f32.mrf.mxu0
      %v2847 = vadd.f32 %v1386, %v2846
      %2848 = vmatmul.bf16.gmra.mxu0 %v2284
      %v2849 = vpop.f32.mrf.mxu0
      %v2850 = vadd.f32 %v1386, %v2849
      %v2851 = vpop.f32.mrf.mxu0
      %v2852 = vadd.f32 %v1386, %v2851
      %2853 = vmatmul.bf16.gmra.mxu0 %v2287
      %v2854 = vpop.f32.mrf.mxu0
      %v2855 = vadd.f32 %v1386, %v2854
      %v2856 = vpop.f32.mrf.mxu0
      %v2857 = vadd.f32 %v1386, %v2856
      %2858 = vmatmul.bf16.gmra.mxu0 %v2290
      %v2859 = vpop.f32.mrf.mxu0
      %v2860 = vadd.f32 %v1386, %v2859
      %v2861 = vpop.f32.mrf.mxu0
      %v2862 = vadd.f32 %v1386, %v2861
      %2863 = vmatmul.bf16.gmra.mxu0 %v2293
      %v2864 = vpop.f32.mrf.mxu0
      %v2865 = vadd.f32 %v1386, %v2864
      %v2866 = vpop.f32.mrf.mxu0
      %v2867 = vadd.f32 %v1386, %v2866
      %2868 = vmatmul.bf16.gmra.mxu0 %v2296
      %v2869 = vpop.f32.mrf.mxu0
      %v2870 = vadd.f32 %v1386, %v2869
      %v2871 = vpop.f32.mrf.mxu0
      %v2872 = vadd.f32 %v1386, %v2871
      %2873 = vmatmul.bf16.gmra.mxu0 %v2299
      %v2874 = vpop.f32.mrf.mxu0
      %v2875 = vadd.f32 %v1386, %v2874
      %v2876 = vpop.f32.mrf.mxu0
      %v2877 = vadd.f32 %v1386, %v2876
      %2878 = vmatmul.bf16.gmra.mxu0 %v2302
      %v2879 = vpop.f32.mrf.mxu0
      %v2880 = vadd.f32 %v1386, %v2879
      %v2881 = vpop.f32.mrf.mxu0
      %v2882 = vadd.f32 %v1386, %v2881
      %2883 = vmatmul.bf16.gmra.mxu0 %v2305
      %v2884 = vpop.f32.mrf.mxu0
      %v2885 = vadd.f32 %v1386, %v2884
      %v2886 = vpop.f32.mrf.mxu0
      %v2887 = vadd.f32 %v1386, %v2886
      %2888 = vmatmul.bf16.gmra.mxu0 %v2308
      %v2889 = vpop.f32.mrf.mxu0
      %v2890 = vadd.f32 %v1386, %v2889
      %v2891 = vpop.f32.mrf.mxu0
      %v2892 = vadd.f32 %v1386, %v2891
      %2893 = vmatmul.bf16.gmra.mxu0 %v2311
      %v2894 = vpop.f32.mrf.mxu0
      %v2895 = vadd.f32 %v1386, %v2894
      %v2896 = vpop.f32.mrf.mxu0
      %v2897 = vadd.f32 %v1386, %v2896
      %2898 = vmatmul.bf16.gmra.mxu0 %v2314
      %v2899 = vpop.f32.mrf.mxu0
      %v2900 = vadd.f32 %v1386, %v2899
      %v2901 = vpop.f32.mrf.mxu0
      %v2902 = vadd.f32 %v1386, %v2901
      %2903 = vmatmul.bf16.gmra.mxu0 %v2317
      %v2904 = vpop.f32.mrf.mxu0
      %v2905 = vadd.f32 %v1386, %v2904
      %v2906 = vpop.f32.mrf.mxu0
      %v2907 = vadd.f32 %v1386, %v2906
      %2908 = vmatmul.bf16.gmra.mxu0 %v2320
      %v2909 = vpop.f32.mrf.mxu0
      %v2910 = vadd.f32 %v1386, %v2909
      %v2911 = vpop.f32.mrf.mxu0
      %v2912 = vadd.f32 %v1386, %v2911
      %2913 = vmatmul.bf16.gmra.mxu0 %v2323
      %v2914 = vpop.f32.mrf.mxu0
      %v2915 = vadd.f32 %v1386, %v2914
      %v2916 = vpop.f32.mrf.mxu0
      %v2917 = vadd.f32 %v1386, %v2916
      %2918 = vmatmul.bf16.gmra.mxu0 %v2326
      %v2919 = vpop.f32.mrf.mxu0
      %v2920 = vadd.f32 %v1386, %v2919
      %v2921 = vpop.f32.mrf.mxu0
      %v2922 = vadd.f32 %v1386, %v2921
      %2923 = vmatmul.bf16.gmra.mxu0 %v2329
      %v2924 = vpop.f32.mrf.mxu0
      %v2925 = vadd.f32 %v1386, %v2924
      %v2926 = vpop.f32.mrf.mxu0
      %v2927 = vadd.f32 %v1386, %v2926
      %2928 = vmatmul.bf16.gmra.mxu0 %v2332
      %v2929 = vpop.f32.mrf.mxu0
      %v2930 = vadd.f32 %v1386, %v2929
      %v2931 = vpop.f32.mrf.mxu0
      %v2932 = vadd.f32 %v1386, %v2931
      %2933 = vmatmul.bf16.gmra.mxu0 %v2335
      %v2934 = vpop.f32.mrf.mxu0
      %v2935 = vadd.f32 %v1386, %v2934
      %v2936 = vpop.f32.mrf.mxu0
      %v2937 = vadd.f32 %v1386, %v2936
      %2938 = vmatmul.bf16.gmra.mxu0 %v2338
      %v2939 = vpop.f32.mrf.mxu0
      %v2940 = vadd.f32 %v1386, %v2939
      %v2941 = vpop.f32.mrf.mxu0
      %v2942 = vadd.f32 %v1386, %v2941
      %2943 = vmatmul.bf16.gmra.mxu0 %v2341
      %v2944 = vpop.f32.mrf.mxu0
      %v2945 = vadd.f32 %v1386, %v2944
      %v2946 = vpop.f32.mrf.mxu0
      %v2947 = vadd.f32 %v1386, %v2946
      %2948 = vmatmul.bf16.gmra.mxu0 %v2344
      %v2949 = vpop.f32.mrf.mxu0
      %v2950 = vadd.f32 %v1386, %v2949
      %v2951 = vpop.f32.mrf.mxu0
      %v2952 = vadd.f32 %v1386, %v2951
      %2953 = vmatmul.bf16.gmra.mxu0 %v2347
      %v2954 = vpop.f32.mrf.mxu0
      %v2955 = vadd.f32 %v1386, %v2954
      %v2956 = vpop.f32.mrf.mxu0
      %v2957 = vadd.f32 %v1386, %v2956
      %2958 = vmatmul.bf16.gmra.mxu0 %v2350
      %v2959 = vpop.f32.mrf.mxu0
      %v2960 = vadd.f32 %v1386, %v2959
      %v2961 = vpop.f32.mrf.mxu0
      %v2962 = vadd.f32 %v1386, %v2961
      %2963 = vmatmul.bf16.gmra.mxu0 %v2353
      %v2964 = vpop.f32.mrf.mxu0
      %v2965 = vadd.f32 %v1386, %v2964
      %v2966 = vpop.f32.mrf.mxu0
      %v2967 = vadd.f32 %v1386, %v2966
      %2968 = vmatmul.bf16.gmra.mxu0 %v2356
      %v2969 = vpop.f32.mrf.mxu0
      %v2970 = vadd.f32 %v1386, %v2969
      %v2971 = vpop.f32.mrf.mxu0
      %v2972 = vadd.f32 %v1386, %v2971
      %2973 = vmatmul.bf16.gmra.mxu0 %v2359
      %v2974 = vpop.f32.mrf.mxu0
      %v2975 = vadd.f32 %v1386, %v2974
      %v2976 = vpop.f32.mrf.mxu0
      %v2977 = vadd.f32 %v1386, %v2976
      %2978 = vmatmul.bf16.gmra.mxu0 %v2362
      %v2979 = vpop.f32.mrf.mxu0
      %v2980 = vadd.f32 %v1386, %v2979
      %v2981 = vpop.f32.mrf.mxu0
      %v2982 = vadd.f32 %v1386, %v2981
      %2983 = vmatmul.bf16.gmra.mxu0 %v2365
      %v2984 = vpop.f32.mrf.mxu0
      %v2985 = vadd.f32 %v1386, %v2984
      %v2986 = vpop.f32.mrf.mxu0
      %v2987 = vadd.f32 %v1386, %v2986
      %2988 = vmatmul.bf16.gmra.mxu0 %v2368
      %v2989 = vpop.f32.mrf.mxu0
      %v2990 = vadd.f32 %v1386, %v2989
      %v2991 = vpop.f32.mrf.mxu0
      %v2992 = vadd.f32 %v1386, %v2991
      %2993 = vmatmul.bf16.gmra.mxu0 %v2371
      %v2994 = vpop.f32.mrf.mxu0
      %v2995 = vadd.f32 %v1386, %v2994
      %v2996 = vpop.f32.mrf.mxu0
      %v2997 = vadd.f32 %v1386, %v2996
      %2998 = vmatmul.bf16.gmra.mxu0 %v2374
      %v2999 = vpop.f32.mrf.mxu0
      %v3000 = vadd.f32 %v1386, %v2999
      %v3001 = vpop.f32.mrf.mxu0
      %v3002 = vadd.f32 %v1386, %v3001
      %3003 = vmatmul.bf16.gmra.mxu0 %v2377
      %v3004 = vpop.f32.mrf.mxu0
      %v3005 = vadd.f32 %v1386, %v3004
      %v3006 = vpop.f32.mrf.mxu0
      %v3007 = vadd.f32 %v1386, %v3006
      %3008 = vmatmul.bf16.gmra.mxu0 %v2380
      %v3009 = vpop.f32.mrf.mxu0
      %v3010 = vadd.f32 %v1386, %v3009
      %v3011 = vpop.f32.mrf.mxu0
      %v3012 = vadd.f32 %v1386, %v3011
      %3013 = vmatmul.bf16.gmra.mxu0 %v2383
      %v3014 = vpop.f32.mrf.mxu0
      %v3015 = vadd.f32 %v1386, %v3014
      %v3016 = vpop.f32.mrf.mxu0
      %v3017 = vadd.f32 %v1386, %v3016
      %3018 = vmatmul.bf16.gmra.mxu0 %v2386
      %v3019 = vpop.f32.mrf.mxu0
      %v3020 = vadd.f32 %v1386, %v3019
      %v3021 = vpop.f32.mrf.mxu0
      %v3022 = vadd.f32 %v1386, %v3021
      %3023 = vmatmul.bf16.gmra.mxu0 %v2389
      %v3024 = vpop.f32.mrf.mxu0
      %v3025 = vadd.f32 %v1386, %v3024
      %v3026 = vpop.f32.mrf.mxu0
      %v3027 = vadd.f32 %v1386, %v3026
      %3028 = vmatmul.bf16.gmra.mxu0 %v2392
      %v3029 = vpop.f32.mrf.mxu0
      %v3030 = vadd.f32 %v1386, %v3029
      %v3031 = vpop.f32.mrf.mxu0
      %v3032 = vadd.f32 %v1386, %v3031
      %3033 = vmatmul.bf16.gmra.mxu0 %v2395
      %v3034 = vpop.f32.mrf.mxu0
      %v3035 = vadd.f32 %v1386, %v3034
      %v3036 = vpop.f32.mrf.mxu0
      %v3037 = vadd.f32 %v1386, %v3036
      %3038 = vmatmul.bf16.gmra.mxu0 %v2398
      %v3039 = vpop.f32.mrf.mxu0
      %v3040 = vadd.f32 %v1386, %v3039
      %v3041 = vpop.f32.mrf.mxu0
      %v3042 = vadd.f32 %v1386, %v3041
      %3043 = vmatmul.bf16.gmra.mxu0 %v2401
      %v3044 = vpop.f32.mrf.mxu0
      %v3045 = vadd.f32 %v1386, %v3044
      %v3046 = vpop.f32.mrf.mxu0
      %v3047 = vadd.f32 %v1386, %v3046
      %3048 = vmatmul.bf16.gmra.mxu0 %v2404
      %v3049 = vpop.f32.mrf.mxu0
      %v3050 = vadd.f32 %v1386, %v3049
      %v3051 = vpop.f32.mrf.mxu0
      %v3052 = vadd.f32 %v1386, %v3051
      %3053 = vmatmul.bf16.gmra.mxu0 %v2407
      %v3054 = vpop.f32.mrf.mxu0
      %v3055 = vadd.f32 %v1386, %v3054
      %v3056 = vpop.f32.mrf.mxu0
      %v3057 = vadd.f32 %v1386, %v3056
      %3058 = vmatmul.bf16.gmra.mxu0 %v2410
      %v3059 = vpop.f32.mrf.mxu0
      %v3060 = vadd.f32 %v1386, %v3059
      %v3061 = vpop.f32.mrf.mxu0
      %v3062 = vadd.f32 %v1386, %v3061
      %3063 = vmatmul.bf16.gmra.mxu0 %v2413
      %v3064 = vpop.f32.mrf.mxu0
      %v3065 = vadd.f32 %v1386, %v3064
      %v3066 = vpop.f32.mrf.mxu0
      %v3067 = vadd.f32 %v1386, %v3066
      %3068 = vmatmul.bf16.gmra.mxu0 %v2416
      %v3069 = vpop.f32.mrf.mxu0
      %v3070 = vadd.f32 %v1386, %v3069
      %v3071 = vpop.f32.mrf.mxu0
      %v3072 = vadd.f32 %v1386, %v3071
      %3073 = vdwg.mxu0
      %3074 = vmatpush.bf16.msra.mxu0 0
      %3075 = vmatpush.bf16.msra.mxu0 0
      %3076 = vmatpush.bf16.msra.mxu0 0
      %3077 = vmatpush.bf16.msra.mxu0 0
      %3078 = vmatpush.bf16.msra.mxu0 0
      %3079 = vmatpush.bf16.msra.mxu0 0
      %3080 = vmatpush.bf16.msra.mxu0 0
      %3081 = vmatpush.bf16.msra.mxu0 %v2423
      %3082 = vmatmul.bf16.gmra.mxu0 %v2035
      %v3083 = vpop.f32.mrf.mxu0
      %v3084 = vadd.f32 %v1387, %v3083
      %v3085 = vpop.f32.mrf.mxu0
      %v3086 = vadd.f32 %v1387, %v3085
      %3087 = vmatmul.bf16.gmra.mxu0 %v2038
      %v3088 = vpop.f32.mrf.mxu0
      %v3089 = vadd.f32 %v1387, %v3088
      %v3090 = vpop.f32.mrf.mxu0
      %v3091 = vadd.f32 %v1387, %v3090
      %3092 = vmatmul.bf16.gmra.mxu0 %v2041
      %v3093 = vpop.f32.mrf.mxu0
      %v3094 = vadd.f32 %v1387, %v3093
      %v3095 = vpop.f32.mrf.mxu0
      %v3096 = vadd.f32 %v1387, %v3095
      %3097 = vmatmul.bf16.gmra.mxu0 %v2044
      %v3098 = vpop.f32.mrf.mxu0
      %v3099 = vadd.f32 %v1387, %v3098
      %v3100 = vpop.f32.mrf.mxu0
      %v3101 = vadd.f32 %v1387, %v3100
      %3102 = vmatmul.bf16.gmra.mxu0 %v2047
      %v3103 = vpop.f32.mrf.mxu0
      %v3104 = vadd.f32 %v1387, %v3103
      %v3105 = vpop.f32.mrf.mxu0
      %v3106 = vadd.f32 %v1387, %v3105
      %3107 = vmatmul.bf16.gmra.mxu0 %v2050
      %v3108 = vpop.f32.mrf.mxu0
      %v3109 = vadd.f32 %v1387, %v3108
      %v3110 = vpop.f32.mrf.mxu0
      %v3111 = vadd.f32 %v1387, %v3110
      %3112 = vmatmul.bf16.gmra.mxu0 %v2053
      %v3113 = vpop.f32.mrf.mxu0
      %v3114 = vadd.f32 %v1387, %v3113
      %v3115 = vpop.f32.mrf.mxu0
      %v3116 = vadd.f32 %v1387, %v3115
      %3117 = vmatmul.bf16.gmra.mxu0 %v2056
      %v3118 = vpop.f32.mrf.mxu0
      %v3119 = vadd.f32 %v1387, %v3118
      %v3120 = vpop.f32.mrf.mxu0
      %v3121 = vadd.f32 %v1387, %v3120
      %3122 = vmatmul.bf16.gmra.mxu0 %v2059
      %v3123 = vpop.f32.mrf.mxu0
      %v3124 = vadd.f32 %v1387, %v3123
      %v3125 = vpop.f32.mrf.mxu0
      %v3126 = vadd.f32 %v1387, %v3125
      %3127 = vmatmul.bf16.gmra.mxu0 %v2062
      %v3128 = vpop.f32.mrf.mxu0
      %v3129 = vadd.f32 %v1387, %v3128
      %v3130 = vpop.f32.mrf.mxu0
      %v3131 = vadd.f32 %v1387, %v3130
      %3132 = vmatmul.bf16.gmra.mxu0 %v2065
      %v3133 = vpop.f32.mrf.mxu0
      %v3134 = vadd.f32 %v1387, %v3133
      %v3135 = vpop.f32.mrf.mxu0
      %v3136 = vadd.f32 %v1387, %v3135
      %3137 = vmatmul.bf16.gmra.mxu0 %v2068
      %v3138 = vpop.f32.mrf.mxu0
      %v3139 = vadd.f32 %v1387, %v3138
      %v3140 = vpop.f32.mrf.mxu0
      %v3141 = vadd.f32 %v1387, %v3140
      %3142 = vmatmul.bf16.gmra.mxu0 %v2071
      %v3143 = vpop.f32.mrf.mxu0
      %v3144 = vadd.f32 %v1387, %v3143
      %v3145 = vpop.f32.mrf.mxu0
      %v3146 = vadd.f32 %v1387, %v3145
      %3147 = vmatmul.bf16.gmra.mxu0 %v2074
      %v3148 = vpop.f32.mrf.mxu0
      %v3149 = vadd.f32 %v1387, %v3148
      %v3150 = vpop.f32.mrf.mxu0
      %v3151 = vadd.f32 %v1387, %v3150
      %3152 = vmatmul.bf16.gmra.mxu0 %v2077
      %v3153 = vpop.f32.mrf.mxu0
      %v3154 = vadd.f32 %v1387, %v3153
      %v3155 = vpop.f32.mrf.mxu0
      %v3156 = vadd.f32 %v1387, %v3155
      %3157 = vmatmul.bf16.gmra.mxu0 %v2080
      %v3158 = vpop.f32.mrf.mxu0
      %v3159 = vadd.f32 %v1387, %v3158
      %v3160 = vpop.f32.mrf.mxu0
      %v3161 = vadd.f32 %v1387, %v3160
      %3162 = vmatmul.bf16.gmra.mxu0 %v2083
      %v3163 = vpop.f32.mrf.mxu0
      %v3164 = vadd.f32 %v1387, %v3163
      %v3165 = vpop.f32.mrf.mxu0
      %v3166 = vadd.f32 %v1387, %v3165
      %3167 = vmatmul.bf16.gmra.mxu0 %v2086
      %v3168 = vpop.f32.mrf.mxu0
      %v3169 = vadd.f32 %v1387, %v3168
      %v3170 = vpop.f32.mrf.mxu0
      %v3171 = vadd.f32 %v1387, %v3170
      %3172 = vmatmul.bf16.gmra.mxu0 %v2089
      %v3173 = vpop.f32.mrf.mxu0
      %v3174 = vadd.f32 %v1387, %v3173
      %v3175 = vpop.f32.mrf.mxu0
      %v3176 = vadd.f32 %v1387, %v3175
      %3177 = vmatmul.bf16.gmra.mxu0 %v2092
      %v3178 = vpop.f32.mrf.mxu0
      %v3179 = vadd.f32 %v1387, %v3178
      %v3180 = vpop.f32.mrf.mxu0
      %v3181 = vadd.f32 %v1387, %v3180
      %3182 = vmatmul.bf16.gmra.mxu0 %v2095
      %v3183 = vpop.f32.mrf.mxu0
      %v3184 = vadd.f32 %v1387, %v3183
      %v3185 = vpop.f32.mrf.mxu0
      %v3186 = vadd.f32 %v1387, %v3185
      %3187 = vmatmul.bf16.gmra.mxu0 %v2098
      %v3188 = vpop.f32.mrf.mxu0
      %v3189 = vadd.f32 %v1387, %v3188
      %v3190 = vpop.f32.mrf.mxu0
      %v3191 = vadd.f32 %v1387, %v3190
      %3192 = vmatmul.bf16.gmra.mxu0 %v2101
      %v3193 = vpop.f32.mrf.mxu0
      %v3194 = vadd.f32 %v1387, %v3193
      %v3195 = vpop.f32.mrf.mxu0
      %v3196 = vadd.f32 %v1387, %v3195
      %3197 = vmatmul.bf16.gmra.mxu0 %v2104
      %v3198 = vpop.f32.mrf.mxu0
      %v3199 = vadd.f32 %v1387, %v3198
      %v3200 = vpop.f32.mrf.mxu0
      %v3201 = vadd.f32 %v1387, %v3200
      %3202 = vmatmul.bf16.gmra.mxu0 %v2107
      %v3203 = vpop.f32.mrf.mxu0
      %v3204 = vadd.f32 %v1387, %v3203
      %v3205 = vpop.f32.mrf.mxu0
      %v3206 = vadd.f32 %v1387, %v3205
      %3207 = vmatmul.bf16.gmra.mxu0 %v2110
      %v3208 = vpop.f32.mrf.mxu0
      %v3209 = vadd.f32 %v1387, %v3208
      %v3210 = vpop.f32.mrf.mxu0
      %v3211 = vadd.f32 %v1387, %v3210
      %3212 = vmatmul.bf16.gmra.mxu0 %v2113
      %v3213 = vpop.f32.mrf.mxu0
      %v3214 = vadd.f32 %v1387, %v3213
      %v3215 = vpop.f32.mrf.mxu0
      %v3216 = vadd.f32 %v1387, %v3215
      %3217 = vmatmul.bf16.gmra.mxu0 %v2116
      %v3218 = vpop.f32.mrf.mxu0
      %v3219 = vadd.f32 %v1387, %v3218
      %v3220 = vpop.f32.mrf.mxu0
      %v3221 = vadd.f32 %v1387, %v3220
      %3222 = vmatmul.bf16.gmra.mxu0 %v2119
      %v3223 = vpop.f32.mrf.mxu0
      %v3224 = vadd.f32 %v1387, %v3223
      %v3225 = vpop.f32.mrf.mxu0
      %v3226 = vadd.f32 %v1387, %v3225
      %3227 = vmatmul.bf16.gmra.mxu0 %v2122
      %v3228 = vpop.f32.mrf.mxu0
      %v3229 = vadd.f32 %v1387, %v3228
      %v3230 = vpop.f32.mrf.mxu0
      %v3231 = vadd.f32 %v1387, %v3230
      %3232 = vmatmul.bf16.gmra.mxu0 %v2125
      %v3233 = vpop.f32.mrf.mxu0
      %v3234 = vadd.f32 %v1387, %v3233
      %v3235 = vpop.f32.mrf.mxu0
      %v3236 = vadd.f32 %v1387, %v3235
      %3237 = vmatmul.bf16.gmra.mxu0 %v2128
      %v3238 = vpop.f32.mrf.mxu0
      %v3239 = vadd.f32 %v1387, %v3238
      %v3240 = vpop.f32.mrf.mxu0
      %v3241 = vadd.f32 %v1387, %v3240
      %3242 = vmatmul.bf16.gmra.mxu0 %v2131
      %v3243 = vpop.f32.mrf.mxu0
      %v3244 = vadd.f32 %v1387, %v3243
      %v3245 = vpop.f32.mrf.mxu0
      %v3246 = vadd.f32 %v1387, %v3245
      %3247 = vmatmul.bf16.gmra.mxu0 %v2134
      %v3248 = vpop.f32.mrf.mxu0
      %v3249 = vadd.f32 %v1387, %v3248
      %v3250 = vpop.f32.mrf.mxu0
      %v3251 = vadd.f32 %v1387, %v3250
      %3252 = vmatmul.bf16.gmra.mxu0 %v2137
      %v3253 = vpop.f32.mrf.mxu0
      %v3254 = vadd.f32 %v1387, %v3253
      %v3255 = vpop.f32.mrf.mxu0
      %v3256 = vadd.f32 %v1387, %v3255
      %3257 = vmatmul.bf16.gmra.mxu0 %v2140
      %v3258 = vpop.f32.mrf.mxu0
      %v3259 = vadd.f32 %v1387, %v3258
      %v3260 = vpop.f32.mrf.mxu0
      %v3261 = vadd.f32 %v1387, %v3260
      %3262 = vmatmul.bf16.gmra.mxu0 %v2143
      %v3263 = vpop.f32.mrf.mxu0
      %v3264 = vadd.f32 %v1387, %v3263
      %v3265 = vpop.f32.mrf.mxu0
      %v3266 = vadd.f32 %v1387, %v3265
      %3267 = vmatmul.bf16.gmra.mxu0 %v2146
      %v3268 = vpop.f32.mrf.mxu0
      %v3269 = vadd.f32 %v1387, %v3268
      %v3270 = vpop.f32.mrf.mxu0
      %v3271 = vadd.f32 %v1387, %v3270
      %3272 = vmatmul.bf16.gmra.mxu0 %v2149
      %v3273 = vpop.f32.mrf.mxu0
      %v3274 = vadd.f32 %v1387, %v3273
      %v3275 = vpop.f32.mrf.mxu0
      %v3276 = vadd.f32 %v1387, %v3275
      %3277 = vmatmul.bf16.gmra.mxu0 %v2152
      %v3278 = vpop.f32.mrf.mxu0
      %v3279 = vadd.f32 %v1387, %v3278
      %v3280 = vpop.f32.mrf.mxu0
      %v3281 = vadd.f32 %v1387, %v3280
      %3282 = vmatmul.bf16.gmra.mxu0 %v2155
      %v3283 = vpop.f32.mrf.mxu0
      %v3284 = vadd.f32 %v1387, %v3283
      %v3285 = vpop.f32.mrf.mxu0
      %v3286 = vadd.f32 %v1387, %v3285
      %3287 = vmatmul.bf16.gmra.mxu0 %v2158
      %v3288 = vpop.f32.mrf.mxu0
      %v3289 = vadd.f32 %v1387, %v3288
      %v3290 = vpop.f32.mrf.mxu0
      %v3291 = vadd.f32 %v1387, %v3290
      %3292 = vmatmul.bf16.gmra.mxu0 %v2161
      %v3293 = vpop.f32.mrf.mxu0
      %v3294 = vadd.f32 %v1387, %v3293
      %v3295 = vpop.f32.mrf.mxu0
      %v3296 = vadd.f32 %v1387, %v3295
      %3297 = vmatmul.bf16.gmra.mxu0 %v2164
      %v3298 = vpop.f32.mrf.mxu0
      %v3299 = vadd.f32 %v1387, %v3298
      %v3300 = vpop.f32.mrf.mxu0
      %v3301 = vadd.f32 %v1387, %v3300
      %3302 = vmatmul.bf16.gmra.mxu0 %v2167
      %v3303 = vpop.f32.mrf.mxu0
      %v3304 = vadd.f32 %v1387, %v3303
      %v3305 = vpop.f32.mrf.mxu0
      %v3306 = vadd.f32 %v1387, %v3305
      %3307 = vmatmul.bf16.gmra.mxu0 %v2170
      %v3308 = vpop.f32.mrf.mxu0
      %v3309 = vadd.f32 %v1387, %v3308
      %v3310 = vpop.f32.mrf.mxu0
      %v3311 = vadd.f32 %v1387, %v3310
      %3312 = vmatmul.bf16.gmra.mxu0 %v2173
      %v3313 = vpop.f32.mrf.mxu0
      %v3314 = vadd.f32 %v1387, %v3313
      %v3315 = vpop.f32.mrf.mxu0
      %v3316 = vadd.f32 %v1387, %v3315
      %3317 = vmatmul.bf16.gmra.mxu0 %v2176
      %v3318 = vpop.f32.mrf.mxu0
      %v3319 = vadd.f32 %v1387, %v3318
      %v3320 = vpop.f32.mrf.mxu0
      %v3321 = vadd.f32 %v1387, %v3320
      %3322 = vmatmul.bf16.gmra.mxu0 %v2179
      %v3323 = vpop.f32.mrf.mxu0
      %v3324 = vadd.f32 %v1387, %v3323
      %v3325 = vpop.f32.mrf.mxu0
      %v3326 = vadd.f32 %v1387, %v3325
      %3327 = vmatmul.bf16.gmra.mxu0 %v2182
      %v3328 = vpop.f32.mrf.mxu0
      %v3329 = vadd.f32 %v1387, %v3328
      %v3330 = vpop.f32.mrf.mxu0
      %v3331 = vadd.f32 %v1387, %v3330
      %3332 = vmatmul.bf16.gmra.mxu0 %v2185
      %v3333 = vpop.f32.mrf.mxu0
      %v3334 = vadd.f32 %v1387, %v3333
      %v3335 = vpop.f32.mrf.mxu0
      %v3336 = vadd.f32 %v1387, %v3335
      %3337 = vmatmul.bf16.gmra.mxu0 %v2188
      %v3338 = vpop.f32.mrf.mxu0
      %v3339 = vadd.f32 %v1387, %v3338
      %v3340 = vpop.f32.mrf.mxu0
      %v3341 = vadd.f32 %v1387, %v3340
      %3342 = vmatmul.bf16.gmra.mxu0 %v2191
      %v3343 = vpop.f32.mrf.mxu0
      %v3344 = vadd.f32 %v1387, %v3343
      %v3345 = vpop.f32.mrf.mxu0
      %v3346 = vadd.f32 %v1387, %v3345
      %3347 = vmatmul.bf16.gmra.mxu0 %v2194
      %v3348 = vpop.f32.mrf.mxu0
      %v3349 = vadd.f32 %v1387, %v3348
      %v3350 = vpop.f32.mrf.mxu0
      %v3351 = vadd.f32 %v1387, %v3350
      %3352 = vmatmul.bf16.gmra.mxu0 %v2197
      %v3353 = vpop.f32.mrf.mxu0
      %v3354 = vadd.f32 %v1387, %v3353
      %v3355 = vpop.f32.mrf.mxu0
      %v3356 = vadd.f32 %v1387, %v3355
      %3357 = vmatmul.bf16.gmra.mxu0 %v2200
      %v3358 = vpop.f32.mrf.mxu0
      %v3359 = vadd.f32 %v1387, %v3358
      %v3360 = vpop.f32.mrf.mxu0
      %v3361 = vadd.f32 %v1387, %v3360
      %3362 = vmatmul.bf16.gmra.mxu0 %v2203
      %v3363 = vpop.f32.mrf.mxu0
      %v3364 = vadd.f32 %v1387, %v3363
      %v3365 = vpop.f32.mrf.mxu0
      %v3366 = vadd.f32 %v1387, %v3365
      %3367 = vmatmul.bf16.gmra.mxu0 %v2206
      %v3368 = vpop.f32.mrf.mxu0
      %v3369 = vadd.f32 %v1387, %v3368
      %v3370 = vpop.f32.mrf.mxu0
      %v3371 = vadd.f32 %v1387, %v3370
      %3372 = vmatmul.bf16.gmra.mxu0 %v2209
      %v3373 = vpop.f32.mrf.mxu0
      %v3374 = vadd.f32 %v1387, %v3373
      %v3375 = vpop.f32.mrf.mxu0
      %v3376 = vadd.f32 %v1387, %v3375
      %3377 = vmatmul.bf16.gmra.mxu0 %v2212
      %v3378 = vpop.f32.mrf.mxu0
      %v3379 = vadd.f32 %v1387, %v3378
      %v3380 = vpop.f32.mrf.mxu0
      %v3381 = vadd.f32 %v1387, %v3380
      %3382 = vmatmul.bf16.gmra.mxu0 %v2215
      %v3383 = vpop.f32.mrf.mxu0
      %v3384 = vadd.f32 %v1387, %v3383
      %v3385 = vpop.f32.mrf.mxu0
      %v3386 = vadd.f32 %v1387, %v3385
      %3387 = vmatmul.bf16.gmra.mxu0 %v2218
      %v3388 = vpop.f32.mrf.mxu0
      %v3389 = vadd.f32 %v1387, %v3388
      %v3390 = vpop.f32.mrf.mxu0
      %v3391 = vadd.f32 %v1387, %v3390
      %3392 = vmatmul.bf16.gmra.mxu0 %v2221
      %v3393 = vpop.f32.mrf.mxu0
      %v3394 = vadd.f32 %v1387, %v3393
      %v3395 = vpop.f32.mrf.mxu0
      %v3396 = vadd.f32 %v1387, %v3395
      %3397 = vmatmul.bf16.gmra.mxu0 %v2224
      %v3398 = vpop.f32.mrf.mxu0
      %v3399 = vadd.f32 %v1387, %v3398
      %v3400 = vpop.f32.mrf.mxu0
      %v3401 = vadd.f32 %v1387, %v3400
      %3402 = vmatmul.bf16.gmra.mxu0 %v2227
      %v3403 = vpop.f32.mrf.mxu0
      %v3404 = vadd.f32 %v1387, %v3403
      %v3405 = vpop.f32.mrf.mxu0
      %v3406 = vadd.f32 %v1387, %v3405
      %3407 = vmatmul.bf16.gmra.mxu0 %v2230
      %v3408 = vpop.f32.mrf.mxu0
      %v3409 = vadd.f32 %v1387, %v3408
      %v3410 = vpop.f32.mrf.mxu0
      %v3411 = vadd.f32 %v1387, %v3410
      %3412 = vmatmul.bf16.gmra.mxu0 %v2233
      %v3413 = vpop.f32.mrf.mxu0
      %v3414 = vadd.f32 %v1387, %v3413
      %v3415 = vpop.f32.mrf.mxu0
      %v3416 = vadd.f32 %v1387, %v3415
      %3417 = vmatmul.bf16.gmra.mxu0 %v2236
      %v3418 = vpop.f32.mrf.mxu0
      %v3419 = vadd.f32 %v1387, %v3418
      %v3420 = vpop.f32.mrf.mxu0
      %v3421 = vadd.f32 %v1387, %v3420
      %3422 = vmatmul.bf16.gmra.mxu0 %v2239
      %v3423 = vpop.f32.mrf.mxu0
      %v3424 = vadd.f32 %v1387, %v3423
      %v3425 = vpop.f32.mrf.mxu0
      %v3426 = vadd.f32 %v1387, %v3425
      %3427 = vmatmul.bf16.gmra.mxu0 %v2242
      %v3428 = vpop.f32.mrf.mxu0
      %v3429 = vadd.f32 %v1387, %v3428
      %v3430 = vpop.f32.mrf.mxu0
      %v3431 = vadd.f32 %v1387, %v3430
      %3432 = vmatmul.bf16.gmra.mxu0 %v2245
      %v3433 = vpop.f32.mrf.mxu0
      %v3434 = vadd.f32 %v1387, %v3433
      %v3435 = vpop.f32.mrf.mxu0
      %v3436 = vadd.f32 %v1387, %v3435
      %3437 = vmatmul.bf16.gmra.mxu0 %v2248
      %v3438 = vpop.f32.mrf.mxu0
      %v3439 = vadd.f32 %v1387, %v3438
      %v3440 = vpop.f32.mrf.mxu0
      %v3441 = vadd.f32 %v1387, %v3440
      %3442 = vmatmul.bf16.gmra.mxu0 %v2251
      %v3443 = vpop.f32.mrf.mxu0
      %v3444 = vadd.f32 %v1387, %v3443
      %v3445 = vpop.f32.mrf.mxu0
      %v3446 = vadd.f32 %v1387, %v3445
      %3447 = vmatmul.bf16.gmra.mxu0 %v2254
      %v3448 = vpop.f32.mrf.mxu0
      %v3449 = vadd.f32 %v1387, %v3448
      %v3450 = vpop.f32.mrf.mxu0
      %v3451 = vadd.f32 %v1387, %v3450
      %3452 = vmatmul.bf16.gmra.mxu0 %v2257
      %v3453 = vpop.f32.mrf.mxu0
      %v3454 = vadd.f32 %v1387, %v3453
      %v3455 = vpop.f32.mrf.mxu0
      %v3456 = vadd.f32 %v1387, %v3455
      %3457 = vmatmul.bf16.gmra.mxu0 %v2260
      %v3458 = vpop.f32.mrf.mxu0
      %v3459 = vadd.f32 %v1387, %v3458
      %v3460 = vpop.f32.mrf.mxu0
      %v3461 = vadd.f32 %v1387, %v3460
      %3462 = vmatmul.bf16.gmra.mxu0 %v2263
      %v3463 = vpop.f32.mrf.mxu0
      %v3464 = vadd.f32 %v1387, %v3463
      %v3465 = vpop.f32.mrf.mxu0
      %v3466 = vadd.f32 %v1387, %v3465
      %3467 = vmatmul.bf16.gmra.mxu0 %v2266
      %v3468 = vpop.f32.mrf.mxu0
      %v3469 = vadd.f32 %v1387, %v3468
      %v3470 = vpop.f32.mrf.mxu0
      %v3471 = vadd.f32 %v1387, %v3470
      %3472 = vmatmul.bf16.gmra.mxu0 %v2269
      %v3473 = vpop.f32.mrf.mxu0
      %v3474 = vadd.f32 %v1387, %v3473
      %v3475 = vpop.f32.mrf.mxu0
      %v3476 = vadd.f32 %v1387, %v3475
      %3477 = vmatmul.bf16.gmra.mxu0 %v2272
      %v3478 = vpop.f32.mrf.mxu0
      %v3479 = vadd.f32 %v1387, %v3478
      %v3480 = vpop.f32.mrf.mxu0
      %v3481 = vadd.f32 %v1387, %v3480
      %3482 = vmatmul.bf16.gmra.mxu0 %v2275
      %v3483 = vpop.f32.mrf.mxu0
      %v3484 = vadd.f32 %v1387, %v3483
      %v3485 = vpop.f32.mrf.mxu0
      %v3486 = vadd.f32 %v1387, %v3485
      %3487 = vmatmul.bf16.gmra.mxu0 %v2278
      %v3488 = vpop.f32.mrf.mxu0
      %v3489 = vadd.f32 %v1387, %v3488
      %v3490 = vpop.f32.mrf.mxu0
      %v3491 = vadd.f32 %v1387, %v3490
      %3492 = vmatmul.bf16.gmra.mxu0 %v2281
      %v3493 = vpop.f32.mrf.mxu0
      %v3494 = vadd.f32 %v1387, %v3493
      %v3495 = vpop.f32.mrf.mxu0
      %v3496 = vadd.f32 %v1387, %v3495
      %3497 = vmatmul.bf16.gmra.mxu0 %v2284
      %v3498 = vpop.f32.mrf.mxu0
      %v3499 = vadd.f32 %v1387, %v3498
      %v3500 = vpop.f32.mrf.mxu0
      %v3501 = vadd.f32 %v1387, %v3500
      %3502 = vmatmul.bf16.gmra.mxu0 %v2287
      %v3503 = vpop.f32.mrf.mxu0
      %v3504 = vadd.f32 %v1387, %v3503
      %v3505 = vpop.f32.mrf.mxu0
      %v3506 = vadd.f32 %v1387, %v3505
      %3507 = vmatmul.bf16.gmra.mxu0 %v2290
      %v3508 = vpop.f32.mrf.mxu0
      %v3509 = vadd.f32 %v1387, %v3508
      %v3510 = vpop.f32.mrf.mxu0
      %v3511 = vadd.f32 %v1387, %v3510
      %3512 = vmatmul.bf16.gmra.mxu0 %v2293
      %v3513 = vpop.f32.mrf.mxu0
      %v3514 = vadd.f32 %v1387, %v3513
      %v3515 = vpop.f32.mrf.mxu0
      %v3516 = vadd.f32 %v1387, %v3515
      %3517 = vmatmul.bf16.gmra.mxu0 %v2296
      %v3518 = vpop.f32.mrf.mxu0
      %v3519 = vadd.f32 %v1387, %v3518
      %v3520 = vpop.f32.mrf.mxu0
      %v3521 = vadd.f32 %v1387, %v3520
      %3522 = vmatmul.bf16.gmra.mxu0 %v2299
      %v3523 = vpop.f32.mrf.mxu0
      %v3524 = vadd.f32 %v1387, %v3523
      %v3525 = vpop.f32.mrf.mxu0
      %v3526 = vadd.f32 %v1387, %v3525
      %3527 = vmatmul.bf16.gmra.mxu0 %v2302
      %v3528 = vpop.f32.mrf.mxu0
      %v3529 = vadd.f32 %v1387, %v3528
      %v3530 = vpop.f32.mrf.mxu0
      %v3531 = vadd.f32 %v1387, %v3530
      %3532 = vmatmul.bf16.gmra.mxu0 %v2305
      %v3533 = vpop.f32.mrf.mxu0
      %v3534 = vadd.f32 %v1387, %v3533
      %v3535 = vpop.f32.mrf.mxu0
      %v3536 = vadd.f32 %v1387, %v3535
      %3537 = vmatmul.bf16.gmra.mxu0 %v2308
      %v3538 = vpop.f32.mrf.mxu0
      %v3539 = vadd.f32 %v1387, %v3538
      %v3540 = vpop.f32.mrf.mxu0
      %v3541 = vadd.f32 %v1387, %v3540
      %3542 = vmatmul.bf16.gmra.mxu0 %v2311
      %v3543 = vpop.f32.mrf.mxu0
      %v3544 = vadd.f32 %v1387, %v3543
      %v3545 = vpop.f32.mrf.mxu0
      %v3546 = vadd.f32 %v1387, %v3545
      %3547 = vmatmul.bf16.gmra.mxu0 %v2314
      %v3548 = vpop.f32.mrf.mxu0
      %v3549 = vadd.f32 %v1387, %v3548
      %v3550 = vpop.f32.mrf.mxu0
      %v3551 = vadd.f32 %v1387, %v3550
      %3552 = vmatmul.bf16.gmra.mxu0 %v2317
      %v3553 = vpop.f32.mrf.mxu0
      %v3554 = vadd.f32 %v1387, %v3553
      %v3555 = vpop.f32.mrf.mxu0
      %v3556 = vadd.f32 %v1387, %v3555
      %3557 = vmatmul.bf16.gmra.mxu0 %v2320
      %v3558 = vpop.f32.mrf.mxu0
      %v3559 = vadd.f32 %v1387, %v3558
      %v3560 = vpop.f32.mrf.mxu0
      %v3561 = vadd.f32 %v1387, %v3560
      %3562 = vmatmul.bf16.gmra.mxu0 %v2323
      %v3563 = vpop.f32.mrf.mxu0
      %v3564 = vadd.f32 %v1387, %v3563
      %v3565 = vpop.f32.mrf.mxu0
      %v3566 = vadd.f32 %v1387, %v3565
      %3567 = vmatmul.bf16.gmra.mxu0 %v2326
      %v3568 = vpop.f32.mrf.mxu0
      %v3569 = vadd.f32 %v1387, %v3568
      %v3570 = vpop.f32.mrf.mxu0
      %v3571 = vadd.f32 %v1387, %v3570
      %3572 = vmatmul.bf16.gmra.mxu0 %v2329
      %v3573 = vpop.f32.mrf.mxu0
      %v3574 = vadd.f32 %v1387, %v3573
      %v3575 = vpop.f32.mrf.mxu0
      %v3576 = vadd.f32 %v1387, %v3575
      %3577 = vmatmul.bf16.gmra.mxu0 %v2332
      %v3578 = vpop.f32.mrf.mxu0
      %v3579 = vadd.f32 %v1387, %v3578
      %v3580 = vpop.f32.mrf.mxu0
      %v3581 = vadd.f32 %v1387, %v3580
      %3582 = vmatmul.bf16.gmra.mxu0 %v2335
      %v3583 = vpop.f32.mrf.mxu0
      %v3584 = vadd.f32 %v1387, %v3583
      %v3585 = vpop.f32.mrf.mxu0
      %v3586 = vadd.f32 %v1387, %v3585
      %3587 = vmatmul.bf16.gmra.mxu0 %v2338
      %v3588 = vpop.f32.mrf.mxu0
      %v3589 = vadd.f32 %v1387, %v3588
      %v3590 = vpop.f32.mrf.mxu0
      %v3591 = vadd.f32 %v1387, %v3590
      %3592 = vmatmul.bf16.gmra.mxu0 %v2341
      %v3593 = vpop.f32.mrf.mxu0
      %v3594 = vadd.f32 %v1387, %v3593
      %v3595 = vpop.f32.mrf.mxu0
      %v3596 = vadd.f32 %v1387, %v3595
      %3597 = vmatmul.bf16.gmra.mxu0 %v2344
      %v3598 = vpop.f32.mrf.mxu0
      %v3599 = vadd.f32 %v1387, %v3598
      %v3600 = vpop.f32.mrf.mxu0
      %v3601 = vadd.f32 %v1387, %v3600
      %3602 = vmatmul.bf16.gmra.mxu0 %v2347
      %v3603 = vpop.f32.mrf.mxu0
      %v3604 = vadd.f32 %v1387, %v3603
      %v3605 = vpop.f32.mrf.mxu0
      %v3606 = vadd.f32 %v1387, %v3605
      %3607 = vmatmul.bf16.gmra.mxu0 %v2350
      %v3608 = vpop.f32.mrf.mxu0
      %v3609 = vadd.f32 %v1387, %v3608
      %v3610 = vpop.f32.mrf.mxu0
      %v3611 = vadd.f32 %v1387, %v3610
      %3612 = vmatmul.bf16.gmra.mxu0 %v2353
      %v3613 = vpop.f32.mrf.mxu0
      %v3614 = vadd.f32 %v1387, %v3613
      %v3615 = vpop.f32.mrf.mxu0
      %v3616 = vadd.f32 %v1387, %v3615
      %3617 = vmatmul.bf16.gmra.mxu0 %v2356
      %v3618 = vpop.f32.mrf.mxu0
      %v3619 = vadd.f32 %v1387, %v3618
      %v3620 = vpop.f32.mrf.mxu0
      %v3621 = vadd.f32 %v1387, %v3620
      %3622 = vmatmul.bf16.gmra.mxu0 %v2359
      %v3623 = vpop.f32.mrf.mxu0
      %v3624 = vadd.f32 %v1387, %v3623
      %v3625 = vpop.f32.mrf.mxu0
      %v3626 = vadd.f32 %v1387, %v3625
      %3627 = vmatmul.bf16.gmra.mxu0 %v2362
      %v3628 = vpop.f32.mrf.mxu0
      %v3629 = vadd.f32 %v1387, %v3628
      %v3630 = vpop.f32.mrf.mxu0
      %v3631 = vadd.f32 %v1387, %v3630
      %3632 = vmatmul.bf16.gmra.mxu0 %v2365
      %v3633 = vpop.f32.mrf.mxu0
      %v3634 = vadd.f32 %v1387, %v3633
      %v3635 = vpop.f32.mrf.mxu0
      %v3636 = vadd.f32 %v1387, %v3635
      %3637 = vmatmul.bf16.gmra.mxu0 %v2368
      %v3638 = vpop.f32.mrf.mxu0
      %v3639 = vadd.f32 %v1387, %v3638
      %v3640 = vpop.f32.mrf.mxu0
      %v3641 = vadd.f32 %v1387, %v3640
      %3642 = vmatmul.bf16.gmra.mxu0 %v2371
      %v3643 = vpop.f32.mrf.mxu0
      %v3644 = vadd.f32 %v1387, %v3643
      %v3645 = vpop.f32.mrf.mxu0
      %v3646 = vadd.f32 %v1387, %v3645
      %3647 = vmatmul.bf16.gmra.mxu0 %v2374
      %v3648 = vpop.f32.mrf.mxu0
      %v3649 = vadd.f32 %v1387, %v3648
      %v3650 = vpop.f32.mrf.mxu0
      %v3651 = vadd.f32 %v1387, %v3650
      %3652 = vmatmul.bf16.gmra.mxu0 %v2377
      %v3653 = vpop.f32.mrf.mxu0
      %v3654 = vadd.f32 %v1387, %v3653
      %v3655 = vpop.f32.mrf.mxu0
      %v3656 = vadd.f32 %v1387, %v3655
      %3657 = vmatmul.bf16.gmra.mxu0 %v2380
      %v3658 = vpop.f32.mrf.mxu0
      %v3659 = vadd.f32 %v1387, %v3658
      %v3660 = vpop.f32.mrf.mxu0
      %v3661 = vadd.f32 %v1387, %v3660
      %3662 = vmatmul.bf16.gmra.mxu0 %v2383
      %v3663 = vpop.f32.mrf.mxu0
      %v3664 = vadd.f32 %v1387, %v3663
      %v3665 = vpop.f32.mrf.mxu0
      %v3666 = vadd.f32 %v1387, %v3665
      %3667 = vmatmul.bf16.gmra.mxu0 %v2386
      %v3668 = vpop.f32.mrf.mxu0
      %v3669 = vadd.f32 %v1387, %v3668
      %v3670 = vpop.f32.mrf.mxu0
      %v3671 = vadd.f32 %v1387, %v3670
      %3672 = vmatmul.bf16.gmra.mxu0 %v2389
      %v3673 = vpop.f32.mrf.mxu0
      %v3674 = vadd.f32 %v1387, %v3673
      %v3675 = vpop.f32.mrf.mxu0
      %v3676 = vadd.f32 %v1387, %v3675
      %3677 = vmatmul.bf16.gmra.mxu0 %v2392
      %v3678 = vpop.f32.mrf.mxu0
      %v3679 = vadd.f32 %v1387, %v3678
      %v3680 = vpop.f32.mrf.mxu0
      %v3681 = vadd.f32 %v1387, %v3680
      %3682 = vmatmul.bf16.gmra.mxu0 %v2395
      %v3683 = vpop.f32.mrf.mxu0
      %v3684 = vadd.f32 %v1387, %v3683
      %v3685 = vpop.f32.mrf.mxu0
      %v3686 = vadd.f32 %v1387, %v3685
      %3687 = vmatmul.bf16.gmra.mxu0 %v2398
      %v3688 = vpop.f32.mrf.mxu0
      %v3689 = vadd.f32 %v1387, %v3688
      %v3690 = vpop.f32.mrf.mxu0
      %v3691 = vadd.f32 %v1387, %v3690
      %3692 = vmatmul.bf16.gmra.mxu0 %v2401
      %v3693 = vpop.f32.mrf.mxu0
      %v3694 = vadd.f32 %v1387, %v3693
      %v3695 = vpop.f32.mrf.mxu0
      %v3696 = vadd.f32 %v1387, %v3695
      %3697 = vmatmul.bf16.gmra.mxu0 %v2404
      %v3698 = vpop.f32.mrf.mxu0
      %v3699 = vadd.f32 %v1387, %v3698
      %v3700 = vpop.f32.mrf.mxu0
      %v3701 = vadd.f32 %v1387, %v3700
      %3702 = vmatmul.bf16.gmra.mxu0 %v2407
      %v3703 = vpop.f32.mrf.mxu0
      %v3704 = vadd.f32 %v1387, %v3703
      %v3705 = vpop.f32.mrf.mxu0
      %v3706 = vadd.f32 %v1387, %v3705
      %3707 = vmatmul.bf16.gmra.mxu0 %v2410
      %v3708 = vpop.f32.mrf.mxu0
      %v3709 = vadd.f32 %v1387, %v3708
      %v3710 = vpop.f32.mrf.mxu0
      %v3711 = vadd.f32 %v1387, %v3710
      %3712 = vmatmul.bf16.gmra.mxu0 %v2413
      %v3713 = vpop.f32.mrf.mxu0
      %v3714 = vadd.f32 %v1387, %v3713
      %v3715 = vpop.f32.mrf.mxu0
      %v3716 = vadd.f32 %v1387, %v3715
      %3717 = vmatmul.bf16.gmra.mxu0 %v2416
      %v3718 = vpop.f32.mrf.mxu0
      %v3719 = vadd.f32 %v1387, %v3718
      %v3720 = vpop.f32.mrf.mxu0
      %v3721 = vadd.f32 %v1387, %v3720
      %3722 = vdwg.mxu0
      %v3739 = vrot.slane %v1293, 1
      %v3740 = vrot.slane %v1293, 2
      %v3741 = vrot.slane %v1293, 3
      %v3742 = vrot.slane %v1293, 4
      %v3743 = vrot.slane %v1293, 5
      %v3744 = vrot.slane %v1293, 6
      %v3745 = vrot.slane %v1293, 7
      %v3746 = vrot.slane %v1295, 1
      %v3747 = vrot.slane %v1295, 2
      %v3748 = vrot.slane %v1295, 3
      %v3749 = vrot.slane %v1295, 4
      %v3750 = vrot.slane %v1295, 5
      %v3751 = vrot.slane %v1295, 6
      %v3752 = vrot.slane %v1295, 7
      %v3753 = vrot.slane %v1298, 1
      %v3754 = vrot.slane %v1298, 2
      %v3755 = vrot.slane %v1298, 3
      %v3756 = vrot.slane %v1298, 4
      %v3757 = vrot.slane %v1298, 5
      %v3758 = vrot.slane %v1298, 6
      %v3759 = vrot.slane %v1298, 7
      %v3760 = vrot.slane %v1300, 1
      %v3761 = vrot.slane %v1300, 2
      %v3762 = vrot.slane %v1300, 3
      %v3763 = vrot.slane %v1300, 4
      %v3764 = vrot.slane %v1300, 5
      %v3765 = vrot.slane %v1300, 6
      %v3766 = vrot.slane %v1300, 7
      %v3767 = vrot.slane %v1303, 1
      %v3768 = vrot.slane %v1303, 2
      %v3769 = vrot.slane %v1303, 3
      %v3770 = vrot.slane %v1303, 4
      %v3771 = vrot.slane %v1303, 5
      %v3772 = vrot.slane %v1303, 6
      %v3773 = vrot.slane %v1303, 7
      %v3774 = vrot.slane %v1305, 1
      %v3775 = vrot.slane %v1305, 2
      %v3776 = vrot.slane %v1305, 3
      %v3777 = vrot.slane %v1305, 4
      %v3778 = vrot.slane %v1305, 5
      %v3779 = vrot.slane %v1305, 6
      %v3780 = vrot.slane %v1305, 7
      %v3781 = vrot.slane %v1308, 1
      %v3782 = vrot.slane %v1308, 2
      %v3783 = vrot.slane %v1308, 3
      %v3784 = vrot.slane %v1308, 4
      %v3785 = vrot.slane %v1308, 5
      %v3786 = vrot.slane %v1308, 6
      %v3787 = vrot.slane %v1308, 7
      %v3788 = vrot.slane %v1310, 1
      %v3789 = vrot.slane %v1310, 2
      %v3790 = vrot.slane %v1310, 3
      %v3791 = vrot.slane %v1310, 4
      %v3792 = vrot.slane %v1310, 5
      %v3793 = vrot.slane %v1310, 6
      %v3794 = vrot.slane %v1310, 7
      %v3795 = vrot.slane %v1313, 1
      %v3796 = vrot.slane %v1313, 2
      %v3797 = vrot.slane %v1313, 3
      %v3798 = vrot.slane %v1313, 4
      %v3799 = vrot.slane %v1313, 5
      %v3800 = vrot.slane %v1313, 6
      %v3801 = vrot.slane %v1313, 7
      %v3802 = vrot.slane %v1315, 1
      %v3803 = vrot.slane %v1315, 2
      %v3804 = vrot.slane %v1315, 3
      %v3805 = vrot.slane %v1315, 4
      %v3806 = vrot.slane %v1315, 5
      %v3807 = vrot.slane %v1315, 6
      %v3808 = vrot.slane %v1315, 7
      %v3809 = vrot.slane %v1318, 1
      %v3810 = vrot.slane %v1318, 2
      %v3811 = vrot.slane %v1318, 3
      %v3812 = vrot.slane %v1318, 4
      %v3813 = vrot.slane %v1318, 5
      %v3814 = vrot.slane %v1318, 6
      %v3815 = vrot.slane %v1318, 7
      %v3816 = vrot.slane %v1320, 1
      %v3817 = vrot.slane %v1320, 2
      %v3818 = vrot.slane %v1320, 3
      %v3819 = vrot.slane %v1320, 4
      %v3820 = vrot.slane %v1320, 5
      %v3821 = vrot.slane %v1320, 6
      %v3822 = vrot.slane %v1320, 7
      %v3823 = vrot.slane %v1323, 1
      %v3824 = vrot.slane %v1323, 2
      %v3825 = vrot.slane %v1323, 3
      %v3826 = vrot.slane %v1323, 4
      %v3827 = vrot.slane %v1323, 5
      %v3828 = vrot.slane %v1323, 6
      %v3829 = vrot.slane %v1323, 7
      %v3830 = vrot.slane %v1325, 1
      %v3831 = vrot.slane %v1325, 2
      %v3832 = vrot.slane %v1325, 3
      %v3833 = vrot.slane %v1325, 4
      %v3834 = vrot.slane %v1325, 5
      %v3835 = vrot.slane %v1325, 6
      %v3836 = vrot.slane %v1325, 7
      %v3837 = vrot.slane %v1328, 1
      %v3838 = vrot.slane %v1328, 2
      %v3839 = vrot.slane %v1328, 3
      %v3840 = vrot.slane %v1328, 4
      %v3841 = vrot.slane %v1328, 5
      %v3842 = vrot.slane %v1328, 6
      %v3843 = vrot.slane %v1328, 7
      %v3844 = vrot.slane %v1330, 1
      %v3845 = vrot.slane %v1330, 2
      %v3846 = vrot.slane %v1330, 3
      %v3847 = vrot.slane %v1330, 4
      %v3848 = vrot.slane %v1330, 5
      %v3849 = vrot.slane %v1330, 6
      %v3850 = vrot.slane %v1330, 7
      %v3851 = vperm.slane %v1293, 0
      %v3852 = vperm.slane %v3739, 0
      %v3853 = vperm.slane %v3740, 0
      %v3854 = vperm.slane %v3741, 0
      %v3855 = vperm.slane %v3742, 0
      %v3856 = vperm.slane %v3743, 0
      %v3857 = vperm.slane %v3744, 0
      %v3858 = vperm.slane %v3745, 0
      %v3859 = vperm.slane %v1295, 0
      %v3860 = vperm.slane %v3746, 0
      %v3861 = vperm.slane %v3747, 0
      %v3862 = vperm.slane %v3748, 0
      %v3863 = vperm.slane %v3749, 0
      %v3864 = vperm.slane %v3750, 0
      %v3865 = vperm.slane %v3751, 0
      %v3866 = vperm.slane %v3752, 0
      %v3867 = vperm.slane %v1298, 0
      %v3868 = vperm.slane %v3753, 0
      %v3869 = vperm.slane %v3754, 0
      %v3870 = vperm.slane %v3755, 0
      %v3871 = vperm.slane %v3756, 0
      %v3872 = vperm.slane %v3757, 0
      %v3873 = vperm.slane %v3758, 0
      %v3874 = vperm.slane %v3759, 0
      %v3875 = vperm.slane %v1300, 0
      %v3876 = vperm.slane %v3760, 0
      %v3877 = vperm.slane %v3761, 0
      %v3878 = vperm.slane %v3762, 0
      %v3879 = vperm.slane %v3763, 0
      %v3880 = vperm.slane %v3764, 0
      %v3881 = vperm.slane %v3765, 0
      %v3882 = vperm.slane %v3766, 0
      %v3883 = vperm.slane %v1303, 0
      %v3884 = vperm.slane %v3767, 0
      %v3885 = vperm.slane %v3768, 0
      %v3886 = vperm.slane %v3769, 0
      %v3887 = vperm.slane %v3770, 0
      %v3888 = vperm.slane %v3771, 0
      %v3889 = vperm.slane %v3772, 0
      %v3890 = vperm.slane %v3773, 0
      %v3891 = vperm.slane %v1305, 0
      %v3892 = vperm.slane %v3774, 0
      %v3893 = vperm.slane %v3775, 0
      %v3894 = vperm.slane %v3776, 0
      %v3895 = vperm.slane %v3777, 0
      %v3896 = vperm.slane %v3778, 0
      %v3897 = vperm.slane %v3779, 0
      %v3898 = vperm.slane %v3780, 0
      %v3899 = vperm.slane %v1308, 0
      %v3900 = vperm.slane %v3781, 0
      %v3901 = vperm.slane %v3782, 0
      %v3902 = vperm.slane %v3783, 0
      %v3903 = vperm.slane %v3784, 0
      %v3904 = vperm.slane %v3785, 0
      %v3905 = vperm.slane %v3786, 0
      %v3906 = vperm.slane %v3787, 0
      %v3907 = vperm.slane %v1310, 0
      %v3908 = vperm.slane %v3788, 0
      %v3909 = vperm.slane %v3789, 0
      %v3910 = vperm.slane %v3790, 0
      %v3911 = vperm.slane %v3791, 0
      %v3912 = vperm.slane %v3792, 0
      %v3913 = vperm.slane %v3793, 0
      %v3914 = vperm.slane %v3794, 0
      %v3915 = vperm.slane %v1313, 0
      %v3916 = vperm.slane %v3795, 0
      %v3917 = vperm.slane %v3796, 0
      %v3918 = vperm.slane %v3797, 0
      %v3919 = vperm.slane %v3798, 0
      %v3920 = vperm.slane %v3799, 0
      %v3921 = vperm.slane %v3800, 0
      %v3922 = vperm.slane %v3801, 0
      %v3923 = vperm.slane %v1315, 0
      %v3924 = vperm.slane %v3802, 0
      %v3925 = vperm.slane %v3803, 0
      %v3926 = vperm.slane %v3804, 0
      %v3927 = vperm.slane %v3805, 0
      %v3928 = vperm.slane %v3806, 0
      %v3929 = vperm.slane %v3807, 0
      %v3930 = vperm.slane %v3808, 0
      %v3931 = vperm.slane %v1318, 0
      %v3932 = vperm.slane %v3809, 0
      %v3933 = vperm.slane %v3810, 0
      %v3934 = vperm.slane %v3811, 0
      %v3935 = vperm.slane %v3812, 0
      %v3936 = vperm.slane %v3813, 0
      %v3937 = vperm.slane %v3814, 0
      %v3938 = vperm.slane %v3815, 0
      %v3939 = vperm.slane %v1320, 0
      %v3940 = vperm.slane %v3816, 0
      %v3941 = vperm.slane %v3817, 0
      %v3942 = vperm.slane %v3818, 0
      %v3943 = vperm.slane %v3819, 0
      %v3944 = vperm.slane %v3820, 0
      %v3945 = vperm.slane %v3821, 0
      %v3946 = vperm.slane %v3822, 0
      %v3947 = vperm.slane %v1323, 0
      %v3948 = vperm.slane %v3823, 0
      %v3949 = vperm.slane %v3824, 0
      %v3950 = vperm.slane %v3825, 0
      %v3951 = vperm.slane %v3826, 0
      %v3952 = vperm.slane %v3827, 0
      %v3953 = vperm.slane %v3828, 0
      %v3954 = vperm.slane %v3829, 0
      %v3955 = vperm.slane %v1325, 0
      %v3956 = vperm.slane %v3830, 0
      %v3957 = vperm.slane %v3831, 0
      %v3958 = vperm.slane %v3832, 0
      %v3959 = vperm.slane %v3833, 0
      %v3960 = vperm.slane %v3834, 0
      %v3961 = vperm.slane %v3835, 0
      %v3962 = vperm.slane %v3836, 0
      %v3963 = vperm.slane %v1328, 0
      %v3964 = vperm.slane %v3837, 0
      %v3965 = vperm.slane %v3838, 0
      %v3966 = vperm.slane %v3839, 0
      %v3967 = vperm.slane %v3840, 0
      %v3968 = vperm.slane %v3841, 0
      %v3969 = vperm.slane %v3842, 0
      %v3970 = vperm.slane %v3843, 0
      %v3971 = vperm.slane %v1330, 0
      %v3972 = vperm.slane %v3844, 0
      %v3973 = vperm.slane %v3845, 0
      %v3974 = vperm.slane %v3846, 0
      %v3975 = vperm.slane %v3847, 0
      %v3976 = vperm.slane %v3848, 0
      %v3977 = vperm.slane %v3849, 0
      %v3978 = vperm.slane %v3850, 0
      %v4107 = vmul.f32 %v1244, %v3851
      %v4108 = vmul.f32 %v1246, %v3851
      %v4109 = vmul.f32 %v1244, %v3852
      %v4110 = vmul.f32 %v1246, %v3852
      %v4111 = vmul.f32 %v1244, %v3853
      %v4112 = vmul.f32 %v1246, %v3853
      %v4113 = vmul.f32 %v1244, %v3854
      %v4114 = vmul.f32 %v1246, %v3854
      %v4115 = vmul.f32 %v1244, %v3855
      %v4116 = vmul.f32 %v1246, %v3855
      %v4117 = vmul.f32 %v1244, %v3856
      %v4118 = vmul.f32 %v1246, %v3856
      %v4119 = vmul.f32 %v1244, %v3857
      %v4120 = vmul.f32 %v1246, %v3857
      %v4121 = vmul.f32 %v1244, %v3858
      %v4122 = vmul.f32 %v1246, %v3858
      %v4123 = vmul.f32 %v1244, %v3859
      %v4124 = vmul.f32 %v1246, %v3859
      %v4125 = vmul.f32 %v1244, %v3860
      %v4126 = vmul.f32 %v1246, %v3860
      %v4127 = vmul.f32 %v1244, %v3861
      %v4128 = vmul.f32 %v1246, %v3861
      %v4129 = vmul.f32 %v1244, %v3862
      %v4130 = vmul.f32 %v1246, %v3862
      %v4131 = vmul.f32 %v1244, %v3863
      %v4132 = vmul.f32 %v1246, %v3863
      %v4133 = vmul.f32 %v1244, %v3864
      %v4134 = vmul.f32 %v1246, %v3864
      %v4135 = vmul.f32 %v1244, %v3865
      %v4136 = vmul.f32 %v1246, %v3865
      %v4137 = vmul.f32 %v1244, %v3866
      %v4138 = vmul.f32 %v1246, %v3866
      %v4139 = vmul.f32 %v1249, %v3867
      %v4140 = vmul.f32 %v1251, %v3867
      %v4141 = vmul.f32 %v1249, %v3868
      %v4142 = vmul.f32 %v1251, %v3868
      %v4143 = vmul.f32 %v1249, %v3869
      %v4144 = vmul.f32 %v1251, %v3869
      %v4145 = vmul.f32 %v1249, %v3870
      %v4146 = vmul.f32 %v1251, %v3870
      %v4147 = vmul.f32 %v1249, %v3871
      %v4148 = vmul.f32 %v1251, %v3871
      %v4149 = vmul.f32 %v1249, %v3872
      %v4150 = vmul.f32 %v1251, %v3872
      %v4151 = vmul.f32 %v1249, %v3873
      %v4152 = vmul.f32 %v1251, %v3873
      %v4153 = vmul.f32 %v1249, %v3874
      %v4154 = vmul.f32 %v1251, %v3874
      %v4155 = vmul.f32 %v1249, %v3875
      %v4156 = vmul.f32 %v1251, %v3875
      %v4157 = vmul.f32 %v1249, %v3876
      %v4158 = vmul.f32 %v1251, %v3876
      %v4159 = vmul.f32 %v1249, %v3877
      %v4160 = vmul.f32 %v1251, %v3877
      %v4161 = vmul.f32 %v1249, %v3878
      %v4162 = vmul.f32 %v1251, %v3878
      %v4163 = vmul.f32 %v1249, %v3879
      %v4164 = vmul.f32 %v1251, %v3879
      %v4165 = vmul.f32 %v1249, %v3880
      %v4166 = vmul.f32 %v1251, %v3880
      %v4167 = vmul.f32 %v1249, %v3881
      %v4168 = vmul.f32 %v1251, %v3881
      %v4169 = vmul.f32 %v1249, %v3882
      %v4170 = vmul.f32 %v1251, %v3882
      %v4171 = vmul.f32 %v1254, %v3883
      %v4172 = vmul.f32 %v1256, %v3883
      %v4173 = vmul.f32 %v1254, %v3884
      %v4174 = vmul.f32 %v1256, %v3884
      %v4175 = vmul.f32 %v1254, %v3885
      %v4176 = vmul.f32 %v1256, %v3885
      %v4177 = vmul.f32 %v1254, %v3886
      %v4178 = vmul.f32 %v1256, %v3886
      %v4179 = vmul.f32 %v1254, %v3887
      %v4180 = vmul.f32 %v1256, %v3887
      %v4181 = vmul.f32 %v1254, %v3888
      %v4182 = vmul.f32 %v1256, %v3888
      %v4183 = vmul.f32 %v1254, %v3889
      %v4184 = vmul.f32 %v1256, %v3889
      %v4185 = vmul.f32 %v1254, %v3890
      %v4186 = vmul.f32 %v1256, %v3890
      %v4187 = vmul.f32 %v1254, %v3891
      %v4188 = vmul.f32 %v1256, %v3891
      %v4189 = vmul.f32 %v1254, %v3892
      %v4190 = vmul.f32 %v1256, %v3892
      %v4191 = vmul.f32 %v1254, %v3893
      %v4192 = vmul.f32 %v1256, %v3893
      %v4193 = vmul.f32 %v1254, %v3894
      %v4194 = vmul.f32 %v1256, %v3894
      %v4195 = vmul.f32 %v1254, %v3895
      %v4196 = vmul.f32 %v1256, %v3895
      %v4197 = vmul.f32 %v1254, %v3896
      %v4198 = vmul.f32 %v1256, %v3896
      %v4199 = vmul.f32 %v1254, %v3897
      %v4200 = vmul.f32 %v1256, %v3897
      %v4201 = vmul.f32 %v1254, %v3898
      %v4202 = vmul.f32 %v1256, %v3898
      %v4203 = vmul.f32 %v1259, %v3899
      %v4204 = vmul.f32 %v1261, %v3899
      %v4205 = vmul.f32 %v1259, %v3900
      %v4206 = vmul.f32 %v1261, %v3900
      %v4207 = vmul.f32 %v1259, %v3901
      %v4208 = vmul.f32 %v1261, %v3901
      %v4209 = vmul.f32 %v1259, %v3902
      %v4210 = vmul.f32 %v1261, %v3902
      %v4211 = vmul.f32 %v1259, %v3903
      %v4212 = vmul.f32 %v1261, %v3903
      %v4213 = vmul.f32 %v1259, %v3904
      %v4214 = vmul.f32 %v1261, %v3904
      %v4215 = vmul.f32 %v1259, %v3905
      %v4216 = vmul.f32 %v1261, %v3905
      %v4217 = vmul.f32 %v1259, %v3906
      %v4218 = vmul.f32 %v1261, %v3906
      %v4219 = vmul.f32 %v1259, %v3907
      %v4220 = vmul.f32 %v1261, %v3907
      %v4221 = vmul.f32 %v1259, %v3908
      %v4222 = vmul.f32 %v1261, %v3908
      %v4223 = vmul.f32 %v1259, %v3909
      %v4224 = vmul.f32 %v1261, %v3909
      %v4225 = vmul.f32 %v1259, %v3910
      %v4226 = vmul.f32 %v1261, %v3910
      %v4227 = vmul.f32 %v1259, %v3911
      %v4228 = vmul.f32 %v1261, %v3911
      %v4229 = vmul.f32 %v1259, %v3912
      %v4230 = vmul.f32 %v1261, %v3912
      %v4231 = vmul.f32 %v1259, %v3913
      %v4232 = vmul.f32 %v1261, %v3913
      %v4233 = vmul.f32 %v1259, %v3914
      %v4234 = vmul.f32 %v1261, %v3914
      %v4235 = vmul.f32 %v1264, %v3915
      %v4236 = vmul.f32 %v1266, %v3915
      %v4237 = vmul.f32 %v1264, %v3916
      %v4238 = vmul.f32 %v1266, %v3916
      %v4239 = vmul.f32 %v1264, %v3917
      %v4240 = vmul.f32 %v1266, %v3917
      %v4241 = vmul.f32 %v1264, %v3918
      %v4242 = vmul.f32 %v1266, %v3918
      %v4243 = vmul.f32 %v1264, %v3919
      %v4244 = vmul.f32 %v1266, %v3919
      %v4245 = vmul.f32 %v1264, %v3920
      %v4246 = vmul.f32 %v1266, %v3920
      %v4247 = vmul.f32 %v1264, %v3921
      %v4248 = vmul.f32 %v1266, %v3921
      %v4249 = vmul.f32 %v1264, %v3922
      %v4250 = vmul.f32 %v1266, %v3922
      %v4251 = vmul.f32 %v1264, %v3923
      %v4252 = vmul.f32 %v1266, %v3923
      %v4253 = vmul.f32 %v1264, %v3924
      %v4254 = vmul.f32 %v1266, %v3924
      %v4255 = vmul.f32 %v1264, %v3925
      %v4256 = vmul.f32 %v1266, %v3925
      %v4257 = vmul.f32 %v1264, %v3926
      %v4258 = vmul.f32 %v1266, %v3926
      %v4259 = vmul.f32 %v1264, %v3927
      %v4260 = vmul.f32 %v1266, %v3927
      %v4261 = vmul.f32 %v1264, %v3928
      %v4262 = vmul.f32 %v1266, %v3928
      %v4263 = vmul.f32 %v1264, %v3929
      %v4264 = vmul.f32 %v1266, %v3929
      %v4265 = vmul.f32 %v1264, %v3930
      %v4266 = vmul.f32 %v1266, %v3930
      %v4267 = vmul.f32 %v1269, %v3931
      %v4268 = vmul.f32 %v1271, %v3931
      %v4269 = vmul.f32 %v1269, %v3932
      %v4270 = vmul.f32 %v1271, %v3932
      %v4271 = vmul.f32 %v1269, %v3933
      %v4272 = vmul.f32 %v1271, %v3933
      %v4273 = vmul.f32 %v1269, %v3934
      %v4274 = vmul.f32 %v1271, %v3934
      %v4275 = vmul.f32 %v1269, %v3935
      %v4276 = vmul.f32 %v1271, %v3935
      %v4277 = vmul.f32 %v1269, %v3936
      %v4278 = vmul.f32 %v1271, %v3936
      %v4279 = vmul.f32 %v1269, %v3937
      %v4280 = vmul.f32 %v1271, %v3937
      %v4281 = vmul.f32 %v1269, %v3938
      %v4282 = vmul.f32 %v1271, %v3938
      %v4283 = vmul.f32 %v1269, %v3939
      %v4284 = vmul.f32 %v1271, %v3939
      %v4285 = vmul.f32 %v1269, %v3940
      %v4286 = vmul.f32 %v1271, %v3940
      %v4287 = vmul.f32 %v1269, %v3941
      %v4288 = vmul.f32 %v1271, %v3941
      %v4289 = vmul.f32 %v1269, %v3942
      %v4290 = vmul.f32 %v1271, %v3942
      %v4291 = vmul.f32 %v1269, %v3943
      %v4292 = vmul.f32 %v1271, %v3943
      %v4293 = vmul.f32 %v1269, %v3944
      %v4294 = vmul.f32 %v1271, %v3944
      %v4295 = vmul.f32 %v1269, %v3945
      %v4296 = vmul.f32 %v1271, %v3945
      %v4297 = vmul.f32 %v1269, %v3946
      %v4298 = vmul.f32 %v1271, %v3946
      %v4299 = vmul.f32 %v1274, %v3947
      %v4300 = vmul.f32 %v1276, %v3947
      %v4301 = vmul.f32 %v1274, %v3948
      %v4302 = vmul.f32 %v1276, %v3948
      %v4303 = vmul.f32 %v1274, %v3949
      %v4304 = vmul.f32 %v1276, %v3949
      %v4305 = vmul.f32 %v1274, %v3950
      %v4306 = vmul.f32 %v1276, %v3950
      %v4307 = vmul.f32 %v1274, %v3951
      %v4308 = vmul.f32 %v1276, %v3951
      %v4309 = vmul.f32 %v1274, %v3952
      %v4310 = vmul.f32 %v1276, %v3952
      %v4311 = vmul.f32 %v1274, %v3953
      %v4312 = vmul.f32 %v1276, %v3953
      %v4313 = vmul.f32 %v1274, %v3954
      %v4314 = vmul.f32 %v1276, %v3954
      %v4315 = vmul.f32 %v1274, %v3955
      %v4316 = vmul.f32 %v1276, %v3955
      %v4317 = vmul.f32 %v1274, %v3956
      %v4318 = vmul.f32 %v1276, %v3956
      %v4319 = vmul.f32 %v1274, %v3957
      %v4320 = vmul.f32 %v1276, %v3957
      %v4321 = vmul.f32 %v1274, %v3958
      %v4322 = vmul.f32 %v1276, %v3958
      %v4323 = vmul.f32 %v1274, %v3959
      %v4324 = vmul.f32 %v1276, %v3959
      %v4325 = vmul.f32 %v1274, %v3960
      %v4326 = vmul.f32 %v1276, %v3960
      %v4327 = vmul.f32 %v1274, %v3961
      %v4328 = vmul.f32 %v1276, %v3961
      %v4329 = vmul.f32 %v1274, %v3962
      %v4330 = vmul.f32 %v1276, %v3962
      %v4331 = vmul.f32 %v1279, %v3963
      %v4332 = vmul.f32 %v1281, %v3963
      %v4333 = vmul.f32 %v1279, %v3964
      %v4334 = vmul.f32 %v1281, %v3964
      %v4335 = vmul.f32 %v1279, %v3965
      %v4336 = vmul.f32 %v1281, %v3965
      %v4337 = vmul.f32 %v1279, %v3966
      %v4338 = vmul.f32 %v1281, %v3966
      %v4339 = vmul.f32 %v1279, %v3967
      %v4340 = vmul.f32 %v1281, %v3967
      %v4341 = vmul.f32 %v1279, %v3968
      %v4342 = vmul.f32 %v1281, %v3968
      %v4343 = vmul.f32 %v1279, %v3969
      %v4344 = vmul.f32 %v1281, %v3969
      %v4345 = vmul.f32 %v1279, %v3970
      %v4346 = vmul.f32 %v1281, %v3970
      %v4347 = vmul.f32 %v1279, %v3971
      %v4348 = vmul.f32 %v1281, %v3971
      %v4349 = vmul.f32 %v1279, %v3972
      %v4350 = vmul.f32 %v1281, %v3972
      %v4351 = vmul.f32 %v1279, %v3973
      %v4352 = vmul.f32 %v1281, %v3973
      %v4353 = vmul.f32 %v1279, %v3974
      %v4354 = vmul.f32 %v1281, %v3974
      %v4355 = vmul.f32 %v1279, %v3975
      %v4356 = vmul.f32 %v1281, %v3975
      %v4357 = vmul.f32 %v1279, %v3976
      %v4358 = vmul.f32 %v1281, %v3976
      %v4359 = vmul.f32 %v1279, %v3977
      %v4360 = vmul.f32 %v1281, %v3977
      %v4361 = vmul.f32 %v1279, %v3978
      %v4362 = vmul.f32 %v1281, %v3978
      %v4363 = vmul.f32 %v4107, %v2435
      %v4364 = vmul.f32 %v4108, %v2437
      %v4365 = vmul.f32 %v4109, %v2440
      %v4366 = vmul.f32 %v4110, %v2442
      %v4367 = vmul.f32 %v4111, %v2445
      %v4368 = vmul.f32 %v4112, %v2447
      %v4369 = vmul.f32 %v4113, %v2450
      %v4370 = vmul.f32 %v4114, %v2452
      %v4371 = vmul.f32 %v4115, %v2455
      %v4372 = vmul.f32 %v4116, %v2457
      %v4373 = vmul.f32 %v4117, %v2460
      %v4374 = vmul.f32 %v4118, %v2462
      %v4375 = vmul.f32 %v4119, %v2465
      %v4376 = vmul.f32 %v4120, %v2467
      %v4377 = vmul.f32 %v4121, %v2470
      %v4378 = vmul.f32 %v4122, %v2472
      %v4379 = vmul.f32 %v4123, %v2475
      %v4380 = vmul.f32 %v4124, %v2477
      %v4381 = vmul.f32 %v4125, %v2480
      %v4382 = vmul.f32 %v4126, %v2482
      %v4383 = vmul.f32 %v4127, %v2485
      %v4384 = vmul.f32 %v4128, %v2487
      %v4385 = vmul.f32 %v4129, %v2490
      %v4386 = vmul.f32 %v4130, %v2492
      %v4387 = vmul.f32 %v4131, %v2495
      %v4388 = vmul.f32 %v4132, %v2497
      %v4389 = vmul.f32 %v4133, %v2500
      %v4390 = vmul.f32 %v4134, %v2502
      %v4391 = vmul.f32 %v4135, %v2505
      %v4392 = vmul.f32 %v4136, %v2507
      %v4393 = vmul.f32 %v4137, %v2510
      %v4394 = vmul.f32 %v4138, %v2512
      %v4395 = vmul.f32 %v4139, %v2515
      %v4396 = vmul.f32 %v4140, %v2517
      %v4397 = vmul.f32 %v4141, %v2520
      %v4398 = vmul.f32 %v4142, %v2522
      %v4399 = vmul.f32 %v4143, %v2525
      %v4400 = vmul.f32 %v4144, %v2527
      %v4401 = vmul.f32 %v4145, %v2530
      %v4402 = vmul.f32 %v4146, %v2532
      %v4403 = vmul.f32 %v4147, %v2535
      %v4404 = vmul.f32 %v4148, %v2537
      %v4405 = vmul.f32 %v4149, %v2540
      %v4406 = vmul.f32 %v4150, %v2542
      %v4407 = vmul.f32 %v4151, %v2545
      %v4408 = vmul.f32 %v4152, %v2547
      %v4409 = vmul.f32 %v4153, %v2550
      %v4410 = vmul.f32 %v4154, %v2552
      %v4411 = vmul.f32 %v4155, %v2555
      %v4412 = vmul.f32 %v4156, %v2557
      %v4413 = vmul.f32 %v4157, %v2560
      %v4414 = vmul.f32 %v4158, %v2562
      %v4415 = vmul.f32 %v4159, %v2565
      %v4416 = vmul.f32 %v4160, %v2567
      %v4417 = vmul.f32 %v4161, %v2570
      %v4418 = vmul.f32 %v4162, %v2572
      %v4419 = vmul.f32 %v4163, %v2575
      %v4420 = vmul.f32 %v4164, %v2577
      %v4421 = vmul.f32 %v4165, %v2580
      %v4422 = vmul.f32 %v4166, %v2582
      %v4423 = vmul.f32 %v4167, %v2585
      %v4424 = vmul.f32 %v4168, %v2587
      %v4425 = vmul.f32 %v4169, %v2590
      %v4426 = vmul.f32 %v4170, %v2592
      %v4427 = vmul.f32 %v4171, %v2595
      %v4428 = vmul.f32 %v4172, %v2597
      %v4429 = vmul.f32 %v4173, %v2600
      %v4430 = vmul.f32 %v4174, %v2602
      %v4431 = vmul.f32 %v4175, %v2605
      %v4432 = vmul.f32 %v4176, %v2607
      %v4433 = vmul.f32 %v4177, %v2610
      %v4434 = vmul.f32 %v4178, %v2612
      %v4435 = vmul.f32 %v4179, %v2615
      %v4436 = vmul.f32 %v4180, %v2617
      %v4437 = vmul.f32 %v4181, %v2620
      %v4438 = vmul.f32 %v4182, %v2622
      %v4439 = vmul.f32 %v4183, %v2625
      %v4440 = vmul.f32 %v4184, %v2627
      %v4441 = vmul.f32 %v4185, %v2630
      %v4442 = vmul.f32 %v4186, %v2632
      %v4443 = vmul.f32 %v4187, %v2635
      %v4444 = vmul.f32 %v4188, %v2637
      %v4445 = vmul.f32 %v4189, %v2640
      %v4446 = vmul.f32 %v4190, %v2642
      %v4447 = vmul.f32 %v4191, %v2645
      %v4448 = vmul.f32 %v4192, %v2647
      %v4449 = vmul.f32 %v4193, %v2650
      %v4450 = vmul.f32 %v4194, %v2652
      %v4451 = vmul.f32 %v4195, %v2655
      %v4452 = vmul.f32 %v4196, %v2657
      %v4453 = vmul.f32 %v4197, %v2660
      %v4454 = vmul.f32 %v4198, %v2662
      %v4455 = vmul.f32 %v4199, %v2665
      %v4456 = vmul.f32 %v4200, %v2667
      %v4457 = vmul.f32 %v4201, %v2670
      %v4458 = vmul.f32 %v4202, %v2672
      %v4459 = vmul.f32 %v4203, %v2675
      %v4460 = vmul.f32 %v4204, %v2677
      %v4461 = vmul.f32 %v4205, %v2680
      %v4462 = vmul.f32 %v4206, %v2682
      %v4463 = vmul.f32 %v4207, %v2685
      %v4464 = vmul.f32 %v4208, %v2687
      %v4465 = vmul.f32 %v4209, %v2690
      %v4466 = vmul.f32 %v4210, %v2692
      %v4467 = vmul.f32 %v4211, %v2695
      %v4468 = vmul.f32 %v4212, %v2697
      %v4469 = vmul.f32 %v4213, %v2700
      %v4470 = vmul.f32 %v4214, %v2702
      %v4471 = vmul.f32 %v4215, %v2705
      %v4472 = vmul.f32 %v4216, %v2707
      %v4473 = vmul.f32 %v4217, %v2710
      %v4474 = vmul.f32 %v4218, %v2712
      %v4475 = vmul.f32 %v4219, %v2715
      %v4476 = vmul.f32 %v4220, %v2717
      %v4477 = vmul.f32 %v4221, %v2720
      %v4478 = vmul.f32 %v4222, %v2722
      %v4479 = vmul.f32 %v4223, %v2725
      %v4480 = vmul.f32 %v4224, %v2727
      %v4481 = vmul.f32 %v4225, %v2730
      %v4482 = vmul.f32 %v4226, %v2732
      %v4483 = vmul.f32 %v4227, %v2735
      %v4484 = vmul.f32 %v4228, %v2737
      %v4485 = vmul.f32 %v4229, %v2740
      %v4486 = vmul.f32 %v4230, %v2742
      %v4487 = vmul.f32 %v4231, %v2745
      %v4488 = vmul.f32 %v4232, %v2747
      %v4489 = vmul.f32 %v4233, %v2750
      %v4490 = vmul.f32 %v4234, %v2752
      %v4491 = vmul.f32 %v4235, %v2755
      %v4492 = vmul.f32 %v4236, %v2757
      %v4493 = vmul.f32 %v4237, %v2760
      %v4494 = vmul.f32 %v4238, %v2762
      %v4495 = vmul.f32 %v4239, %v2765
      %v4496 = vmul.f32 %v4240, %v2767
      %v4497 = vmul.f32 %v4241, %v2770
      %v4498 = vmul.f32 %v4242, %v2772
      %v4499 = vmul.f32 %v4243, %v2775
      %v4500 = vmul.f32 %v4244, %v2777
      %v4501 = vmul.f32 %v4245, %v2780
      %v4502 = vmul.f32 %v4246, %v2782
      %v4503 = vmul.f32 %v4247, %v2785
      %v4504 = vmul.f32 %v4248, %v2787
      %v4505 = vmul.f32 %v4249, %v2790
      %v4506 = vmul.f32 %v4250, %v2792
      %v4507 = vmul.f32 %v4251, %v2795
      %v4508 = vmul.f32 %v4252, %v2797
      %v4509 = vmul.f32 %v4253, %v2800
      %v4510 = vmul.f32 %v4254, %v2802
      %v4511 = vmul.f32 %v4255, %v2805
      %v4512 = vmul.f32 %v4256, %v2807
      %v4513 = vmul.f32 %v4257, %v2810
      %v4514 = vmul.f32 %v4258, %v2812
      %v4515 = vmul.f32 %v4259, %v2815
      %v4516 = vmul.f32 %v4260, %v2817
      %v4517 = vmul.f32 %v4261, %v2820
      %v4518 = vmul.f32 %v4262, %v2822
      %v4519 = vmul.f32 %v4263, %v2825
      %v4520 = vmul.f32 %v4264, %v2827
      %v4521 = vmul.f32 %v4265, %v2830
      %v4522 = vmul.f32 %v4266, %v2832
      %v4523 = vmul.f32 %v4267, %v2835
      %v4524 = vmul.f32 %v4268, %v2837
      %v4525 = vmul.f32 %v4269, %v2840
      %v4526 = vmul.f32 %v4270, %v2842
      %v4527 = vmul.f32 %v4271, %v2845
      %v4528 = vmul.f32 %v4272, %v2847
      %v4529 = vmul.f32 %v4273, %v2850
      %v4530 = vmul.f32 %v4274, %v2852
      %v4531 = vmul.f32 %v4275, %v2855
      %v4532 = vmul.f32 %v4276, %v2857
      %v4533 = vmul.f32 %v4277, %v2860
      %v4534 = vmul.f32 %v4278, %v2862
      %v4535 = vmul.f32 %v4279, %v2865
      %v4536 = vmul.f32 %v4280, %v2867
      %v4537 = vmul.f32 %v4281, %v2870
      %v4538 = vmul.f32 %v4282, %v2872
      %v4539 = vmul.f32 %v4283, %v2875
      %v4540 = vmul.f32 %v4284, %v2877
      %v4541 = vmul.f32 %v4285, %v2880
      %v4542 = vmul.f32 %v4286, %v2882
      %v4543 = vmul.f32 %v4287, %v2885
      %v4544 = vmul.f32 %v4288, %v2887
      %v4545 = vmul.f32 %v4289, %v2890
      %v4546 = vmul.f32 %v4290, %v2892
      %v4547 = vmul.f32 %v4291, %v2895
      %v4548 = vmul.f32 %v4292, %v2897
      %v4549 = vmul.f32 %v4293, %v2900
      %v4550 = vmul.f32 %v4294, %v2902
      %v4551 = vmul.f32 %v4295, %v2905
      %v4552 = vmul.f32 %v4296, %v2907
      %v4553 = vmul.f32 %v4297, %v2910
      %v4554 = vmul.f32 %v4298, %v2912
      %v4555 = vmul.f32 %v4299, %v2915
      %v4556 = vmul.f32 %v4300, %v2917
      %v4557 = vmul.f32 %v4301, %v2920
      %v4558 = vmul.f32 %v4302, %v2922
      %v4559 = vmul.f32 %v4303, %v2925
      %v4560 = vmul.f32 %v4304, %v2927
      %v4561 = vmul.f32 %v4305, %v2930
      %v4562 = vmul.f32 %v4306, %v2932
      %v4563 = vmul.f32 %v4307, %v2935
      %v4564 = vmul.f32 %v4308, %v2937
      %v4565 = vmul.f32 %v4309, %v2940
      %v4566 = vmul.f32 %v4310, %v2942
      %v4567 = vmul.f32 %v4311, %v2945
      %v4568 = vmul.f32 %v4312, %v2947
      %v4569 = vmul.f32 %v4313, %v2950
      %v4570 = vmul.f32 %v4314, %v2952
      %v4571 = vmul.f32 %v4315, %v2955
      %v4572 = vmul.f32 %v4316, %v2957
      %v4573 = vmul.f32 %v4317, %v2960
      %v4574 = vmul.f32 %v4318, %v2962
      %v4575 = vmul.f32 %v4319, %v2965
      %v4576 = vmul.f32 %v4320, %v2967
      %v4577 = vmul.f32 %v4321, %v2970
      %v4578 = vmul.f32 %v4322, %v2972
      %v4579 = vmul.f32 %v4323, %v2975
      %v4580 = vmul.f32 %v4324, %v2977
      %v4581 = vmul.f32 %v4325, %v2980
      %v4582 = vmul.f32 %v4326, %v2982
      %v4583 = vmul.f32 %v4327, %v2985
      %v4584 = vmul.f32 %v4328, %v2987
      %v4585 = vmul.f32 %v4329, %v2990
      %v4586 = vmul.f32 %v4330, %v2992
      %v4587 = vmul.f32 %v4331, %v2995
      %v4588 = vmul.f32 %v4332, %v2997
      %v4589 = vmul.f32 %v4333, %v3000
      %v4590 = vmul.f32 %v4334, %v3002
      %v4591 = vmul.f32 %v4335, %v3005
      %v4592 = vmul.f32 %v4336, %v3007
      %v4593 = vmul.f32 %v4337, %v3010
      %v4594 = vmul.f32 %v4338, %v3012
      %v4595 = vmul.f32 %v4339, %v3015
      %v4596 = vmul.f32 %v4340, %v3017
      %v4597 = vmul.f32 %v4341, %v3020
      %v4598 = vmul.f32 %v4342, %v3022
      %v4599 = vmul.f32 %v4343, %v3025
      %v4600 = vmul.f32 %v4344, %v3027
      %v4601 = vmul.f32 %v4345, %v3030
      %v4602 = vmul.f32 %v4346, %v3032
      %v4603 = vmul.f32 %v4347, %v3035
      %v4604 = vmul.f32 %v4348, %v3037
      %v4605 = vmul.f32 %v4349, %v3040
      %v4606 = vmul.f32 %v4350, %v3042
      %v4607 = vmul.f32 %v4351, %v3045
      %v4608 = vmul.f32 %v4352, %v3047
      %v4609 = vmul.f32 %v4353, %v3050
      %v4610 = vmul.f32 %v4354, %v3052
      %v4611 = vmul.f32 %v4355, %v3055
      %v4612 = vmul.f32 %v4356, %v3057
      %v4613 = vmul.f32 %v4357, %v3060
      %v4614 = vmul.f32 %v4358, %v3062
      %v4615 = vmul.f32 %v4359, %v3065
      %v4616 = vmul.f32 %v4360, %v3067
      %v4617 = vmul.f32 %v4361, %v3070
      %v4618 = vmul.f32 %v4362, %v3072
      %v4619 = vpack.c.bf16 %v4364, %v4363
      %v4620 = vpack.c.bf16 %v4366, %v4365
      %v4621 = vpack.c.bf16 %v4368, %v4367
      %v4622 = vpack.c.bf16 %v4370, %v4369
      %v4623 = vpack.c.bf16 %v4372, %v4371
      %v4624 = vpack.c.bf16 %v4374, %v4373
      %v4625 = vpack.c.bf16 %v4376, %v4375
      %v4626 = vpack.c.bf16 %v4378, %v4377
      %v4627 = vpack.c.bf16 %v4380, %v4379
      %v4628 = vpack.c.bf16 %v4382, %v4381
      %v4629 = vpack.c.bf16 %v4384, %v4383
      %v4630 = vpack.c.bf16 %v4386, %v4385
      %v4631 = vpack.c.bf16 %v4388, %v4387
      %v4632 = vpack.c.bf16 %v4390, %v4389
      %v4633 = vpack.c.bf16 %v4392, %v4391
      %v4634 = vpack.c.bf16 %v4394, %v4393
      %v4635 = vpack.c.bf16 %v4396, %v4395
      %v4636 = vpack.c.bf16 %v4398, %v4397
      %v4637 = vpack.c.bf16 %v4400, %v4399
      %v4638 = vpack.c.bf16 %v4402, %v4401
      %v4639 = vpack.c.bf16 %v4404, %v4403
      %v4640 = vpack.c.bf16 %v4406, %v4405
      %v4641 = vpack.c.bf16 %v4408, %v4407
      %v4642 = vpack.c.bf16 %v4410, %v4409
      %v4643 = vpack.c.bf16 %v4412, %v4411
      %v4644 = vpack.c.bf16 %v4414, %v4413
      %v4645 = vpack.c.bf16 %v4416, %v4415
      %v4646 = vpack.c.bf16 %v4418, %v4417
      %v4647 = vpack.c.bf16 %v4420, %v4419
      %v4648 = vpack.c.bf16 %v4422, %v4421
      %v4649 = vpack.c.bf16 %v4424, %v4423
      %v4650 = vpack.c.bf16 %v4426, %v4425
      %v4651 = vpack.c.bf16 %v4428, %v4427
      %v4652 = vpack.c.bf16 %v4430, %v4429
      %v4653 = vpack.c.bf16 %v4432, %v4431
      %v4654 = vpack.c.bf16 %v4434, %v4433
      %v4655 = vpack.c.bf16 %v4436, %v4435
      %v4656 = vpack.c.bf16 %v4438, %v4437
      %v4657 = vpack.c.bf16 %v4440, %v4439
      %v4658 = vpack.c.bf16 %v4442, %v4441
      %v4659 = vpack.c.bf16 %v4444, %v4443
      %v4660 = vpack.c.bf16 %v4446, %v4445
      %v4661 = vpack.c.bf16 %v4448, %v4447
      %v4662 = vpack.c.bf16 %v4450, %v4449
      %v4663 = vpack.c.bf16 %v4452, %v4451
      %v4664 = vpack.c.bf16 %v4454, %v4453
      %v4665 = vpack.c.bf16 %v4456, %v4455
      %v4666 = vpack.c.bf16 %v4458, %v4457
      %v4667 = vpack.c.bf16 %v4460, %v4459
      %v4668 = vpack.c.bf16 %v4462, %v4461
      %v4669 = vpack.c.bf16 %v4464, %v4463
      %v4670 = vpack.c.bf16 %v4466, %v4465
      %v4671 = vpack.c.bf16 %v4468, %v4467
      %v4672 = vpack.c.bf16 %v4470, %v4469
      %v4673 = vpack.c.bf16 %v4472, %v4471
      %v4674 = vpack.c.bf16 %v4474, %v4473
      %v4675 = vpack.c.bf16 %v4476, %v4475
      %v4676 = vpack.c.bf16 %v4478, %v4477
      %v4677 = vpack.c.bf16 %v4480, %v4479
      %v4678 = vpack.c.bf16 %v4482, %v4481
      %v4679 = vpack.c.bf16 %v4484, %v4483
      %v4680 = vpack.c.bf16 %v4486, %v4485
      %v4681 = vpack.c.bf16 %v4488, %v4487
      %v4682 = vpack.c.bf16 %v4490, %v4489
      %v4683 = vpack.c.bf16 %v4492, %v4491
      %v4684 = vpack.c.bf16 %v4494, %v4493
      %v4685 = vpack.c.bf16 %v4496, %v4495
      %v4686 = vpack.c.bf16 %v4498, %v4497
      %v4687 = vpack.c.bf16 %v4500, %v4499
      %v4688 = vpack.c.bf16 %v4502, %v4501
      %v4689 = vpack.c.bf16 %v4504, %v4503
      %v4690 = vpack.c.bf16 %v4506, %v4505
      %v4691 = vpack.c.bf16 %v4508, %v4507
      %v4692 = vpack.c.bf16 %v4510, %v4509
      %v4693 = vpack.c.bf16 %v4512, %v4511
      %v4694 = vpack.c.bf16 %v4514, %v4513
      %v4695 = vpack.c.bf16 %v4516, %v4515
      %v4696 = vpack.c.bf16 %v4518, %v4517
      %v4697 = vpack.c.bf16 %v4520, %v4519
      %v4698 = vpack.c.bf16 %v4522, %v4521
      %v4699 = vpack.c.bf16 %v4524, %v4523
      %v4700 = vpack.c.bf16 %v4526, %v4525
      %v4701 = vpack.c.bf16 %v4528, %v4527
      %v4702 = vpack.c.bf16 %v4530, %v4529
      %v4703 = vpack.c.bf16 %v4532, %v4531
      %v4704 = vpack.c.bf16 %v4534, %v4533
      %v4705 = vpack.c.bf16 %v4536, %v4535
      %v4706 = vpack.c.bf16 %v4538, %v4537
      %v4707 = vpack.c.bf16 %v4540, %v4539
      %v4708 = vpack.c.bf16 %v4542, %v4541
      %v4709 = vpack.c.bf16 %v4544, %v4543
      %v4710 = vpack.c.bf16 %v4546, %v4545
      %v4711 = vpack.c.bf16 %v4548, %v4547
      %v4712 = vpack.c.bf16 %v4550, %v4549
      %v4713 = vpack.c.bf16 %v4552, %v4551
      %v4714 = vpack.c.bf16 %v4554, %v4553
      %v4715 = vpack.c.bf16 %v4556, %v4555
      %v4716 = vpack.c.bf16 %v4558, %v4557
      %v4717 = vpack.c.bf16 %v4560, %v4559
      %v4718 = vpack.c.bf16 %v4562, %v4561
      %v4719 = vpack.c.bf16 %v4564, %v4563
      %v4720 = vpack.c.bf16 %v4566, %v4565
      %v4721 = vpack.c.bf16 %v4568, %v4567
      %v4722 = vpack.c.bf16 %v4570, %v4569
      %v4723 = vpack.c.bf16 %v4572, %v4571
      %v4724 = vpack.c.bf16 %v4574, %v4573
      %v4725 = vpack.c.bf16 %v4576, %v4575
      %v4726 = vpack.c.bf16 %v4578, %v4577
      %v4727 = vpack.c.bf16 %v4580, %v4579
      %v4728 = vpack.c.bf16 %v4582, %v4581
      %v4729 = vpack.c.bf16 %v4584, %v4583
      %v4730 = vpack.c.bf16 %v4586, %v4585
      %v4731 = vpack.c.bf16 %v4588, %v4587
      %v4732 = vpack.c.bf16 %v4590, %v4589
      %v4733 = vpack.c.bf16 %v4592, %v4591
      %v4734 = vpack.c.bf16 %v4594, %v4593
      %v4735 = vpack.c.bf16 %v4596, %v4595
      %v4736 = vpack.c.bf16 %v4598, %v4597
      %v4737 = vpack.c.bf16 %v4600, %v4599
      %v4738 = vpack.c.bf16 %v4602, %v4601
      %v4739 = vpack.c.bf16 %v4604, %v4603
      %v4740 = vpack.c.bf16 %v4606, %v4605
      %v4741 = vpack.c.bf16 %v4608, %v4607
      %v4742 = vpack.c.bf16 %v4610, %v4609
      %v4743 = vpack.c.bf16 %v4612, %v4611
      %v4744 = vpack.c.bf16 %v4614, %v4613
      %v4745 = vpack.c.bf16 %v4616, %v4615
      %v4746 = vpack.c.bf16 %v4618, %v4617
      %v4763 = vunpack.c.l.b16 %v1121
      %v4764 = vunpack.c.l.b16 %v1122
      %v4765 = vunpack.c.l.b16 %v1123
      %v4766 = vunpack.c.l.b16 %v1124
      %v4767 = vunpack.c.l.b16 %v1125
      %v4768 = vunpack.c.l.b16 %v1126
      %v4769 = vunpack.c.l.b16 %v1127
      %v4770 = vunpack.c.l.b16 %v1128
      %v4771 = vunpack.c.l.b16 %v1129
      %v4772 = vunpack.c.l.b16 %v1130
      %v4773 = vunpack.c.l.b16 %v1131
      %v4774 = vunpack.c.l.b16 %v1132
      %v4775 = vunpack.c.l.b16 %v1133
      %v4776 = vunpack.c.l.b16 %v1134
      %v4777 = vunpack.c.l.b16 %v1135
      %v4778 = vunpack.c.l.b16 %v1136
      %v4779 = vpack.c.b16 %v4764, %v4763
      %v4780 = vpack.c.b16 %v4766, %v4765
      %v4781 = vpack.c.b16 %v4768, %v4767
      %v4782 = vpack.c.b16 %v4770, %v4769
      %v4783 = vpack.c.b16 %v4772, %v4771
      %v4784 = vpack.c.b16 %v4774, %v4773
      %v4785 = vpack.c.b16 %v4776, %v4775
      %v4786 = vpack.c.b16 %v4778, %v4777
      %4795 = vmatpush.bf16.msra.mxu0 %v4786
      %4796 = vmatpush.bf16.msra.mxu0 %v4785
      %4797 = vmatpush.bf16.msra.mxu0 %v4784
      %4798 = vmatpush.bf16.msra.mxu0 %v4783
      %4799 = vmatpush.bf16.msra.mxu0 %v4782
      %4800 = vmatpush.bf16.msra.mxu0 %v4781
      %4801 = vmatpush.bf16.msra.mxu0 %v4780
      %4802 = vmatpush.bf16.msra.mxu0 %v4779
      %4803 = vmatmul.bf16.gmra.mxu0 %v4619
      %v4804 = vpop.f32.mrf.mxu0
      %v4805 = vadd.f32 %v855, %v4804
      %v4806 = vpop.f32.mrf.mxu0
      %v4807 = vadd.f32 %v856, %v4806
      %4808 = vmatmul.bf16.gmra.mxu0 %v4620
      %v4809 = vpop.f32.mrf.mxu0
      %v4810 = vadd.f32 %v857, %v4809
      %v4811 = vpop.f32.mrf.mxu0
      %v4812 = vadd.f32 %v858, %v4811
      %4813 = vmatmul.bf16.gmra.mxu0 %v4621
      %v4814 = vpop.f32.mrf.mxu0
      %v4815 = vadd.f32 %v859, %v4814
      %v4816 = vpop.f32.mrf.mxu0
      %v4817 = vadd.f32 %v860, %v4816
      %4818 = vmatmul.bf16.gmra.mxu0 %v4622
      %v4819 = vpop.f32.mrf.mxu0
      %v4820 = vadd.f32 %v861, %v4819
      %v4821 = vpop.f32.mrf.mxu0
      %v4822 = vadd.f32 %v862, %v4821
      %4823 = vmatmul.bf16.gmra.mxu0 %v4623
      %v4824 = vpop.f32.mrf.mxu0
      %v4825 = vadd.f32 %v863, %v4824
      %v4826 = vpop.f32.mrf.mxu0
      %v4827 = vadd.f32 %v864, %v4826
      %4828 = vmatmul.bf16.gmra.mxu0 %v4624
      %v4829 = vpop.f32.mrf.mxu0
      %v4830 = vadd.f32 %v865, %v4829
      %v4831 = vpop.f32.mrf.mxu0
      %v4832 = vadd.f32 %v866, %v4831
      %4833 = vmatmul.bf16.gmra.mxu0 %v4625
      %v4834 = vpop.f32.mrf.mxu0
      %v4835 = vadd.f32 %v867, %v4834
      %v4836 = vpop.f32.mrf.mxu0
      %v4837 = vadd.f32 %v868, %v4836
      %4838 = vmatmul.bf16.gmra.mxu0 %v4626
      %v4839 = vpop.f32.mrf.mxu0
      %v4840 = vadd.f32 %v869, %v4839
      %v4841 = vpop.f32.mrf.mxu0
      %v4842 = vadd.f32 %v870, %v4841
      %4843 = vmatmul.bf16.gmra.mxu0 %v4627
      %v4844 = vpop.f32.mrf.mxu0
      %v4845 = vadd.f32 %v871, %v4844
      %v4846 = vpop.f32.mrf.mxu0
      %v4847 = vadd.f32 %v872, %v4846
      %4848 = vmatmul.bf16.gmra.mxu0 %v4628
      %v4849 = vpop.f32.mrf.mxu0
      %v4850 = vadd.f32 %v873, %v4849
      %v4851 = vpop.f32.mrf.mxu0
      %v4852 = vadd.f32 %v874, %v4851
      %4853 = vmatmul.bf16.gmra.mxu0 %v4629
      %v4854 = vpop.f32.mrf.mxu0
      %v4855 = vadd.f32 %v875, %v4854
      %v4856 = vpop.f32.mrf.mxu0
      %v4857 = vadd.f32 %v876, %v4856
      %4858 = vmatmul.bf16.gmra.mxu0 %v4630
      %v4859 = vpop.f32.mrf.mxu0
      %v4860 = vadd.f32 %v877, %v4859
      %v4861 = vpop.f32.mrf.mxu0
      %v4862 = vadd.f32 %v878, %v4861
      %4863 = vmatmul.bf16.gmra.mxu0 %v4631
      %v4864 = vpop.f32.mrf.mxu0
      %v4865 = vadd.f32 %v879, %v4864
      %v4866 = vpop.f32.mrf.mxu0
      %v4867 = vadd.f32 %v880, %v4866
      %4868 = vmatmul.bf16.gmra.mxu0 %v4632
      %v4869 = vpop.f32.mrf.mxu0
      %v4870 = vadd.f32 %v881, %v4869
      %v4871 = vpop.f32.mrf.mxu0
      %v4872 = vadd.f32 %v882, %v4871
      %4873 = vmatmul.bf16.gmra.mxu0 %v4633
      %v4874 = vpop.f32.mrf.mxu0
      %v4875 = vadd.f32 %v883, %v4874
      %v4876 = vpop.f32.mrf.mxu0
      %v4877 = vadd.f32 %v884, %v4876
      %4878 = vmatmul.bf16.gmra.mxu0 %v4634
      %v4879 = vpop.f32.mrf.mxu0
      %v4880 = vadd.f32 %v885, %v4879
      %v4881 = vpop.f32.mrf.mxu0
      %v4882 = vadd.f32 %v886, %v4881
      %4883 = vmatmul.bf16.gmra.mxu0 %v4635
      %v4884 = vpop.f32.mrf.mxu0
      %v4885 = vadd.f32 %v887, %v4884
      %v4886 = vpop.f32.mrf.mxu0
      %v4887 = vadd.f32 %v888, %v4886
      %4888 = vmatmul.bf16.gmra.mxu0 %v4636
      %v4889 = vpop.f32.mrf.mxu0
      %v4890 = vadd.f32 %v889, %v4889
      %v4891 = vpop.f32.mrf.mxu0
      %v4892 = vadd.f32 %v890, %v4891
      %4893 = vmatmul.bf16.gmra.mxu0 %v4637
      %v4894 = vpop.f32.mrf.mxu0
      %v4895 = vadd.f32 %v891, %v4894
      %v4896 = vpop.f32.mrf.mxu0
      %v4897 = vadd.f32 %v892, %v4896
      %4898 = vmatmul.bf16.gmra.mxu0 %v4638
      %v4899 = vpop.f32.mrf.mxu0
      %v4900 = vadd.f32 %v893, %v4899
      %v4901 = vpop.f32.mrf.mxu0
      %v4902 = vadd.f32 %v894, %v4901
      %4903 = vmatmul.bf16.gmra.mxu0 %v4639
      %v4904 = vpop.f32.mrf.mxu0
      %v4905 = vadd.f32 %v895, %v4904
      %v4906 = vpop.f32.mrf.mxu0
      %v4907 = vadd.f32 %v896, %v4906
      %4908 = vmatmul.bf16.gmra.mxu0 %v4640
      %v4909 = vpop.f32.mrf.mxu0
      %v4910 = vadd.f32 %v897, %v4909
      %v4911 = vpop.f32.mrf.mxu0
      %v4912 = vadd.f32 %v898, %v4911
      %4913 = vmatmul.bf16.gmra.mxu0 %v4641
      %v4914 = vpop.f32.mrf.mxu0
      %v4915 = vadd.f32 %v899, %v4914
      %v4916 = vpop.f32.mrf.mxu0
      %v4917 = vadd.f32 %v900, %v4916
      %4918 = vmatmul.bf16.gmra.mxu0 %v4642
      %v4919 = vpop.f32.mrf.mxu0
      %v4920 = vadd.f32 %v901, %v4919
      %v4921 = vpop.f32.mrf.mxu0
      %v4922 = vadd.f32 %v902, %v4921
      %4923 = vmatmul.bf16.gmra.mxu0 %v4643
      %v4924 = vpop.f32.mrf.mxu0
      %v4925 = vadd.f32 %v903, %v4924
      %v4926 = vpop.f32.mrf.mxu0
      %v4927 = vadd.f32 %v904, %v4926
      %4928 = vmatmul.bf16.gmra.mxu0 %v4644
      %v4929 = vpop.f32.mrf.mxu0
      %v4930 = vadd.f32 %v905, %v4929
      %v4931 = vpop.f32.mrf.mxu0
      %v4932 = vadd.f32 %v906, %v4931
      %4933 = vmatmul.bf16.gmra.mxu0 %v4645
      %v4934 = vpop.f32.mrf.mxu0
      %v4935 = vadd.f32 %v907, %v4934
      %v4936 = vpop.f32.mrf.mxu0
      %v4937 = vadd.f32 %v908, %v4936
      %4938 = vmatmul.bf16.gmra.mxu0 %v4646
      %v4939 = vpop.f32.mrf.mxu0
      %v4940 = vadd.f32 %v909, %v4939
      %v4941 = vpop.f32.mrf.mxu0
      %v4942 = vadd.f32 %v910, %v4941
      %4943 = vmatmul.bf16.gmra.mxu0 %v4647
      %v4944 = vpop.f32.mrf.mxu0
      %v4945 = vadd.f32 %v911, %v4944
      %v4946 = vpop.f32.mrf.mxu0
      %v4947 = vadd.f32 %v912, %v4946
      %4948 = vmatmul.bf16.gmra.mxu0 %v4648
      %v4949 = vpop.f32.mrf.mxu0
      %v4950 = vadd.f32 %v913, %v4949
      %v4951 = vpop.f32.mrf.mxu0
      %v4952 = vadd.f32 %v914, %v4951
      %4953 = vmatmul.bf16.gmra.mxu0 %v4649
      %v4954 = vpop.f32.mrf.mxu0
      %v4955 = vadd.f32 %v915, %v4954
      %v4956 = vpop.f32.mrf.mxu0
      %v4957 = vadd.f32 %v916, %v4956
      %4958 = vmatmul.bf16.gmra.mxu0 %v4650
      %v4959 = vpop.f32.mrf.mxu0
      %v4960 = vadd.f32 %v917, %v4959
      %v4961 = vpop.f32.mrf.mxu0
      %v4962 = vadd.f32 %v918, %v4961
      %4963 = vmatmul.bf16.gmra.mxu0 %v4651
      %v4964 = vpop.f32.mrf.mxu0
      %v4965 = vadd.f32 %v919, %v4964
      %v4966 = vpop.f32.mrf.mxu0
      %v4967 = vadd.f32 %v920, %v4966
      %4968 = vmatmul.bf16.gmra.mxu0 %v4652
      %v4969 = vpop.f32.mrf.mxu0
      %v4970 = vadd.f32 %v921, %v4969
      %v4971 = vpop.f32.mrf.mxu0
      %v4972 = vadd.f32 %v922, %v4971
      %4973 = vmatmul.bf16.gmra.mxu0 %v4653
      %v4974 = vpop.f32.mrf.mxu0
      %v4975 = vadd.f32 %v923, %v4974
      %v4976 = vpop.f32.mrf.mxu0
      %v4977 = vadd.f32 %v924, %v4976
      %4978 = vmatmul.bf16.gmra.mxu0 %v4654
      %v4979 = vpop.f32.mrf.mxu0
      %v4980 = vadd.f32 %v925, %v4979
      %v4981 = vpop.f32.mrf.mxu0
      %v4982 = vadd.f32 %v926, %v4981
      %4983 = vmatmul.bf16.gmra.mxu0 %v4655
      %v4984 = vpop.f32.mrf.mxu0
      %v4985 = vadd.f32 %v927, %v4984
      %v4986 = vpop.f32.mrf.mxu0
      %v4987 = vadd.f32 %v928, %v4986
      %4988 = vmatmul.bf16.gmra.mxu0 %v4656
      %v4989 = vpop.f32.mrf.mxu0
      %v4990 = vadd.f32 %v929, %v4989
      %v4991 = vpop.f32.mrf.mxu0
      %v4992 = vadd.f32 %v930, %v4991
      %4993 = vmatmul.bf16.gmra.mxu0 %v4657
      %v4994 = vpop.f32.mrf.mxu0
      %v4995 = vadd.f32 %v931, %v4994
      %v4996 = vpop.f32.mrf.mxu0
      %v4997 = vadd.f32 %v932, %v4996
      %4998 = vmatmul.bf16.gmra.mxu0 %v4658
      %v4999 = vpop.f32.mrf.mxu0
      %v5000 = vadd.f32 %v933, %v4999
      %v5001 = vpop.f32.mrf.mxu0
      %v5002 = vadd.f32 %v934, %v5001
      %5003 = vmatmul.bf16.gmra.mxu0 %v4659
      %v5004 = vpop.f32.mrf.mxu0
      %v5005 = vadd.f32 %v935, %v5004
      %v5006 = vpop.f32.mrf.mxu0
      %v5007 = vadd.f32 %v936, %v5006
      %5008 = vmatmul.bf16.gmra.mxu0 %v4660
      %v5009 = vpop.f32.mrf.mxu0
      %v5010 = vadd.f32 %v937, %v5009
      %v5011 = vpop.f32.mrf.mxu0
      %v5012 = vadd.f32 %v938, %v5011
      %5013 = vmatmul.bf16.gmra.mxu0 %v4661
      %v5014 = vpop.f32.mrf.mxu0
      %v5015 = vadd.f32 %v939, %v5014
      %v5016 = vpop.f32.mrf.mxu0
      %v5017 = vadd.f32 %v940, %v5016
      %5018 = vmatmul.bf16.gmra.mxu0 %v4662
      %v5019 = vpop.f32.mrf.mxu0
      %v5020 = vadd.f32 %v941, %v5019
      %v5021 = vpop.f32.mrf.mxu0
      %v5022 = vadd.f32 %v942, %v5021
      %5023 = vmatmul.bf16.gmra.mxu0 %v4663
      %v5024 = vpop.f32.mrf.mxu0
      %v5025 = vadd.f32 %v943, %v5024
      %v5026 = vpop.f32.mrf.mxu0
      %v5027 = vadd.f32 %v944, %v5026
      %5028 = vmatmul.bf16.gmra.mxu0 %v4664
      %v5029 = vpop.f32.mrf.mxu0
      %v5030 = vadd.f32 %v945, %v5029
      %v5031 = vpop.f32.mrf.mxu0
      %v5032 = vadd.f32 %v946, %v5031
      %5033 = vmatmul.bf16.gmra.mxu0 %v4665
      %v5034 = vpop.f32.mrf.mxu0
      %v5035 = vadd.f32 %v947, %v5034
      %v5036 = vpop.f32.mrf.mxu0
      %v5037 = vadd.f32 %v948, %v5036
      %5038 = vmatmul.bf16.gmra.mxu0 %v4666
      %v5039 = vpop.f32.mrf.mxu0
      %v5040 = vadd.f32 %v949, %v5039
      %v5041 = vpop.f32.mrf.mxu0
      %v5042 = vadd.f32 %v950, %v5041
      %5043 = vmatmul.bf16.gmra.mxu0 %v4667
      %v5044 = vpop.f32.mrf.mxu0
      %v5045 = vadd.f32 %v951, %v5044
      %v5046 = vpop.f32.mrf.mxu0
      %v5047 = vadd.f32 %v952, %v5046
      %5048 = vmatmul.bf16.gmra.mxu0 %v4668
      %v5049 = vpop.f32.mrf.mxu0
      %v5050 = vadd.f32 %v953, %v5049
      %v5051 = vpop.f32.mrf.mxu0
      %v5052 = vadd.f32 %v954, %v5051
      %5053 = vmatmul.bf16.gmra.mxu0 %v4669
      %v5054 = vpop.f32.mrf.mxu0
      %v5055 = vadd.f32 %v955, %v5054
      %v5056 = vpop.f32.mrf.mxu0
      %v5057 = vadd.f32 %v956, %v5056
      %5058 = vmatmul.bf16.gmra.mxu0 %v4670
      %v5059 = vpop.f32.mrf.mxu0
      %v5060 = vadd.f32 %v957, %v5059
      %v5061 = vpop.f32.mrf.mxu0
      %v5062 = vadd.f32 %v958, %v5061
      %5063 = vmatmul.bf16.gmra.mxu0 %v4671
      %v5064 = vpop.f32.mrf.mxu0
      %v5065 = vadd.f32 %v959, %v5064
      %v5066 = vpop.f32.mrf.mxu0
      %v5067 = vadd.f32 %v960, %v5066
      %5068 = vmatmul.bf16.gmra.mxu0 %v4672
      %v5069 = vpop.f32.mrf.mxu0
      %v5070 = vadd.f32 %v961, %v5069
      %v5071 = vpop.f32.mrf.mxu0
      %v5072 = vadd.f32 %v962, %v5071
      %5073 = vmatmul.bf16.gmra.mxu0 %v4673
      %v5074 = vpop.f32.mrf.mxu0
      %v5075 = vadd.f32 %v963, %v5074
      %v5076 = vpop.f32.mrf.mxu0
      %v5077 = vadd.f32 %v964, %v5076
      %5078 = vmatmul.bf16.gmra.mxu0 %v4674
      %v5079 = vpop.f32.mrf.mxu0
      %v5080 = vadd.f32 %v965, %v5079
      %v5081 = vpop.f32.mrf.mxu0
      %v5082 = vadd.f32 %v966, %v5081
      %5083 = vmatmul.bf16.gmra.mxu0 %v4675
      %v5084 = vpop.f32.mrf.mxu0
      %v5085 = vadd.f32 %v967, %v5084
      %v5086 = vpop.f32.mrf.mxu0
      %v5087 = vadd.f32 %v968, %v5086
      %5088 = vmatmul.bf16.gmra.mxu0 %v4676
      %v5089 = vpop.f32.mrf.mxu0
      %v5090 = vadd.f32 %v969, %v5089
      %v5091 = vpop.f32.mrf.mxu0
      %v5092 = vadd.f32 %v970, %v5091
      %5093 = vmatmul.bf16.gmra.mxu0 %v4677
      %v5094 = vpop.f32.mrf.mxu0
      %v5095 = vadd.f32 %v971, %v5094
      %v5096 = vpop.f32.mrf.mxu0
      %v5097 = vadd.f32 %v972, %v5096
      %5098 = vmatmul.bf16.gmra.mxu0 %v4678
      %v5099 = vpop.f32.mrf.mxu0
      %v5100 = vadd.f32 %v973, %v5099
      %v5101 = vpop.f32.mrf.mxu0
      %v5102 = vadd.f32 %v974, %v5101
      %5103 = vmatmul.bf16.gmra.mxu0 %v4679
      %v5104 = vpop.f32.mrf.mxu0
      %v5105 = vadd.f32 %v975, %v5104
      %v5106 = vpop.f32.mrf.mxu0
      %v5107 = vadd.f32 %v976, %v5106
      %5108 = vmatmul.bf16.gmra.mxu0 %v4680
      %v5109 = vpop.f32.mrf.mxu0
      %v5110 = vadd.f32 %v977, %v5109
      %v5111 = vpop.f32.mrf.mxu0
      %v5112 = vadd.f32 %v978, %v5111
      %5113 = vmatmul.bf16.gmra.mxu0 %v4681
      %v5114 = vpop.f32.mrf.mxu0
      %v5115 = vadd.f32 %v979, %v5114
      %v5116 = vpop.f32.mrf.mxu0
      %v5117 = vadd.f32 %v980, %v5116
      %5118 = vmatmul.bf16.gmra.mxu0 %v4682
      %v5119 = vpop.f32.mrf.mxu0
      %v5120 = vadd.f32 %v981, %v5119
      %v5121 = vpop.f32.mrf.mxu0
      %v5122 = vadd.f32 %v982, %v5121
      %5123 = vmatmul.bf16.gmra.mxu0 %v4683
      %v5124 = vpop.f32.mrf.mxu0
      %v5125 = vadd.f32 %v983, %v5124
      %v5126 = vpop.f32.mrf.mxu0
      %v5127 = vadd.f32 %v984, %v5126
      %5128 = vmatmul.bf16.gmra.mxu0 %v4684
      %v5129 = vpop.f32.mrf.mxu0
      %v5130 = vadd.f32 %v985, %v5129
      %v5131 = vpop.f32.mrf.mxu0
      %v5132 = vadd.f32 %v986, %v5131
      %5133 = vmatmul.bf16.gmra.mxu0 %v4685
      %v5134 = vpop.f32.mrf.mxu0
      %v5135 = vadd.f32 %v987, %v5134
      %v5136 = vpop.f32.mrf.mxu0
      %v5137 = vadd.f32 %v988, %v5136
      %5138 = vmatmul.bf16.gmra.mxu0 %v4686
      %v5139 = vpop.f32.mrf.mxu0
      %v5140 = vadd.f32 %v989, %v5139
      %v5141 = vpop.f32.mrf.mxu0
      %v5142 = vadd.f32 %v990, %v5141
      %5143 = vmatmul.bf16.gmra.mxu0 %v4687
      %v5144 = vpop.f32.mrf.mxu0
      %v5145 = vadd.f32 %v991, %v5144
      %v5146 = vpop.f32.mrf.mxu0
      %v5147 = vadd.f32 %v992, %v5146
      %5148 = vmatmul.bf16.gmra.mxu0 %v4688
      %v5149 = vpop.f32.mrf.mxu0
      %v5150 = vadd.f32 %v993, %v5149
      %v5151 = vpop.f32.mrf.mxu0
      %v5152 = vadd.f32 %v994, %v5151
      %5153 = vmatmul.bf16.gmra.mxu0 %v4689
      %v5154 = vpop.f32.mrf.mxu0
      %v5155 = vadd.f32 %v995, %v5154
      %v5156 = vpop.f32.mrf.mxu0
      %v5157 = vadd.f32 %v996, %v5156
      %5158 = vmatmul.bf16.gmra.mxu0 %v4690
      %v5159 = vpop.f32.mrf.mxu0
      %v5160 = vadd.f32 %v997, %v5159
      %v5161 = vpop.f32.mrf.mxu0
      %v5162 = vadd.f32 %v998, %v5161
      %5163 = vmatmul.bf16.gmra.mxu0 %v4691
      %v5164 = vpop.f32.mrf.mxu0
      %v5165 = vadd.f32 %v999, %v5164
      %v5166 = vpop.f32.mrf.mxu0
      %v5167 = vadd.f32 %v1000, %v5166
      %5168 = vmatmul.bf16.gmra.mxu0 %v4692
      %v5169 = vpop.f32.mrf.mxu0
      %v5170 = vadd.f32 %v1001, %v5169
      %v5171 = vpop.f32.mrf.mxu0
      %v5172 = vadd.f32 %v1002, %v5171
      %5173 = vmatmul.bf16.gmra.mxu0 %v4693
      %v5174 = vpop.f32.mrf.mxu0
      %v5175 = vadd.f32 %v1003, %v5174
      %v5176 = vpop.f32.mrf.mxu0
      %v5177 = vadd.f32 %v1004, %v5176
      %5178 = vmatmul.bf16.gmra.mxu0 %v4694
      %v5179 = vpop.f32.mrf.mxu0
      %v5180 = vadd.f32 %v1005, %v5179
      %v5181 = vpop.f32.mrf.mxu0
      %v5182 = vadd.f32 %v1006, %v5181
      %5183 = vmatmul.bf16.gmra.mxu0 %v4695
      %v5184 = vpop.f32.mrf.mxu0
      %v5185 = vadd.f32 %v1007, %v5184
      %v5186 = vpop.f32.mrf.mxu0
      %v5187 = vadd.f32 %v1008, %v5186
      %5188 = vmatmul.bf16.gmra.mxu0 %v4696
      %v5189 = vpop.f32.mrf.mxu0
      %v5190 = vadd.f32 %v1009, %v5189
      %v5191 = vpop.f32.mrf.mxu0
      %v5192 = vadd.f32 %v1010, %v5191
      %5193 = vmatmul.bf16.gmra.mxu0 %v4697
      %v5194 = vpop.f32.mrf.mxu0
      %v5195 = vadd.f32 %v1011, %v5194
      %v5196 = vpop.f32.mrf.mxu0
      %v5197 = vadd.f32 %v1012, %v5196
      %5198 = vmatmul.bf16.gmra.mxu0 %v4698
      %v5199 = vpop.f32.mrf.mxu0
      %v5200 = vadd.f32 %v1013, %v5199
      %v5201 = vpop.f32.mrf.mxu0
      %v5202 = vadd.f32 %v1014, %v5201
      %5203 = vmatmul.bf16.gmra.mxu0 %v4699
      %v5204 = vpop.f32.mrf.mxu0
      %v5205 = vadd.f32 %v1015, %v5204
      %v5206 = vpop.f32.mrf.mxu0
      %v5207 = vadd.f32 %v1016, %v5206
      %5208 = vmatmul.bf16.gmra.mxu0 %v4700
      %v5209 = vpop.f32.mrf.mxu0
      %v5210 = vadd.f32 %v1017, %v5209
      %v5211 = vpop.f32.mrf.mxu0
      %v5212 = vadd.f32 %v1018, %v5211
      %5213 = vmatmul.bf16.gmra.mxu0 %v4701
      %v5214 = vpop.f32.mrf.mxu0
      %v5215 = vadd.f32 %v1019, %v5214
      %v5216 = vpop.f32.mrf.mxu0
      %v5217 = vadd.f32 %v1020, %v5216
      %5218 = vmatmul.bf16.gmra.mxu0 %v4702
      %v5219 = vpop.f32.mrf.mxu0
      %v5220 = vadd.f32 %v1021, %v5219
      %v5221 = vpop.f32.mrf.mxu0
      %v5222 = vadd.f32 %v1022, %v5221
      %5223 = vmatmul.bf16.gmra.mxu0 %v4703
      %v5224 = vpop.f32.mrf.mxu0
      %v5225 = vadd.f32 %v1023, %v5224
      %v5226 = vpop.f32.mrf.mxu0
      %v5227 = vadd.f32 %v1024, %v5226
      %5228 = vmatmul.bf16.gmra.mxu0 %v4704
      %v5229 = vpop.f32.mrf.mxu0
      %v5230 = vadd.f32 %v1025, %v5229
      %v5231 = vpop.f32.mrf.mxu0
      %v5232 = vadd.f32 %v1026, %v5231
      %5233 = vmatmul.bf16.gmra.mxu0 %v4705
      %v5234 = vpop.f32.mrf.mxu0
      %v5235 = vadd.f32 %v1027, %v5234
      %v5236 = vpop.f32.mrf.mxu0
      %v5237 = vadd.f32 %v1028, %v5236
      %5238 = vmatmul.bf16.gmra.mxu0 %v4706
      %v5239 = vpop.f32.mrf.mxu0
      %v5240 = vadd.f32 %v1029, %v5239
      %v5241 = vpop.f32.mrf.mxu0
      %v5242 = vadd.f32 %v1030, %v5241
      %5243 = vmatmul.bf16.gmra.mxu0 %v4707
      %v5244 = vpop.f32.mrf.mxu0
      %v5245 = vadd.f32 %v1031, %v5244
      %v5246 = vpop.f32.mrf.mxu0
      %v5247 = vadd.f32 %v1032, %v5246
      %5248 = vmatmul.bf16.gmra.mxu0 %v4708
      %v5249 = vpop.f32.mrf.mxu0
      %v5250 = vadd.f32 %v1033, %v5249
      %v5251 = vpop.f32.mrf.mxu0
      %v5252 = vadd.f32 %v1034, %v5251
      %5253 = vmatmul.bf16.gmra.mxu0 %v4709
      %v5254 = vpop.f32.mrf.mxu0
      %v5255 = vadd.f32 %v1035, %v5254
      %v5256 = vpop.f32.mrf.mxu0
      %v5257 = vadd.f32 %v1036, %v5256
      %5258 = vmatmul.bf16.gmra.mxu0 %v4710
      %v5259 = vpop.f32.mrf.mxu0
      %v5260 = vadd.f32 %v1037, %v5259
      %v5261 = vpop.f32.mrf.mxu0
      %v5262 = vadd.f32 %v1038, %v5261
      %5263 = vmatmul.bf16.gmra.mxu0 %v4711
      %v5264 = vpop.f32.mrf.mxu0
      %v5265 = vadd.f32 %v1039, %v5264
      %v5266 = vpop.f32.mrf.mxu0
      %v5267 = vadd.f32 %v1040, %v5266
      %5268 = vmatmul.bf16.gmra.mxu0 %v4712
      %v5269 = vpop.f32.mrf.mxu0
      %v5270 = vadd.f32 %v1041, %v5269
      %v5271 = vpop.f32.mrf.mxu0
      %v5272 = vadd.f32 %v1042, %v5271
      %5273 = vmatmul.bf16.gmra.mxu0 %v4713
      %v5274 = vpop.f32.mrf.mxu0
      %v5275 = vadd.f32 %v1043, %v5274
      %v5276 = vpop.f32.mrf.mxu0
      %v5277 = vadd.f32 %v1044, %v5276
      %5278 = vmatmul.bf16.gmra.mxu0 %v4714
      %v5279 = vpop.f32.mrf.mxu0
      %v5280 = vadd.f32 %v1045, %v5279
      %v5281 = vpop.f32.mrf.mxu0
      %v5282 = vadd.f32 %v1046, %v5281
      %5283 = vmatmul.bf16.gmra.mxu0 %v4715
      %v5284 = vpop.f32.mrf.mxu0
      %v5285 = vadd.f32 %v1047, %v5284
      %v5286 = vpop.f32.mrf.mxu0
      %v5287 = vadd.f32 %v1048, %v5286
      %5288 = vmatmul.bf16.gmra.mxu0 %v4716
      %v5289 = vpop.f32.mrf.mxu0
      %v5290 = vadd.f32 %v1049, %v5289
      %v5291 = vpop.f32.mrf.mxu0
      %v5292 = vadd.f32 %v1050, %v5291
      %5293 = vmatmul.bf16.gmra.mxu0 %v4717
      %v5294 = vpop.f32.mrf.mxu0
      %v5295 = vadd.f32 %v1051, %v5294
      %v5296 = vpop.f32.mrf.mxu0
      %v5297 = vadd.f32 %v1052, %v5296
      %5298 = vmatmul.bf16.gmra.mxu0 %v4718
      %v5299 = vpop.f32.mrf.mxu0
      %v5300 = vadd.f32 %v1053, %v5299
      %v5301 = vpop.f32.mrf.mxu0
      %v5302 = vadd.f32 %v1054, %v5301
      %5303 = vmatmul.bf16.gmra.mxu0 %v4719
      %v5304 = vpop.f32.mrf.mxu0
      %v5305 = vadd.f32 %v1055, %v5304
      %v5306 = vpop.f32.mrf.mxu0
      %v5307 = vadd.f32 %v1056, %v5306
      %5308 = vmatmul.bf16.gmra.mxu0 %v4720
      %v5309 = vpop.f32.mrf.mxu0
      %v5310 = vadd.f32 %v1057, %v5309
      %v5311 = vpop.f32.mrf.mxu0
      %v5312 = vadd.f32 %v1058, %v5311
      %5313 = vmatmul.bf16.gmra.mxu0 %v4721
      %v5314 = vpop.f32.mrf.mxu0
      %v5315 = vadd.f32 %v1059, %v5314
      %v5316 = vpop.f32.mrf.mxu0
      %v5317 = vadd.f32 %v1060, %v5316
      %5318 = vmatmul.bf16.gmra.mxu0 %v4722
      %v5319 = vpop.f32.mrf.mxu0
      %v5320 = vadd.f32 %v1061, %v5319
      %v5321 = vpop.f32.mrf.mxu0
      %v5322 = vadd.f32 %v1062, %v5321
      %5323 = vmatmul.bf16.gmra.mxu0 %v4723
      %v5324 = vpop.f32.mrf.mxu0
      %v5325 = vadd.f32 %v1063, %v5324
      %v5326 = vpop.f32.mrf.mxu0
      %v5327 = vadd.f32 %v1064, %v5326
      %5328 = vmatmul.bf16.gmra.mxu0 %v4724
      %v5329 = vpop.f32.mrf.mxu0
      %v5330 = vadd.f32 %v1065, %v5329
      %v5331 = vpop.f32.mrf.mxu0
      %v5332 = vadd.f32 %v1066, %v5331
      %5333 = vmatmul.bf16.gmra.mxu0 %v4725
      %v5334 = vpop.f32.mrf.mxu0
      %v5335 = vadd.f32 %v1067, %v5334
      %v5336 = vpop.f32.mrf.mxu0
      %v5337 = vadd.f32 %v1068, %v5336
      %5338 = vmatmul.bf16.gmra.mxu0 %v4726
      %v5339 = vpop.f32.mrf.mxu0
      %v5340 = vadd.f32 %v1069, %v5339
      %v5341 = vpop.f32.mrf.mxu0
      %v5342 = vadd.f32 %v1070, %v5341
      %5343 = vmatmul.bf16.gmra.mxu0 %v4727
      %v5344 = vpop.f32.mrf.mxu0
      %v5345 = vadd.f32 %v1071, %v5344
      %v5346 = vpop.f32.mrf.mxu0
      %v5347 = vadd.f32 %v1072, %v5346
      %5348 = vmatmul.bf16.gmra.mxu0 %v4728
      %v5349 = vpop.f32.mrf.mxu0
      %v5350 = vadd.f32 %v1073, %v5349
      %v5351 = vpop.f32.mrf.mxu0
      %v5352 = vadd.f32 %v1074, %v5351
      %5353 = vmatmul.bf16.gmra.mxu0 %v4729
      %v5354 = vpop.f32.mrf.mxu0
      %v5355 = vadd.f32 %v1075, %v5354
      %v5356 = vpop.f32.mrf.mxu0
      %v5357 = vadd.f32 %v1076, %v5356
      %5358 = vmatmul.bf16.gmra.mxu0 %v4730
      %v5359 = vpop.f32.mrf.mxu0
      %v5360 = vadd.f32 %v1077, %v5359
      %v5361 = vpop.f32.mrf.mxu0
      %v5362 = vadd.f32 %v1078, %v5361
      %5363 = vmatmul.bf16.gmra.mxu0 %v4731
      %v5364 = vpop.f32.mrf.mxu0
      %v5365 = vadd.f32 %v1079, %v5364
      %v5366 = vpop.f32.mrf.mxu0
      %v5367 = vadd.f32 %v1080, %v5366
      %5368 = vmatmul.bf16.gmra.mxu0 %v4732
      %v5369 = vpop.f32.mrf.mxu0
      %v5370 = vadd.f32 %v1081, %v5369
      %v5371 = vpop.f32.mrf.mxu0
      %v5372 = vadd.f32 %v1082, %v5371
      %5373 = vmatmul.bf16.gmra.mxu0 %v4733
      %v5374 = vpop.f32.mrf.mxu0
      %v5375 = vadd.f32 %v1083, %v5374
      %v5376 = vpop.f32.mrf.mxu0
      %v5377 = vadd.f32 %v1084, %v5376
      %5378 = vmatmul.bf16.gmra.mxu0 %v4734
      %v5379 = vpop.f32.mrf.mxu0
      %v5380 = vadd.f32 %v1085, %v5379
      %v5381 = vpop.f32.mrf.mxu0
      %v5382 = vadd.f32 %v1086, %v5381
      %5383 = vmatmul.bf16.gmra.mxu0 %v4735
      %v5384 = vpop.f32.mrf.mxu0
      %v5385 = vadd.f32 %v1087, %v5384
      %v5386 = vpop.f32.mrf.mxu0
      %v5387 = vadd.f32 %v1088, %v5386
      %5388 = vmatmul.bf16.gmra.mxu0 %v4736
      %v5389 = vpop.f32.mrf.mxu0
      %v5390 = vadd.f32 %v1089, %v5389
      %v5391 = vpop.f32.mrf.mxu0
      %v5392 = vadd.f32 %v1090, %v5391
      %5393 = vmatmul.bf16.gmra.mxu0 %v4737
      %v5394 = vpop.f32.mrf.mxu0
      %v5395 = vadd.f32 %v1091, %v5394
      %v5396 = vpop.f32.mrf.mxu0
      %v5397 = vadd.f32 %v1092, %v5396
      %5398 = vmatmul.bf16.gmra.mxu0 %v4738
      %v5399 = vpop.f32.mrf.mxu0
      %v5400 = vadd.f32 %v1093, %v5399
      %v5401 = vpop.f32.mrf.mxu0
      %v5402 = vadd.f32 %v1094, %v5401
      %5403 = vmatmul.bf16.gmra.mxu0 %v4739
      %v5404 = vpop.f32.mrf.mxu0
      %v5405 = vadd.f32 %v1095, %v5404
      %v5406 = vpop.f32.mrf.mxu0
      %v5407 = vadd.f32 %v1096, %v5406
      %5408 = vmatmul.bf16.gmra.mxu0 %v4740
      %v5409 = vpop.f32.mrf.mxu0
      %v5410 = vadd.f32 %v1097, %v5409
      %v5411 = vpop.f32.mrf.mxu0
      %v5412 = vadd.f32 %v1098, %v5411
      %5413 = vmatmul.bf16.gmra.mxu0 %v4741
      %v5414 = vpop.f32.mrf.mxu0
      %v5415 = vadd.f32 %v1099, %v5414
      %v5416 = vpop.f32.mrf.mxu0
      %v5417 = vadd.f32 %v1100, %v5416
      %5418 = vmatmul.bf16.gmra.mxu0 %v4742
      %v5419 = vpop.f32.mrf.mxu0
      %v5420 = vadd.f32 %v1101, %v5419
      %v5421 = vpop.f32.mrf.mxu0
      %v5422 = vadd.f32 %v1102, %v5421
      %5423 = vmatmul.bf16.gmra.mxu0 %v4743
      %v5424 = vpop.f32.mrf.mxu0
      %v5425 = vadd.f32 %v1103, %v5424
      %v5426 = vpop.f32.mrf.mxu0
      %v5427 = vadd.f32 %v1104, %v5426
      %5428 = vmatmul.bf16.gmra.mxu0 %v4744
      %v5429 = vpop.f32.mrf.mxu0
      %v5430 = vadd.f32 %v1105, %v5429
      %v5431 = vpop.f32.mrf.mxu0
      %v5432 = vadd.f32 %v1106, %v5431
      %5433 = vmatmul.bf16.gmra.mxu0 %v4745
      %v5434 = vpop.f32.mrf.mxu0
      %v5435 = vadd.f32 %v1107, %v5434
      %v5436 = vpop.f32.mrf.mxu0
      %v5437 = vadd.f32 %v1108, %v5436
      %5438 = vmatmul.bf16.gmra.mxu0 %v4746
      %v5439 = vpop.f32.mrf.mxu0
      %v5440 = vadd.f32 %v1109, %v5439
      %v5441 = vpop.f32.mrf.mxu0
      %v5442 = vadd.f32 %v1110, %v5441
      %5443 = vdwg.mxu0
      %vm5444 = vcmask 523264
      %v5445 = vsel %vm5444, %v4805, -inf
      %v5446 = vsel %vm5444, %v4807, -inf
      %v5447 = vmax.f32 %v5445, %v5446
      %v5448 = vrot.slane %v5447, 4
      %v5449 = vmax.f32 %v5447, %v5448
      %v5450 = vrot.slane %v5449, 2
      %v5451 = vmax.f32 %v5449, %v5450
      %v5452 = vrot.slane %v5451, 1
      %v5453 = vmax.f32 %v5451, %v5452
      %v5454 = vsel %vm5444, %v4810, -inf
      %v5455 = vsel %vm5444, %v4812, -inf
      %v5456 = vmax.f32 %v5454, %v5455
      %v5457 = vrot.slane %v5456, 4
      %v5458 = vmax.f32 %v5456, %v5457
      %v5459 = vrot.slane %v5458, 2
      %v5460 = vmax.f32 %v5458, %v5459
      %v5461 = vrot.slane %v5460, 1
      %v5462 = vmax.f32 %v5460, %v5461
      %v5463 = vsel %vm5444, %v4815, -inf
      %v5464 = vsel %vm5444, %v4817, -inf
      %v5465 = vmax.f32 %v5463, %v5464
      %v5466 = vrot.slane %v5465, 4
      %v5467 = vmax.f32 %v5465, %v5466
      %v5468 = vrot.slane %v5467, 2
      %v5469 = vmax.f32 %v5467, %v5468
      %v5470 = vrot.slane %v5469, 1
      %v5471 = vmax.f32 %v5469, %v5470
      %v5472 = vsel %vm5444, %v4820, -inf
      %v5473 = vsel %vm5444, %v4822, -inf
      %v5474 = vmax.f32 %v5472, %v5473
      %v5475 = vrot.slane %v5474, 4
      %v5476 = vmax.f32 %v5474, %v5475
      %v5477 = vrot.slane %v5476, 2
      %v5478 = vmax.f32 %v5476, %v5477
      %v5479 = vrot.slane %v5478, 1
      %v5480 = vmax.f32 %v5478, %v5479
      %v5481 = vsel %vm5444, %v4825, -inf
      %v5482 = vsel %vm5444, %v4827, -inf
      %v5483 = vmax.f32 %v5481, %v5482
      %v5484 = vrot.slane %v5483, 4
      %v5485 = vmax.f32 %v5483, %v5484
      %v5486 = vrot.slane %v5485, 2
      %v5487 = vmax.f32 %v5485, %v5486
      %v5488 = vrot.slane %v5487, 1
      %v5489 = vmax.f32 %v5487, %v5488
      %v5490 = vsel %vm5444, %v4830, -inf
      %v5491 = vsel %vm5444, %v4832, -inf
      %v5492 = vmax.f32 %v5490, %v5491
      %v5493 = vrot.slane %v5492, 4
      %v5494 = vmax.f32 %v5492, %v5493
      %v5495 = vrot.slane %v5494, 2
      %v5496 = vmax.f32 %v5494, %v5495
      %v5497 = vrot.slane %v5496, 1
      %v5498 = vmax.f32 %v5496, %v5497
      %v5499 = vsel %vm5444, %v4835, -inf
      %v5500 = vsel %vm5444, %v4837, -inf
      %v5501 = vmax.f32 %v5499, %v5500
      %v5502 = vrot.slane %v5501, 4
      %v5503 = vmax.f32 %v5501, %v5502
      %v5504 = vrot.slane %v5503, 2
      %v5505 = vmax.f32 %v5503, %v5504
      %v5506 = vrot.slane %v5505, 1
      %v5507 = vmax.f32 %v5505, %v5506
      %v5508 = vsel %vm5444, %v4840, -inf
      %v5509 = vsel %vm5444, %v4842, -inf
      %v5510 = vmax.f32 %v5508, %v5509
      %v5511 = vrot.slane %v5510, 4
      %v5512 = vmax.f32 %v5510, %v5511
      %v5513 = vrot.slane %v5512, 2
      %v5514 = vmax.f32 %v5512, %v5513
      %v5515 = vrot.slane %v5514, 1
      %v5516 = vmax.f32 %v5514, %v5515
      %v5517 = vsel %vm5444, %v4845, -inf
      %v5518 = vsel %vm5444, %v4847, -inf
      %v5519 = vmax.f32 %v5517, %v5518
      %v5520 = vrot.slane %v5519, 4
      %v5521 = vmax.f32 %v5519, %v5520
      %v5522 = vrot.slane %v5521, 2
      %v5523 = vmax.f32 %v5521, %v5522
      %v5524 = vrot.slane %v5523, 1
      %v5525 = vmax.f32 %v5523, %v5524
      %v5526 = vsel %vm5444, %v4850, -inf
      %v5527 = vsel %vm5444, %v4852, -inf
      %v5528 = vmax.f32 %v5526, %v5527
      %v5529 = vrot.slane %v5528, 4
      %v5530 = vmax.f32 %v5528, %v5529
      %v5531 = vrot.slane %v5530, 2
      %v5532 = vmax.f32 %v5530, %v5531
      %v5533 = vrot.slane %v5532, 1
      %v5534 = vmax.f32 %v5532, %v5533
      %v5535 = vsel %vm5444, %v4855, -inf
      %v5536 = vsel %vm5444, %v4857, -inf
      %v5537 = vmax.f32 %v5535, %v5536
      %v5538 = vrot.slane %v5537, 4
      %v5539 = vmax.f32 %v5537, %v5538
      %v5540 = vrot.slane %v5539, 2
      %v5541 = vmax.f32 %v5539, %v5540
      %v5542 = vrot.slane %v5541, 1
      %v5543 = vmax.f32 %v5541, %v5542
      %v5544 = vsel %vm5444, %v4860, -inf
      %v5545 = vsel %vm5444, %v4862, -inf
      %v5546 = vmax.f32 %v5544, %v5545
      %v5547 = vrot.slane %v5546, 4
      %v5548 = vmax.f32 %v5546, %v5547
      %v5549 = vrot.slane %v5548, 2
      %v5550 = vmax.f32 %v5548, %v5549
      %v5551 = vrot.slane %v5550, 1
      %v5552 = vmax.f32 %v5550, %v5551
      %v5553 = vsel %vm5444, %v4865, -inf
      %v5554 = vsel %vm5444, %v4867, -inf
      %v5555 = vmax.f32 %v5553, %v5554
      %v5556 = vrot.slane %v5555, 4
      %v5557 = vmax.f32 %v5555, %v5556
      %v5558 = vrot.slane %v5557, 2
      %v5559 = vmax.f32 %v5557, %v5558
      %v5560 = vrot.slane %v5559, 1
      %v5561 = vmax.f32 %v5559, %v5560
      %v5562 = vsel %vm5444, %v4870, -inf
      %v5563 = vsel %vm5444, %v4872, -inf
      %v5564 = vmax.f32 %v5562, %v5563
      %v5565 = vrot.slane %v5564, 4
      %v5566 = vmax.f32 %v5564, %v5565
      %v5567 = vrot.slane %v5566, 2
      %v5568 = vmax.f32 %v5566, %v5567
      %v5569 = vrot.slane %v5568, 1
      %v5570 = vmax.f32 %v5568, %v5569
      %v5571 = vsel %vm5444, %v4875, -inf
      %v5572 = vsel %vm5444, %v4877, -inf
      %v5573 = vmax.f32 %v5571, %v5572
      %v5574 = vrot.slane %v5573, 4
      %v5575 = vmax.f32 %v5573, %v5574
      %v5576 = vrot.slane %v5575, 2
      %v5577 = vmax.f32 %v5575, %v5576
      %v5578 = vrot.slane %v5577, 1
      %v5579 = vmax.f32 %v5577, %v5578
      %v5580 = vsel %vm5444, %v4880, -inf
      %v5581 = vsel %vm5444, %v4882, -inf
      %v5582 = vmax.f32 %v5580, %v5581
      %v5583 = vrot.slane %v5582, 4
      %v5584 = vmax.f32 %v5582, %v5583
      %v5585 = vrot.slane %v5584, 2
      %v5586 = vmax.f32 %v5584, %v5585
      %v5587 = vrot.slane %v5586, 1
      %v5588 = vmax.f32 %v5586, %v5587
      %v5589 = vsel %vm5444, %v4885, -inf
      %v5590 = vsel %vm5444, %v4887, -inf
      %v5591 = vmax.f32 %v5589, %v5590
      %v5592 = vrot.slane %v5591, 4
      %v5593 = vmax.f32 %v5591, %v5592
      %v5594 = vrot.slane %v5593, 2
      %v5595 = vmax.f32 %v5593, %v5594
      %v5596 = vrot.slane %v5595, 1
      %v5597 = vmax.f32 %v5595, %v5596
      %v5598 = vsel %vm5444, %v4890, -inf
      %v5599 = vsel %vm5444, %v4892, -inf
      %v5600 = vmax.f32 %v5598, %v5599
      %v5601 = vrot.slane %v5600, 4
      %v5602 = vmax.f32 %v5600, %v5601
      %v5603 = vrot.slane %v5602, 2
      %v5604 = vmax.f32 %v5602, %v5603
      %v5605 = vrot.slane %v5604, 1
      %v5606 = vmax.f32 %v5604, %v5605
      %v5607 = vsel %vm5444, %v4895, -inf
      %v5608 = vsel %vm5444, %v4897, -inf
      %v5609 = vmax.f32 %v5607, %v5608
      %v5610 = vrot.slane %v5609, 4
      %v5611 = vmax.f32 %v5609, %v5610
      %v5612 = vrot.slane %v5611, 2
      %v5613 = vmax.f32 %v5611, %v5612
      %v5614 = vrot.slane %v5613, 1
      %v5615 = vmax.f32 %v5613, %v5614
      %v5616 = vsel %vm5444, %v4900, -inf
      %v5617 = vsel %vm5444, %v4902, -inf
      %v5618 = vmax.f32 %v5616, %v5617
      %v5619 = vrot.slane %v5618, 4
      %v5620 = vmax.f32 %v5618, %v5619
      %v5621 = vrot.slane %v5620, 2
      %v5622 = vmax.f32 %v5620, %v5621
      %v5623 = vrot.slane %v5622, 1
      %v5624 = vmax.f32 %v5622, %v5623
      %v5625 = vsel %vm5444, %v4905, -inf
      %v5626 = vsel %vm5444, %v4907, -inf
      %v5627 = vmax.f32 %v5625, %v5626
      %v5628 = vrot.slane %v5627, 4
      %v5629 = vmax.f32 %v5627, %v5628
      %v5630 = vrot.slane %v5629, 2
      %v5631 = vmax.f32 %v5629, %v5630
      %v5632 = vrot.slane %v5631, 1
      %v5633 = vmax.f32 %v5631, %v5632
      %v5634 = vsel %vm5444, %v4910, -inf
      %v5635 = vsel %vm5444, %v4912, -inf
      %v5636 = vmax.f32 %v5634, %v5635
      %v5637 = vrot.slane %v5636, 4
      %v5638 = vmax.f32 %v5636, %v5637
      %v5639 = vrot.slane %v5638, 2
      %v5640 = vmax.f32 %v5638, %v5639
      %v5641 = vrot.slane %v5640, 1
      %v5642 = vmax.f32 %v5640, %v5641
      %v5643 = vsel %vm5444, %v4915, -inf
      %v5644 = vsel %vm5444, %v4917, -inf
      %v5645 = vmax.f32 %v5643, %v5644
      %v5646 = vrot.slane %v5645, 4
      %v5647 = vmax.f32 %v5645, %v5646
      %v5648 = vrot.slane %v5647, 2
      %v5649 = vmax.f32 %v5647, %v5648
      %v5650 = vrot.slane %v5649, 1
      %v5651 = vmax.f32 %v5649, %v5650
      %v5652 = vsel %vm5444, %v4920, -inf
      %v5653 = vsel %vm5444, %v4922, -inf
      %v5654 = vmax.f32 %v5652, %v5653
      %v5655 = vrot.slane %v5654, 4
      %v5656 = vmax.f32 %v5654, %v5655
      %v5657 = vrot.slane %v5656, 2
      %v5658 = vmax.f32 %v5656, %v5657
      %v5659 = vrot.slane %v5658, 1
      %v5660 = vmax.f32 %v5658, %v5659
      %v5661 = vsel %vm5444, %v4925, -inf
      %v5662 = vsel %vm5444, %v4927, -inf
      %v5663 = vmax.f32 %v5661, %v5662
      %v5664 = vrot.slane %v5663, 4
      %v5665 = vmax.f32 %v5663, %v5664
      %v5666 = vrot.slane %v5665, 2
      %v5667 = vmax.f32 %v5665, %v5666
      %v5668 = vrot.slane %v5667, 1
      %v5669 = vmax.f32 %v5667, %v5668
      %v5670 = vsel %vm5444, %v4930, -inf
      %v5671 = vsel %vm5444, %v4932, -inf
      %v5672 = vmax.f32 %v5670, %v5671
      %v5673 = vrot.slane %v5672, 4
      %v5674 = vmax.f32 %v5672, %v5673
      %v5675 = vrot.slane %v5674, 2
      %v5676 = vmax.f32 %v5674, %v5675
      %v5677 = vrot.slane %v5676, 1
      %v5678 = vmax.f32 %v5676, %v5677
      %v5679 = vsel %vm5444, %v4935, -inf
      %v5680 = vsel %vm5444, %v4937, -inf
      %v5681 = vmax.f32 %v5679, %v5680
      %v5682 = vrot.slane %v5681, 4
      %v5683 = vmax.f32 %v5681, %v5682
      %v5684 = vrot.slane %v5683, 2
      %v5685 = vmax.f32 %v5683, %v5684
      %v5686 = vrot.slane %v5685, 1
      %v5687 = vmax.f32 %v5685, %v5686
      %v5688 = vsel %vm5444, %v4940, -inf
      %v5689 = vsel %vm5444, %v4942, -inf
      %v5690 = vmax.f32 %v5688, %v5689
      %v5691 = vrot.slane %v5690, 4
      %v5692 = vmax.f32 %v5690, %v5691
      %v5693 = vrot.slane %v5692, 2
      %v5694 = vmax.f32 %v5692, %v5693
      %v5695 = vrot.slane %v5694, 1
      %v5696 = vmax.f32 %v5694, %v5695
      %v5697 = vsel %vm5444, %v4945, -inf
      %v5698 = vsel %vm5444, %v4947, -inf
      %v5699 = vmax.f32 %v5697, %v5698
      %v5700 = vrot.slane %v5699, 4
      %v5701 = vmax.f32 %v5699, %v5700
      %v5702 = vrot.slane %v5701, 2
      %v5703 = vmax.f32 %v5701, %v5702
      %v5704 = vrot.slane %v5703, 1
      %v5705 = vmax.f32 %v5703, %v5704
      %v5706 = vsel %vm5444, %v4950, -inf
      %v5707 = vsel %vm5444, %v4952, -inf
      %v5708 = vmax.f32 %v5706, %v5707
      %v5709 = vrot.slane %v5708, 4
      %v5710 = vmax.f32 %v5708, %v5709
      %v5711 = vrot.slane %v5710, 2
      %v5712 = vmax.f32 %v5710, %v5711
      %v5713 = vrot.slane %v5712, 1
      %v5714 = vmax.f32 %v5712, %v5713
      %v5715 = vsel %vm5444, %v4955, -inf
      %v5716 = vsel %vm5444, %v4957, -inf
      %v5717 = vmax.f32 %v5715, %v5716
      %v5718 = vrot.slane %v5717, 4
      %v5719 = vmax.f32 %v5717, %v5718
      %v5720 = vrot.slane %v5719, 2
      %v5721 = vmax.f32 %v5719, %v5720
      %v5722 = vrot.slane %v5721, 1
      %v5723 = vmax.f32 %v5721, %v5722
      %v5724 = vsel %vm5444, %v4960, -inf
      %v5725 = vsel %vm5444, %v4962, -inf
      %v5726 = vmax.f32 %v5724, %v5725
      %v5727 = vrot.slane %v5726, 4
      %v5728 = vmax.f32 %v5726, %v5727
      %v5729 = vrot.slane %v5728, 2
      %v5730 = vmax.f32 %v5728, %v5729
      %v5731 = vrot.slane %v5730, 1
      %v5732 = vmax.f32 %v5730, %v5731
      %v5733 = vsel %vm5444, %v4965, -inf
      %v5734 = vsel %vm5444, %v4967, -inf
      %v5735 = vmax.f32 %v5733, %v5734
      %v5736 = vrot.slane %v5735, 4
      %v5737 = vmax.f32 %v5735, %v5736
      %v5738 = vrot.slane %v5737, 2
      %v5739 = vmax.f32 %v5737, %v5738
      %v5740 = vrot.slane %v5739, 1
      %v5741 = vmax.f32 %v5739, %v5740
      %v5742 = vsel %vm5444, %v4970, -inf
      %v5743 = vsel %vm5444, %v4972, -inf
      %v5744 = vmax.f32 %v5742, %v5743
      %v5745 = vrot.slane %v5744, 4
      %v5746 = vmax.f32 %v5744, %v5745
      %v5747 = vrot.slane %v5746, 2
      %v5748 = vmax.f32 %v5746, %v5747
      %v5749 = vrot.slane %v5748, 1
      %v5750 = vmax.f32 %v5748, %v5749
      %v5751 = vsel %vm5444, %v4975, -inf
      %v5752 = vsel %vm5444, %v4977, -inf
      %v5753 = vmax.f32 %v5751, %v5752
      %v5754 = vrot.slane %v5753, 4
      %v5755 = vmax.f32 %v5753, %v5754
      %v5756 = vrot.slane %v5755, 2
      %v5757 = vmax.f32 %v5755, %v5756
      %v5758 = vrot.slane %v5757, 1
      %v5759 = vmax.f32 %v5757, %v5758
      %v5760 = vsel %vm5444, %v4980, -inf
      %v5761 = vsel %vm5444, %v4982, -inf
      %v5762 = vmax.f32 %v5760, %v5761
      %v5763 = vrot.slane %v5762, 4
      %v5764 = vmax.f32 %v5762, %v5763
      %v5765 = vrot.slane %v5764, 2
      %v5766 = vmax.f32 %v5764, %v5765
      %v5767 = vrot.slane %v5766, 1
      %v5768 = vmax.f32 %v5766, %v5767
      %v5769 = vsel %vm5444, %v4985, -inf
      %v5770 = vsel %vm5444, %v4987, -inf
      %v5771 = vmax.f32 %v5769, %v5770
      %v5772 = vrot.slane %v5771, 4
      %v5773 = vmax.f32 %v5771, %v5772
      %v5774 = vrot.slane %v5773, 2
      %v5775 = vmax.f32 %v5773, %v5774
      %v5776 = vrot.slane %v5775, 1
      %v5777 = vmax.f32 %v5775, %v5776
      %v5778 = vsel %vm5444, %v4990, -inf
      %v5779 = vsel %vm5444, %v4992, -inf
      %v5780 = vmax.f32 %v5778, %v5779
      %v5781 = vrot.slane %v5780, 4
      %v5782 = vmax.f32 %v5780, %v5781
      %v5783 = vrot.slane %v5782, 2
      %v5784 = vmax.f32 %v5782, %v5783
      %v5785 = vrot.slane %v5784, 1
      %v5786 = vmax.f32 %v5784, %v5785
      %v5787 = vsel %vm5444, %v4995, -inf
      %v5788 = vsel %vm5444, %v4997, -inf
      %v5789 = vmax.f32 %v5787, %v5788
      %v5790 = vrot.slane %v5789, 4
      %v5791 = vmax.f32 %v5789, %v5790
      %v5792 = vrot.slane %v5791, 2
      %v5793 = vmax.f32 %v5791, %v5792
      %v5794 = vrot.slane %v5793, 1
      %v5795 = vmax.f32 %v5793, %v5794
      %v5796 = vsel %vm5444, %v5000, -inf
      %v5797 = vsel %vm5444, %v5002, -inf
      %v5798 = vmax.f32 %v5796, %v5797
      %v5799 = vrot.slane %v5798, 4
      %v5800 = vmax.f32 %v5798, %v5799
      %v5801 = vrot.slane %v5800, 2
      %v5802 = vmax.f32 %v5800, %v5801
      %v5803 = vrot.slane %v5802, 1
      %v5804 = vmax.f32 %v5802, %v5803
      %v5805 = vsel %vm5444, %v5005, -inf
      %v5806 = vsel %vm5444, %v5007, -inf
      %v5807 = vmax.f32 %v5805, %v5806
      %v5808 = vrot.slane %v5807, 4
      %v5809 = vmax.f32 %v5807, %v5808
      %v5810 = vrot.slane %v5809, 2
      %v5811 = vmax.f32 %v5809, %v5810
      %v5812 = vrot.slane %v5811, 1
      %v5813 = vmax.f32 %v5811, %v5812
      %v5814 = vsel %vm5444, %v5010, -inf
      %v5815 = vsel %vm5444, %v5012, -inf
      %v5816 = vmax.f32 %v5814, %v5815
      %v5817 = vrot.slane %v5816, 4
      %v5818 = vmax.f32 %v5816, %v5817
      %v5819 = vrot.slane %v5818, 2
      %v5820 = vmax.f32 %v5818, %v5819
      %v5821 = vrot.slane %v5820, 1
      %v5822 = vmax.f32 %v5820, %v5821
      %v5823 = vsel %vm5444, %v5015, -inf
      %v5824 = vsel %vm5444, %v5017, -inf
      %v5825 = vmax.f32 %v5823, %v5824
      %v5826 = vrot.slane %v5825, 4
      %v5827 = vmax.f32 %v5825, %v5826
      %v5828 = vrot.slane %v5827, 2
      %v5829 = vmax.f32 %v5827, %v5828
      %v5830 = vrot.slane %v5829, 1
      %v5831 = vmax.f32 %v5829, %v5830
      %v5832 = vsel %vm5444, %v5020, -inf
      %v5833 = vsel %vm5444, %v5022, -inf
      %v5834 = vmax.f32 %v5832, %v5833
      %v5835 = vrot.slane %v5834, 4
      %v5836 = vmax.f32 %v5834, %v5835
      %v5837 = vrot.slane %v5836, 2
      %v5838 = vmax.f32 %v5836, %v5837
      %v5839 = vrot.slane %v5838, 1
      %v5840 = vmax.f32 %v5838, %v5839
      %v5841 = vsel %vm5444, %v5025, -inf
      %v5842 = vsel %vm5444, %v5027, -inf
      %v5843 = vmax.f32 %v5841, %v5842
      %v5844 = vrot.slane %v5843, 4
      %v5845 = vmax.f32 %v5843, %v5844
      %v5846 = vrot.slane %v5845, 2
      %v5847 = vmax.f32 %v5845, %v5846
      %v5848 = vrot.slane %v5847, 1
      %v5849 = vmax.f32 %v5847, %v5848
      %v5850 = vsel %vm5444, %v5030, -inf
      %v5851 = vsel %vm5444, %v5032, -inf
      %v5852 = vmax.f32 %v5850, %v5851
      %v5853 = vrot.slane %v5852, 4
      %v5854 = vmax.f32 %v5852, %v5853
      %v5855 = vrot.slane %v5854, 2
      %v5856 = vmax.f32 %v5854, %v5855
      %v5857 = vrot.slane %v5856, 1
      %v5858 = vmax.f32 %v5856, %v5857
      %v5859 = vsel %vm5444, %v5035, -inf
      %v5860 = vsel %vm5444, %v5037, -inf
      %v5861 = vmax.f32 %v5859, %v5860
      %v5862 = vrot.slane %v5861, 4
      %v5863 = vmax.f32 %v5861, %v5862
      %v5864 = vrot.slane %v5863, 2
      %v5865 = vmax.f32 %v5863, %v5864
      %v5866 = vrot.slane %v5865, 1
      %v5867 = vmax.f32 %v5865, %v5866
      %v5868 = vsel %vm5444, %v5040, -inf
      %v5869 = vsel %vm5444, %v5042, -inf
      %v5870 = vmax.f32 %v5868, %v5869
      %v5871 = vrot.slane %v5870, 4
      %v5872 = vmax.f32 %v5870, %v5871
      %v5873 = vrot.slane %v5872, 2
      %v5874 = vmax.f32 %v5872, %v5873
      %v5875 = vrot.slane %v5874, 1
      %v5876 = vmax.f32 %v5874, %v5875
      %v5877 = vsel %vm5444, %v5045, -inf
      %v5878 = vsel %vm5444, %v5047, -inf
      %v5879 = vmax.f32 %v5877, %v5878
      %v5880 = vrot.slane %v5879, 4
      %v5881 = vmax.f32 %v5879, %v5880
      %v5882 = vrot.slane %v5881, 2
      %v5883 = vmax.f32 %v5881, %v5882
      %v5884 = vrot.slane %v5883, 1
      %v5885 = vmax.f32 %v5883, %v5884
      %v5886 = vsel %vm5444, %v5050, -inf
      %v5887 = vsel %vm5444, %v5052, -inf
      %v5888 = vmax.f32 %v5886, %v5887
      %v5889 = vrot.slane %v5888, 4
      %v5890 = vmax.f32 %v5888, %v5889
      %v5891 = vrot.slane %v5890, 2
      %v5892 = vmax.f32 %v5890, %v5891
      %v5893 = vrot.slane %v5892, 1
      %v5894 = vmax.f32 %v5892, %v5893
      %v5895 = vsel %vm5444, %v5055, -inf
      %v5896 = vsel %vm5444, %v5057, -inf
      %v5897 = vmax.f32 %v5895, %v5896
      %v5898 = vrot.slane %v5897, 4
      %v5899 = vmax.f32 %v5897, %v5898
      %v5900 = vrot.slane %v5899, 2
      %v5901 = vmax.f32 %v5899, %v5900
      %v5902 = vrot.slane %v5901, 1
      %v5903 = vmax.f32 %v5901, %v5902
      %v5904 = vsel %vm5444, %v5060, -inf
      %v5905 = vsel %vm5444, %v5062, -inf
      %v5906 = vmax.f32 %v5904, %v5905
      %v5907 = vrot.slane %v5906, 4
      %v5908 = vmax.f32 %v5906, %v5907
      %v5909 = vrot.slane %v5908, 2
      %v5910 = vmax.f32 %v5908, %v5909
      %v5911 = vrot.slane %v5910, 1
      %v5912 = vmax.f32 %v5910, %v5911
      %v5913 = vsel %vm5444, %v5065, -inf
      %v5914 = vsel %vm5444, %v5067, -inf
      %v5915 = vmax.f32 %v5913, %v5914
      %v5916 = vrot.slane %v5915, 4
      %v5917 = vmax.f32 %v5915, %v5916
      %v5918 = vrot.slane %v5917, 2
      %v5919 = vmax.f32 %v5917, %v5918
      %v5920 = vrot.slane %v5919, 1
      %v5921 = vmax.f32 %v5919, %v5920
      %v5922 = vsel %vm5444, %v5070, -inf
      %v5923 = vsel %vm5444, %v5072, -inf
      %v5924 = vmax.f32 %v5922, %v5923
      %v5925 = vrot.slane %v5924, 4
      %v5926 = vmax.f32 %v5924, %v5925
      %v5927 = vrot.slane %v5926, 2
      %v5928 = vmax.f32 %v5926, %v5927
      %v5929 = vrot.slane %v5928, 1
      %v5930 = vmax.f32 %v5928, %v5929
      %v5931 = vsel %vm5444, %v5075, -inf
      %v5932 = vsel %vm5444, %v5077, -inf
      %v5933 = vmax.f32 %v5931, %v5932
      %v5934 = vrot.slane %v5933, 4
      %v5935 = vmax.f32 %v5933, %v5934
      %v5936 = vrot.slane %v5935, 2
      %v5937 = vmax.f32 %v5935, %v5936
      %v5938 = vrot.slane %v5937, 1
      %v5939 = vmax.f32 %v5937, %v5938
      %v5940 = vsel %vm5444, %v5080, -inf
      %v5941 = vsel %vm5444, %v5082, -inf
      %v5942 = vmax.f32 %v5940, %v5941
      %v5943 = vrot.slane %v5942, 4
      %v5944 = vmax.f32 %v5942, %v5943
      %v5945 = vrot.slane %v5944, 2
      %v5946 = vmax.f32 %v5944, %v5945
      %v5947 = vrot.slane %v5946, 1
      %v5948 = vmax.f32 %v5946, %v5947
      %v5949 = vsel %vm5444, %v5085, -inf
      %v5950 = vsel %vm5444, %v5087, -inf
      %v5951 = vmax.f32 %v5949, %v5950
      %v5952 = vrot.slane %v5951, 4
      %v5953 = vmax.f32 %v5951, %v5952
      %v5954 = vrot.slane %v5953, 2
      %v5955 = vmax.f32 %v5953, %v5954
      %v5956 = vrot.slane %v5955, 1
      %v5957 = vmax.f32 %v5955, %v5956
      %v5958 = vsel %vm5444, %v5090, -inf
      %v5959 = vsel %vm5444, %v5092, -inf
      %v5960 = vmax.f32 %v5958, %v5959
      %v5961 = vrot.slane %v5960, 4
      %v5962 = vmax.f32 %v5960, %v5961
      %v5963 = vrot.slane %v5962, 2
      %v5964 = vmax.f32 %v5962, %v5963
      %v5965 = vrot.slane %v5964, 1
      %v5966 = vmax.f32 %v5964, %v5965
      %v5967 = vsel %vm5444, %v5095, -inf
      %v5968 = vsel %vm5444, %v5097, -inf
      %v5969 = vmax.f32 %v5967, %v5968
      %v5970 = vrot.slane %v5969, 4
      %v5971 = vmax.f32 %v5969, %v5970
      %v5972 = vrot.slane %v5971, 2
      %v5973 = vmax.f32 %v5971, %v5972
      %v5974 = vrot.slane %v5973, 1
      %v5975 = vmax.f32 %v5973, %v5974
      %v5976 = vsel %vm5444, %v5100, -inf
      %v5977 = vsel %vm5444, %v5102, -inf
      %v5978 = vmax.f32 %v5976, %v5977
      %v5979 = vrot.slane %v5978, 4
      %v5980 = vmax.f32 %v5978, %v5979
      %v5981 = vrot.slane %v5980, 2
      %v5982 = vmax.f32 %v5980, %v5981
      %v5983 = vrot.slane %v5982, 1
      %v5984 = vmax.f32 %v5982, %v5983
      %v5985 = vsel %vm5444, %v5105, -inf
      %v5986 = vsel %vm5444, %v5107, -inf
      %v5987 = vmax.f32 %v5985, %v5986
      %v5988 = vrot.slane %v5987, 4
      %v5989 = vmax.f32 %v5987, %v5988
      %v5990 = vrot.slane %v5989, 2
      %v5991 = vmax.f32 %v5989, %v5990
      %v5992 = vrot.slane %v5991, 1
      %v5993 = vmax.f32 %v5991, %v5992
      %v5994 = vsel %vm5444, %v5110, -inf
      %v5995 = vsel %vm5444, %v5112, -inf
      %v5996 = vmax.f32 %v5994, %v5995
      %v5997 = vrot.slane %v5996, 4
      %v5998 = vmax.f32 %v5996, %v5997
      %v5999 = vrot.slane %v5998, 2
      %v6000 = vmax.f32 %v5998, %v5999
      %v6001 = vrot.slane %v6000, 1
      %v6002 = vmax.f32 %v6000, %v6001
      %v6003 = vsel %vm5444, %v5115, -inf
      %v6004 = vsel %vm5444, %v5117, -inf
      %v6005 = vmax.f32 %v6003, %v6004
      %v6006 = vrot.slane %v6005, 4
      %v6007 = vmax.f32 %v6005, %v6006
      %v6008 = vrot.slane %v6007, 2
      %v6009 = vmax.f32 %v6007, %v6008
      %v6010 = vrot.slane %v6009, 1
      %v6011 = vmax.f32 %v6009, %v6010
      %v6012 = vsel %vm5444, %v5120, -inf
      %v6013 = vsel %vm5444, %v5122, -inf
      %v6014 = vmax.f32 %v6012, %v6013
      %v6015 = vrot.slane %v6014, 4
      %v6016 = vmax.f32 %v6014, %v6015
      %v6017 = vrot.slane %v6016, 2
      %v6018 = vmax.f32 %v6016, %v6017
      %v6019 = vrot.slane %v6018, 1
      %v6020 = vmax.f32 %v6018, %v6019
      %v6021 = vsel %vm5444, %v5125, -inf
      %v6022 = vsel %vm5444, %v5127, -inf
      %v6023 = vmax.f32 %v6021, %v6022
      %v6024 = vrot.slane %v6023, 4
      %v6025 = vmax.f32 %v6023, %v6024
      %v6026 = vrot.slane %v6025, 2
      %v6027 = vmax.f32 %v6025, %v6026
      %v6028 = vrot.slane %v6027, 1
      %v6029 = vmax.f32 %v6027, %v6028
      %v6030 = vsel %vm5444, %v5130, -inf
      %v6031 = vsel %vm5444, %v5132, -inf
      %v6032 = vmax.f32 %v6030, %v6031
      %v6033 = vrot.slane %v6032, 4
      %v6034 = vmax.f32 %v6032, %v6033
      %v6035 = vrot.slane %v6034, 2
      %v6036 = vmax.f32 %v6034, %v6035
      %v6037 = vrot.slane %v6036, 1
      %v6038 = vmax.f32 %v6036, %v6037
      %v6039 = vsel %vm5444, %v5135, -inf
      %v6040 = vsel %vm5444, %v5137, -inf
      %v6041 = vmax.f32 %v6039, %v6040
      %v6042 = vrot.slane %v6041, 4
      %v6043 = vmax.f32 %v6041, %v6042
      %v6044 = vrot.slane %v6043, 2
      %v6045 = vmax.f32 %v6043, %v6044
      %v6046 = vrot.slane %v6045, 1
      %v6047 = vmax.f32 %v6045, %v6046
      %v6048 = vsel %vm5444, %v5140, -inf
      %v6049 = vsel %vm5444, %v5142, -inf
      %v6050 = vmax.f32 %v6048, %v6049
      %v6051 = vrot.slane %v6050, 4
      %v6052 = vmax.f32 %v6050, %v6051
      %v6053 = vrot.slane %v6052, 2
      %v6054 = vmax.f32 %v6052, %v6053
      %v6055 = vrot.slane %v6054, 1
      %v6056 = vmax.f32 %v6054, %v6055
      %v6057 = vsel %vm5444, %v5145, -inf
      %v6058 = vsel %vm5444, %v5147, -inf
      %v6059 = vmax.f32 %v6057, %v6058
      %v6060 = vrot.slane %v6059, 4
      %v6061 = vmax.f32 %v6059, %v6060
      %v6062 = vrot.slane %v6061, 2
      %v6063 = vmax.f32 %v6061, %v6062
      %v6064 = vrot.slane %v6063, 1
      %v6065 = vmax.f32 %v6063, %v6064
      %v6066 = vsel %vm5444, %v5150, -inf
      %v6067 = vsel %vm5444, %v5152, -inf
      %v6068 = vmax.f32 %v6066, %v6067
      %v6069 = vrot.slane %v6068, 4
      %v6070 = vmax.f32 %v6068, %v6069
      %v6071 = vrot.slane %v6070, 2
      %v6072 = vmax.f32 %v6070, %v6071
      %v6073 = vrot.slane %v6072, 1
      %v6074 = vmax.f32 %v6072, %v6073
      %v6075 = vsel %vm5444, %v5155, -inf
      %v6076 = vsel %vm5444, %v5157, -inf
      %v6077 = vmax.f32 %v6075, %v6076
      %v6078 = vrot.slane %v6077, 4
      %v6079 = vmax.f32 %v6077, %v6078
      %v6080 = vrot.slane %v6079, 2
      %v6081 = vmax.f32 %v6079, %v6080
      %v6082 = vrot.slane %v6081, 1
      %v6083 = vmax.f32 %v6081, %v6082
      %v6084 = vsel %vm5444, %v5160, -inf
      %v6085 = vsel %vm5444, %v5162, -inf
      %v6086 = vmax.f32 %v6084, %v6085
      %v6087 = vrot.slane %v6086, 4
      %v6088 = vmax.f32 %v6086, %v6087
      %v6089 = vrot.slane %v6088, 2
      %v6090 = vmax.f32 %v6088, %v6089
      %v6091 = vrot.slane %v6090, 1
      %v6092 = vmax.f32 %v6090, %v6091
      %v6093 = vsel %vm5444, %v5165, -inf
      %v6094 = vsel %vm5444, %v5167, -inf
      %v6095 = vmax.f32 %v6093, %v6094
      %v6096 = vrot.slane %v6095, 4
      %v6097 = vmax.f32 %v6095, %v6096
      %v6098 = vrot.slane %v6097, 2
      %v6099 = vmax.f32 %v6097, %v6098
      %v6100 = vrot.slane %v6099, 1
      %v6101 = vmax.f32 %v6099, %v6100
      %v6102 = vsel %vm5444, %v5170, -inf
      %v6103 = vsel %vm5444, %v5172, -inf
      %v6104 = vmax.f32 %v6102, %v6103
      %v6105 = vrot.slane %v6104, 4
      %v6106 = vmax.f32 %v6104, %v6105
      %v6107 = vrot.slane %v6106, 2
      %v6108 = vmax.f32 %v6106, %v6107
      %v6109 = vrot.slane %v6108, 1
      %v6110 = vmax.f32 %v6108, %v6109
      %v6111 = vsel %vm5444, %v5175, -inf
      %v6112 = vsel %vm5444, %v5177, -inf
      %v6113 = vmax.f32 %v6111, %v6112
      %v6114 = vrot.slane %v6113, 4
      %v6115 = vmax.f32 %v6113, %v6114
      %v6116 = vrot.slane %v6115, 2
      %v6117 = vmax.f32 %v6115, %v6116
      %v6118 = vrot.slane %v6117, 1
      %v6119 = vmax.f32 %v6117, %v6118
      %v6120 = vsel %vm5444, %v5180, -inf
      %v6121 = vsel %vm5444, %v5182, -inf
      %v6122 = vmax.f32 %v6120, %v6121
      %v6123 = vrot.slane %v6122, 4
      %v6124 = vmax.f32 %v6122, %v6123
      %v6125 = vrot.slane %v6124, 2
      %v6126 = vmax.f32 %v6124, %v6125
      %v6127 = vrot.slane %v6126, 1
      %v6128 = vmax.f32 %v6126, %v6127
      %v6129 = vsel %vm5444, %v5185, -inf
      %v6130 = vsel %vm5444, %v5187, -inf
      %v6131 = vmax.f32 %v6129, %v6130
      %v6132 = vrot.slane %v6131, 4
      %v6133 = vmax.f32 %v6131, %v6132
      %v6134 = vrot.slane %v6133, 2
      %v6135 = vmax.f32 %v6133, %v6134
      %v6136 = vrot.slane %v6135, 1
      %v6137 = vmax.f32 %v6135, %v6136
      %v6138 = vsel %vm5444, %v5190, -inf
      %v6139 = vsel %vm5444, %v5192, -inf
      %v6140 = vmax.f32 %v6138, %v6139
      %v6141 = vrot.slane %v6140, 4
      %v6142 = vmax.f32 %v6140, %v6141
      %v6143 = vrot.slane %v6142, 2
      %v6144 = vmax.f32 %v6142, %v6143
      %v6145 = vrot.slane %v6144, 1
      %v6146 = vmax.f32 %v6144, %v6145
      %v6147 = vsel %vm5444, %v5195, -inf
      %v6148 = vsel %vm5444, %v5197, -inf
      %v6149 = vmax.f32 %v6147, %v6148
      %v6150 = vrot.slane %v6149, 4
      %v6151 = vmax.f32 %v6149, %v6150
      %v6152 = vrot.slane %v6151, 2
      %v6153 = vmax.f32 %v6151, %v6152
      %v6154 = vrot.slane %v6153, 1
      %v6155 = vmax.f32 %v6153, %v6154
      %v6156 = vsel %vm5444, %v5200, -inf
      %v6157 = vsel %vm5444, %v5202, -inf
      %v6158 = vmax.f32 %v6156, %v6157
      %v6159 = vrot.slane %v6158, 4
      %v6160 = vmax.f32 %v6158, %v6159
      %v6161 = vrot.slane %v6160, 2
      %v6162 = vmax.f32 %v6160, %v6161
      %v6163 = vrot.slane %v6162, 1
      %v6164 = vmax.f32 %v6162, %v6163
      %v6165 = vsel %vm5444, %v5205, -inf
      %v6166 = vsel %vm5444, %v5207, -inf
      %v6167 = vmax.f32 %v6165, %v6166
      %v6168 = vrot.slane %v6167, 4
      %v6169 = vmax.f32 %v6167, %v6168
      %v6170 = vrot.slane %v6169, 2
      %v6171 = vmax.f32 %v6169, %v6170
      %v6172 = vrot.slane %v6171, 1
      %v6173 = vmax.f32 %v6171, %v6172
      %v6174 = vsel %vm5444, %v5210, -inf
      %v6175 = vsel %vm5444, %v5212, -inf
      %v6176 = vmax.f32 %v6174, %v6175
      %v6177 = vrot.slane %v6176, 4
      %v6178 = vmax.f32 %v6176, %v6177
      %v6179 = vrot.slane %v6178, 2
      %v6180 = vmax.f32 %v6178, %v6179
      %v6181 = vrot.slane %v6180, 1
      %v6182 = vmax.f32 %v6180, %v6181
      %v6183 = vsel %vm5444, %v5215, -inf
      %v6184 = vsel %vm5444, %v5217, -inf
      %v6185 = vmax.f32 %v6183, %v6184
      %v6186 = vrot.slane %v6185, 4
      %v6187 = vmax.f32 %v6185, %v6186
      %v6188 = vrot.slane %v6187, 2
      %v6189 = vmax.f32 %v6187, %v6188
      %v6190 = vrot.slane %v6189, 1
      %v6191 = vmax.f32 %v6189, %v6190
      %v6192 = vsel %vm5444, %v5220, -inf
      %v6193 = vsel %vm5444, %v5222, -inf
      %v6194 = vmax.f32 %v6192, %v6193
      %v6195 = vrot.slane %v6194, 4
      %v6196 = vmax.f32 %v6194, %v6195
      %v6197 = vrot.slane %v6196, 2
      %v6198 = vmax.f32 %v6196, %v6197
      %v6199 = vrot.slane %v6198, 1
      %v6200 = vmax.f32 %v6198, %v6199
      %v6201 = vsel %vm5444, %v5225, -inf
      %v6202 = vsel %vm5444, %v5227, -inf
      %v6203 = vmax.f32 %v6201, %v6202
      %v6204 = vrot.slane %v6203, 4
      %v6205 = vmax.f32 %v6203, %v6204
      %v6206 = vrot.slane %v6205, 2
      %v6207 = vmax.f32 %v6205, %v6206
      %v6208 = vrot.slane %v6207, 1
      %v6209 = vmax.f32 %v6207, %v6208
      %v6210 = vsel %vm5444, %v5230, -inf
      %v6211 = vsel %vm5444, %v5232, -inf
      %v6212 = vmax.f32 %v6210, %v6211
      %v6213 = vrot.slane %v6212, 4
      %v6214 = vmax.f32 %v6212, %v6213
      %v6215 = vrot.slane %v6214, 2
      %v6216 = vmax.f32 %v6214, %v6215
      %v6217 = vrot.slane %v6216, 1
      %v6218 = vmax.f32 %v6216, %v6217
      %v6219 = vsel %vm5444, %v5235, -inf
      %v6220 = vsel %vm5444, %v5237, -inf
      %v6221 = vmax.f32 %v6219, %v6220
      %v6222 = vrot.slane %v6221, 4
      %v6223 = vmax.f32 %v6221, %v6222
      %v6224 = vrot.slane %v6223, 2
      %v6225 = vmax.f32 %v6223, %v6224
      %v6226 = vrot.slane %v6225, 1
      %v6227 = vmax.f32 %v6225, %v6226
      %v6228 = vsel %vm5444, %v5240, -inf
      %v6229 = vsel %vm5444, %v5242, -inf
      %v6230 = vmax.f32 %v6228, %v6229
      %v6231 = vrot.slane %v6230, 4
      %v6232 = vmax.f32 %v6230, %v6231
      %v6233 = vrot.slane %v6232, 2
      %v6234 = vmax.f32 %v6232, %v6233
      %v6235 = vrot.slane %v6234, 1
      %v6236 = vmax.f32 %v6234, %v6235
      %v6237 = vsel %vm5444, %v5245, -inf
      %v6238 = vsel %vm5444, %v5247, -inf
      %v6239 = vmax.f32 %v6237, %v6238
      %v6240 = vrot.slane %v6239, 4
      %v6241 = vmax.f32 %v6239, %v6240
      %v6242 = vrot.slane %v6241, 2
      %v6243 = vmax.f32 %v6241, %v6242
      %v6244 = vrot.slane %v6243, 1
      %v6245 = vmax.f32 %v6243, %v6244
      %v6246 = vsel %vm5444, %v5250, -inf
      %v6247 = vsel %vm5444, %v5252, -inf
      %v6248 = vmax.f32 %v6246, %v6247
      %v6249 = vrot.slane %v6248, 4
      %v6250 = vmax.f32 %v6248, %v6249
      %v6251 = vrot.slane %v6250, 2
      %v6252 = vmax.f32 %v6250, %v6251
      %v6253 = vrot.slane %v6252, 1
      %v6254 = vmax.f32 %v6252, %v6253
      %v6255 = vsel %vm5444, %v5255, -inf
      %v6256 = vsel %vm5444, %v5257, -inf
      %v6257 = vmax.f32 %v6255, %v6256
      %v6258 = vrot.slane %v6257, 4
      %v6259 = vmax.f32 %v6257, %v6258
      %v6260 = vrot.slane %v6259, 2
      %v6261 = vmax.f32 %v6259, %v6260
      %v6262 = vrot.slane %v6261, 1
      %v6263 = vmax.f32 %v6261, %v6262
      %v6264 = vsel %vm5444, %v5260, -inf
      %v6265 = vsel %vm5444, %v5262, -inf
      %v6266 = vmax.f32 %v6264, %v6265
      %v6267 = vrot.slane %v6266, 4
      %v6268 = vmax.f32 %v6266, %v6267
      %v6269 = vrot.slane %v6268, 2
      %v6270 = vmax.f32 %v6268, %v6269
      %v6271 = vrot.slane %v6270, 1
      %v6272 = vmax.f32 %v6270, %v6271
      %v6273 = vsel %vm5444, %v5265, -inf
      %v6274 = vsel %vm5444, %v5267, -inf
      %v6275 = vmax.f32 %v6273, %v6274
      %v6276 = vrot.slane %v6275, 4
      %v6277 = vmax.f32 %v6275, %v6276
      %v6278 = vrot.slane %v6277, 2
      %v6279 = vmax.f32 %v6277, %v6278
      %v6280 = vrot.slane %v6279, 1
      %v6281 = vmax.f32 %v6279, %v6280
      %v6282 = vsel %vm5444, %v5270, -inf
      %v6283 = vsel %vm5444, %v5272, -inf
      %v6284 = vmax.f32 %v6282, %v6283
      %v6285 = vrot.slane %v6284, 4
      %v6286 = vmax.f32 %v6284, %v6285
      %v6287 = vrot.slane %v6286, 2
      %v6288 = vmax.f32 %v6286, %v6287
      %v6289 = vrot.slane %v6288, 1
      %v6290 = vmax.f32 %v6288, %v6289
      %v6291 = vsel %vm5444, %v5275, -inf
      %v6292 = vsel %vm5444, %v5277, -inf
      %v6293 = vmax.f32 %v6291, %v6292
      %v6294 = vrot.slane %v6293, 4
      %v6295 = vmax.f32 %v6293, %v6294
      %v6296 = vrot.slane %v6295, 2
      %v6297 = vmax.f32 %v6295, %v6296
      %v6298 = vrot.slane %v6297, 1
      %v6299 = vmax.f32 %v6297, %v6298
      %v6300 = vsel %vm5444, %v5280, -inf
      %v6301 = vsel %vm5444, %v5282, -inf
      %v6302 = vmax.f32 %v6300, %v6301
      %v6303 = vrot.slane %v6302, 4
      %v6304 = vmax.f32 %v6302, %v6303
      %v6305 = vrot.slane %v6304, 2
      %v6306 = vmax.f32 %v6304, %v6305
      %v6307 = vrot.slane %v6306, 1
      %v6308 = vmax.f32 %v6306, %v6307
      %v6309 = vsel %vm5444, %v5285, -inf
      %v6310 = vsel %vm5444, %v5287, -inf
      %v6311 = vmax.f32 %v6309, %v6310
      %v6312 = vrot.slane %v6311, 4
      %v6313 = vmax.f32 %v6311, %v6312
      %v6314 = vrot.slane %v6313, 2
      %v6315 = vmax.f32 %v6313, %v6314
      %v6316 = vrot.slane %v6315, 1
      %v6317 = vmax.f32 %v6315, %v6316
      %v6318 = vsel %vm5444, %v5290, -inf
      %v6319 = vsel %vm5444, %v5292, -inf
      %v6320 = vmax.f32 %v6318, %v6319
      %v6321 = vrot.slane %v6320, 4
      %v6322 = vmax.f32 %v6320, %v6321
      %v6323 = vrot.slane %v6322, 2
      %v6324 = vmax.f32 %v6322, %v6323
      %v6325 = vrot.slane %v6324, 1
      %v6326 = vmax.f32 %v6324, %v6325
      %v6327 = vsel %vm5444, %v5295, -inf
      %v6328 = vsel %vm5444, %v5297, -inf
      %v6329 = vmax.f32 %v6327, %v6328
      %v6330 = vrot.slane %v6329, 4
      %v6331 = vmax.f32 %v6329, %v6330
      %v6332 = vrot.slane %v6331, 2
      %v6333 = vmax.f32 %v6331, %v6332
      %v6334 = vrot.slane %v6333, 1
      %v6335 = vmax.f32 %v6333, %v6334
      %v6336 = vsel %vm5444, %v5300, -inf
      %v6337 = vsel %vm5444, %v5302, -inf
      %v6338 = vmax.f32 %v6336, %v6337
      %v6339 = vrot.slane %v6338, 4
      %v6340 = vmax.f32 %v6338, %v6339
      %v6341 = vrot.slane %v6340, 2
      %v6342 = vmax.f32 %v6340, %v6341
      %v6343 = vrot.slane %v6342, 1
      %v6344 = vmax.f32 %v6342, %v6343
      %v6345 = vsel %vm5444, %v5305, -inf
      %v6346 = vsel %vm5444, %v5307, -inf
      %v6347 = vmax.f32 %v6345, %v6346
      %v6348 = vrot.slane %v6347, 4
      %v6349 = vmax.f32 %v6347, %v6348
      %v6350 = vrot.slane %v6349, 2
      %v6351 = vmax.f32 %v6349, %v6350
      %v6352 = vrot.slane %v6351, 1
      %v6353 = vmax.f32 %v6351, %v6352
      %v6354 = vsel %vm5444, %v5310, -inf
      %v6355 = vsel %vm5444, %v5312, -inf
      %v6356 = vmax.f32 %v6354, %v6355
      %v6357 = vrot.slane %v6356, 4
      %v6358 = vmax.f32 %v6356, %v6357
      %v6359 = vrot.slane %v6358, 2
      %v6360 = vmax.f32 %v6358, %v6359
      %v6361 = vrot.slane %v6360, 1
      %v6362 = vmax.f32 %v6360, %v6361
      %v6363 = vsel %vm5444, %v5315, -inf
      %v6364 = vsel %vm5444, %v5317, -inf
      %v6365 = vmax.f32 %v6363, %v6364
      %v6366 = vrot.slane %v6365, 4
      %v6367 = vmax.f32 %v6365, %v6366
      %v6368 = vrot.slane %v6367, 2
      %v6369 = vmax.f32 %v6367, %v6368
      %v6370 = vrot.slane %v6369, 1
      %v6371 = vmax.f32 %v6369, %v6370
      %v6372 = vsel %vm5444, %v5320, -inf
      %v6373 = vsel %vm5444, %v5322, -inf
      %v6374 = vmax.f32 %v6372, %v6373
      %v6375 = vrot.slane %v6374, 4
      %v6376 = vmax.f32 %v6374, %v6375
      %v6377 = vrot.slane %v6376, 2
      %v6378 = vmax.f32 %v6376, %v6377
      %v6379 = vrot.slane %v6378, 1
      %v6380 = vmax.f32 %v6378, %v6379
      %v6381 = vsel %vm5444, %v5325, -inf
      %v6382 = vsel %vm5444, %v5327, -inf
      %v6383 = vmax.f32 %v6381, %v6382
      %v6384 = vrot.slane %v6383, 4
      %v6385 = vmax.f32 %v6383, %v6384
      %v6386 = vrot.slane %v6385, 2
      %v6387 = vmax.f32 %v6385, %v6386
      %v6388 = vrot.slane %v6387, 1
      %v6389 = vmax.f32 %v6387, %v6388
      %v6390 = vsel %vm5444, %v5330, -inf
      %v6391 = vsel %vm5444, %v5332, -inf
      %v6392 = vmax.f32 %v6390, %v6391
      %v6393 = vrot.slane %v6392, 4
      %v6394 = vmax.f32 %v6392, %v6393
      %v6395 = vrot.slane %v6394, 2
      %v6396 = vmax.f32 %v6394, %v6395
      %v6397 = vrot.slane %v6396, 1
      %v6398 = vmax.f32 %v6396, %v6397
      %v6399 = vsel %vm5444, %v5335, -inf
      %v6400 = vsel %vm5444, %v5337, -inf
      %v6401 = vmax.f32 %v6399, %v6400
      %v6402 = vrot.slane %v6401, 4
      %v6403 = vmax.f32 %v6401, %v6402
      %v6404 = vrot.slane %v6403, 2
      %v6405 = vmax.f32 %v6403, %v6404
      %v6406 = vrot.slane %v6405, 1
      %v6407 = vmax.f32 %v6405, %v6406
      %v6408 = vsel %vm5444, %v5340, -inf
      %v6409 = vsel %vm5444, %v5342, -inf
      %v6410 = vmax.f32 %v6408, %v6409
      %v6411 = vrot.slane %v6410, 4
      %v6412 = vmax.f32 %v6410, %v6411
      %v6413 = vrot.slane %v6412, 2
      %v6414 = vmax.f32 %v6412, %v6413
      %v6415 = vrot.slane %v6414, 1
      %v6416 = vmax.f32 %v6414, %v6415
      %v6417 = vsel %vm5444, %v5345, -inf
      %v6418 = vsel %vm5444, %v5347, -inf
      %v6419 = vmax.f32 %v6417, %v6418
      %v6420 = vrot.slane %v6419, 4
      %v6421 = vmax.f32 %v6419, %v6420
      %v6422 = vrot.slane %v6421, 2
      %v6423 = vmax.f32 %v6421, %v6422
      %v6424 = vrot.slane %v6423, 1
      %v6425 = vmax.f32 %v6423, %v6424
      %v6426 = vsel %vm5444, %v5350, -inf
      %v6427 = vsel %vm5444, %v5352, -inf
      %v6428 = vmax.f32 %v6426, %v6427
      %v6429 = vrot.slane %v6428, 4
      %v6430 = vmax.f32 %v6428, %v6429
      %v6431 = vrot.slane %v6430, 2
      %v6432 = vmax.f32 %v6430, %v6431
      %v6433 = vrot.slane %v6432, 1
      %v6434 = vmax.f32 %v6432, %v6433
      %v6435 = vsel %vm5444, %v5355, -inf
      %v6436 = vsel %vm5444, %v5357, -inf
      %v6437 = vmax.f32 %v6435, %v6436
      %v6438 = vrot.slane %v6437, 4
      %v6439 = vmax.f32 %v6437, %v6438
      %v6440 = vrot.slane %v6439, 2
      %v6441 = vmax.f32 %v6439, %v6440
      %v6442 = vrot.slane %v6441, 1
      %v6443 = vmax.f32 %v6441, %v6442
      %v6444 = vsel %vm5444, %v5360, -inf
      %v6445 = vsel %vm5444, %v5362, -inf
      %v6446 = vmax.f32 %v6444, %v6445
      %v6447 = vrot.slane %v6446, 4
      %v6448 = vmax.f32 %v6446, %v6447
      %v6449 = vrot.slane %v6448, 2
      %v6450 = vmax.f32 %v6448, %v6449
      %v6451 = vrot.slane %v6450, 1
      %v6452 = vmax.f32 %v6450, %v6451
      %v6453 = vsel %vm5444, %v5365, -inf
      %v6454 = vsel %vm5444, %v5367, -inf
      %v6455 = vmax.f32 %v6453, %v6454
      %v6456 = vrot.slane %v6455, 4
      %v6457 = vmax.f32 %v6455, %v6456
      %v6458 = vrot.slane %v6457, 2
      %v6459 = vmax.f32 %v6457, %v6458
      %v6460 = vrot.slane %v6459, 1
      %v6461 = vmax.f32 %v6459, %v6460
      %v6462 = vsel %vm5444, %v5370, -inf
      %v6463 = vsel %vm5444, %v5372, -inf
      %v6464 = vmax.f32 %v6462, %v6463
      %v6465 = vrot.slane %v6464, 4
      %v6466 = vmax.f32 %v6464, %v6465
      %v6467 = vrot.slane %v6466, 2
      %v6468 = vmax.f32 %v6466, %v6467
      %v6469 = vrot.slane %v6468, 1
      %v6470 = vmax.f32 %v6468, %v6469
      %v6471 = vsel %vm5444, %v5375, -inf
      %v6472 = vsel %vm5444, %v5377, -inf
      %v6473 = vmax.f32 %v6471, %v6472
      %v6474 = vrot.slane %v6473, 4
      %v6475 = vmax.f32 %v6473, %v6474
      %v6476 = vrot.slane %v6475, 2
      %v6477 = vmax.f32 %v6475, %v6476
      %v6478 = vrot.slane %v6477, 1
      %v6479 = vmax.f32 %v6477, %v6478
      %v6480 = vsel %vm5444, %v5380, -inf
      %v6481 = vsel %vm5444, %v5382, -inf
      %v6482 = vmax.f32 %v6480, %v6481
      %v6483 = vrot.slane %v6482, 4
      %v6484 = vmax.f32 %v6482, %v6483
      %v6485 = vrot.slane %v6484, 2
      %v6486 = vmax.f32 %v6484, %v6485
      %v6487 = vrot.slane %v6486, 1
      %v6488 = vmax.f32 %v6486, %v6487
      %v6489 = vsel %vm5444, %v5385, -inf
      %v6490 = vsel %vm5444, %v5387, -inf
      %v6491 = vmax.f32 %v6489, %v6490
      %v6492 = vrot.slane %v6491, 4
      %v6493 = vmax.f32 %v6491, %v6492
      %v6494 = vrot.slane %v6493, 2
      %v6495 = vmax.f32 %v6493, %v6494
      %v6496 = vrot.slane %v6495, 1
      %v6497 = vmax.f32 %v6495, %v6496
      %v6498 = vsel %vm5444, %v5390, -inf
      %v6499 = vsel %vm5444, %v5392, -inf
      %v6500 = vmax.f32 %v6498, %v6499
      %v6501 = vrot.slane %v6500, 4
      %v6502 = vmax.f32 %v6500, %v6501
      %v6503 = vrot.slane %v6502, 2
      %v6504 = vmax.f32 %v6502, %v6503
      %v6505 = vrot.slane %v6504, 1
      %v6506 = vmax.f32 %v6504, %v6505
      %v6507 = vsel %vm5444, %v5395, -inf
      %v6508 = vsel %vm5444, %v5397, -inf
      %v6509 = vmax.f32 %v6507, %v6508
      %v6510 = vrot.slane %v6509, 4
      %v6511 = vmax.f32 %v6509, %v6510
      %v6512 = vrot.slane %v6511, 2
      %v6513 = vmax.f32 %v6511, %v6512
      %v6514 = vrot.slane %v6513, 1
      %v6515 = vmax.f32 %v6513, %v6514
      %v6516 = vsel %vm5444, %v5400, -inf
      %v6517 = vsel %vm5444, %v5402, -inf
      %v6518 = vmax.f32 %v6516, %v6517
      %v6519 = vrot.slane %v6518, 4
      %v6520 = vmax.f32 %v6518, %v6519
      %v6521 = vrot.slane %v6520, 2
      %v6522 = vmax.f32 %v6520, %v6521
      %v6523 = vrot.slane %v6522, 1
      %v6524 = vmax.f32 %v6522, %v6523
      %v6525 = vsel %vm5444, %v5405, -inf
      %v6526 = vsel %vm5444, %v5407, -inf
      %v6527 = vmax.f32 %v6525, %v6526
      %v6528 = vrot.slane %v6527, 4
      %v6529 = vmax.f32 %v6527, %v6528
      %v6530 = vrot.slane %v6529, 2
      %v6531 = vmax.f32 %v6529, %v6530
      %v6532 = vrot.slane %v6531, 1
      %v6533 = vmax.f32 %v6531, %v6532
      %v6534 = vsel %vm5444, %v5410, -inf
      %v6535 = vsel %vm5444, %v5412, -inf
      %v6536 = vmax.f32 %v6534, %v6535
      %v6537 = vrot.slane %v6536, 4
      %v6538 = vmax.f32 %v6536, %v6537
      %v6539 = vrot.slane %v6538, 2
      %v6540 = vmax.f32 %v6538, %v6539
      %v6541 = vrot.slane %v6540, 1
      %v6542 = vmax.f32 %v6540, %v6541
      %v6543 = vsel %vm5444, %v5415, -inf
      %v6544 = vsel %vm5444, %v5417, -inf
      %v6545 = vmax.f32 %v6543, %v6544
      %v6546 = vrot.slane %v6545, 4
      %v6547 = vmax.f32 %v6545, %v6546
      %v6548 = vrot.slane %v6547, 2
      %v6549 = vmax.f32 %v6547, %v6548
      %v6550 = vrot.slane %v6549, 1
      %v6551 = vmax.f32 %v6549, %v6550
      %v6552 = vsel %vm5444, %v5420, -inf
      %v6553 = vsel %vm5444, %v5422, -inf
      %v6554 = vmax.f32 %v6552, %v6553
      %v6555 = vrot.slane %v6554, 4
      %v6556 = vmax.f32 %v6554, %v6555
      %v6557 = vrot.slane %v6556, 2
      %v6558 = vmax.f32 %v6556, %v6557
      %v6559 = vrot.slane %v6558, 1
      %v6560 = vmax.f32 %v6558, %v6559
      %v6561 = vsel %vm5444, %v5425, -inf
      %v6562 = vsel %vm5444, %v5427, -inf
      %v6563 = vmax.f32 %v6561, %v6562
      %v6564 = vrot.slane %v6563, 4
      %v6565 = vmax.f32 %v6563, %v6564
      %v6566 = vrot.slane %v6565, 2
      %v6567 = vmax.f32 %v6565, %v6566
      %v6568 = vrot.slane %v6567, 1
      %v6569 = vmax.f32 %v6567, %v6568
      %v6570 = vsel %vm5444, %v5430, -inf
      %v6571 = vsel %vm5444, %v5432, -inf
      %v6572 = vmax.f32 %v6570, %v6571
      %v6573 = vrot.slane %v6572, 4
      %v6574 = vmax.f32 %v6572, %v6573
      %v6575 = vrot.slane %v6574, 2
      %v6576 = vmax.f32 %v6574, %v6575
      %v6577 = vrot.slane %v6576, 1
      %v6578 = vmax.f32 %v6576, %v6577
      %v6579 = vsel %vm5444, %v5435, -inf
      %v6580 = vsel %vm5444, %v5437, -inf
      %v6581 = vmax.f32 %v6579, %v6580
      %v6582 = vrot.slane %v6581, 4
      %v6583 = vmax.f32 %v6581, %v6582
      %v6584 = vrot.slane %v6583, 2
      %v6585 = vmax.f32 %v6583, %v6584
      %v6586 = vrot.slane %v6585, 1
      %v6587 = vmax.f32 %v6585, %v6586
      %v6588 = vsel %vm5444, %v5440, -inf
      %v6589 = vsel %vm5444, %v5442, -inf
      %v6590 = vmax.f32 %v6588, %v6589
      %v6591 = vrot.slane %v6590, 4
      %v6592 = vmax.f32 %v6590, %v6591
      %v6593 = vrot.slane %v6592, 2
      %v6594 = vmax.f32 %v6592, %v6593
      %v6595 = vrot.slane %v6594, 1
      %v6596 = vmax.f32 %v6594, %v6595
      %v6597 = vsub.f32 %v4805, %v5453
      %v6598 = vsub.f32 %v4807, %v5453
      %v6599 = vsub.f32 %v4810, %v5462
      %v6600 = vsub.f32 %v4812, %v5462
      %v6601 = vsub.f32 %v4815, %v5471
      %v6602 = vsub.f32 %v4817, %v5471
      %v6603 = vsub.f32 %v4820, %v5480
      %v6604 = vsub.f32 %v4822, %v5480
      %v6605 = vsub.f32 %v4825, %v5489
      %v6606 = vsub.f32 %v4827, %v5489
      %v6607 = vsub.f32 %v4830, %v5498
      %v6608 = vsub.f32 %v4832, %v5498
      %v6609 = vsub.f32 %v4835, %v5507
      %v6610 = vsub.f32 %v4837, %v5507
      %v6611 = vsub.f32 %v4840, %v5516
      %v6612 = vsub.f32 %v4842, %v5516
      %v6613 = vsub.f32 %v4845, %v5525
      %v6614 = vsub.f32 %v4847, %v5525
      %v6615 = vsub.f32 %v4850, %v5534
      %v6616 = vsub.f32 %v4852, %v5534
      %v6617 = vsub.f32 %v4855, %v5543
      %v6618 = vsub.f32 %v4857, %v5543
      %v6619 = vsub.f32 %v4860, %v5552
      %v6620 = vsub.f32 %v4862, %v5552
      %v6621 = vsub.f32 %v4865, %v5561
      %v6622 = vsub.f32 %v4867, %v5561
      %v6623 = vsub.f32 %v4870, %v5570
      %v6624 = vsub.f32 %v4872, %v5570
      %v6625 = vsub.f32 %v4875, %v5579
      %v6626 = vsub.f32 %v4877, %v5579
      %v6627 = vsub.f32 %v4880, %v5588
      %v6628 = vsub.f32 %v4882, %v5588
      %v6629 = vsub.f32 %v4885, %v5597
      %v6630 = vsub.f32 %v4887, %v5597
      %v6631 = vsub.f32 %v4890, %v5606
      %v6632 = vsub.f32 %v4892, %v5606
      %v6633 = vsub.f32 %v4895, %v5615
      %v6634 = vsub.f32 %v4897, %v5615
      %v6635 = vsub.f32 %v4900, %v5624
      %v6636 = vsub.f32 %v4902, %v5624
      %v6637 = vsub.f32 %v4905, %v5633
      %v6638 = vsub.f32 %v4907, %v5633
      %v6639 = vsub.f32 %v4910, %v5642
      %v6640 = vsub.f32 %v4912, %v5642
      %v6641 = vsub.f32 %v4915, %v5651
      %v6642 = vsub.f32 %v4917, %v5651
      %v6643 = vsub.f32 %v4920, %v5660
      %v6644 = vsub.f32 %v4922, %v5660
      %v6645 = vsub.f32 %v4925, %v5669
      %v6646 = vsub.f32 %v4927, %v5669
      %v6647 = vsub.f32 %v4930, %v5678
      %v6648 = vsub.f32 %v4932, %v5678
      %v6649 = vsub.f32 %v4935, %v5687
      %v6650 = vsub.f32 %v4937, %v5687
      %v6651 = vsub.f32 %v4940, %v5696
      %v6652 = vsub.f32 %v4942, %v5696
      %v6653 = vsub.f32 %v4945, %v5705
      %v6654 = vsub.f32 %v4947, %v5705
      %v6655 = vsub.f32 %v4950, %v5714
      %v6656 = vsub.f32 %v4952, %v5714
      %v6657 = vsub.f32 %v4955, %v5723
      %v6658 = vsub.f32 %v4957, %v5723
      %v6659 = vsub.f32 %v4960, %v5732
      %v6660 = vsub.f32 %v4962, %v5732
      %v6661 = vsub.f32 %v4965, %v5741
      %v6662 = vsub.f32 %v4967, %v5741
      %v6663 = vsub.f32 %v4970, %v5750
      %v6664 = vsub.f32 %v4972, %v5750
      %v6665 = vsub.f32 %v4975, %v5759
      %v6666 = vsub.f32 %v4977, %v5759
      %v6667 = vsub.f32 %v4980, %v5768
      %v6668 = vsub.f32 %v4982, %v5768
      %v6669 = vsub.f32 %v4985, %v5777
      %v6670 = vsub.f32 %v4987, %v5777
      %v6671 = vsub.f32 %v4990, %v5786
      %v6672 = vsub.f32 %v4992, %v5786
      %v6673 = vsub.f32 %v4995, %v5795
      %v6674 = vsub.f32 %v4997, %v5795
      %v6675 = vsub.f32 %v5000, %v5804
      %v6676 = vsub.f32 %v5002, %v5804
      %v6677 = vsub.f32 %v5005, %v5813
      %v6678 = vsub.f32 %v5007, %v5813
      %v6679 = vsub.f32 %v5010, %v5822
      %v6680 = vsub.f32 %v5012, %v5822
      %v6681 = vsub.f32 %v5015, %v5831
      %v6682 = vsub.f32 %v5017, %v5831
      %v6683 = vsub.f32 %v5020, %v5840
      %v6684 = vsub.f32 %v5022, %v5840
      %v6685 = vsub.f32 %v5025, %v5849
      %v6686 = vsub.f32 %v5027, %v5849
      %v6687 = vsub.f32 %v5030, %v5858
      %v6688 = vsub.f32 %v5032, %v5858
      %v6689 = vsub.f32 %v5035, %v5867
      %v6690 = vsub.f32 %v5037, %v5867
      %v6691 = vsub.f32 %v5040, %v5876
      %v6692 = vsub.f32 %v5042, %v5876
      %v6693 = vsub.f32 %v5045, %v5885
      %v6694 = vsub.f32 %v5047, %v5885
      %v6695 = vsub.f32 %v5050, %v5894
      %v6696 = vsub.f32 %v5052, %v5894
      %v6697 = vsub.f32 %v5055, %v5903
      %v6698 = vsub.f32 %v5057, %v5903
      %v6699 = vsub.f32 %v5060, %v5912
      %v6700 = vsub.f32 %v5062, %v5912
      %v6701 = vsub.f32 %v5065, %v5921
      %v6702 = vsub.f32 %v5067, %v5921
      %v6703 = vsub.f32 %v5070, %v5930
      %v6704 = vsub.f32 %v5072, %v5930
      %v6705 = vsub.f32 %v5075, %v5939
      %v6706 = vsub.f32 %v5077, %v5939
      %v6707 = vsub.f32 %v5080, %v5948
      %v6708 = vsub.f32 %v5082, %v5948
      %v6709 = vsub.f32 %v5085, %v5957
      %v6710 = vsub.f32 %v5087, %v5957
      %v6711 = vsub.f32 %v5090, %v5966
      %v6712 = vsub.f32 %v5092, %v5966
      %v6713 = vsub.f32 %v5095, %v5975
      %v6714 = vsub.f32 %v5097, %v5975
      %v6715 = vsub.f32 %v5100, %v5984
      %v6716 = vsub.f32 %v5102, %v5984
      %v6717 = vsub.f32 %v5105, %v5993
      %v6718 = vsub.f32 %v5107, %v5993
      %v6719 = vsub.f32 %v5110, %v6002
      %v6720 = vsub.f32 %v5112, %v6002
      %v6721 = vsub.f32 %v5115, %v6011
      %v6722 = vsub.f32 %v5117, %v6011
      %v6723 = vsub.f32 %v5120, %v6020
      %v6724 = vsub.f32 %v5122, %v6020
      %v6725 = vsub.f32 %v5125, %v6029
      %v6726 = vsub.f32 %v5127, %v6029
      %v6727 = vsub.f32 %v5130, %v6038
      %v6728 = vsub.f32 %v5132, %v6038
      %v6729 = vsub.f32 %v5135, %v6047
      %v6730 = vsub.f32 %v5137, %v6047
      %v6731 = vsub.f32 %v5140, %v6056
      %v6732 = vsub.f32 %v5142, %v6056
      %v6733 = vsub.f32 %v5145, %v6065
      %v6734 = vsub.f32 %v5147, %v6065
      %v6735 = vsub.f32 %v5150, %v6074
      %v6736 = vsub.f32 %v5152, %v6074
      %v6737 = vsub.f32 %v5155, %v6083
      %v6738 = vsub.f32 %v5157, %v6083
      %v6739 = vsub.f32 %v5160, %v6092
      %v6740 = vsub.f32 %v5162, %v6092
      %v6741 = vsub.f32 %v5165, %v6101
      %v6742 = vsub.f32 %v5167, %v6101
      %v6743 = vsub.f32 %v5170, %v6110
      %v6744 = vsub.f32 %v5172, %v6110
      %v6745 = vsub.f32 %v5175, %v6119
      %v6746 = vsub.f32 %v5177, %v6119
      %v6747 = vsub.f32 %v5180, %v6128
      %v6748 = vsub.f32 %v5182, %v6128
      %v6749 = vsub.f32 %v5185, %v6137
      %v6750 = vsub.f32 %v5187, %v6137
      %v6751 = vsub.f32 %v5190, %v6146
      %v6752 = vsub.f32 %v5192, %v6146
      %v6753 = vsub.f32 %v5195, %v6155
      %v6754 = vsub.f32 %v5197, %v6155
      %v6755 = vsub.f32 %v5200, %v6164
      %v6756 = vsub.f32 %v5202, %v6164
      %v6757 = vsub.f32 %v5205, %v6173
      %v6758 = vsub.f32 %v5207, %v6173
      %v6759 = vsub.f32 %v5210, %v6182
      %v6760 = vsub.f32 %v5212, %v6182
      %v6761 = vsub.f32 %v5215, %v6191
      %v6762 = vsub.f32 %v5217, %v6191
      %v6763 = vsub.f32 %v5220, %v6200
      %v6764 = vsub.f32 %v5222, %v6200
      %v6765 = vsub.f32 %v5225, %v6209
      %v6766 = vsub.f32 %v5227, %v6209
      %v6767 = vsub.f32 %v5230, %v6218
      %v6768 = vsub.f32 %v5232, %v6218
      %v6769 = vsub.f32 %v5235, %v6227
      %v6770 = vsub.f32 %v5237, %v6227
      %v6771 = vsub.f32 %v5240, %v6236
      %v6772 = vsub.f32 %v5242, %v6236
      %v6773 = vsub.f32 %v5245, %v6245
      %v6774 = vsub.f32 %v5247, %v6245
      %v6775 = vsub.f32 %v5250, %v6254
      %v6776 = vsub.f32 %v5252, %v6254
      %v6777 = vsub.f32 %v5255, %v6263
      %v6778 = vsub.f32 %v5257, %v6263
      %v6779 = vsub.f32 %v5260, %v6272
      %v6780 = vsub.f32 %v5262, %v6272
      %v6781 = vsub.f32 %v5265, %v6281
      %v6782 = vsub.f32 %v5267, %v6281
      %v6783 = vsub.f32 %v5270, %v6290
      %v6784 = vsub.f32 %v5272, %v6290
      %v6785 = vsub.f32 %v5275, %v6299
      %v6786 = vsub.f32 %v5277, %v6299
      %v6787 = vsub.f32 %v5280, %v6308
      %v6788 = vsub.f32 %v5282, %v6308
      %v6789 = vsub.f32 %v5285, %v6317
      %v6790 = vsub.f32 %v5287, %v6317
      %v6791 = vsub.f32 %v5290, %v6326
      %v6792 = vsub.f32 %v5292, %v6326
      %v6793 = vsub.f32 %v5295, %v6335
      %v6794 = vsub.f32 %v5297, %v6335
      %v6795 = vsub.f32 %v5300, %v6344
      %v6796 = vsub.f32 %v5302, %v6344
      %v6797 = vsub.f32 %v5305, %v6353
      %v6798 = vsub.f32 %v5307, %v6353
      %v6799 = vsub.f32 %v5310, %v6362
      %v6800 = vsub.f32 %v5312, %v6362
      %v6801 = vsub.f32 %v5315, %v6371
      %v6802 = vsub.f32 %v5317, %v6371
      %v6803 = vsub.f32 %v5320, %v6380
      %v6804 = vsub.f32 %v5322, %v6380
      %v6805 = vsub.f32 %v5325, %v6389
      %v6806 = vsub.f32 %v5327, %v6389
      %v6807 = vsub.f32 %v5330, %v6398
      %v6808 = vsub.f32 %v5332, %v6398
      %v6809 = vsub.f32 %v5335, %v6407
      %v6810 = vsub.f32 %v5337, %v6407
      %v6811 = vsub.f32 %v5340, %v6416
      %v6812 = vsub.f32 %v5342, %v6416
      %v6813 = vsub.f32 %v5345, %v6425
      %v6814 = vsub.f32 %v5347, %v6425
      %v6815 = vsub.f32 %v5350, %v6434
      %v6816 = vsub.f32 %v5352, %v6434
      %v6817 = vsub.f32 %v5355, %v6443
      %v6818 = vsub.f32 %v5357, %v6443
      %v6819 = vsub.f32 %v5360, %v6452
      %v6820 = vsub.f32 %v5362, %v6452
      %v6821 = vsub.f32 %v5365, %v6461
      %v6822 = vsub.f32 %v5367, %v6461
      %v6823 = vsub.f32 %v5370, %v6470
      %v6824 = vsub.f32 %v5372, %v6470
      %v6825 = vsub.f32 %v5375, %v6479
      %v6826 = vsub.f32 %v5377, %v6479
      %v6827 = vsub.f32 %v5380, %v6488
      %v6828 = vsub.f32 %v5382, %v6488
      %v6829 = vsub.f32 %v5385, %v6497
      %v6830 = vsub.f32 %v5387, %v6497
      %v6831 = vsub.f32 %v5390, %v6506
      %v6832 = vsub.f32 %v5392, %v6506
      %v6833 = vsub.f32 %v5395, %v6515
      %v6834 = vsub.f32 %v5397, %v6515
      %v6835 = vsub.f32 %v5400, %v6524
      %v6836 = vsub.f32 %v5402, %v6524
      %v6837 = vsub.f32 %v5405, %v6533
      %v6838 = vsub.f32 %v5407, %v6533
      %v6839 = vsub.f32 %v5410, %v6542
      %v6840 = vsub.f32 %v5412, %v6542
      %v6841 = vsub.f32 %v5415, %v6551
      %v6842 = vsub.f32 %v5417, %v6551
      %v6843 = vsub.f32 %v5420, %v6560
      %v6844 = vsub.f32 %v5422, %v6560
      %v6845 = vsub.f32 %v5425, %v6569
      %v6846 = vsub.f32 %v5427, %v6569
      %v6847 = vsub.f32 %v5430, %v6578
      %v6848 = vsub.f32 %v5432, %v6578
      %v6849 = vsub.f32 %v5435, %v6587
      %v6850 = vsub.f32 %v5437, %v6587
      %v6851 = vsub.f32 %v5440, %v6596
      %v6852 = vsub.f32 %v5442, %v6596
      %v6853 = vmul.f32 %v6597, 1.442695
      %v6854 = vpow.pop %v6853
      %v6855 = vmul.f32 %v6598, 1.442695
      %v6856 = vpow.pop %v6855
      %v6857 = vmul.f32 %v6599, 1.442695
      %v6858 = vpow.pop %v6857
      %v6859 = vmul.f32 %v6600, 1.442695
      %v6860 = vpow.pop %v6859
      %v6861 = vmul.f32 %v6601, 1.442695
      %v6862 = vpow.pop %v6861
      %v6863 = vmul.f32 %v6602, 1.442695
      %v6864 = vpow.pop %v6863
      %v6865 = vmul.f32 %v6603, 1.442695
      %v6866 = vpow.pop %v6865
      %v6867 = vmul.f32 %v6604, 1.442695
      %v6868 = vpow.pop %v6867
      %v6869 = vmul.f32 %v6605, 1.442695
      %v6870 = vpow.pop %v6869
      %v6871 = vmul.f32 %v6606, 1.442695
      %v6872 = vpow.pop %v6871
      %v6873 = vmul.f32 %v6607, 1.442695
      %v6874 = vpow.pop %v6873
      %v6875 = vmul.f32 %v6608, 1.442695
      %v6876 = vpow.pop %v6875
      %v6877 = vmul.f32 %v6609, 1.442695
      %v6878 = vpow.pop %v6877
      %v6879 = vmul.f32 %v6610, 1.442695
      %v6880 = vpow.pop %v6879
      %v6881 = vmul.f32 %v6611, 1.442695
      %v6882 = vpow.pop %v6881
      %v6883 = vmul.f32 %v6612, 1.442695
      %v6884 = vpow.pop %v6883
      %v6885 = vmul.f32 %v6613, 1.442695
      %v6886 = vpow.pop %v6885
      %v6887 = vmul.f32 %v6614, 1.442695
      %v6888 = vpow.pop %v6887
      %v6889 = vmul.f32 %v6615, 1.442695
      %v6890 = vpow.pop %v6889
      %v6891 = vmul.f32 %v6616, 1.442695
      %v6892 = vpow.pop %v6891
      %v6893 = vmul.f32 %v6617, 1.442695
      %v6894 = vpow.pop %v6893
      %v6895 = vmul.f32 %v6618, 1.442695
      %v6896 = vpow.pop %v6895
      %v6897 = vmul.f32 %v6619, 1.442695
      %v6898 = vpow.pop %v6897
      %v6899 = vmul.f32 %v6620, 1.442695
      %v6900 = vpow.pop %v6899
      %v6901 = vmul.f32 %v6621, 1.442695
      %v6902 = vpow.pop %v6901
      %v6903 = vmul.f32 %v6622, 1.442695
      %v6904 = vpow.pop %v6903
      %v6905 = vmul.f32 %v6623, 1.442695
      %v6906 = vpow.pop %v6905
      %v6907 = vmul.f32 %v6624, 1.442695
      %v6908 = vpow.pop %v6907
      %v6909 = vmul.f32 %v6625, 1.442695
      %v6910 = vpow.pop %v6909
      %v6911 = vmul.f32 %v6626, 1.442695
      %v6912 = vpow.pop %v6911
      %v6913 = vmul.f32 %v6627, 1.442695
      %v6914 = vpow.pop %v6913
      %v6915 = vmul.f32 %v6628, 1.442695
      %v6916 = vpow.pop %v6915
      %v6917 = vmul.f32 %v6629, 1.442695
      %v6918 = vpow.pop %v6917
      %v6919 = vmul.f32 %v6630, 1.442695
      %v6920 = vpow.pop %v6919
      %v6921 = vmul.f32 %v6631, 1.442695
      %v6922 = vpow.pop %v6921
      %v6923 = vmul.f32 %v6632, 1.442695
      %v6924 = vpow.pop %v6923
      %v6925 = vmul.f32 %v6633, 1.442695
      %v6926 = vpow.pop %v6925
      %v6927 = vmul.f32 %v6634, 1.442695
      %v6928 = vpow.pop %v6927
      %v6929 = vmul.f32 %v6635, 1.442695
      %v6930 = vpow.pop %v6929
      %v6931 = vmul.f32 %v6636, 1.442695
      %v6932 = vpow.pop %v6931
      %v6933 = vmul.f32 %v6637, 1.442695
      %v6934 = vpow.pop %v6933
      %v6935 = vmul.f32 %v6638, 1.442695
      %v6936 = vpow.pop %v6935
      %v6937 = vmul.f32 %v6639, 1.442695
      %v6938 = vpow.pop %v6937
      %v6939 = vmul.f32 %v6640, 1.442695
      %v6940 = vpow.pop %v6939
      %v6941 = vmul.f32 %v6641, 1.442695
      %v6942 = vpow.pop %v6941
      %v6943 = vmul.f32 %v6642, 1.442695
      %v6944 = vpow.pop %v6943
      %v6945 = vmul.f32 %v6643, 1.442695
      %v6946 = vpow.pop %v6945
      %v6947 = vmul.f32 %v6644, 1.442695
      %v6948 = vpow.pop %v6947
      %v6949 = vmul.f32 %v6645, 1.442695
      %v6950 = vpow.pop %v6949
      %v6951 = vmul.f32 %v6646, 1.442695
      %v6952 = vpow.pop %v6951
      %v6953 = vmul.f32 %v6647, 1.442695
      %v6954 = vpow.pop %v6953
      %v6955 = vmul.f32 %v6648, 1.442695
      %v6956 = vpow.pop %v6955
      %v6957 = vmul.f32 %v6649, 1.442695
      %v6958 = vpow.pop %v6957
      %v6959 = vmul.f32 %v6650, 1.442695
      %v6960 = vpow.pop %v6959
      %v6961 = vmul.f32 %v6651, 1.442695
      %v6962 = vpow.pop %v6961
      %v6963 = vmul.f32 %v6652, 1.442695
      %v6964 = vpow.pop %v6963
      %v6965 = vmul.f32 %v6653, 1.442695
      %v6966 = vpow.pop %v6965
      %v6967 = vmul.f32 %v6654, 1.442695
      %v6968 = vpow.pop %v6967
      %v6969 = vmul.f32 %v6655, 1.442695
      %v6970 = vpow.pop %v6969
      %v6971 = vmul.f32 %v6656, 1.442695
      %v6972 = vpow.pop %v6971
      %v6973 = vmul.f32 %v6657, 1.442695
      %v6974 = vpow.pop %v6973
      %v6975 = vmul.f32 %v6658, 1.442695
      %v6976 = vpow.pop %v6975
      %v6977 = vmul.f32 %v6659, 1.442695
      %v6978 = vpow.pop %v6977
      %v6979 = vmul.f32 %v6660, 1.442695
      %v6980 = vpow.pop %v6979
      %v6981 = vmul.f32 %v6661, 1.442695
      %v6982 = vpow.pop %v6981
      %v6983 = vmul.f32 %v6662, 1.442695
      %v6984 = vpow.pop %v6983
      %v6985 = vmul.f32 %v6663, 1.442695
      %v6986 = vpow.pop %v6985
      %v6987 = vmul.f32 %v6664, 1.442695
      %v6988 = vpow.pop %v6987
      %v6989 = vmul.f32 %v6665, 1.442695
      %v6990 = vpow.pop %v6989
      %v6991 = vmul.f32 %v6666, 1.442695
      %v6992 = vpow.pop %v6991
      %v6993 = vmul.f32 %v6667, 1.442695
      %v6994 = vpow.pop %v6993
      %v6995 = vmul.f32 %v6668, 1.442695
      %v6996 = vpow.pop %v6995
      %v6997 = vmul.f32 %v6669, 1.442695
      %v6998 = vpow.pop %v6997
      %v6999 = vmul.f32 %v6670, 1.442695
      %v7000 = vpow.pop %v6999
      %v7001 = vmul.f32 %v6671, 1.442695
      %v7002 = vpow.pop %v7001
      %v7003 = vmul.f32 %v6672, 1.442695
      %v7004 = vpow.pop %v7003
      %v7005 = vmul.f32 %v6673, 1.442695
      %v7006 = vpow.pop %v7005
      %v7007 = vmul.f32 %v6674, 1.442695
      %v7008 = vpow.pop %v7007
      %v7009 = vmul.f32 %v6675, 1.442695
      %v7010 = vpow.pop %v7009
      %v7011 = vmul.f32 %v6676, 1.442695
      %v7012 = vpow.pop %v7011
      %v7013 = vmul.f32 %v6677, 1.442695
      %v7014 = vpow.pop %v7013
      %v7015 = vmul.f32 %v6678, 1.442695
      %v7016 = vpow.pop %v7015
      %v7017 = vmul.f32 %v6679, 1.442695
      %v7018 = vpow.pop %v7017
      %v7019 = vmul.f32 %v6680, 1.442695
      %v7020 = vpow.pop %v7019
      %v7021 = vmul.f32 %v6681, 1.442695
      %v7022 = vpow.pop %v7021
      %v7023 = vmul.f32 %v6682, 1.442695
      %v7024 = vpow.pop %v7023
      %v7025 = vmul.f32 %v6683, 1.442695
      %v7026 = vpow.pop %v7025
      %v7027 = vmul.f32 %v6684, 1.442695
      %v7028 = vpow.pop %v7027
      %v7029 = vmul.f32 %v6685, 1.442695
      %v7030 = vpow.pop %v7029
      %v7031 = vmul.f32 %v6686, 1.442695
      %v7032 = vpow.pop %v7031
      %v7033 = vmul.f32 %v6687, 1.442695
      %v7034 = vpow.pop %v7033
      %v7035 = vmul.f32 %v6688, 1.442695
      %v7036 = vpow.pop %v7035
      %v7037 = vmul.f32 %v6689, 1.442695
      %v7038 = vpow.pop %v7037
      %v7039 = vmul.f32 %v6690, 1.442695
      %v7040 = vpow.pop %v7039
      %v7041 = vmul.f32 %v6691, 1.442695
      %v7042 = vpow.pop %v7041
      %v7043 = vmul.f32 %v6692, 1.442695
      %v7044 = vpow.pop %v7043
      %v7045 = vmul.f32 %v6693, 1.442695
      %v7046 = vpow.pop %v7045
      %v7047 = vmul.f32 %v6694, 1.442695
      %v7048 = vpow.pop %v7047
      %v7049 = vmul.f32 %v6695, 1.442695
      %v7050 = vpow.pop %v7049
      %v7051 = vmul.f32 %v6696, 1.442695
      %v7052 = vpow.pop %v7051
      %v7053 = vmul.f32 %v6697, 1.442695
      %v7054 = vpow.pop %v7053
      %v7055 = vmul.f32 %v6698, 1.442695
      %v7056 = vpow.pop %v7055
      %v7057 = vmul.f32 %v6699, 1.442695
      %v7058 = vpow.pop %v7057
      %v7059 = vmul.f32 %v6700, 1.442695
      %v7060 = vpow.pop %v7059
      %v7061 = vmul.f32 %v6701, 1.442695
      %v7062 = vpow.pop %v7061
      %v7063 = vmul.f32 %v6702, 1.442695
      %v7064 = vpow.pop %v7063
      %v7065 = vmul.f32 %v6703, 1.442695
      %v7066 = vpow.pop %v7065
      %v7067 = vmul.f32 %v6704, 1.442695
      %v7068 = vpow.pop %v7067
      %v7069 = vmul.f32 %v6705, 1.442695
      %v7070 = vpow.pop %v7069
      %v7071 = vmul.f32 %v6706, 1.442695
      %v7072 = vpow.pop %v7071
      %v7073 = vmul.f32 %v6707, 1.442695
      %v7074 = vpow.pop %v7073
      %v7075 = vmul.f32 %v6708, 1.442695
      %v7076 = vpow.pop %v7075
      %v7077 = vmul.f32 %v6709, 1.442695
      %v7078 = vpow.pop %v7077
      %v7079 = vmul.f32 %v6710, 1.442695
      %v7080 = vpow.pop %v7079
      %v7081 = vmul.f32 %v6711, 1.442695
      %v7082 = vpow.pop %v7081
      %v7083 = vmul.f32 %v6712, 1.442695
      %v7084 = vpow.pop %v7083
      %v7085 = vmul.f32 %v6713, 1.442695
      %v7086 = vpow.pop %v7085
      %v7087 = vmul.f32 %v6714, 1.442695
      %v7088 = vpow.pop %v7087
      %v7089 = vmul.f32 %v6715, 1.442695
      %v7090 = vpow.pop %v7089
      %v7091 = vmul.f32 %v6716, 1.442695
      %v7092 = vpow.pop %v7091
      %v7093 = vmul.f32 %v6717, 1.442695
      %v7094 = vpow.pop %v7093
      %v7095 = vmul.f32 %v6718, 1.442695
      %v7096 = vpow.pop %v7095
      %v7097 = vmul.f32 %v6719, 1.442695
      %v7098 = vpow.pop %v7097
      %v7099 = vmul.f32 %v6720, 1.442695
      %v7100 = vpow.pop %v7099
      %v7101 = vmul.f32 %v6721, 1.442695
      %v7102 = vpow.pop %v7101
      %v7103 = vmul.f32 %v6722, 1.442695
      %v7104 = vpow.pop %v7103
      %v7105 = vmul.f32 %v6723, 1.442695
      %v7106 = vpow.pop %v7105
      %v7107 = vmul.f32 %v6724, 1.442695
      %v7108 = vpow.pop %v7107
      %v7109 = vmul.f32 %v6725, 1.442695
      %v7110 = vpow.pop %v7109
      %v7111 = vmul.f32 %v6726, 1.442695
      %v7112 = vpow.pop %v7111
      %v7113 = vmul.f32 %v6727, 1.442695
      %v7114 = vpow.pop %v7113
      %v7115 = vmul.f32 %v6728, 1.442695
      %v7116 = vpow.pop %v7115
      %v7117 = vmul.f32 %v6729, 1.442695
      %v7118 = vpow.pop %v7117
      %v7119 = vmul.f32 %v6730, 1.442695
      %v7120 = vpow.pop %v7119
      %v7121 = vmul.f32 %v6731, 1.442695
      %v7122 = vpow.pop %v7121
      %v7123 = vmul.f32 %v6732, 1.442695
      %v7124 = vpow.pop %v7123
      %v7125 = vmul.f32 %v6733, 1.442695
      %v7126 = vpow.pop %v7125
      %v7127 = vmul.f32 %v6734, 1.442695
      %v7128 = vpow.pop %v7127
      %v7129 = vmul.f32 %v6735, 1.442695
      %v7130 = vpow.pop %v7129
      %v7131 = vmul.f32 %v6736, 1.442695
      %v7132 = vpow.pop %v7131
      %v7133 = vmul.f32 %v6737, 1.442695
      %v7134 = vpow.pop %v7133
      %v7135 = vmul.f32 %v6738, 1.442695
      %v7136 = vpow.pop %v7135
      %v7137 = vmul.f32 %v6739, 1.442695
      %v7138 = vpow.pop %v7137
      %v7139 = vmul.f32 %v6740, 1.442695
      %v7140 = vpow.pop %v7139
      %v7141 = vmul.f32 %v6741, 1.442695
      %v7142 = vpow.pop %v7141
      %v7143 = vmul.f32 %v6742, 1.442695
      %v7144 = vpow.pop %v7143
      %v7145 = vmul.f32 %v6743, 1.442695
      %v7146 = vpow.pop %v7145
      %v7147 = vmul.f32 %v6744, 1.442695
      %v7148 = vpow.pop %v7147
      %v7149 = vmul.f32 %v6745, 1.442695
      %v7150 = vpow.pop %v7149
      %v7151 = vmul.f32 %v6746, 1.442695
      %v7152 = vpow.pop %v7151
      %v7153 = vmul.f32 %v6747, 1.442695
      %v7154 = vpow.pop %v7153
      %v7155 = vmul.f32 %v6748, 1.442695
      %v7156 = vpow.pop %v7155
      %v7157 = vmul.f32 %v6749, 1.442695
      %v7158 = vpow.pop %v7157
      %v7159 = vmul.f32 %v6750, 1.442695
      %v7160 = vpow.pop %v7159
      %v7161 = vmul.f32 %v6751, 1.442695
      %v7162 = vpow.pop %v7161
      %v7163 = vmul.f32 %v6752, 1.442695
      %v7164 = vpow.pop %v7163
      %v7165 = vmul.f32 %v6753, 1.442695
      %v7166 = vpow.pop %v7165
      %v7167 = vmul.f32 %v6754, 1.442695
      %v7168 = vpow.pop %v7167
      %v7169 = vmul.f32 %v6755, 1.442695
      %v7170 = vpow.pop %v7169
      %v7171 = vmul.f32 %v6756, 1.442695
      %v7172 = vpow.pop %v7171
      %v7173 = vmul.f32 %v6757, 1.442695
      %v7174 = vpow.pop %v7173
      %v7175 = vmul.f32 %v6758, 1.442695
      %v7176 = vpow.pop %v7175
      %v7177 = vmul.f32 %v6759, 1.442695
      %v7178 = vpow.pop %v7177
      %v7179 = vmul.f32 %v6760, 1.442695
      %v7180 = vpow.pop %v7179
      %v7181 = vmul.f32 %v6761, 1.442695
      %v7182 = vpow.pop %v7181
      %v7183 = vmul.f32 %v6762, 1.442695
      %v7184 = vpow.pop %v7183
      %v7185 = vmul.f32 %v6763, 1.442695
      %v7186 = vpow.pop %v7185
      %v7187 = vmul.f32 %v6764, 1.442695
      %v7188 = vpow.pop %v7187
      %v7189 = vmul.f32 %v6765, 1.442695
      %v7190 = vpow.pop %v7189
      %v7191 = vmul.f32 %v6766, 1.442695
      %v7192 = vpow.pop %v7191
      %v7193 = vmul.f32 %v6767, 1.442695
      %v7194 = vpow.pop %v7193
      %v7195 = vmul.f32 %v6768, 1.442695
      %v7196 = vpow.pop %v7195
      %v7197 = vmul.f32 %v6769, 1.442695
      %v7198 = vpow.pop %v7197
      %v7199 = vmul.f32 %v6770, 1.442695
      %v7200 = vpow.pop %v7199
      %v7201 = vmul.f32 %v6771, 1.442695
      %v7202 = vpow.pop %v7201
      %v7203 = vmul.f32 %v6772, 1.442695
      %v7204 = vpow.pop %v7203
      %v7205 = vmul.f32 %v6773, 1.442695
      %v7206 = vpow.pop %v7205
      %v7207 = vmul.f32 %v6774, 1.442695
      %v7208 = vpow.pop %v7207
      %v7209 = vmul.f32 %v6775, 1.442695
      %v7210 = vpow.pop %v7209
      %v7211 = vmul.f32 %v6776, 1.442695
      %v7212 = vpow.pop %v7211
      %v7213 = vmul.f32 %v6777, 1.442695
      %v7214 = vpow.pop %v7213
      %v7215 = vmul.f32 %v6778, 1.442695
      %v7216 = vpow.pop %v7215
      %v7217 = vmul.f32 %v6779, 1.442695
      %v7218 = vpow.pop %v7217
      %v7219 = vmul.f32 %v6780, 1.442695
      %v7220 = vpow.pop %v7219
      %v7221 = vmul.f32 %v6781, 1.442695
      %v7222 = vpow.pop %v7221
      %v7223 = vmul.f32 %v6782, 1.442695
      %v7224 = vpow.pop %v7223
      %v7225 = vmul.f32 %v6783, 1.442695
      %v7226 = vpow.pop %v7225
      %v7227 = vmul.f32 %v6784, 1.442695
      %v7228 = vpow.pop %v7227
      %v7229 = vmul.f32 %v6785, 1.442695
      %v7230 = vpow.pop %v7229
      %v7231 = vmul.f32 %v6786, 1.442695
      %v7232 = vpow.pop %v7231
      %v7233 = vmul.f32 %v6787, 1.442695
      %v7234 = vpow.pop %v7233
      %v7235 = vmul.f32 %v6788, 1.442695
      %v7236 = vpow.pop %v7235
      %v7237 = vmul.f32 %v6789, 1.442695
      %v7238 = vpow.pop %v7237
      %v7239 = vmul.f32 %v6790, 1.442695
      %v7240 = vpow.pop %v7239
      %v7241 = vmul.f32 %v6791, 1.442695
      %v7242 = vpow.pop %v7241
      %v7243 = vmul.f32 %v6792, 1.442695
      %v7244 = vpow.pop %v7243
      %v7245 = vmul.f32 %v6793, 1.442695
      %v7246 = vpow.pop %v7245
      %v7247 = vmul.f32 %v6794, 1.442695
      %v7248 = vpow.pop %v7247
      %v7249 = vmul.f32 %v6795, 1.442695
      %v7250 = vpow.pop %v7249
      %v7251 = vmul.f32 %v6796, 1.442695
      %v7252 = vpow.pop %v7251
      %v7253 = vmul.f32 %v6797, 1.442695
      %v7254 = vpow.pop %v7253
      %v7255 = vmul.f32 %v6798, 1.442695
      %v7256 = vpow.pop %v7255
      %v7257 = vmul.f32 %v6799, 1.442695
      %v7258 = vpow.pop %v7257
      %v7259 = vmul.f32 %v6800, 1.442695
      %v7260 = vpow.pop %v7259
      %v7261 = vmul.f32 %v6801, 1.442695
      %v7262 = vpow.pop %v7261
      %v7263 = vmul.f32 %v6802, 1.442695
      %v7264 = vpow.pop %v7263
      %v7265 = vmul.f32 %v6803, 1.442695
      %v7266 = vpow.pop %v7265
      %v7267 = vmul.f32 %v6804, 1.442695
      %v7268 = vpow.pop %v7267
      %v7269 = vmul.f32 %v6805, 1.442695
      %v7270 = vpow.pop %v7269
      %v7271 = vmul.f32 %v6806, 1.442695
      %v7272 = vpow.pop %v7271
      %v7273 = vmul.f32 %v6807, 1.442695
      %v7274 = vpow.pop %v7273
      %v7275 = vmul.f32 %v6808, 1.442695
      %v7276 = vpow.pop %v7275
      %v7277 = vmul.f32 %v6809, 1.442695
      %v7278 = vpow.pop %v7277
      %v7279 = vmul.f32 %v6810, 1.442695
      %v7280 = vpow.pop %v7279
      %v7281 = vmul.f32 %v6811, 1.442695
      %v7282 = vpow.pop %v7281
      %v7283 = vmul.f32 %v6812, 1.442695
      %v7284 = vpow.pop %v7283
      %v7285 = vmul.f32 %v6813, 1.442695
      %v7286 = vpow.pop %v7285
      %v7287 = vmul.f32 %v6814, 1.442695
      %v7288 = vpow.pop %v7287
      %v7289 = vmul.f32 %v6815, 1.442695
      %v7290 = vpow.pop %v7289
      %v7291 = vmul.f32 %v6816, 1.442695
      %v7292 = vpow.pop %v7291
      %v7293 = vmul.f32 %v6817, 1.442695
      %v7294 = vpow.pop %v7293
      %v7295 = vmul.f32 %v6818, 1.442695
      %v7296 = vpow.pop %v7295
      %v7297 = vmul.f32 %v6819, 1.442695
      %v7298 = vpow.pop %v7297
      %v7299 = vmul.f32 %v6820, 1.442695
      %v7300 = vpow.pop %v7299
      %v7301 = vmul.f32 %v6821, 1.442695
      %v7302 = vpow.pop %v7301
      %v7303 = vmul.f32 %v6822, 1.442695
      %v7304 = vpow.pop %v7303
      %v7305 = vmul.f32 %v6823, 1.442695
      %v7306 = vpow.pop %v7305
      %v7307 = vmul.f32 %v6824, 1.442695
      %v7308 = vpow.pop %v7307
      %v7309 = vmul.f32 %v6825, 1.442695
      %v7310 = vpow.pop %v7309
      %v7311 = vmul.f32 %v6826, 1.442695
      %v7312 = vpow.pop %v7311
      %v7313 = vmul.f32 %v6827, 1.442695
      %v7314 = vpow.pop %v7313
      %v7315 = vmul.f32 %v6828, 1.442695
      %v7316 = vpow.pop %v7315
      %v7317 = vmul.f32 %v6829, 1.442695
      %v7318 = vpow.pop %v7317
      %v7319 = vmul.f32 %v6830, 1.442695
      %v7320 = vpow.pop %v7319
      %v7321 = vmul.f32 %v6831, 1.442695
      %v7322 = vpow.pop %v7321
      %v7323 = vmul.f32 %v6832, 1.442695
      %v7324 = vpow.pop %v7323
      %v7325 = vmul.f32 %v6833, 1.442695
      %v7326 = vpow.pop %v7325
      %v7327 = vmul.f32 %v6834, 1.442695
      %v7328 = vpow.pop %v7327
      %v7329 = vmul.f32 %v6835, 1.442695
      %v7330 = vpow.pop %v7329
      %v7331 = vmul.f32 %v6836, 1.442695
      %v7332 = vpow.pop %v7331
      %v7333 = vmul.f32 %v6837, 1.442695
      %v7334 = vpow.pop %v7333
      %v7335 = vmul.f32 %v6838, 1.442695
      %v7336 = vpow.pop %v7335
      %v7337 = vmul.f32 %v6839, 1.442695
      %v7338 = vpow.pop %v7337
      %v7339 = vmul.f32 %v6840, 1.442695
      %v7340 = vpow.pop %v7339
      %v7341 = vmul.f32 %v6841, 1.442695
      %v7342 = vpow.pop %v7341
      %v7343 = vmul.f32 %v6842, 1.442695
      %v7344 = vpow.pop %v7343
      %v7345 = vmul.f32 %v6843, 1.442695
      %v7346 = vpow.pop %v7345
      %v7347 = vmul.f32 %v6844, 1.442695
      %v7348 = vpow.pop %v7347
      %v7349 = vmul.f32 %v6845, 1.442695
      %v7350 = vpow.pop %v7349
      %v7351 = vmul.f32 %v6846, 1.442695
      %v7352 = vpow.pop %v7351
      %v7353 = vmul.f32 %v6847, 1.442695
      %v7354 = vpow.pop %v7353
      %v7355 = vmul.f32 %v6848, 1.442695
      %v7356 = vpow.pop %v7355
      %v7357 = vmul.f32 %v6849, 1.442695
      %v7358 = vpow.pop %v7357
      %v7359 = vmul.f32 %v6850, 1.442695
      %v7360 = vpow.pop %v7359
      %v7361 = vmul.f32 %v6851, 1.442695
      %v7362 = vpow.pop %v7361
      %v7363 = vmul.f32 %v6852, 1.442695
      %v7364 = vpow.pop %v7363
      %v7365 = vsel %vm5444, %v6854, 0.0
      %v7366 = vsel %vm5444, %v6856, 0.0
      %v7367 = vadd.f32 %v7365, %v7366
      %v7368 = vrot.slane %v7367, 4
      %v7369 = vadd.f32 %v7367, %v7368
      %v7370 = vrot.slane %v7369, 2
      %v7371 = vadd.f32 %v7369, %v7370
      %v7372 = vrot.slane %v7371, 1
      %v7373 = vadd.f32 %v7371, %v7372
      %v7374 = vsel %vm5444, %v6858, 0.0
      %v7375 = vsel %vm5444, %v6860, 0.0
      %v7376 = vadd.f32 %v7374, %v7375
      %v7377 = vrot.slane %v7376, 4
      %v7378 = vadd.f32 %v7376, %v7377
      %v7379 = vrot.slane %v7378, 2
      %v7380 = vadd.f32 %v7378, %v7379
      %v7381 = vrot.slane %v7380, 1
      %v7382 = vadd.f32 %v7380, %v7381
      %v7383 = vsel %vm5444, %v6862, 0.0
      %v7384 = vsel %vm5444, %v6864, 0.0
      %v7385 = vadd.f32 %v7383, %v7384
      %v7386 = vrot.slane %v7385, 4
      %v7387 = vadd.f32 %v7385, %v7386
      %v7388 = vrot.slane %v7387, 2
      %v7389 = vadd.f32 %v7387, %v7388
      %v7390 = vrot.slane %v7389, 1
      %v7391 = vadd.f32 %v7389, %v7390
      %v7392 = vsel %vm5444, %v6866, 0.0
      %v7393 = vsel %vm5444, %v6868, 0.0
      %v7394 = vadd.f32 %v7392, %v7393
      %v7395 = vrot.slane %v7394, 4
      %v7396 = vadd.f32 %v7394, %v7395
      %v7397 = vrot.slane %v7396, 2
      %v7398 = vadd.f32 %v7396, %v7397
      %v7399 = vrot.slane %v7398, 1
      %v7400 = vadd.f32 %v7398, %v7399
      %v7401 = vsel %vm5444, %v6870, 0.0
      %v7402 = vsel %vm5444, %v6872, 0.0
      %v7403 = vadd.f32 %v7401, %v7402
      %v7404 = vrot.slane %v7403, 4
      %v7405 = vadd.f32 %v7403, %v7404
      %v7406 = vrot.slane %v7405, 2
      %v7407 = vadd.f32 %v7405, %v7406
      %v7408 = vrot.slane %v7407, 1
      %v7409 = vadd.f32 %v7407, %v7408
      %v7410 = vsel %vm5444, %v6874, 0.0
      %v7411 = vsel %vm5444, %v6876, 0.0
      %v7412 = vadd.f32 %v7410, %v7411
      %v7413 = vrot.slane %v7412, 4
      %v7414 = vadd.f32 %v7412, %v7413
      %v7415 = vrot.slane %v7414, 2
      %v7416 = vadd.f32 %v7414, %v7415
      %v7417 = vrot.slane %v7416, 1
      %v7418 = vadd.f32 %v7416, %v7417
      %v7419 = vsel %vm5444, %v6878, 0.0
      %v7420 = vsel %vm5444, %v6880, 0.0
      %v7421 = vadd.f32 %v7419, %v7420
      %v7422 = vrot.slane %v7421, 4
      %v7423 = vadd.f32 %v7421, %v7422
      %v7424 = vrot.slane %v7423, 2
      %v7425 = vadd.f32 %v7423, %v7424
      %v7426 = vrot.slane %v7425, 1
      %v7427 = vadd.f32 %v7425, %v7426
      %v7428 = vsel %vm5444, %v6882, 0.0
      %v7429 = vsel %vm5444, %v6884, 0.0
      %v7430 = vadd.f32 %v7428, %v7429
      %v7431 = vrot.slane %v7430, 4
      %v7432 = vadd.f32 %v7430, %v7431
      %v7433 = vrot.slane %v7432, 2
      %v7434 = vadd.f32 %v7432, %v7433
      %v7435 = vrot.slane %v7434, 1
      %v7436 = vadd.f32 %v7434, %v7435
      %v7437 = vsel %vm5444, %v6886, 0.0
      %v7438 = vsel %vm5444, %v6888, 0.0
      %v7439 = vadd.f32 %v7437, %v7438
      %v7440 = vrot.slane %v7439, 4
      %v7441 = vadd.f32 %v7439, %v7440
      %v7442 = vrot.slane %v7441, 2
      %v7443 = vadd.f32 %v7441, %v7442
      %v7444 = vrot.slane %v7443, 1
      %v7445 = vadd.f32 %v7443, %v7444
      %v7446 = vsel %vm5444, %v6890, 0.0
      %v7447 = vsel %vm5444, %v6892, 0.0
      %v7448 = vadd.f32 %v7446, %v7447
      %v7449 = vrot.slane %v7448, 4
      %v7450 = vadd.f32 %v7448, %v7449
      %v7451 = vrot.slane %v7450, 2
      %v7452 = vadd.f32 %v7450, %v7451
      %v7453 = vrot.slane %v7452, 1
      %v7454 = vadd.f32 %v7452, %v7453
      %v7455 = vsel %vm5444, %v6894, 0.0
      %v7456 = vsel %vm5444, %v6896, 0.0
      %v7457 = vadd.f32 %v7455, %v7456
      %v7458 = vrot.slane %v7457, 4
      %v7459 = vadd.f32 %v7457, %v7458
      %v7460 = vrot.slane %v7459, 2
      %v7461 = vadd.f32 %v7459, %v7460
      %v7462 = vrot.slane %v7461, 1
      %v7463 = vadd.f32 %v7461, %v7462
      %v7464 = vsel %vm5444, %v6898, 0.0
      %v7465 = vsel %vm5444, %v6900, 0.0
      %v7466 = vadd.f32 %v7464, %v7465
      %v7467 = vrot.slane %v7466, 4
      %v7468 = vadd.f32 %v7466, %v7467
      %v7469 = vrot.slane %v7468, 2
      %v7470 = vadd.f32 %v7468, %v7469
      %v7471 = vrot.slane %v7470, 1
      %v7472 = vadd.f32 %v7470, %v7471
      %v7473 = vsel %vm5444, %v6902, 0.0
      %v7474 = vsel %vm5444, %v6904, 0.0
      %v7475 = vadd.f32 %v7473, %v7474
      %v7476 = vrot.slane %v7475, 4
      %v7477 = vadd.f32 %v7475, %v7476
      %v7478 = vrot.slane %v7477, 2
      %v7479 = vadd.f32 %v7477, %v7478
      %v7480 = vrot.slane %v7479, 1
      %v7481 = vadd.f32 %v7479, %v7480
      %v7482 = vsel %vm5444, %v6906, 0.0
      %v7483 = vsel %vm5444, %v6908, 0.0
      %v7484 = vadd.f32 %v7482, %v7483
      %v7485 = vrot.slane %v7484, 4
      %v7486 = vadd.f32 %v7484, %v7485
      %v7487 = vrot.slane %v7486, 2
      %v7488 = vadd.f32 %v7486, %v7487
      %v7489 = vrot.slane %v7488, 1
      %v7490 = vadd.f32 %v7488, %v7489
      %v7491 = vsel %vm5444, %v6910, 0.0
      %v7492 = vsel %vm5444, %v6912, 0.0
      %v7493 = vadd.f32 %v7491, %v7492
      %v7494 = vrot.slane %v7493, 4
      %v7495 = vadd.f32 %v7493, %v7494
      %v7496 = vrot.slane %v7495, 2
      %v7497 = vadd.f32 %v7495, %v7496
      %v7498 = vrot.slane %v7497, 1
      %v7499 = vadd.f32 %v7497, %v7498
      %v7500 = vsel %vm5444, %v6914, 0.0
      %v7501 = vsel %vm5444, %v6916, 0.0
      %v7502 = vadd.f32 %v7500, %v7501
      %v7503 = vrot.slane %v7502, 4
      %v7504 = vadd.f32 %v7502, %v7503
      %v7505 = vrot.slane %v7504, 2
      %v7506 = vadd.f32 %v7504, %v7505
      %v7507 = vrot.slane %v7506, 1
      %v7508 = vadd.f32 %v7506, %v7507
      %v7509 = vsel %vm5444, %v6918, 0.0
      %v7510 = vsel %vm5444, %v6920, 0.0
      %v7511 = vadd.f32 %v7509, %v7510
      %v7512 = vrot.slane %v7511, 4
      %v7513 = vadd.f32 %v7511, %v7512
      %v7514 = vrot.slane %v7513, 2
      %v7515 = vadd.f32 %v7513, %v7514
      %v7516 = vrot.slane %v7515, 1
      %v7517 = vadd.f32 %v7515, %v7516
      %v7518 = vsel %vm5444, %v6922, 0.0
      %v7519 = vsel %vm5444, %v6924, 0.0
      %v7520 = vadd.f32 %v7518, %v7519
      %v7521 = vrot.slane %v7520, 4
      %v7522 = vadd.f32 %v7520, %v7521
      %v7523 = vrot.slane %v7522, 2
      %v7524 = vadd.f32 %v7522, %v7523
      %v7525 = vrot.slane %v7524, 1
      %v7526 = vadd.f32 %v7524, %v7525
      %v7527 = vsel %vm5444, %v6926, 0.0
      %v7528 = vsel %vm5444, %v6928, 0.0
      %v7529 = vadd.f32 %v7527, %v7528
      %v7530 = vrot.slane %v7529, 4
      %v7531 = vadd.f32 %v7529, %v7530
      %v7532 = vrot.slane %v7531, 2
      %v7533 = vadd.f32 %v7531, %v7532
      %v7534 = vrot.slane %v7533, 1
      %v7535 = vadd.f32 %v7533, %v7534
      %v7536 = vsel %vm5444, %v6930, 0.0
      %v7537 = vsel %vm5444, %v6932, 0.0
      %v7538 = vadd.f32 %v7536, %v7537
      %v7539 = vrot.slane %v7538, 4
      %v7540 = vadd.f32 %v7538, %v7539
      %v7541 = vrot.slane %v7540, 2
      %v7542 = vadd.f32 %v7540, %v7541
      %v7543 = vrot.slane %v7542, 1
      %v7544 = vadd.f32 %v7542, %v7543
      %v7545 = vsel %vm5444, %v6934, 0.0
      %v7546 = vsel %vm5444, %v6936, 0.0
      %v7547 = vadd.f32 %v7545, %v7546
      %v7548 = vrot.slane %v7547, 4
      %v7549 = vadd.f32 %v7547, %v7548
      %v7550 = vrot.slane %v7549, 2
      %v7551 = vadd.f32 %v7549, %v7550
      %v7552 = vrot.slane %v7551, 1
      %v7553 = vadd.f32 %v7551, %v7552
      %v7554 = vsel %vm5444, %v6938, 0.0
      %v7555 = vsel %vm5444, %v6940, 0.0
      %v7556 = vadd.f32 %v7554, %v7555
      %v7557 = vrot.slane %v7556, 4
      %v7558 = vadd.f32 %v7556, %v7557
      %v7559 = vrot.slane %v7558, 2
      %v7560 = vadd.f32 %v7558, %v7559
      %v7561 = vrot.slane %v7560, 1
      %v7562 = vadd.f32 %v7560, %v7561
      %v7563 = vsel %vm5444, %v6942, 0.0
      %v7564 = vsel %vm5444, %v6944, 0.0
      %v7565 = vadd.f32 %v7563, %v7564
      %v7566 = vrot.slane %v7565, 4
      %v7567 = vadd.f32 %v7565, %v7566
      %v7568 = vrot.slane %v7567, 2
      %v7569 = vadd.f32 %v7567, %v7568
      %v7570 = vrot.slane %v7569, 1
      %v7571 = vadd.f32 %v7569, %v7570
      %v7572 = vsel %vm5444, %v6946, 0.0
      %v7573 = vsel %vm5444, %v6948, 0.0
      %v7574 = vadd.f32 %v7572, %v7573
      %v7575 = vrot.slane %v7574, 4
      %v7576 = vadd.f32 %v7574, %v7575
      %v7577 = vrot.slane %v7576, 2
      %v7578 = vadd.f32 %v7576, %v7577
      %v7579 = vrot.slane %v7578, 1
      %v7580 = vadd.f32 %v7578, %v7579
      %v7581 = vsel %vm5444, %v6950, 0.0
      %v7582 = vsel %vm5444, %v6952, 0.0
      %v7583 = vadd.f32 %v7581, %v7582
      %v7584 = vrot.slane %v7583, 4
      %v7585 = vadd.f32 %v7583, %v7584
      %v7586 = vrot.slane %v7585, 2
      %v7587 = vadd.f32 %v7585, %v7586
      %v7588 = vrot.slane %v7587, 1
      %v7589 = vadd.f32 %v7587, %v7588
      %v7590 = vsel %vm5444, %v6954, 0.0
      %v7591 = vsel %vm5444, %v6956, 0.0
      %v7592 = vadd.f32 %v7590, %v7591
      %v7593 = vrot.slane %v7592, 4
      %v7594 = vadd.f32 %v7592, %v7593
      %v7595 = vrot.slane %v7594, 2
      %v7596 = vadd.f32 %v7594, %v7595
      %v7597 = vrot.slane %v7596, 1
      %v7598 = vadd.f32 %v7596, %v7597
      %v7599 = vsel %vm5444, %v6958, 0.0
      %v7600 = vsel %vm5444, %v6960, 0.0
      %v7601 = vadd.f32 %v7599, %v7600
      %v7602 = vrot.slane %v7601, 4
      %v7603 = vadd.f32 %v7601, %v7602
      %v7604 = vrot.slane %v7603, 2
      %v7605 = vadd.f32 %v7603, %v7604
      %v7606 = vrot.slane %v7605, 1
      %v7607 = vadd.f32 %v7605, %v7606
      %v7608 = vsel %vm5444, %v6962, 0.0
      %v7609 = vsel %vm5444, %v6964, 0.0
      %v7610 = vadd.f32 %v7608, %v7609
      %v7611 = vrot.slane %v7610, 4
      %v7612 = vadd.f32 %v7610, %v7611
      %v7613 = vrot.slane %v7612, 2
      %v7614 = vadd.f32 %v7612, %v7613
      %v7615 = vrot.slane %v7614, 1
      %v7616 = vadd.f32 %v7614, %v7615
      %v7617 = vsel %vm5444, %v6966, 0.0
      %v7618 = vsel %vm5444, %v6968, 0.0
      %v7619 = vadd.f32 %v7617, %v7618
      %v7620 = vrot.slane %v7619, 4
      %v7621 = vadd.f32 %v7619, %v7620
      %v7622 = vrot.slane %v7621, 2
      %v7623 = vadd.f32 %v7621, %v7622
      %v7624 = vrot.slane %v7623, 1
      %v7625 = vadd.f32 %v7623, %v7624
      %v7626 = vsel %vm5444, %v6970, 0.0
      %v7627 = vsel %vm5444, %v6972, 0.0
      %v7628 = vadd.f32 %v7626, %v7627
      %v7629 = vrot.slane %v7628, 4
      %v7630 = vadd.f32 %v7628, %v7629
      %v7631 = vrot.slane %v7630, 2
      %v7632 = vadd.f32 %v7630, %v7631
      %v7633 = vrot.slane %v7632, 1
      %v7634 = vadd.f32 %v7632, %v7633
      %v7635 = vsel %vm5444, %v6974, 0.0
      %v7636 = vsel %vm5444, %v6976, 0.0
      %v7637 = vadd.f32 %v7635, %v7636
      %v7638 = vrot.slane %v7637, 4
      %v7639 = vadd.f32 %v7637, %v7638
      %v7640 = vrot.slane %v7639, 2
      %v7641 = vadd.f32 %v7639, %v7640
      %v7642 = vrot.slane %v7641, 1
      %v7643 = vadd.f32 %v7641, %v7642
      %v7644 = vsel %vm5444, %v6978, 0.0
      %v7645 = vsel %vm5444, %v6980, 0.0
      %v7646 = vadd.f32 %v7644, %v7645
      %v7647 = vrot.slane %v7646, 4
      %v7648 = vadd.f32 %v7646, %v7647
      %v7649 = vrot.slane %v7648, 2
      %v7650 = vadd.f32 %v7648, %v7649
      %v7651 = vrot.slane %v7650, 1
      %v7652 = vadd.f32 %v7650, %v7651
      %v7653 = vsel %vm5444, %v6982, 0.0
      %v7654 = vsel %vm5444, %v6984, 0.0
      %v7655 = vadd.f32 %v7653, %v7654
      %v7656 = vrot.slane %v7655, 4
      %v7657 = vadd.f32 %v7655, %v7656
      %v7658 = vrot.slane %v7657, 2
      %v7659 = vadd.f32 %v7657, %v7658
      %v7660 = vrot.slane %v7659, 1
      %v7661 = vadd.f32 %v7659, %v7660
      %v7662 = vsel %vm5444, %v6986, 0.0
      %v7663 = vsel %vm5444, %v6988, 0.0
      %v7664 = vadd.f32 %v7662, %v7663
      %v7665 = vrot.slane %v7664, 4
      %v7666 = vadd.f32 %v7664, %v7665
      %v7667 = vrot.slane %v7666, 2
      %v7668 = vadd.f32 %v7666, %v7667
      %v7669 = vrot.slane %v7668, 1
      %v7670 = vadd.f32 %v7668, %v7669
      %v7671 = vsel %vm5444, %v6990, 0.0
      %v7672 = vsel %vm5444, %v6992, 0.0
      %v7673 = vadd.f32 %v7671, %v7672
      %v7674 = vrot.slane %v7673, 4
      %v7675 = vadd.f32 %v7673, %v7674
      %v7676 = vrot.slane %v7675, 2
      %v7677 = vadd.f32 %v7675, %v7676
      %v7678 = vrot.slane %v7677, 1
      %v7679 = vadd.f32 %v7677, %v7678
      %v7680 = vsel %vm5444, %v6994, 0.0
      %v7681 = vsel %vm5444, %v6996, 0.0
      %v7682 = vadd.f32 %v7680, %v7681
      %v7683 = vrot.slane %v7682, 4
      %v7684 = vadd.f32 %v7682, %v7683
      %v7685 = vrot.slane %v7684, 2
      %v7686 = vadd.f32 %v7684, %v7685
      %v7687 = vrot.slane %v7686, 1
      %v7688 = vadd.f32 %v7686, %v7687
      %v7689 = vsel %vm5444, %v6998, 0.0
      %v7690 = vsel %vm5444, %v7000, 0.0
      %v7691 = vadd.f32 %v7689, %v7690
      %v7692 = vrot.slane %v7691, 4
      %v7693 = vadd.f32 %v7691, %v7692
      %v7694 = vrot.slane %v7693, 2
      %v7695 = vadd.f32 %v7693, %v7694
      %v7696 = vrot.slane %v7695, 1
      %v7697 = vadd.f32 %v7695, %v7696
      %v7698 = vsel %vm5444, %v7002, 0.0
      %v7699 = vsel %vm5444, %v7004, 0.0
      %v7700 = vadd.f32 %v7698, %v7699
      %v7701 = vrot.slane %v7700, 4
      %v7702 = vadd.f32 %v7700, %v7701
      %v7703 = vrot.slane %v7702, 2
      %v7704 = vadd.f32 %v7702, %v7703
      %v7705 = vrot.slane %v7704, 1
      %v7706 = vadd.f32 %v7704, %v7705
      %v7707 = vsel %vm5444, %v7006, 0.0
      %v7708 = vsel %vm5444, %v7008, 0.0
      %v7709 = vadd.f32 %v7707, %v7708
      %v7710 = vrot.slane %v7709, 4
      %v7711 = vadd.f32 %v7709, %v7710
      %v7712 = vrot.slane %v7711, 2
      %v7713 = vadd.f32 %v7711, %v7712
      %v7714 = vrot.slane %v7713, 1
      %v7715 = vadd.f32 %v7713, %v7714
      %v7716 = vsel %vm5444, %v7010, 0.0
      %v7717 = vsel %vm5444, %v7012, 0.0
      %v7718 = vadd.f32 %v7716, %v7717
      %v7719 = vrot.slane %v7718, 4
      %v7720 = vadd.f32 %v7718, %v7719
      %v7721 = vrot.slane %v7720, 2
      %v7722 = vadd.f32 %v7720, %v7721
      %v7723 = vrot.slane %v7722, 1
      %v7724 = vadd.f32 %v7722, %v7723
      %v7725 = vsel %vm5444, %v7014, 0.0
      %v7726 = vsel %vm5444, %v7016, 0.0
      %v7727 = vadd.f32 %v7725, %v7726
      %v7728 = vrot.slane %v7727, 4
      %v7729 = vadd.f32 %v7727, %v7728
      %v7730 = vrot.slane %v7729, 2
      %v7731 = vadd.f32 %v7729, %v7730
      %v7732 = vrot.slane %v7731, 1
      %v7733 = vadd.f32 %v7731, %v7732
      %v7734 = vsel %vm5444, %v7018, 0.0
      %v7735 = vsel %vm5444, %v7020, 0.0
      %v7736 = vadd.f32 %v7734, %v7735
      %v7737 = vrot.slane %v7736, 4
      %v7738 = vadd.f32 %v7736, %v7737
      %v7739 = vrot.slane %v7738, 2
      %v7740 = vadd.f32 %v7738, %v7739
      %v7741 = vrot.slane %v7740, 1
      %v7742 = vadd.f32 %v7740, %v7741
      %v7743 = vsel %vm5444, %v7022, 0.0
      %v7744 = vsel %vm5444, %v7024, 0.0
      %v7745 = vadd.f32 %v7743, %v7744
      %v7746 = vrot.slane %v7745, 4
      %v7747 = vadd.f32 %v7745, %v7746
      %v7748 = vrot.slane %v7747, 2
      %v7749 = vadd.f32 %v7747, %v7748
      %v7750 = vrot.slane %v7749, 1
      %v7751 = vadd.f32 %v7749, %v7750
      %v7752 = vsel %vm5444, %v7026, 0.0
      %v7753 = vsel %vm5444, %v7028, 0.0
      %v7754 = vadd.f32 %v7752, %v7753
      %v7755 = vrot.slane %v7754, 4
      %v7756 = vadd.f32 %v7754, %v7755
      %v7757 = vrot.slane %v7756, 2
      %v7758 = vadd.f32 %v7756, %v7757
      %v7759 = vrot.slane %v7758, 1
      %v7760 = vadd.f32 %v7758, %v7759
      %v7761 = vsel %vm5444, %v7030, 0.0
      %v7762 = vsel %vm5444, %v7032, 0.0
      %v7763 = vadd.f32 %v7761, %v7762
      %v7764 = vrot.slane %v7763, 4
      %v7765 = vadd.f32 %v7763, %v7764
      %v7766 = vrot.slane %v7765, 2
      %v7767 = vadd.f32 %v7765, %v7766
      %v7768 = vrot.slane %v7767, 1
      %v7769 = vadd.f32 %v7767, %v7768
      %v7770 = vsel %vm5444, %v7034, 0.0
      %v7771 = vsel %vm5444, %v7036, 0.0
      %v7772 = vadd.f32 %v7770, %v7771
      %v7773 = vrot.slane %v7772, 4
      %v7774 = vadd.f32 %v7772, %v7773
      %v7775 = vrot.slane %v7774, 2
      %v7776 = vadd.f32 %v7774, %v7775
      %v7777 = vrot.slane %v7776, 1
      %v7778 = vadd.f32 %v7776, %v7777
      %v7779 = vsel %vm5444, %v7038, 0.0
      %v7780 = vsel %vm5444, %v7040, 0.0
      %v7781 = vadd.f32 %v7779, %v7780
      %v7782 = vrot.slane %v7781, 4
      %v7783 = vadd.f32 %v7781, %v7782
      %v7784 = vrot.slane %v7783, 2
      %v7785 = vadd.f32 %v7783, %v7784
      %v7786 = vrot.slane %v7785, 1
      %v7787 = vadd.f32 %v7785, %v7786
      %v7788 = vsel %vm5444, %v7042, 0.0
      %v7789 = vsel %vm5444, %v7044, 0.0
      %v7790 = vadd.f32 %v7788, %v7789
      %v7791 = vrot.slane %v7790, 4
      %v7792 = vadd.f32 %v7790, %v7791
      %v7793 = vrot.slane %v7792, 2
      %v7794 = vadd.f32 %v7792, %v7793
      %v7795 = vrot.slane %v7794, 1
      %v7796 = vadd.f32 %v7794, %v7795
      %v7797 = vsel %vm5444, %v7046, 0.0
      %v7798 = vsel %vm5444, %v7048, 0.0
      %v7799 = vadd.f32 %v7797, %v7798
      %v7800 = vrot.slane %v7799, 4
      %v7801 = vadd.f32 %v7799, %v7800
      %v7802 = vrot.slane %v7801, 2
      %v7803 = vadd.f32 %v7801, %v7802
      %v7804 = vrot.slane %v7803, 1
      %v7805 = vadd.f32 %v7803, %v7804
      %v7806 = vsel %vm5444, %v7050, 0.0
      %v7807 = vsel %vm5444, %v7052, 0.0
      %v7808 = vadd.f32 %v7806, %v7807
      %v7809 = vrot.slane %v7808, 4
      %v7810 = vadd.f32 %v7808, %v7809
      %v7811 = vrot.slane %v7810, 2
      %v7812 = vadd.f32 %v7810, %v7811
      %v7813 = vrot.slane %v7812, 1
      %v7814 = vadd.f32 %v7812, %v7813
      %v7815 = vsel %vm5444, %v7054, 0.0
      %v7816 = vsel %vm5444, %v7056, 0.0
      %v7817 = vadd.f32 %v7815, %v7816
      %v7818 = vrot.slane %v7817, 4
      %v7819 = vadd.f32 %v7817, %v7818
      %v7820 = vrot.slane %v7819, 2
      %v7821 = vadd.f32 %v7819, %v7820
      %v7822 = vrot.slane %v7821, 1
      %v7823 = vadd.f32 %v7821, %v7822
      %v7824 = vsel %vm5444, %v7058, 0.0
      %v7825 = vsel %vm5444, %v7060, 0.0
      %v7826 = vadd.f32 %v7824, %v7825
      %v7827 = vrot.slane %v7826, 4
      %v7828 = vadd.f32 %v7826, %v7827
      %v7829 = vrot.slane %v7828, 2
      %v7830 = vadd.f32 %v7828, %v7829
      %v7831 = vrot.slane %v7830, 1
      %v7832 = vadd.f32 %v7830, %v7831
      %v7833 = vsel %vm5444, %v7062, 0.0
      %v7834 = vsel %vm5444, %v7064, 0.0
      %v7835 = vadd.f32 %v7833, %v7834
      %v7836 = vrot.slane %v7835, 4
      %v7837 = vadd.f32 %v7835, %v7836
      %v7838 = vrot.slane %v7837, 2
      %v7839 = vadd.f32 %v7837, %v7838
      %v7840 = vrot.slane %v7839, 1
      %v7841 = vadd.f32 %v7839, %v7840
      %v7842 = vsel %vm5444, %v7066, 0.0
      %v7843 = vsel %vm5444, %v7068, 0.0
      %v7844 = vadd.f32 %v7842, %v7843
      %v7845 = vrot.slane %v7844, 4
      %v7846 = vadd.f32 %v7844, %v7845
      %v7847 = vrot.slane %v7846, 2
      %v7848 = vadd.f32 %v7846, %v7847
      %v7849 = vrot.slane %v7848, 1
      %v7850 = vadd.f32 %v7848, %v7849
      %v7851 = vsel %vm5444, %v7070, 0.0
      %v7852 = vsel %vm5444, %v7072, 0.0
      %v7853 = vadd.f32 %v7851, %v7852
      %v7854 = vrot.slane %v7853, 4
      %v7855 = vadd.f32 %v7853, %v7854
      %v7856 = vrot.slane %v7855, 2
      %v7857 = vadd.f32 %v7855, %v7856
      %v7858 = vrot.slane %v7857, 1
      %v7859 = vadd.f32 %v7857, %v7858
      %v7860 = vsel %vm5444, %v7074, 0.0
      %v7861 = vsel %vm5444, %v7076, 0.0
      %v7862 = vadd.f32 %v7860, %v7861
      %v7863 = vrot.slane %v7862, 4
      %v7864 = vadd.f32 %v7862, %v7863
      %v7865 = vrot.slane %v7864, 2
      %v7866 = vadd.f32 %v7864, %v7865
      %v7867 = vrot.slane %v7866, 1
      %v7868 = vadd.f32 %v7866, %v7867
      %v7869 = vsel %vm5444, %v7078, 0.0
      %v7870 = vsel %vm5444, %v7080, 0.0
      %v7871 = vadd.f32 %v7869, %v7870
      %v7872 = vrot.slane %v7871, 4
      %v7873 = vadd.f32 %v7871, %v7872
      %v7874 = vrot.slane %v7873, 2
      %v7875 = vadd.f32 %v7873, %v7874
      %v7876 = vrot.slane %v7875, 1
      %v7877 = vadd.f32 %v7875, %v7876
      %v7878 = vsel %vm5444, %v7082, 0.0
      %v7879 = vsel %vm5444, %v7084, 0.0
      %v7880 = vadd.f32 %v7878, %v7879
      %v7881 = vrot.slane %v7880, 4
      %v7882 = vadd.f32 %v7880, %v7881
      %v7883 = vrot.slane %v7882, 2
      %v7884 = vadd.f32 %v7882, %v7883
      %v7885 = vrot.slane %v7884, 1
      %v7886 = vadd.f32 %v7884, %v7885
      %v7887 = vsel %vm5444, %v7086, 0.0
      %v7888 = vsel %vm5444, %v7088, 0.0
      %v7889 = vadd.f32 %v7887, %v7888
      %v7890 = vrot.slane %v7889, 4
      %v7891 = vadd.f32 %v7889, %v7890
      %v7892 = vrot.slane %v7891, 2
      %v7893 = vadd.f32 %v7891, %v7892
      %v7894 = vrot.slane %v7893, 1
      %v7895 = vadd.f32 %v7893, %v7894
      %v7896 = vsel %vm5444, %v7090, 0.0
      %v7897 = vsel %vm5444, %v7092, 0.0
      %v7898 = vadd.f32 %v7896, %v7897
      %v7899 = vrot.slane %v7898, 4
      %v7900 = vadd.f32 %v7898, %v7899
      %v7901 = vrot.slane %v7900, 2
      %v7902 = vadd.f32 %v7900, %v7901
      %v7903 = vrot.slane %v7902, 1
      %v7904 = vadd.f32 %v7902, %v7903
      %v7905 = vsel %vm5444, %v7094, 0.0
      %v7906 = vsel %vm5444, %v7096, 0.0
      %v7907 = vadd.f32 %v7905, %v7906
      %v7908 = vrot.slane %v7907, 4
      %v7909 = vadd.f32 %v7907, %v7908
      %v7910 = vrot.slane %v7909, 2
      %v7911 = vadd.f32 %v7909, %v7910
      %v7912 = vrot.slane %v7911, 1
      %v7913 = vadd.f32 %v7911, %v7912
      %v7914 = vsel %vm5444, %v7098, 0.0
      %v7915 = vsel %vm5444, %v7100, 0.0
      %v7916 = vadd.f32 %v7914, %v7915
      %v7917 = vrot.slane %v7916, 4
      %v7918 = vadd.f32 %v7916, %v7917
      %v7919 = vrot.slane %v7918, 2
      %v7920 = vadd.f32 %v7918, %v7919
      %v7921 = vrot.slane %v7920, 1
      %v7922 = vadd.f32 %v7920, %v7921
      %v7923 = vsel %vm5444, %v7102, 0.0
      %v7924 = vsel %vm5444, %v7104, 0.0
      %v7925 = vadd.f32 %v7923, %v7924
      %v7926 = vrot.slane %v7925, 4
      %v7927 = vadd.f32 %v7925, %v7926
      %v7928 = vrot.slane %v7927, 2
      %v7929 = vadd.f32 %v7927, %v7928
      %v7930 = vrot.slane %v7929, 1
      %v7931 = vadd.f32 %v7929, %v7930
      %v7932 = vsel %vm5444, %v7106, 0.0
      %v7933 = vsel %vm5444, %v7108, 0.0
      %v7934 = vadd.f32 %v7932, %v7933
      %v7935 = vrot.slane %v7934, 4
      %v7936 = vadd.f32 %v7934, %v7935
      %v7937 = vrot.slane %v7936, 2
      %v7938 = vadd.f32 %v7936, %v7937
      %v7939 = vrot.slane %v7938, 1
      %v7940 = vadd.f32 %v7938, %v7939
      %v7941 = vsel %vm5444, %v7110, 0.0
      %v7942 = vsel %vm5444, %v7112, 0.0
      %v7943 = vadd.f32 %v7941, %v7942
      %v7944 = vrot.slane %v7943, 4
      %v7945 = vadd.f32 %v7943, %v7944
      %v7946 = vrot.slane %v7945, 2
      %v7947 = vadd.f32 %v7945, %v7946
      %v7948 = vrot.slane %v7947, 1
      %v7949 = vadd.f32 %v7947, %v7948
      %v7950 = vsel %vm5444, %v7114, 0.0
      %v7951 = vsel %vm5444, %v7116, 0.0
      %v7952 = vadd.f32 %v7950, %v7951
      %v7953 = vrot.slane %v7952, 4
      %v7954 = vadd.f32 %v7952, %v7953
      %v7955 = vrot.slane %v7954, 2
      %v7956 = vadd.f32 %v7954, %v7955
      %v7957 = vrot.slane %v7956, 1
      %v7958 = vadd.f32 %v7956, %v7957
      %v7959 = vsel %vm5444, %v7118, 0.0
      %v7960 = vsel %vm5444, %v7120, 0.0
      %v7961 = vadd.f32 %v7959, %v7960
      %v7962 = vrot.slane %v7961, 4
      %v7963 = vadd.f32 %v7961, %v7962
      %v7964 = vrot.slane %v7963, 2
      %v7965 = vadd.f32 %v7963, %v7964
      %v7966 = vrot.slane %v7965, 1
      %v7967 = vadd.f32 %v7965, %v7966
      %v7968 = vsel %vm5444, %v7122, 0.0
      %v7969 = vsel %vm5444, %v7124, 0.0
      %v7970 = vadd.f32 %v7968, %v7969
      %v7971 = vrot.slane %v7970, 4
      %v7972 = vadd.f32 %v7970, %v7971
      %v7973 = vrot.slane %v7972, 2
      %v7974 = vadd.f32 %v7972, %v7973
      %v7975 = vrot.slane %v7974, 1
      %v7976 = vadd.f32 %v7974, %v7975
      %v7977 = vsel %vm5444, %v7126, 0.0
      %v7978 = vsel %vm5444, %v7128, 0.0
      %v7979 = vadd.f32 %v7977, %v7978
      %v7980 = vrot.slane %v7979, 4
      %v7981 = vadd.f32 %v7979, %v7980
      %v7982 = vrot.slane %v7981, 2
      %v7983 = vadd.f32 %v7981, %v7982
      %v7984 = vrot.slane %v7983, 1
      %v7985 = vadd.f32 %v7983, %v7984
      %v7986 = vsel %vm5444, %v7130, 0.0
      %v7987 = vsel %vm5444, %v7132, 0.0
      %v7988 = vadd.f32 %v7986, %v7987
      %v7989 = vrot.slane %v7988, 4
      %v7990 = vadd.f32 %v7988, %v7989
      %v7991 = vrot.slane %v7990, 2
      %v7992 = vadd.f32 %v7990, %v7991
      %v7993 = vrot.slane %v7992, 1
      %v7994 = vadd.f32 %v7992, %v7993
      %v7995 = vsel %vm5444, %v7134, 0.0
      %v7996 = vsel %vm5444, %v7136, 0.0
      %v7997 = vadd.f32 %v7995, %v7996
      %v7998 = vrot.slane %v7997, 4
      %v7999 = vadd.f32 %v7997, %v7998
      %v8000 = vrot.slane %v7999, 2
      %v8001 = vadd.f32 %v7999, %v8000
      %v8002 = vrot.slane %v8001, 1
      %v8003 = vadd.f32 %v8001, %v8002
      %v8004 = vsel %vm5444, %v7138, 0.0
      %v8005 = vsel %vm5444, %v7140, 0.0
      %v8006 = vadd.f32 %v8004, %v8005
      %v8007 = vrot.slane %v8006, 4
      %v8008 = vadd.f32 %v8006, %v8007
      %v8009 = vrot.slane %v8008, 2
      %v8010 = vadd.f32 %v8008, %v8009
      %v8011 = vrot.slane %v8010, 1
      %v8012 = vadd.f32 %v8010, %v8011
      %v8013 = vsel %vm5444, %v7142, 0.0
      %v8014 = vsel %vm5444, %v7144, 0.0
      %v8015 = vadd.f32 %v8013, %v8014
      %v8016 = vrot.slane %v8015, 4
      %v8017 = vadd.f32 %v8015, %v8016
      %v8018 = vrot.slane %v8017, 2
      %v8019 = vadd.f32 %v8017, %v8018
      %v8020 = vrot.slane %v8019, 1
      %v8021 = vadd.f32 %v8019, %v8020
      %v8022 = vsel %vm5444, %v7146, 0.0
      %v8023 = vsel %vm5444, %v7148, 0.0
      %v8024 = vadd.f32 %v8022, %v8023
      %v8025 = vrot.slane %v8024, 4
      %v8026 = vadd.f32 %v8024, %v8025
      %v8027 = vrot.slane %v8026, 2
      %v8028 = vadd.f32 %v8026, %v8027
      %v8029 = vrot.slane %v8028, 1
      %v8030 = vadd.f32 %v8028, %v8029
      %v8031 = vsel %vm5444, %v7150, 0.0
      %v8032 = vsel %vm5444, %v7152, 0.0
      %v8033 = vadd.f32 %v8031, %v8032
      %v8034 = vrot.slane %v8033, 4
      %v8035 = vadd.f32 %v8033, %v8034
      %v8036 = vrot.slane %v8035, 2
      %v8037 = vadd.f32 %v8035, %v8036
      %v8038 = vrot.slane %v8037, 1
      %v8039 = vadd.f32 %v8037, %v8038
      %v8040 = vsel %vm5444, %v7154, 0.0
      %v8041 = vsel %vm5444, %v7156, 0.0
      %v8042 = vadd.f32 %v8040, %v8041
      %v8043 = vrot.slane %v8042, 4
      %v8044 = vadd.f32 %v8042, %v8043
      %v8045 = vrot.slane %v8044, 2
      %v8046 = vadd.f32 %v8044, %v8045
      %v8047 = vrot.slane %v8046, 1
      %v8048 = vadd.f32 %v8046, %v8047
      %v8049 = vsel %vm5444, %v7158, 0.0
      %v8050 = vsel %vm5444, %v7160, 0.0
      %v8051 = vadd.f32 %v8049, %v8050
      %v8052 = vrot.slane %v8051, 4
      %v8053 = vadd.f32 %v8051, %v8052
      %v8054 = vrot.slane %v8053, 2
      %v8055 = vadd.f32 %v8053, %v8054
      %v8056 = vrot.slane %v8055, 1
      %v8057 = vadd.f32 %v8055, %v8056
      %v8058 = vsel %vm5444, %v7162, 0.0
      %v8059 = vsel %vm5444, %v7164, 0.0
      %v8060 = vadd.f32 %v8058, %v8059
      %v8061 = vrot.slane %v8060, 4
      %v8062 = vadd.f32 %v8060, %v8061
      %v8063 = vrot.slane %v8062, 2
      %v8064 = vadd.f32 %v8062, %v8063
      %v8065 = vrot.slane %v8064, 1
      %v8066 = vadd.f32 %v8064, %v8065
      %v8067 = vsel %vm5444, %v7166, 0.0
      %v8068 = vsel %vm5444, %v7168, 0.0
      %v8069 = vadd.f32 %v8067, %v8068
      %v8070 = vrot.slane %v8069, 4
      %v8071 = vadd.f32 %v8069, %v8070
      %v8072 = vrot.slane %v8071, 2
      %v8073 = vadd.f32 %v8071, %v8072
      %v8074 = vrot.slane %v8073, 1
      %v8075 = vadd.f32 %v8073, %v8074
      %v8076 = vsel %vm5444, %v7170, 0.0
      %v8077 = vsel %vm5444, %v7172, 0.0
      %v8078 = vadd.f32 %v8076, %v8077
      %v8079 = vrot.slane %v8078, 4
      %v8080 = vadd.f32 %v8078, %v8079
      %v8081 = vrot.slane %v8080, 2
      %v8082 = vadd.f32 %v8080, %v8081
      %v8083 = vrot.slane %v8082, 1
      %v8084 = vadd.f32 %v8082, %v8083
      %v8085 = vsel %vm5444, %v7174, 0.0
      %v8086 = vsel %vm5444, %v7176, 0.0
      %v8087 = vadd.f32 %v8085, %v8086
      %v8088 = vrot.slane %v8087, 4
      %v8089 = vadd.f32 %v8087, %v8088
      %v8090 = vrot.slane %v8089, 2
      %v8091 = vadd.f32 %v8089, %v8090
      %v8092 = vrot.slane %v8091, 1
      %v8093 = vadd.f32 %v8091, %v8092
      %v8094 = vsel %vm5444, %v7178, 0.0
      %v8095 = vsel %vm5444, %v7180, 0.0
      %v8096 = vadd.f32 %v8094, %v8095
      %v8097 = vrot.slane %v8096, 4
      %v8098 = vadd.f32 %v8096, %v8097
      %v8099 = vrot.slane %v8098, 2
      %v8100 = vadd.f32 %v8098, %v8099
      %v8101 = vrot.slane %v8100, 1
      %v8102 = vadd.f32 %v8100, %v8101
      %v8103 = vsel %vm5444, %v7182, 0.0
      %v8104 = vsel %vm5444, %v7184, 0.0
      %v8105 = vadd.f32 %v8103, %v8104
      %v8106 = vrot.slane %v8105, 4
      %v8107 = vadd.f32 %v8105, %v8106
      %v8108 = vrot.slane %v8107, 2
      %v8109 = vadd.f32 %v8107, %v8108
      %v8110 = vrot.slane %v8109, 1
      %v8111 = vadd.f32 %v8109, %v8110
      %v8112 = vsel %vm5444, %v7186, 0.0
      %v8113 = vsel %vm5444, %v7188, 0.0
      %v8114 = vadd.f32 %v8112, %v8113
      %v8115 = vrot.slane %v8114, 4
      %v8116 = vadd.f32 %v8114, %v8115
      %v8117 = vrot.slane %v8116, 2
      %v8118 = vadd.f32 %v8116, %v8117
      %v8119 = vrot.slane %v8118, 1
      %v8120 = vadd.f32 %v8118, %v8119
      %v8121 = vsel %vm5444, %v7190, 0.0
      %v8122 = vsel %vm5444, %v7192, 0.0
      %v8123 = vadd.f32 %v8121, %v8122
      %v8124 = vrot.slane %v8123, 4
      %v8125 = vadd.f32 %v8123, %v8124
      %v8126 = vrot.slane %v8125, 2
      %v8127 = vadd.f32 %v8125, %v8126
      %v8128 = vrot.slane %v8127, 1
      %v8129 = vadd.f32 %v8127, %v8128
      %v8130 = vsel %vm5444, %v7194, 0.0
      %v8131 = vsel %vm5444, %v7196, 0.0
      %v8132 = vadd.f32 %v8130, %v8131
      %v8133 = vrot.slane %v8132, 4
      %v8134 = vadd.f32 %v8132, %v8133
      %v8135 = vrot.slane %v8134, 2
      %v8136 = vadd.f32 %v8134, %v8135
      %v8137 = vrot.slane %v8136, 1
      %v8138 = vadd.f32 %v8136, %v8137
      %v8139 = vsel %vm5444, %v7198, 0.0
      %v8140 = vsel %vm5444, %v7200, 0.0
      %v8141 = vadd.f32 %v8139, %v8140
      %v8142 = vrot.slane %v8141, 4
      %v8143 = vadd.f32 %v8141, %v8142
      %v8144 = vrot.slane %v8143, 2
      %v8145 = vadd.f32 %v8143, %v8144
      %v8146 = vrot.slane %v8145, 1
      %v8147 = vadd.f32 %v8145, %v8146
      %v8148 = vsel %vm5444, %v7202, 0.0
      %v8149 = vsel %vm5444, %v7204, 0.0
      %v8150 = vadd.f32 %v8148, %v8149
      %v8151 = vrot.slane %v8150, 4
      %v8152 = vadd.f32 %v8150, %v8151
      %v8153 = vrot.slane %v8152, 2
      %v8154 = vadd.f32 %v8152, %v8153
      %v8155 = vrot.slane %v8154, 1
      %v8156 = vadd.f32 %v8154, %v8155
      %v8157 = vsel %vm5444, %v7206, 0.0
      %v8158 = vsel %vm5444, %v7208, 0.0
      %v8159 = vadd.f32 %v8157, %v8158
      %v8160 = vrot.slane %v8159, 4
      %v8161 = vadd.f32 %v8159, %v8160
      %v8162 = vrot.slane %v8161, 2
      %v8163 = vadd.f32 %v8161, %v8162
      %v8164 = vrot.slane %v8163, 1
      %v8165 = vadd.f32 %v8163, %v8164
      %v8166 = vsel %vm5444, %v7210, 0.0
      %v8167 = vsel %vm5444, %v7212, 0.0
      %v8168 = vadd.f32 %v8166, %v8167
      %v8169 = vrot.slane %v8168, 4
      %v8170 = vadd.f32 %v8168, %v8169
      %v8171 = vrot.slane %v8170, 2
      %v8172 = vadd.f32 %v8170, %v8171
      %v8173 = vrot.slane %v8172, 1
      %v8174 = vadd.f32 %v8172, %v8173
      %v8175 = vsel %vm5444, %v7214, 0.0
      %v8176 = vsel %vm5444, %v7216, 0.0
      %v8177 = vadd.f32 %v8175, %v8176
      %v8178 = vrot.slane %v8177, 4
      %v8179 = vadd.f32 %v8177, %v8178
      %v8180 = vrot.slane %v8179, 2
      %v8181 = vadd.f32 %v8179, %v8180
      %v8182 = vrot.slane %v8181, 1
      %v8183 = vadd.f32 %v8181, %v8182
      %v8184 = vsel %vm5444, %v7218, 0.0
      %v8185 = vsel %vm5444, %v7220, 0.0
      %v8186 = vadd.f32 %v8184, %v8185
      %v8187 = vrot.slane %v8186, 4
      %v8188 = vadd.f32 %v8186, %v8187
      %v8189 = vrot.slane %v8188, 2
      %v8190 = vadd.f32 %v8188, %v8189
      %v8191 = vrot.slane %v8190, 1
      %v8192 = vadd.f32 %v8190, %v8191
      %v8193 = vsel %vm5444, %v7222, 0.0
      %v8194 = vsel %vm5444, %v7224, 0.0
      %v8195 = vadd.f32 %v8193, %v8194
      %v8196 = vrot.slane %v8195, 4
      %v8197 = vadd.f32 %v8195, %v8196
      %v8198 = vrot.slane %v8197, 2
      %v8199 = vadd.f32 %v8197, %v8198
      %v8200 = vrot.slane %v8199, 1
      %v8201 = vadd.f32 %v8199, %v8200
      %v8202 = vsel %vm5444, %v7226, 0.0
      %v8203 = vsel %vm5444, %v7228, 0.0
      %v8204 = vadd.f32 %v8202, %v8203
      %v8205 = vrot.slane %v8204, 4
      %v8206 = vadd.f32 %v8204, %v8205
      %v8207 = vrot.slane %v8206, 2
      %v8208 = vadd.f32 %v8206, %v8207
      %v8209 = vrot.slane %v8208, 1
      %v8210 = vadd.f32 %v8208, %v8209
      %v8211 = vsel %vm5444, %v7230, 0.0
      %v8212 = vsel %vm5444, %v7232, 0.0
      %v8213 = vadd.f32 %v8211, %v8212
      %v8214 = vrot.slane %v8213, 4
      %v8215 = vadd.f32 %v8213, %v8214
      %v8216 = vrot.slane %v8215, 2
      %v8217 = vadd.f32 %v8215, %v8216
      %v8218 = vrot.slane %v8217, 1
      %v8219 = vadd.f32 %v8217, %v8218
      %v8220 = vsel %vm5444, %v7234, 0.0
      %v8221 = vsel %vm5444, %v7236, 0.0
      %v8222 = vadd.f32 %v8220, %v8221
      %v8223 = vrot.slane %v8222, 4
      %v8224 = vadd.f32 %v8222, %v8223
      %v8225 = vrot.slane %v8224, 2
      %v8226 = vadd.f32 %v8224, %v8225
      %v8227 = vrot.slane %v8226, 1
      %v8228 = vadd.f32 %v8226, %v8227
      %v8229 = vsel %vm5444, %v7238, 0.0
      %v8230 = vsel %vm5444, %v7240, 0.0
      %v8231 = vadd.f32 %v8229, %v8230
      %v8232 = vrot.slane %v8231, 4
      %v8233 = vadd.f32 %v8231, %v8232
      %v8234 = vrot.slane %v8233, 2
      %v8235 = vadd.f32 %v8233, %v8234
      %v8236 = vrot.slane %v8235, 1
      %v8237 = vadd.f32 %v8235, %v8236
      %v8238 = vsel %vm5444, %v7242, 0.0
      %v8239 = vsel %vm5444, %v7244, 0.0
      %v8240 = vadd.f32 %v8238, %v8239
      %v8241 = vrot.slane %v8240, 4
      %v8242 = vadd.f32 %v8240, %v8241
      %v8243 = vrot.slane %v8242, 2
      %v8244 = vadd.f32 %v8242, %v8243
      %v8245 = vrot.slane %v8244, 1
      %v8246 = vadd.f32 %v8244, %v8245
      %v8247 = vsel %vm5444, %v7246, 0.0
      %v8248 = vsel %vm5444, %v7248, 0.0
      %v8249 = vadd.f32 %v8247, %v8248
      %v8250 = vrot.slane %v8249, 4
      %v8251 = vadd.f32 %v8249, %v8250
      %v8252 = vrot.slane %v8251, 2
      %v8253 = vadd.f32 %v8251, %v8252
      %v8254 = vrot.slane %v8253, 1
      %v8255 = vadd.f32 %v8253, %v8254
      %v8256 = vsel %vm5444, %v7250, 0.0
      %v8257 = vsel %vm5444, %v7252, 0.0
      %v8258 = vadd.f32 %v8256, %v8257
      %v8259 = vrot.slane %v8258, 4
      %v8260 = vadd.f32 %v8258, %v8259
      %v8261 = vrot.slane %v8260, 2
      %v8262 = vadd.f32 %v8260, %v8261
      %v8263 = vrot.slane %v8262, 1
      %v8264 = vadd.f32 %v8262, %v8263
      %v8265 = vsel %vm5444, %v7254, 0.0
      %v8266 = vsel %vm5444, %v7256, 0.0
      %v8267 = vadd.f32 %v8265, %v8266
      %v8268 = vrot.slane %v8267, 4
      %v8269 = vadd.f32 %v8267, %v8268
      %v8270 = vrot.slane %v8269, 2
      %v8271 = vadd.f32 %v8269, %v8270
      %v8272 = vrot.slane %v8271, 1
      %v8273 = vadd.f32 %v8271, %v8272
      %v8274 = vsel %vm5444, %v7258, 0.0
      %v8275 = vsel %vm5444, %v7260, 0.0
      %v8276 = vadd.f32 %v8274, %v8275
      %v8277 = vrot.slane %v8276, 4
      %v8278 = vadd.f32 %v8276, %v8277
      %v8279 = vrot.slane %v8278, 2
      %v8280 = vadd.f32 %v8278, %v8279
      %v8281 = vrot.slane %v8280, 1
      %v8282 = vadd.f32 %v8280, %v8281
      %v8283 = vsel %vm5444, %v7262, 0.0
      %v8284 = vsel %vm5444, %v7264, 0.0
      %v8285 = vadd.f32 %v8283, %v8284
      %v8286 = vrot.slane %v8285, 4
      %v8287 = vadd.f32 %v8285, %v8286
      %v8288 = vrot.slane %v8287, 2
      %v8289 = vadd.f32 %v8287, %v8288
      %v8290 = vrot.slane %v8289, 1
      %v8291 = vadd.f32 %v8289, %v8290
      %v8292 = vsel %vm5444, %v7266, 0.0
      %v8293 = vsel %vm5444, %v7268, 0.0
      %v8294 = vadd.f32 %v8292, %v8293
      %v8295 = vrot.slane %v8294, 4
      %v8296 = vadd.f32 %v8294, %v8295
      %v8297 = vrot.slane %v8296, 2
      %v8298 = vadd.f32 %v8296, %v8297
      %v8299 = vrot.slane %v8298, 1
      %v8300 = vadd.f32 %v8298, %v8299
      %v8301 = vsel %vm5444, %v7270, 0.0
      %v8302 = vsel %vm5444, %v7272, 0.0
      %v8303 = vadd.f32 %v8301, %v8302
      %v8304 = vrot.slane %v8303, 4
      %v8305 = vadd.f32 %v8303, %v8304
      %v8306 = vrot.slane %v8305, 2
      %v8307 = vadd.f32 %v8305, %v8306
      %v8308 = vrot.slane %v8307, 1
      %v8309 = vadd.f32 %v8307, %v8308
      %v8310 = vsel %vm5444, %v7274, 0.0
      %v8311 = vsel %vm5444, %v7276, 0.0
      %v8312 = vadd.f32 %v8310, %v8311
      %v8313 = vrot.slane %v8312, 4
      %v8314 = vadd.f32 %v8312, %v8313
      %v8315 = vrot.slane %v8314, 2
      %v8316 = vadd.f32 %v8314, %v8315
      %v8317 = vrot.slane %v8316, 1
      %v8318 = vadd.f32 %v8316, %v8317
      %v8319 = vsel %vm5444, %v7278, 0.0
      %v8320 = vsel %vm5444, %v7280, 0.0
      %v8321 = vadd.f32 %v8319, %v8320
      %v8322 = vrot.slane %v8321, 4
      %v8323 = vadd.f32 %v8321, %v8322
      %v8324 = vrot.slane %v8323, 2
      %v8325 = vadd.f32 %v8323, %v8324
      %v8326 = vrot.slane %v8325, 1
      %v8327 = vadd.f32 %v8325, %v8326
      %v8328 = vsel %vm5444, %v7282, 0.0
      %v8329 = vsel %vm5444, %v7284, 0.0
      %v8330 = vadd.f32 %v8328, %v8329
      %v8331 = vrot.slane %v8330, 4
      %v8332 = vadd.f32 %v8330, %v8331
      %v8333 = vrot.slane %v8332, 2
      %v8334 = vadd.f32 %v8332, %v8333
      %v8335 = vrot.slane %v8334, 1
      %v8336 = vadd.f32 %v8334, %v8335
      %v8337 = vsel %vm5444, %v7286, 0.0
      %v8338 = vsel %vm5444, %v7288, 0.0
      %v8339 = vadd.f32 %v8337, %v8338
      %v8340 = vrot.slane %v8339, 4
      %v8341 = vadd.f32 %v8339, %v8340
      %v8342 = vrot.slane %v8341, 2
      %v8343 = vadd.f32 %v8341, %v8342
      %v8344 = vrot.slane %v8343, 1
      %v8345 = vadd.f32 %v8343, %v8344
      %v8346 = vsel %vm5444, %v7290, 0.0
      %v8347 = vsel %vm5444, %v7292, 0.0
      %v8348 = vadd.f32 %v8346, %v8347
      %v8349 = vrot.slane %v8348, 4
      %v8350 = vadd.f32 %v8348, %v8349
      %v8351 = vrot.slane %v8350, 2
      %v8352 = vadd.f32 %v8350, %v8351
      %v8353 = vrot.slane %v8352, 1
      %v8354 = vadd.f32 %v8352, %v8353
      %v8355 = vsel %vm5444, %v7294, 0.0
      %v8356 = vsel %vm5444, %v7296, 0.0
      %v8357 = vadd.f32 %v8355, %v8356
      %v8358 = vrot.slane %v8357, 4
      %v8359 = vadd.f32 %v8357, %v8358
      %v8360 = vrot.slane %v8359, 2
      %v8361 = vadd.f32 %v8359, %v8360
      %v8362 = vrot.slane %v8361, 1
      %v8363 = vadd.f32 %v8361, %v8362
      %v8364 = vsel %vm5444, %v7298, 0.0
      %v8365 = vsel %vm5444, %v7300, 0.0
      %v8366 = vadd.f32 %v8364, %v8365
      %v8367 = vrot.slane %v8366, 4
      %v8368 = vadd.f32 %v8366, %v8367
      %v8369 = vrot.slane %v8368, 2
      %v8370 = vadd.f32 %v8368, %v8369
      %v8371 = vrot.slane %v8370, 1
      %v8372 = vadd.f32 %v8370, %v8371
      %v8373 = vsel %vm5444, %v7302, 0.0
      %v8374 = vsel %vm5444, %v7304, 0.0
      %v8375 = vadd.f32 %v8373, %v8374
      %v8376 = vrot.slane %v8375, 4
      %v8377 = vadd.f32 %v8375, %v8376
      %v8378 = vrot.slane %v8377, 2
      %v8379 = vadd.f32 %v8377, %v8378
      %v8380 = vrot.slane %v8379, 1
      %v8381 = vadd.f32 %v8379, %v8380
      %v8382 = vsel %vm5444, %v7306, 0.0
      %v8383 = vsel %vm5444, %v7308, 0.0
      %v8384 = vadd.f32 %v8382, %v8383
      %v8385 = vrot.slane %v8384, 4
      %v8386 = vadd.f32 %v8384, %v8385
      %v8387 = vrot.slane %v8386, 2
      %v8388 = vadd.f32 %v8386, %v8387
      %v8389 = vrot.slane %v8388, 1
      %v8390 = vadd.f32 %v8388, %v8389
      %v8391 = vsel %vm5444, %v7310, 0.0
      %v8392 = vsel %vm5444, %v7312, 0.0
      %v8393 = vadd.f32 %v8391, %v8392
      %v8394 = vrot.slane %v8393, 4
      %v8395 = vadd.f32 %v8393, %v8394
      %v8396 = vrot.slane %v8395, 2
      %v8397 = vadd.f32 %v8395, %v8396
      %v8398 = vrot.slane %v8397, 1
      %v8399 = vadd.f32 %v8397, %v8398
      %v8400 = vsel %vm5444, %v7314, 0.0
      %v8401 = vsel %vm5444, %v7316, 0.0
      %v8402 = vadd.f32 %v8400, %v8401
      %v8403 = vrot.slane %v8402, 4
      %v8404 = vadd.f32 %v8402, %v8403
      %v8405 = vrot.slane %v8404, 2
      %v8406 = vadd.f32 %v8404, %v8405
      %v8407 = vrot.slane %v8406, 1
      %v8408 = vadd.f32 %v8406, %v8407
      %v8409 = vsel %vm5444, %v7318, 0.0
      %v8410 = vsel %vm5444, %v7320, 0.0
      %v8411 = vadd.f32 %v8409, %v8410
      %v8412 = vrot.slane %v8411, 4
      %v8413 = vadd.f32 %v8411, %v8412
      %v8414 = vrot.slane %v8413, 2
      %v8415 = vadd.f32 %v8413, %v8414
      %v8416 = vrot.slane %v8415, 1
      %v8417 = vadd.f32 %v8415, %v8416
      %v8418 = vsel %vm5444, %v7322, 0.0
      %v8419 = vsel %vm5444, %v7324, 0.0
      %v8420 = vadd.f32 %v8418, %v8419
      %v8421 = vrot.slane %v8420, 4
      %v8422 = vadd.f32 %v8420, %v8421
      %v8423 = vrot.slane %v8422, 2
      %v8424 = vadd.f32 %v8422, %v8423
      %v8425 = vrot.slane %v8424, 1
      %v8426 = vadd.f32 %v8424, %v8425
      %v8427 = vsel %vm5444, %v7326, 0.0
      %v8428 = vsel %vm5444, %v7328, 0.0
      %v8429 = vadd.f32 %v8427, %v8428
      %v8430 = vrot.slane %v8429, 4
      %v8431 = vadd.f32 %v8429, %v8430
      %v8432 = vrot.slane %v8431, 2
      %v8433 = vadd.f32 %v8431, %v8432
      %v8434 = vrot.slane %v8433, 1
      %v8435 = vadd.f32 %v8433, %v8434
      %v8436 = vsel %vm5444, %v7330, 0.0
      %v8437 = vsel %vm5444, %v7332, 0.0
      %v8438 = vadd.f32 %v8436, %v8437
      %v8439 = vrot.slane %v8438, 4
      %v8440 = vadd.f32 %v8438, %v8439
      %v8441 = vrot.slane %v8440, 2
      %v8442 = vadd.f32 %v8440, %v8441
      %v8443 = vrot.slane %v8442, 1
      %v8444 = vadd.f32 %v8442, %v8443
      %v8445 = vsel %vm5444, %v7334, 0.0
      %v8446 = vsel %vm5444, %v7336, 0.0
      %v8447 = vadd.f32 %v8445, %v8446
      %v8448 = vrot.slane %v8447, 4
      %v8449 = vadd.f32 %v8447, %v8448
      %v8450 = vrot.slane %v8449, 2
      %v8451 = vadd.f32 %v8449, %v8450
      %v8452 = vrot.slane %v8451, 1
      %v8453 = vadd.f32 %v8451, %v8452
      %v8454 = vsel %vm5444, %v7338, 0.0
      %v8455 = vsel %vm5444, %v7340, 0.0
      %v8456 = vadd.f32 %v8454, %v8455
      %v8457 = vrot.slane %v8456, 4
      %v8458 = vadd.f32 %v8456, %v8457
      %v8459 = vrot.slane %v8458, 2
      %v8460 = vadd.f32 %v8458, %v8459
      %v8461 = vrot.slane %v8460, 1
      %v8462 = vadd.f32 %v8460, %v8461
      %v8463 = vsel %vm5444, %v7342, 0.0
      %v8464 = vsel %vm5444, %v7344, 0.0
      %v8465 = vadd.f32 %v8463, %v8464
      %v8466 = vrot.slane %v8465, 4
      %v8467 = vadd.f32 %v8465, %v8466
      %v8468 = vrot.slane %v8467, 2
      %v8469 = vadd.f32 %v8467, %v8468
      %v8470 = vrot.slane %v8469, 1
      %v8471 = vadd.f32 %v8469, %v8470
      %v8472 = vsel %vm5444, %v7346, 0.0
      %v8473 = vsel %vm5444, %v7348, 0.0
      %v8474 = vadd.f32 %v8472, %v8473
      %v8475 = vrot.slane %v8474, 4
      %v8476 = vadd.f32 %v8474, %v8475
      %v8477 = vrot.slane %v8476, 2
      %v8478 = vadd.f32 %v8476, %v8477
      %v8479 = vrot.slane %v8478, 1
      %v8480 = vadd.f32 %v8478, %v8479
      %v8481 = vsel %vm5444, %v7350, 0.0
      %v8482 = vsel %vm5444, %v7352, 0.0
      %v8483 = vadd.f32 %v8481, %v8482
      %v8484 = vrot.slane %v8483, 4
      %v8485 = vadd.f32 %v8483, %v8484
      %v8486 = vrot.slane %v8485, 2
      %v8487 = vadd.f32 %v8485, %v8486
      %v8488 = vrot.slane %v8487, 1
      %v8489 = vadd.f32 %v8487, %v8488
      %v8490 = vsel %vm5444, %v7354, 0.0
      %v8491 = vsel %vm5444, %v7356, 0.0
      %v8492 = vadd.f32 %v8490, %v8491
      %v8493 = vrot.slane %v8492, 4
      %v8494 = vadd.f32 %v8492, %v8493
      %v8495 = vrot.slane %v8494, 2
      %v8496 = vadd.f32 %v8494, %v8495
      %v8497 = vrot.slane %v8496, 1
      %v8498 = vadd.f32 %v8496, %v8497
      %v8499 = vsel %vm5444, %v7358, 0.0
      %v8500 = vsel %vm5444, %v7360, 0.0
      %v8501 = vadd.f32 %v8499, %v8500
      %v8502 = vrot.slane %v8501, 4
      %v8503 = vadd.f32 %v8501, %v8502
      %v8504 = vrot.slane %v8503, 2
      %v8505 = vadd.f32 %v8503, %v8504
      %v8506 = vrot.slane %v8505, 1
      %v8507 = vadd.f32 %v8505, %v8506
      %v8508 = vsel %vm5444, %v7362, 0.0
      %v8509 = vsel %vm5444, %v7364, 0.0
      %v8510 = vadd.f32 %v8508, %v8509
      %v8511 = vrot.slane %v8510, 4
      %v8512 = vadd.f32 %v8510, %v8511
      %v8513 = vrot.slane %v8512, 2
      %v8514 = vadd.f32 %v8512, %v8513
      %v8515 = vrot.slane %v8514, 1
      %v8516 = vadd.f32 %v8514, %v8515
      %v8517 = vmul.f32 %v6854, %v1342
      %v8518 = vmul.f32 %v6856, %v1344
      %v8519 = vmul.f32 %v6858, %v1342
      %v8520 = vmul.f32 %v6860, %v1344
      %v8521 = vmul.f32 %v6862, %v1342
      %v8522 = vmul.f32 %v6864, %v1344
      %v8523 = vmul.f32 %v6866, %v1342
      %v8524 = vmul.f32 %v6868, %v1344
      %v8525 = vmul.f32 %v6870, %v1342
      %v8526 = vmul.f32 %v6872, %v1344
      %v8527 = vmul.f32 %v6874, %v1342
      %v8528 = vmul.f32 %v6876, %v1344
      %v8529 = vmul.f32 %v6878, %v1342
      %v8530 = vmul.f32 %v6880, %v1344
      %v8531 = vmul.f32 %v6882, %v1342
      %v8532 = vmul.f32 %v6884, %v1344
      %v8533 = vmul.f32 %v6886, %v1342
      %v8534 = vmul.f32 %v6888, %v1344
      %v8535 = vmul.f32 %v6890, %v1342
      %v8536 = vmul.f32 %v6892, %v1344
      %v8537 = vmul.f32 %v6894, %v1342
      %v8538 = vmul.f32 %v6896, %v1344
      %v8539 = vmul.f32 %v6898, %v1342
      %v8540 = vmul.f32 %v6900, %v1344
      %v8541 = vmul.f32 %v6902, %v1342
      %v8542 = vmul.f32 %v6904, %v1344
      %v8543 = vmul.f32 %v6906, %v1342
      %v8544 = vmul.f32 %v6908, %v1344
      %v8545 = vmul.f32 %v6910, %v1342
      %v8546 = vmul.f32 %v6912, %v1344
      %v8547 = vmul.f32 %v6914, %v1342
      %v8548 = vmul.f32 %v6916, %v1344
      %v8549 = vmul.f32 %v6918, %v1347
      %v8550 = vmul.f32 %v6920, %v1349
      %v8551 = vmul.f32 %v6922, %v1347
      %v8552 = vmul.f32 %v6924, %v1349
      %v8553 = vmul.f32 %v6926, %v1347
      %v8554 = vmul.f32 %v6928, %v1349
      %v8555 = vmul.f32 %v6930, %v1347
      %v8556 = vmul.f32 %v6932, %v1349
      %v8557 = vmul.f32 %v6934, %v1347
      %v8558 = vmul.f32 %v6936, %v1349
      %v8559 = vmul.f32 %v6938, %v1347
      %v8560 = vmul.f32 %v6940, %v1349
      %v8561 = vmul.f32 %v6942, %v1347
      %v8562 = vmul.f32 %v6944, %v1349
      %v8563 = vmul.f32 %v6946, %v1347
      %v8564 = vmul.f32 %v6948, %v1349
      %v8565 = vmul.f32 %v6950, %v1347
      %v8566 = vmul.f32 %v6952, %v1349
      %v8567 = vmul.f32 %v6954, %v1347
      %v8568 = vmul.f32 %v6956, %v1349
      %v8569 = vmul.f32 %v6958, %v1347
      %v8570 = vmul.f32 %v6960, %v1349
      %v8571 = vmul.f32 %v6962, %v1347
      %v8572 = vmul.f32 %v6964, %v1349
      %v8573 = vmul.f32 %v6966, %v1347
      %v8574 = vmul.f32 %v6968, %v1349
      %v8575 = vmul.f32 %v6970, %v1347
      %v8576 = vmul.f32 %v6972, %v1349
      %v8577 = vmul.f32 %v6974, %v1347
      %v8578 = vmul.f32 %v6976, %v1349
      %v8579 = vmul.f32 %v6978, %v1347
      %v8580 = vmul.f32 %v6980, %v1349
      %v8581 = vmul.f32 %v6982, %v1352
      %v8582 = vmul.f32 %v6984, %v1354
      %v8583 = vmul.f32 %v6986, %v1352
      %v8584 = vmul.f32 %v6988, %v1354
      %v8585 = vmul.f32 %v6990, %v1352
      %v8586 = vmul.f32 %v6992, %v1354
      %v8587 = vmul.f32 %v6994, %v1352
      %v8588 = vmul.f32 %v6996, %v1354
      %v8589 = vmul.f32 %v6998, %v1352
      %v8590 = vmul.f32 %v7000, %v1354
      %v8591 = vmul.f32 %v7002, %v1352
      %v8592 = vmul.f32 %v7004, %v1354
      %v8593 = vmul.f32 %v7006, %v1352
      %v8594 = vmul.f32 %v7008, %v1354
      %v8595 = vmul.f32 %v7010, %v1352
      %v8596 = vmul.f32 %v7012, %v1354
      %v8597 = vmul.f32 %v7014, %v1352
      %v8598 = vmul.f32 %v7016, %v1354
      %v8599 = vmul.f32 %v7018, %v1352
      %v8600 = vmul.f32 %v7020, %v1354
      %v8601 = vmul.f32 %v7022, %v1352
      %v8602 = vmul.f32 %v7024, %v1354
      %v8603 = vmul.f32 %v7026, %v1352
      %v8604 = vmul.f32 %v7028, %v1354
      %v8605 = vmul.f32 %v7030, %v1352
      %v8606 = vmul.f32 %v7032, %v1354
      %v8607 = vmul.f32 %v7034, %v1352
      %v8608 = vmul.f32 %v7036, %v1354
      %v8609 = vmul.f32 %v7038, %v1352
      %v8610 = vmul.f32 %v7040, %v1354
      %v8611 = vmul.f32 %v7042, %v1352
      %v8612 = vmul.f32 %v7044, %v1354
      %v8613 = vmul.f32 %v7046, %v1357
      %v8614 = vmul.f32 %v7048, %v1359
      %v8615 = vmul.f32 %v7050, %v1357
      %v8616 = vmul.f32 %v7052, %v1359
      %v8617 = vmul.f32 %v7054, %v1357
      %v8618 = vmul.f32 %v7056, %v1359
      %v8619 = vmul.f32 %v7058, %v1357
      %v8620 = vmul.f32 %v7060, %v1359
      %v8621 = vmul.f32 %v7062, %v1357
      %v8622 = vmul.f32 %v7064, %v1359
      %v8623 = vmul.f32 %v7066, %v1357
      %v8624 = vmul.f32 %v7068, %v1359
      %v8625 = vmul.f32 %v7070, %v1357
      %v8626 = vmul.f32 %v7072, %v1359
      %v8627 = vmul.f32 %v7074, %v1357
      %v8628 = vmul.f32 %v7076, %v1359
      %v8629 = vmul.f32 %v7078, %v1357
      %v8630 = vmul.f32 %v7080, %v1359
      %v8631 = vmul.f32 %v7082, %v1357
      %v8632 = vmul.f32 %v7084, %v1359
      %v8633 = vmul.f32 %v7086, %v1357
      %v8634 = vmul.f32 %v7088, %v1359
      %v8635 = vmul.f32 %v7090, %v1357
      %v8636 = vmul.f32 %v7092, %v1359
      %v8637 = vmul.f32 %v7094, %v1357
      %v8638 = vmul.f32 %v7096, %v1359
      %v8639 = vmul.f32 %v7098, %v1357
      %v8640 = vmul.f32 %v7100, %v1359
      %v8641 = vmul.f32 %v7102, %v1357
      %v8642 = vmul.f32 %v7104, %v1359
      %v8643 = vmul.f32 %v7106, %v1357
      %v8644 = vmul.f32 %v7108, %v1359
      %v8645 = vmul.f32 %v7110, %v1362
      %v8646 = vmul.f32 %v7112, %v1364
      %v8647 = vmul.f32 %v7114, %v1362
      %v8648 = vmul.f32 %v7116, %v1364
      %v8649 = vmul.f32 %v7118, %v1362
      %v8650 = vmul.f32 %v7120, %v1364
      %v8651 = vmul.f32 %v7122, %v1362
      %v8652 = vmul.f32 %v7124, %v1364
      %v8653 = vmul.f32 %v7126, %v1362
      %v8654 = vmul.f32 %v7128, %v1364
      %v8655 = vmul.f32 %v7130, %v1362
      %v8656 = vmul.f32 %v7132, %v1364
      %v8657 = vmul.f32 %v7134, %v1362
      %v8658 = vmul.f32 %v7136, %v1364
      %v8659 = vmul.f32 %v7138, %v1362
      %v8660 = vmul.f32 %v7140, %v1364
      %v8661 = vmul.f32 %v7142, %v1362
      %v8662 = vmul.f32 %v7144, %v1364
      %v8663 = vmul.f32 %v7146, %v1362
      %v8664 = vmul.f32 %v7148, %v1364
      %v8665 = vmul.f32 %v7150, %v1362
      %v8666 = vmul.f32 %v7152, %v1364
      %v8667 = vmul.f32 %v7154, %v1362
      %v8668 = vmul.f32 %v7156, %v1364
      %v8669 = vmul.f32 %v7158, %v1362
      %v8670 = vmul.f32 %v7160, %v1364
      %v8671 = vmul.f32 %v7162, %v1362
      %v8672 = vmul.f32 %v7164, %v1364
      %v8673 = vmul.f32 %v7166, %v1362
      %v8674 = vmul.f32 %v7168, %v1364
      %v8675 = vmul.f32 %v7170, %v1362
      %v8676 = vmul.f32 %v7172, %v1364
      %v8677 = vmul.f32 %v7174, %v1367
      %v8678 = vmul.f32 %v7176, %v1369
      %v8679 = vmul.f32 %v7178, %v1367
      %v8680 = vmul.f32 %v7180, %v1369
      %v8681 = vmul.f32 %v7182, %v1367
      %v8682 = vmul.f32 %v7184, %v1369
      %v8683 = vmul.f32 %v7186, %v1367
      %v8684 = vmul.f32 %v7188, %v1369
      %v8685 = vmul.f32 %v7190, %v1367
      %v8686 = vmul.f32 %v7192, %v1369
      %v8687 = vmul.f32 %v7194, %v1367
      %v8688 = vmul.f32 %v7196, %v1369
      %v8689 = vmul.f32 %v7198, %v1367
      %v8690 = vmul.f32 %v7200, %v1369
      %v8691 = vmul.f32 %v7202, %v1367
      %v8692 = vmul.f32 %v7204, %v1369
      %v8693 = vmul.f32 %v7206, %v1367
      %v8694 = vmul.f32 %v7208, %v1369
      %v8695 = vmul.f32 %v7210, %v1367
      %v8696 = vmul.f32 %v7212, %v1369
      %v8697 = vmul.f32 %v7214, %v1367
      %v8698 = vmul.f32 %v7216, %v1369
      %v8699 = vmul.f32 %v7218, %v1367
      %v8700 = vmul.f32 %v7220, %v1369
      %v8701 = vmul.f32 %v7222, %v1367
      %v8702 = vmul.f32 %v7224, %v1369
      %v8703 = vmul.f32 %v7226, %v1367
      %v8704 = vmul.f32 %v7228, %v1369
      %v8705 = vmul.f32 %v7230, %v1367
      %v8706 = vmul.f32 %v7232, %v1369
      %v8707 = vmul.f32 %v7234, %v1367
      %v8708 = vmul.f32 %v7236, %v1369
      %v8709 = vmul.f32 %v7238, %v1372
      %v8710 = vmul.f32 %v7240, %v1374
      %v8711 = vmul.f32 %v7242, %v1372
      %v8712 = vmul.f32 %v7244, %v1374
      %v8713 = vmul.f32 %v7246, %v1372
      %v8714 = vmul.f32 %v7248, %v1374
      %v8715 = vmul.f32 %v7250, %v1372
      %v8716 = vmul.f32 %v7252, %v1374
      %v8717 = vmul.f32 %v7254, %v1372
      %v8718 = vmul.f32 %v7256, %v1374
      %v8719 = vmul.f32 %v7258, %v1372
      %v8720 = vmul.f32 %v7260, %v1374
      %v8721 = vmul.f32 %v7262, %v1372
      %v8722 = vmul.f32 %v7264, %v1374
      %v8723 = vmul.f32 %v7266, %v1372
      %v8724 = vmul.f32 %v7268, %v1374
      %v8725 = vmul.f32 %v7270, %v1372
      %v8726 = vmul.f32 %v7272, %v1374
      %v8727 = vmul.f32 %v7274, %v1372
      %v8728 = vmul.f32 %v7276, %v1374
      %v8729 = vmul.f32 %v7278, %v1372
      %v8730 = vmul.f32 %v7280, %v1374
      %v8731 = vmul.f32 %v7282, %v1372
      %v8732 = vmul.f32 %v7284, %v1374
      %v8733 = vmul.f32 %v7286, %v1372
      %v8734 = vmul.f32 %v7288, %v1374
      %v8735 = vmul.f32 %v7290, %v1372
      %v8736 = vmul.f32 %v7292, %v1374
      %v8737 = vmul.f32 %v7294, %v1372
      %v8738 = vmul.f32 %v7296, %v1374
      %v8739 = vmul.f32 %v7298, %v1372
      %v8740 = vmul.f32 %v7300, %v1374
      %v8741 = vmul.f32 %v7302, %v1377
      %v8742 = vmul.f32 %v7304, %v1379
      %v8743 = vmul.f32 %v7306, %v1377
      %v8744 = vmul.f32 %v7308, %v1379
      %v8745 = vmul.f32 %v7310, %v1377
      %v8746 = vmul.f32 %v7312, %v1379
      %v8747 = vmul.f32 %v7314, %v1377
      %v8748 = vmul.f32 %v7316, %v1379
      %v8749 = vmul.f32 %v7318, %v1377
      %v8750 = vmul.f32 %v7320, %v1379
      %v8751 = vmul.f32 %v7322, %v1377
      %v8752 = vmul.f32 %v7324, %v1379
      %v8753 = vmul.f32 %v7326, %v1377
      %v8754 = vmul.f32 %v7328, %v1379
      %v8755 = vmul.f32 %v7330, %v1377
      %v8756 = vmul.f32 %v7332, %v1379
      %v8757 = vmul.f32 %v7334, %v1377
      %v8758 = vmul.f32 %v7336, %v1379
      %v8759 = vmul.f32 %v7338, %v1377
      %v8760 = vmul.f32 %v7340, %v1379
      %v8761 = vmul.f32 %v7342, %v1377
      %v8762 = vmul.f32 %v7344, %v1379
      %v8763 = vmul.f32 %v7346, %v1377
      %v8764 = vmul.f32 %v7348, %v1379
      %v8765 = vmul.f32 %v7350, %v1377
      %v8766 = vmul.f32 %v7352, %v1379
      %v8767 = vmul.f32 %v7354, %v1377
      %v8768 = vmul.f32 %v7356, %v1379
      %v8769 = vmul.f32 %v7358, %v1377
      %v8770 = vmul.f32 %v7360, %v1379
      %v8771 = vmul.f32 %v7362, %v1377
      %v8772 = vmul.f32 %v7364, %v1379
      %v8773 = vmul.f32 %v8517, %v3084
      %v8774 = vmul.f32 %v8518, %v3086
      %v8775 = vmul.f32 %v8519, %v3089
      %v8776 = vmul.f32 %v8520, %v3091
      %v8777 = vmul.f32 %v8521, %v3094
      %v8778 = vmul.f32 %v8522, %v3096
      %v8779 = vmul.f32 %v8523, %v3099
      %v8780 = vmul.f32 %v8524, %v3101
      %v8781 = vmul.f32 %v8525, %v3104
      %v8782 = vmul.f32 %v8526, %v3106
      %v8783 = vmul.f32 %v8527, %v3109
      %v8784 = vmul.f32 %v8528, %v3111
      %v8785 = vmul.f32 %v8529, %v3114
      %v8786 = vmul.f32 %v8530, %v3116
      %v8787 = vmul.f32 %v8531, %v3119
      %v8788 = vmul.f32 %v8532, %v3121
      %v8789 = vmul.f32 %v8533, %v3124
      %v8790 = vmul.f32 %v8534, %v3126
      %v8791 = vmul.f32 %v8535, %v3129
      %v8792 = vmul.f32 %v8536, %v3131
      %v8793 = vmul.f32 %v8537, %v3134
      %v8794 = vmul.f32 %v8538, %v3136
      %v8795 = vmul.f32 %v8539, %v3139
      %v8796 = vmul.f32 %v8540, %v3141
      %v8797 = vmul.f32 %v8541, %v3144
      %v8798 = vmul.f32 %v8542, %v3146
      %v8799 = vmul.f32 %v8543, %v3149
      %v8800 = vmul.f32 %v8544, %v3151
      %v8801 = vmul.f32 %v8545, %v3154
      %v8802 = vmul.f32 %v8546, %v3156
      %v8803 = vmul.f32 %v8547, %v3159
      %v8804 = vmul.f32 %v8548, %v3161
      %v8805 = vmul.f32 %v8549, %v3164
      %v8806 = vmul.f32 %v8550, %v3166
      %v8807 = vmul.f32 %v8551, %v3169
      %v8808 = vmul.f32 %v8552, %v3171
      %v8809 = vmul.f32 %v8553, %v3174
      %v8810 = vmul.f32 %v8554, %v3176
      %v8811 = vmul.f32 %v8555, %v3179
      %v8812 = vmul.f32 %v8556, %v3181
      %v8813 = vmul.f32 %v8557, %v3184
      %v8814 = vmul.f32 %v8558, %v3186
      %v8815 = vmul.f32 %v8559, %v3189
      %v8816 = vmul.f32 %v8560, %v3191
      %v8817 = vmul.f32 %v8561, %v3194
      %v8818 = vmul.f32 %v8562, %v3196
      %v8819 = vmul.f32 %v8563, %v3199
      %v8820 = vmul.f32 %v8564, %v3201
      %v8821 = vmul.f32 %v8565, %v3204
      %v8822 = vmul.f32 %v8566, %v3206
      %v8823 = vmul.f32 %v8567, %v3209
      %v8824 = vmul.f32 %v8568, %v3211
      %v8825 = vmul.f32 %v8569, %v3214
      %v8826 = vmul.f32 %v8570, %v3216
      %v8827 = vmul.f32 %v8571, %v3219
      %v8828 = vmul.f32 %v8572, %v3221
      %v8829 = vmul.f32 %v8573, %v3224
      %v8830 = vmul.f32 %v8574, %v3226
      %v8831 = vmul.f32 %v8575, %v3229
      %v8832 = vmul.f32 %v8576, %v3231
      %v8833 = vmul.f32 %v8577, %v3234
      %v8834 = vmul.f32 %v8578, %v3236
      %v8835 = vmul.f32 %v8579, %v3239
      %v8836 = vmul.f32 %v8580, %v3241
      %v8837 = vmul.f32 %v8581, %v3244
      %v8838 = vmul.f32 %v8582, %v3246
      %v8839 = vmul.f32 %v8583, %v3249
      %v8840 = vmul.f32 %v8584, %v3251
      %v8841 = vmul.f32 %v8585, %v3254
      %v8842 = vmul.f32 %v8586, %v3256
      %v8843 = vmul.f32 %v8587, %v3259
      %v8844 = vmul.f32 %v8588, %v3261
      %v8845 = vmul.f32 %v8589, %v3264
      %v8846 = vmul.f32 %v8590, %v3266
      %v8847 = vmul.f32 %v8591, %v3269
      %v8848 = vmul.f32 %v8592, %v3271
      %v8849 = vmul.f32 %v8593, %v3274
      %v8850 = vmul.f32 %v8594, %v3276
      %v8851 = vmul.f32 %v8595, %v3279
      %v8852 = vmul.f32 %v8596, %v3281
      %v8853 = vmul.f32 %v8597, %v3284
      %v8854 = vmul.f32 %v8598, %v3286
      %v8855 = vmul.f32 %v8599, %v3289
      %v8856 = vmul.f32 %v8600, %v3291
      %v8857 = vmul.f32 %v8601, %v3294
      %v8858 = vmul.f32 %v8602, %v3296
      %v8859 = vmul.f32 %v8603, %v3299
      %v8860 = vmul.f32 %v8604, %v3301
      %v8861 = vmul.f32 %v8605, %v3304
      %v8862 = vmul.f32 %v8606, %v3306
      %v8863 = vmul.f32 %v8607, %v3309
      %v8864 = vmul.f32 %v8608, %v3311
      %v8865 = vmul.f32 %v8609, %v3314
      %v8866 = vmul.f32 %v8610, %v3316
      %v8867 = vmul.f32 %v8611, %v3319
      %v8868 = vmul.f32 %v8612, %v3321
      %v8869 = vmul.f32 %v8613, %v3324
      %v8870 = vmul.f32 %v8614, %v3326
      %v8871 = vmul.f32 %v8615, %v3329
      %v8872 = vmul.f32 %v8616, %v3331
      %v8873 = vmul.f32 %v8617, %v3334
      %v8874 = vmul.f32 %v8618, %v3336
      %v8875 = vmul.f32 %v8619, %v3339
      %v8876 = vmul.f32 %v8620, %v3341
      %v8877 = vmul.f32 %v8621, %v3344
      %v8878 = vmul.f32 %v8622, %v3346
      %v8879 = vmul.f32 %v8623, %v3349
      %v8880 = vmul.f32 %v8624, %v3351
      %v8881 = vmul.f32 %v8625, %v3354
      %v8882 = vmul.f32 %v8626, %v3356
      %v8883 = vmul.f32 %v8627, %v3359
      %v8884 = vmul.f32 %v8628, %v3361
      %v8885 = vmul.f32 %v8629, %v3364
      %v8886 = vmul.f32 %v8630, %v3366
      %v8887 = vmul.f32 %v8631, %v3369
      %v8888 = vmul.f32 %v8632, %v3371
      %v8889 = vmul.f32 %v8633, %v3374
      %v8890 = vmul.f32 %v8634, %v3376
      %v8891 = vmul.f32 %v8635, %v3379
      %v8892 = vmul.f32 %v8636, %v3381
      %v8893 = vmul.f32 %v8637, %v3384
      %v8894 = vmul.f32 %v8638, %v3386
      %v8895 = vmul.f32 %v8639, %v3389
      %v8896 = vmul.f32 %v8640, %v3391
      %v8897 = vmul.f32 %v8641, %v3394
      %v8898 = vmul.f32 %v8642, %v3396
      %v8899 = vmul.f32 %v8643, %v3399
      %v8900 = vmul.f32 %v8644, %v3401
      %v8901 = vmul.f32 %v8645, %v3404
      %v8902 = vmul.f32 %v8646, %v3406
      %v8903 = vmul.f32 %v8647, %v3409
      %v8904 = vmul.f32 %v8648, %v3411
      %v8905 = vmul.f32 %v8649, %v3414
      %v8906 = vmul.f32 %v8650, %v3416
      %v8907 = vmul.f32 %v8651, %v3419
      %v8908 = vmul.f32 %v8652, %v3421
      %v8909 = vmul.f32 %v8653, %v3424
      %v8910 = vmul.f32 %v8654, %v3426
      %v8911 = vmul.f32 %v8655, %v3429
      %v8912 = vmul.f32 %v8656, %v3431
      %v8913 = vmul.f32 %v8657, %v3434
      %v8914 = vmul.f32 %v8658, %v3436
      %v8915 = vmul.f32 %v8659, %v3439
      %v8916 = vmul.f32 %v8660, %v3441
      %v8917 = vmul.f32 %v8661, %v3444
      %v8918 = vmul.f32 %v8662, %v3446
      %v8919 = vmul.f32 %v8663, %v3449
      %v8920 = vmul.f32 %v8664, %v3451
      %v8921 = vmul.f32 %v8665, %v3454
      %v8922 = vmul.f32 %v8666, %v3456
      %v8923 = vmul.f32 %v8667, %v3459
      %v8924 = vmul.f32 %v8668, %v3461
      %v8925 = vmul.f32 %v8669, %v3464
      %v8926 = vmul.f32 %v8670, %v3466
      %v8927 = vmul.f32 %v8671, %v3469
      %v8928 = vmul.f32 %v8672, %v3471
      %v8929 = vmul.f32 %v8673, %v3474
      %v8930 = vmul.f32 %v8674, %v3476
      %v8931 = vmul.f32 %v8675, %v3479
      %v8932 = vmul.f32 %v8676, %v3481
      %v8933 = vmul.f32 %v8677, %v3484
      %v8934 = vmul.f32 %v8678, %v3486
      %v8935 = vmul.f32 %v8679, %v3489
      %v8936 = vmul.f32 %v8680, %v3491
      %v8937 = vmul.f32 %v8681, %v3494
      %v8938 = vmul.f32 %v8682, %v3496
      %v8939 = vmul.f32 %v8683, %v3499
      %v8940 = vmul.f32 %v8684, %v3501
      %v8941 = vmul.f32 %v8685, %v3504
      %v8942 = vmul.f32 %v8686, %v3506
      %v8943 = vmul.f32 %v8687, %v3509
      %v8944 = vmul.f32 %v8688, %v3511
      %v8945 = vmul.f32 %v8689, %v3514
      %v8946 = vmul.f32 %v8690, %v3516
      %v8947 = vmul.f32 %v8691, %v3519
      %v8948 = vmul.f32 %v8692, %v3521
      %v8949 = vmul.f32 %v8693, %v3524
      %v8950 = vmul.f32 %v8694, %v3526
      %v8951 = vmul.f32 %v8695, %v3529
      %v8952 = vmul.f32 %v8696, %v3531
      %v8953 = vmul.f32 %v8697, %v3534
      %v8954 = vmul.f32 %v8698, %v3536
      %v8955 = vmul.f32 %v8699, %v3539
      %v8956 = vmul.f32 %v8700, %v3541
      %v8957 = vmul.f32 %v8701, %v3544
      %v8958 = vmul.f32 %v8702, %v3546
      %v8959 = vmul.f32 %v8703, %v3549
      %v8960 = vmul.f32 %v8704, %v3551
      %v8961 = vmul.f32 %v8705, %v3554
      %v8962 = vmul.f32 %v8706, %v3556
      %v8963 = vmul.f32 %v8707, %v3559
      %v8964 = vmul.f32 %v8708, %v3561
      %v8965 = vmul.f32 %v8709, %v3564
      %v8966 = vmul.f32 %v8710, %v3566
      %v8967 = vmul.f32 %v8711, %v3569
      %v8968 = vmul.f32 %v8712, %v3571
      %v8969 = vmul.f32 %v8713, %v3574
      %v8970 = vmul.f32 %v8714, %v3576
      %v8971 = vmul.f32 %v8715, %v3579
      %v8972 = vmul.f32 %v8716, %v3581
      %v8973 = vmul.f32 %v8717, %v3584
      %v8974 = vmul.f32 %v8718, %v3586
      %v8975 = vmul.f32 %v8719, %v3589
      %v8976 = vmul.f32 %v8720, %v3591
      %v8977 = vmul.f32 %v8721, %v3594
      %v8978 = vmul.f32 %v8722, %v3596
      %v8979 = vmul.f32 %v8723, %v3599
      %v8980 = vmul.f32 %v8724, %v3601
      %v8981 = vmul.f32 %v8725, %v3604
      %v8982 = vmul.f32 %v8726, %v3606
      %v8983 = vmul.f32 %v8727, %v3609
      %v8984 = vmul.f32 %v8728, %v3611
      %v8985 = vmul.f32 %v8729, %v3614
      %v8986 = vmul.f32 %v8730, %v3616
      %v8987 = vmul.f32 %v8731, %v3619
      %v8988 = vmul.f32 %v8732, %v3621
      %v8989 = vmul.f32 %v8733, %v3624
      %v8990 = vmul.f32 %v8734, %v3626
      %v8991 = vmul.f32 %v8735, %v3629
      %v8992 = vmul.f32 %v8736, %v3631
      %v8993 = vmul.f32 %v8737, %v3634
      %v8994 = vmul.f32 %v8738, %v3636
      %v8995 = vmul.f32 %v8739, %v3639
      %v8996 = vmul.f32 %v8740, %v3641
      %v8997 = vmul.f32 %v8741, %v3644
      %v8998 = vmul.f32 %v8742, %v3646
      %v8999 = vmul.f32 %v8743, %v3649
      %v9000 = vmul.f32 %v8744, %v3651
      %v9001 = vmul.f32 %v8745, %v3654
      %v9002 = vmul.f32 %v8746, %v3656
      %v9003 = vmul.f32 %v8747, %v3659
      %v9004 = vmul.f32 %v8748, %v3661
      %v9005 = vmul.f32 %v8749, %v3664
      %v9006 = vmul.f32 %v8750, %v3666
      %v9007 = vmul.f32 %v8751, %v3669
      %v9008 = vmul.f32 %v8752, %v3671
      %v9009 = vmul.f32 %v8753, %v3674
      %v9010 = vmul.f32 %v8754, %v3676
      %v9011 = vmul.f32 %v8755, %v3679
      %v9012 = vmul.f32 %v8756, %v3681
      %v9013 = vmul.f32 %v8757, %v3684
      %v9014 = vmul.f32 %v8758, %v3686
      %v9015 = vmul.f32 %v8759, %v3689
      %v9016 = vmul.f32 %v8760, %v3691
      %v9017 = vmul.f32 %v8761, %v3694
      %v9018 = vmul.f32 %v8762, %v3696
      %v9019 = vmul.f32 %v8763, %v3699
      %v9020 = vmul.f32 %v8764, %v3701
      %v9021 = vmul.f32 %v8765, %v3704
      %v9022 = vmul.f32 %v8766, %v3706
      %v9023 = vmul.f32 %v8767, %v3709
      %v9024 = vmul.f32 %v8768, %v3711
      %v9025 = vmul.f32 %v8769, %v3714
      %v9026 = vmul.f32 %v8770, %v3716
      %v9027 = vmul.f32 %v8771, %v3719
      %v9028 = vmul.f32 %v8772, %v3721
      %v9029 = vsel %vm5444, %v8773, 0.0
      %v9030 = vsel %vm5444, %v8774, 0.0
      %v9031 = vadd.f32 %v9029, %v9030
      %v9032 = vrot.slane %v9031, 4
      %v9033 = vadd.f32 %v9031, %v9032
      %v9034 = vrot.slane %v9033, 2
      %v9035 = vadd.f32 %v9033, %v9034
      %v9036 = vrot.slane %v9035, 1
      %v9037 = vadd.f32 %v9035, %v9036
      %v9038 = vsel %vm5444, %v8775, 0.0
      %v9039 = vsel %vm5444, %v8776, 0.0
      %v9040 = vadd.f32 %v9038, %v9039
      %v9041 = vrot.slane %v9040, 4
      %v9042 = vadd.f32 %v9040, %v9041
      %v9043 = vrot.slane %v9042, 2
      %v9044 = vadd.f32 %v9042, %v9043
      %v9045 = vrot.slane %v9044, 1
      %v9046 = vadd.f32 %v9044, %v9045
      %v9047 = vsel %vm5444, %v8777, 0.0
      %v9048 = vsel %vm5444, %v8778, 0.0
      %v9049 = vadd.f32 %v9047, %v9048
      %v9050 = vrot.slane %v9049, 4
      %v9051 = vadd.f32 %v9049, %v9050
      %v9052 = vrot.slane %v9051, 2
      %v9053 = vadd.f32 %v9051, %v9052
      %v9054 = vrot.slane %v9053, 1
      %v9055 = vadd.f32 %v9053, %v9054
      %v9056 = vsel %vm5444, %v8779, 0.0
      %v9057 = vsel %vm5444, %v8780, 0.0
      %v9058 = vadd.f32 %v9056, %v9057
      %v9059 = vrot.slane %v9058, 4
      %v9060 = vadd.f32 %v9058, %v9059
      %v9061 = vrot.slane %v9060, 2
      %v9062 = vadd.f32 %v9060, %v9061
      %v9063 = vrot.slane %v9062, 1
      %v9064 = vadd.f32 %v9062, %v9063
      %v9065 = vsel %vm5444, %v8781, 0.0
      %v9066 = vsel %vm5444, %v8782, 0.0
      %v9067 = vadd.f32 %v9065, %v9066
      %v9068 = vrot.slane %v9067, 4
      %v9069 = vadd.f32 %v9067, %v9068
      %v9070 = vrot.slane %v9069, 2
      %v9071 = vadd.f32 %v9069, %v9070
      %v9072 = vrot.slane %v9071, 1
      %v9073 = vadd.f32 %v9071, %v9072
      %v9074 = vsel %vm5444, %v8783, 0.0
      %v9075 = vsel %vm5444, %v8784, 0.0
      %v9076 = vadd.f32 %v9074, %v9075
      %v9077 = vrot.slane %v9076, 4
      %v9078 = vadd.f32 %v9076, %v9077
      %v9079 = vrot.slane %v9078, 2
      %v9080 = vadd.f32 %v9078, %v9079
      %v9081 = vrot.slane %v9080, 1
      %v9082 = vadd.f32 %v9080, %v9081
      %v9083 = vsel %vm5444, %v8785, 0.0
      %v9084 = vsel %vm5444, %v8786, 0.0
      %v9085 = vadd.f32 %v9083, %v9084
      %v9086 = vrot.slane %v9085, 4
      %v9087 = vadd.f32 %v9085, %v9086
      %v9088 = vrot.slane %v9087, 2
      %v9089 = vadd.f32 %v9087, %v9088
      %v9090 = vrot.slane %v9089, 1
      %v9091 = vadd.f32 %v9089, %v9090
      %v9092 = vsel %vm5444, %v8787, 0.0
      %v9093 = vsel %vm5444, %v8788, 0.0
      %v9094 = vadd.f32 %v9092, %v9093
      %v9095 = vrot.slane %v9094, 4
      %v9096 = vadd.f32 %v9094, %v9095
      %v9097 = vrot.slane %v9096, 2
      %v9098 = vadd.f32 %v9096, %v9097
      %v9099 = vrot.slane %v9098, 1
      %v9100 = vadd.f32 %v9098, %v9099
      %v9101 = vsel %vm5444, %v8789, 0.0
      %v9102 = vsel %vm5444, %v8790, 0.0
      %v9103 = vadd.f32 %v9101, %v9102
      %v9104 = vrot.slane %v9103, 4
      %v9105 = vadd.f32 %v9103, %v9104
      %v9106 = vrot.slane %v9105, 2
      %v9107 = vadd.f32 %v9105, %v9106
      %v9108 = vrot.slane %v9107, 1
      %v9109 = vadd.f32 %v9107, %v9108
      %v9110 = vsel %vm5444, %v8791, 0.0
      %v9111 = vsel %vm5444, %v8792, 0.0
      %v9112 = vadd.f32 %v9110, %v9111
      %v9113 = vrot.slane %v9112, 4
      %v9114 = vadd.f32 %v9112, %v9113
      %v9115 = vrot.slane %v9114, 2
      %v9116 = vadd.f32 %v9114, %v9115
      %v9117 = vrot.slane %v9116, 1
      %v9118 = vadd.f32 %v9116, %v9117
      %v9119 = vsel %vm5444, %v8793, 0.0
      %v9120 = vsel %vm5444, %v8794, 0.0
      %v9121 = vadd.f32 %v9119, %v9120
      %v9122 = vrot.slane %v9121, 4
      %v9123 = vadd.f32 %v9121, %v9122
      %v9124 = vrot.slane %v9123, 2
      %v9125 = vadd.f32 %v9123, %v9124
      %v9126 = vrot.slane %v9125, 1
      %v9127 = vadd.f32 %v9125, %v9126
      %v9128 = vsel %vm5444, %v8795, 0.0
      %v9129 = vsel %vm5444, %v8796, 0.0
      %v9130 = vadd.f32 %v9128, %v9129
      %v9131 = vrot.slane %v9130, 4
      %v9132 = vadd.f32 %v9130, %v9131
      %v9133 = vrot.slane %v9132, 2
      %v9134 = vadd.f32 %v9132, %v9133
      %v9135 = vrot.slane %v9134, 1
      %v9136 = vadd.f32 %v9134, %v9135
      %v9137 = vsel %vm5444, %v8797, 0.0
      %v9138 = vsel %vm5444, %v8798, 0.0
      %v9139 = vadd.f32 %v9137, %v9138
      %v9140 = vrot.slane %v9139, 4
      %v9141 = vadd.f32 %v9139, %v9140
      %v9142 = vrot.slane %v9141, 2
      %v9143 = vadd.f32 %v9141, %v9142
      %v9144 = vrot.slane %v9143, 1
      %v9145 = vadd.f32 %v9143, %v9144
      %v9146 = vsel %vm5444, %v8799, 0.0
      %v9147 = vsel %vm5444, %v8800, 0.0
      %v9148 = vadd.f32 %v9146, %v9147
      %v9149 = vrot.slane %v9148, 4
      %v9150 = vadd.f32 %v9148, %v9149
      %v9151 = vrot.slane %v9150, 2
      %v9152 = vadd.f32 %v9150, %v9151
      %v9153 = vrot.slane %v9152, 1
      %v9154 = vadd.f32 %v9152, %v9153
      %v9155 = vsel %vm5444, %v8801, 0.0
      %v9156 = vsel %vm5444, %v8802, 0.0
      %v9157 = vadd.f32 %v9155, %v9156
      %v9158 = vrot.slane %v9157, 4
      %v9159 = vadd.f32 %v9157, %v9158
      %v9160 = vrot.slane %v9159, 2
      %v9161 = vadd.f32 %v9159, %v9160
      %v9162 = vrot.slane %v9161, 1
      %v9163 = vadd.f32 %v9161, %v9162
      %v9164 = vsel %vm5444, %v8803, 0.0
      %v9165 = vsel %vm5444, %v8804, 0.0
      %v9166 = vadd.f32 %v9164, %v9165
      %v9167 = vrot.slane %v9166, 4
      %v9168 = vadd.f32 %v9166, %v9167
      %v9169 = vrot.slane %v9168, 2
      %v9170 = vadd.f32 %v9168, %v9169
      %v9171 = vrot.slane %v9170, 1
      %v9172 = vadd.f32 %v9170, %v9171
      %v9173 = vsel %vm5444, %v8805, 0.0
      %v9174 = vsel %vm5444, %v8806, 0.0
      %v9175 = vadd.f32 %v9173, %v9174
      %v9176 = vrot.slane %v9175, 4
      %v9177 = vadd.f32 %v9175, %v9176
      %v9178 = vrot.slane %v9177, 2
      %v9179 = vadd.f32 %v9177, %v9178
      %v9180 = vrot.slane %v9179, 1
      %v9181 = vadd.f32 %v9179, %v9180
      %v9182 = vsel %vm5444, %v8807, 0.0
      %v9183 = vsel %vm5444, %v8808, 0.0
      %v9184 = vadd.f32 %v9182, %v9183
      %v9185 = vrot.slane %v9184, 4
      %v9186 = vadd.f32 %v9184, %v9185
      %v9187 = vrot.slane %v9186, 2
      %v9188 = vadd.f32 %v9186, %v9187
      %v9189 = vrot.slane %v9188, 1
      %v9190 = vadd.f32 %v9188, %v9189
      %v9191 = vsel %vm5444, %v8809, 0.0
      %v9192 = vsel %vm5444, %v8810, 0.0
      %v9193 = vadd.f32 %v9191, %v9192
      %v9194 = vrot.slane %v9193, 4
      %v9195 = vadd.f32 %v9193, %v9194
      %v9196 = vrot.slane %v9195, 2
      %v9197 = vadd.f32 %v9195, %v9196
      %v9198 = vrot.slane %v9197, 1
      %v9199 = vadd.f32 %v9197, %v9198
      %v9200 = vsel %vm5444, %v8811, 0.0
      %v9201 = vsel %vm5444, %v8812, 0.0
      %v9202 = vadd.f32 %v9200, %v9201
      %v9203 = vrot.slane %v9202, 4
      %v9204 = vadd.f32 %v9202, %v9203
      %v9205 = vrot.slane %v9204, 2
      %v9206 = vadd.f32 %v9204, %v9205
      %v9207 = vrot.slane %v9206, 1
      %v9208 = vadd.f32 %v9206, %v9207
      %v9209 = vsel %vm5444, %v8813, 0.0
      %v9210 = vsel %vm5444, %v8814, 0.0
      %v9211 = vadd.f32 %v9209, %v9210
      %v9212 = vrot.slane %v9211, 4
      %v9213 = vadd.f32 %v9211, %v9212
      %v9214 = vrot.slane %v9213, 2
      %v9215 = vadd.f32 %v9213, %v9214
      %v9216 = vrot.slane %v9215, 1
      %v9217 = vadd.f32 %v9215, %v9216
      %v9218 = vsel %vm5444, %v8815, 0.0
      %v9219 = vsel %vm5444, %v8816, 0.0
      %v9220 = vadd.f32 %v9218, %v9219
      %v9221 = vrot.slane %v9220, 4
      %v9222 = vadd.f32 %v9220, %v9221
      %v9223 = vrot.slane %v9222, 2
      %v9224 = vadd.f32 %v9222, %v9223
      %v9225 = vrot.slane %v9224, 1
      %v9226 = vadd.f32 %v9224, %v9225
      %v9227 = vsel %vm5444, %v8817, 0.0
      %v9228 = vsel %vm5444, %v8818, 0.0
      %v9229 = vadd.f32 %v9227, %v9228
      %v9230 = vrot.slane %v9229, 4
      %v9231 = vadd.f32 %v9229, %v9230
      %v9232 = vrot.slane %v9231, 2
      %v9233 = vadd.f32 %v9231, %v9232
      %v9234 = vrot.slane %v9233, 1
      %v9235 = vadd.f32 %v9233, %v9234
      %v9236 = vsel %vm5444, %v8819, 0.0
      %v9237 = vsel %vm5444, %v8820, 0.0
      %v9238 = vadd.f32 %v9236, %v9237
      %v9239 = vrot.slane %v9238, 4
      %v9240 = vadd.f32 %v9238, %v9239
      %v9241 = vrot.slane %v9240, 2
      %v9242 = vadd.f32 %v9240, %v9241
      %v9243 = vrot.slane %v9242, 1
      %v9244 = vadd.f32 %v9242, %v9243
      %v9245 = vsel %vm5444, %v8821, 0.0
      %v9246 = vsel %vm5444, %v8822, 0.0
      %v9247 = vadd.f32 %v9245, %v9246
      %v9248 = vrot.slane %v9247, 4
      %v9249 = vadd.f32 %v9247, %v9248
      %v9250 = vrot.slane %v9249, 2
      %v9251 = vadd.f32 %v9249, %v9250
      %v9252 = vrot.slane %v9251, 1
      %v9253 = vadd.f32 %v9251, %v9252
      %v9254 = vsel %vm5444, %v8823, 0.0
      %v9255 = vsel %vm5444, %v8824, 0.0
      %v9256 = vadd.f32 %v9254, %v9255
      %v9257 = vrot.slane %v9256, 4
      %v9258 = vadd.f32 %v9256, %v9257
      %v9259 = vrot.slane %v9258, 2
      %v9260 = vadd.f32 %v9258, %v9259
      %v9261 = vrot.slane %v9260, 1
      %v9262 = vadd.f32 %v9260, %v9261
      %v9263 = vsel %vm5444, %v8825, 0.0
      %v9264 = vsel %vm5444, %v8826, 0.0
      %v9265 = vadd.f32 %v9263, %v9264
      %v9266 = vrot.slane %v9265, 4
      %v9267 = vadd.f32 %v9265, %v9266
      %v9268 = vrot.slane %v9267, 2
      %v9269 = vadd.f32 %v9267, %v9268
      %v9270 = vrot.slane %v9269, 1
      %v9271 = vadd.f32 %v9269, %v9270
      %v9272 = vsel %vm5444, %v8827, 0.0
      %v9273 = vsel %vm5444, %v8828, 0.0
      %v9274 = vadd.f32 %v9272, %v9273
      %v9275 = vrot.slane %v9274, 4
      %v9276 = vadd.f32 %v9274, %v9275
      %v9277 = vrot.slane %v9276, 2
      %v9278 = vadd.f32 %v9276, %v9277
      %v9279 = vrot.slane %v9278, 1
      %v9280 = vadd.f32 %v9278, %v9279
      %v9281 = vsel %vm5444, %v8829, 0.0
      %v9282 = vsel %vm5444, %v8830, 0.0
      %v9283 = vadd.f32 %v9281, %v9282
      %v9284 = vrot.slane %v9283, 4
      %v9285 = vadd.f32 %v9283, %v9284
      %v9286 = vrot.slane %v9285, 2
      %v9287 = vadd.f32 %v9285, %v9286
      %v9288 = vrot.slane %v9287, 1
      %v9289 = vadd.f32 %v9287, %v9288
      %v9290 = vsel %vm5444, %v8831, 0.0
      %v9291 = vsel %vm5444, %v8832, 0.0
      %v9292 = vadd.f32 %v9290, %v9291
      %v9293 = vrot.slane %v9292, 4
      %v9294 = vadd.f32 %v9292, %v9293
      %v9295 = vrot.slane %v9294, 2
      %v9296 = vadd.f32 %v9294, %v9295
      %v9297 = vrot.slane %v9296, 1
      %v9298 = vadd.f32 %v9296, %v9297
      %v9299 = vsel %vm5444, %v8833, 0.0
      %v9300 = vsel %vm5444, %v8834, 0.0
      %v9301 = vadd.f32 %v9299, %v9300
      %v9302 = vrot.slane %v9301, 4
      %v9303 = vadd.f32 %v9301, %v9302
      %v9304 = vrot.slane %v9303, 2
      %v9305 = vadd.f32 %v9303, %v9304
      %v9306 = vrot.slane %v9305, 1
      %v9307 = vadd.f32 %v9305, %v9306
      %v9308 = vsel %vm5444, %v8835, 0.0
      %v9309 = vsel %vm5444, %v8836, 0.0
      %v9310 = vadd.f32 %v9308, %v9309
      %v9311 = vrot.slane %v9310, 4
      %v9312 = vadd.f32 %v9310, %v9311
      %v9313 = vrot.slane %v9312, 2
      %v9314 = vadd.f32 %v9312, %v9313
      %v9315 = vrot.slane %v9314, 1
      %v9316 = vadd.f32 %v9314, %v9315
      %v9317 = vsel %vm5444, %v8837, 0.0
      %v9318 = vsel %vm5444, %v8838, 0.0
      %v9319 = vadd.f32 %v9317, %v9318
      %v9320 = vrot.slane %v9319, 4
      %v9321 = vadd.f32 %v9319, %v9320
      %v9322 = vrot.slane %v9321, 2
      %v9323 = vadd.f32 %v9321, %v9322
      %v9324 = vrot.slane %v9323, 1
      %v9325 = vadd.f32 %v9323, %v9324
      %v9326 = vsel %vm5444, %v8839, 0.0
      %v9327 = vsel %vm5444, %v8840, 0.0
      %v9328 = vadd.f32 %v9326, %v9327
      %v9329 = vrot.slane %v9328, 4
      %v9330 = vadd.f32 %v9328, %v9329
      %v9331 = vrot.slane %v9330, 2
      %v9332 = vadd.f32 %v9330, %v9331
      %v9333 = vrot.slane %v9332, 1
      %v9334 = vadd.f32 %v9332, %v9333
      %v9335 = vsel %vm5444, %v8841, 0.0
      %v9336 = vsel %vm5444, %v8842, 0.0
      %v9337 = vadd.f32 %v9335, %v9336
      %v9338 = vrot.slane %v9337, 4
      %v9339 = vadd.f32 %v9337, %v9338
      %v9340 = vrot.slane %v9339, 2
      %v9341 = vadd.f32 %v9339, %v9340
      %v9342 = vrot.slane %v9341, 1
      %v9343 = vadd.f32 %v9341, %v9342
      %v9344 = vsel %vm5444, %v8843, 0.0
      %v9345 = vsel %vm5444, %v8844, 0.0
      %v9346 = vadd.f32 %v9344, %v9345
      %v9347 = vrot.slane %v9346, 4
      %v9348 = vadd.f32 %v9346, %v9347
      %v9349 = vrot.slane %v9348, 2
      %v9350 = vadd.f32 %v9348, %v9349
      %v9351 = vrot.slane %v9350, 1
      %v9352 = vadd.f32 %v9350, %v9351
      %v9353 = vsel %vm5444, %v8845, 0.0
      %v9354 = vsel %vm5444, %v8846, 0.0
      %v9355 = vadd.f32 %v9353, %v9354
      %v9356 = vrot.slane %v9355, 4
      %v9357 = vadd.f32 %v9355, %v9356
      %v9358 = vrot.slane %v9357, 2
      %v9359 = vadd.f32 %v9357, %v9358
      %v9360 = vrot.slane %v9359, 1
      %v9361 = vadd.f32 %v9359, %v9360
      %v9362 = vsel %vm5444, %v8847, 0.0
      %v9363 = vsel %vm5444, %v8848, 0.0
      %v9364 = vadd.f32 %v9362, %v9363
      %v9365 = vrot.slane %v9364, 4
      %v9366 = vadd.f32 %v9364, %v9365
      %v9367 = vrot.slane %v9366, 2
      %v9368 = vadd.f32 %v9366, %v9367
      %v9369 = vrot.slane %v9368, 1
      %v9370 = vadd.f32 %v9368, %v9369
      %v9371 = vsel %vm5444, %v8849, 0.0
      %v9372 = vsel %vm5444, %v8850, 0.0
      %v9373 = vadd.f32 %v9371, %v9372
      %v9374 = vrot.slane %v9373, 4
      %v9375 = vadd.f32 %v9373, %v9374
      %v9376 = vrot.slane %v9375, 2
      %v9377 = vadd.f32 %v9375, %v9376
      %v9378 = vrot.slane %v9377, 1
      %v9379 = vadd.f32 %v9377, %v9378
      %v9380 = vsel %vm5444, %v8851, 0.0
      %v9381 = vsel %vm5444, %v8852, 0.0
      %v9382 = vadd.f32 %v9380, %v9381
      %v9383 = vrot.slane %v9382, 4
      %v9384 = vadd.f32 %v9382, %v9383
      %v9385 = vrot.slane %v9384, 2
      %v9386 = vadd.f32 %v9384, %v9385
      %v9387 = vrot.slane %v9386, 1
      %v9388 = vadd.f32 %v9386, %v9387
      %v9389 = vsel %vm5444, %v8853, 0.0
      %v9390 = vsel %vm5444, %v8854, 0.0
      %v9391 = vadd.f32 %v9389, %v9390
      %v9392 = vrot.slane %v9391, 4
      %v9393 = vadd.f32 %v9391, %v9392
      %v9394 = vrot.slane %v9393, 2
      %v9395 = vadd.f32 %v9393, %v9394
      %v9396 = vrot.slane %v9395, 1
      %v9397 = vadd.f32 %v9395, %v9396
      %v9398 = vsel %vm5444, %v8855, 0.0
      %v9399 = vsel %vm5444, %v8856, 0.0
      %v9400 = vadd.f32 %v9398, %v9399
      %v9401 = vrot.slane %v9400, 4
      %v9402 = vadd.f32 %v9400, %v9401
      %v9403 = vrot.slane %v9402, 2
      %v9404 = vadd.f32 %v9402, %v9403
      %v9405 = vrot.slane %v9404, 1
      %v9406 = vadd.f32 %v9404, %v9405
      %v9407 = vsel %vm5444, %v8857, 0.0
      %v9408 = vsel %vm5444, %v8858, 0.0
      %v9409 = vadd.f32 %v9407, %v9408
      %v9410 = vrot.slane %v9409, 4
      %v9411 = vadd.f32 %v9409, %v9410
      %v9412 = vrot.slane %v9411, 2
      %v9413 = vadd.f32 %v9411, %v9412
      %v9414 = vrot.slane %v9413, 1
      %v9415 = vadd.f32 %v9413, %v9414
      %v9416 = vsel %vm5444, %v8859, 0.0
      %v9417 = vsel %vm5444, %v8860, 0.0
      %v9418 = vadd.f32 %v9416, %v9417
      %v9419 = vrot.slane %v9418, 4
      %v9420 = vadd.f32 %v9418, %v9419
      %v9421 = vrot.slane %v9420, 2
      %v9422 = vadd.f32 %v9420, %v9421
      %v9423 = vrot.slane %v9422, 1
      %v9424 = vadd.f32 %v9422, %v9423
      %v9425 = vsel %vm5444, %v8861, 0.0
      %v9426 = vsel %vm5444, %v8862, 0.0
      %v9427 = vadd.f32 %v9425, %v9426
      %v9428 = vrot.slane %v9427, 4
      %v9429 = vadd.f32 %v9427, %v9428
      %v9430 = vrot.slane %v9429, 2
      %v9431 = vadd.f32 %v9429, %v9430
      %v9432 = vrot.slane %v9431, 1
      %v9433 = vadd.f32 %v9431, %v9432
      %v9434 = vsel %vm5444, %v8863, 0.0
      %v9435 = vsel %vm5444, %v8864, 0.0
      %v9436 = vadd.f32 %v9434, %v9435
      %v9437 = vrot.slane %v9436, 4
      %v9438 = vadd.f32 %v9436, %v9437
      %v9439 = vrot.slane %v9438, 2
      %v9440 = vadd.f32 %v9438, %v9439
      %v9441 = vrot.slane %v9440, 1
      %v9442 = vadd.f32 %v9440, %v9441
      %v9443 = vsel %vm5444, %v8865, 0.0
      %v9444 = vsel %vm5444, %v8866, 0.0
      %v9445 = vadd.f32 %v9443, %v9444
      %v9446 = vrot.slane %v9445, 4
      %v9447 = vadd.f32 %v9445, %v9446
      %v9448 = vrot.slane %v9447, 2
      %v9449 = vadd.f32 %v9447, %v9448
      %v9450 = vrot.slane %v9449, 1
      %v9451 = vadd.f32 %v9449, %v9450
      %v9452 = vsel %vm5444, %v8867, 0.0
      %v9453 = vsel %vm5444, %v8868, 0.0
      %v9454 = vadd.f32 %v9452, %v9453
      %v9455 = vrot.slane %v9454, 4
      %v9456 = vadd.f32 %v9454, %v9455
      %v9457 = vrot.slane %v9456, 2
      %v9458 = vadd.f32 %v9456, %v9457
      %v9459 = vrot.slane %v9458, 1
      %v9460 = vadd.f32 %v9458, %v9459
      %v9461 = vsel %vm5444, %v8869, 0.0
      %v9462 = vsel %vm5444, %v8870, 0.0
      %v9463 = vadd.f32 %v9461, %v9462
      %v9464 = vrot.slane %v9463, 4
      %v9465 = vadd.f32 %v9463, %v9464
      %v9466 = vrot.slane %v9465, 2
      %v9467 = vadd.f32 %v9465, %v9466
      %v9468 = vrot.slane %v9467, 1
      %v9469 = vadd.f32 %v9467, %v9468
      %v9470 = vsel %vm5444, %v8871, 0.0
      %v9471 = vsel %vm5444, %v8872, 0.0
      %v9472 = vadd.f32 %v9470, %v9471
      %v9473 = vrot.slane %v9472, 4
      %v9474 = vadd.f32 %v9472, %v9473
      %v9475 = vrot.slane %v9474, 2
      %v9476 = vadd.f32 %v9474, %v9475
      %v9477 = vrot.slane %v9476, 1
      %v9478 = vadd.f32 %v9476, %v9477
      %v9479 = vsel %vm5444, %v8873, 0.0
      %v9480 = vsel %vm5444, %v8874, 0.0
      %v9481 = vadd.f32 %v9479, %v9480
      %v9482 = vrot.slane %v9481, 4
      %v9483 = vadd.f32 %v9481, %v9482
      %v9484 = vrot.slane %v9483, 2
      %v9485 = vadd.f32 %v9483, %v9484
      %v9486 = vrot.slane %v9485, 1
      %v9487 = vadd.f32 %v9485, %v9486
      %v9488 = vsel %vm5444, %v8875, 0.0
      %v9489 = vsel %vm5444, %v8876, 0.0
      %v9490 = vadd.f32 %v9488, %v9489
      %v9491 = vrot.slane %v9490, 4
      %v9492 = vadd.f32 %v9490, %v9491
      %v9493 = vrot.slane %v9492, 2
      %v9494 = vadd.f32 %v9492, %v9493
      %v9495 = vrot.slane %v9494, 1
      %v9496 = vadd.f32 %v9494, %v9495
      %v9497 = vsel %vm5444, %v8877, 0.0
      %v9498 = vsel %vm5444, %v8878, 0.0
      %v9499 = vadd.f32 %v9497, %v9498
      %v9500 = vrot.slane %v9499, 4
      %v9501 = vadd.f32 %v9499, %v9500
      %v9502 = vrot.slane %v9501, 2
      %v9503 = vadd.f32 %v9501, %v9502
      %v9504 = vrot.slane %v9503, 1
      %v9505 = vadd.f32 %v9503, %v9504
      %v9506 = vsel %vm5444, %v8879, 0.0
      %v9507 = vsel %vm5444, %v8880, 0.0
      %v9508 = vadd.f32 %v9506, %v9507
      %v9509 = vrot.slane %v9508, 4
      %v9510 = vadd.f32 %v9508, %v9509
      %v9511 = vrot.slane %v9510, 2
      %v9512 = vadd.f32 %v9510, %v9511
      %v9513 = vrot.slane %v9512, 1
      %v9514 = vadd.f32 %v9512, %v9513
      %v9515 = vsel %vm5444, %v8881, 0.0
      %v9516 = vsel %vm5444, %v8882, 0.0
      %v9517 = vadd.f32 %v9515, %v9516
      %v9518 = vrot.slane %v9517, 4
      %v9519 = vadd.f32 %v9517, %v9518
      %v9520 = vrot.slane %v9519, 2
      %v9521 = vadd.f32 %v9519, %v9520
      %v9522 = vrot.slane %v9521, 1
      %v9523 = vadd.f32 %v9521, %v9522
      %v9524 = vsel %vm5444, %v8883, 0.0
      %v9525 = vsel %vm5444, %v8884, 0.0
      %v9526 = vadd.f32 %v9524, %v9525
      %v9527 = vrot.slane %v9526, 4
      %v9528 = vadd.f32 %v9526, %v9527
      %v9529 = vrot.slane %v9528, 2
      %v9530 = vadd.f32 %v9528, %v9529
      %v9531 = vrot.slane %v9530, 1
      %v9532 = vadd.f32 %v9530, %v9531
      %v9533 = vsel %vm5444, %v8885, 0.0
      %v9534 = vsel %vm5444, %v8886, 0.0
      %v9535 = vadd.f32 %v9533, %v9534
      %v9536 = vrot.slane %v9535, 4
      %v9537 = vadd.f32 %v9535, %v9536
      %v9538 = vrot.slane %v9537, 2
      %v9539 = vadd.f32 %v9537, %v9538
      %v9540 = vrot.slane %v9539, 1
      %v9541 = vadd.f32 %v9539, %v9540
      %v9542 = vsel %vm5444, %v8887, 0.0
      %v9543 = vsel %vm5444, %v8888, 0.0
      %v9544 = vadd.f32 %v9542, %v9543
      %v9545 = vrot.slane %v9544, 4
      %v9546 = vadd.f32 %v9544, %v9545
      %v9547 = vrot.slane %v9546, 2
      %v9548 = vadd.f32 %v9546, %v9547
      %v9549 = vrot.slane %v9548, 1
      %v9550 = vadd.f32 %v9548, %v9549
      %v9551 = vsel %vm5444, %v8889, 0.0
      %v9552 = vsel %vm5444, %v8890, 0.0
      %v9553 = vadd.f32 %v9551, %v9552
      %v9554 = vrot.slane %v9553, 4
      %v9555 = vadd.f32 %v9553, %v9554
      %v9556 = vrot.slane %v9555, 2
      %v9557 = vadd.f32 %v9555, %v9556
      %v9558 = vrot.slane %v9557, 1
      %v9559 = vadd.f32 %v9557, %v9558
      %v9560 = vsel %vm5444, %v8891, 0.0
      %v9561 = vsel %vm5444, %v8892, 0.0
      %v9562 = vadd.f32 %v9560, %v9561
      %v9563 = vrot.slane %v9562, 4
      %v9564 = vadd.f32 %v9562, %v9563
      %v9565 = vrot.slane %v9564, 2
      %v9566 = vadd.f32 %v9564, %v9565
      %v9567 = vrot.slane %v9566, 1
      %v9568 = vadd.f32 %v9566, %v9567
      %v9569 = vsel %vm5444, %v8893, 0.0
      %v9570 = vsel %vm5444, %v8894, 0.0
      %v9571 = vadd.f32 %v9569, %v9570
      %v9572 = vrot.slane %v9571, 4
      %v9573 = vadd.f32 %v9571, %v9572
      %v9574 = vrot.slane %v9573, 2
      %v9575 = vadd.f32 %v9573, %v9574
      %v9576 = vrot.slane %v9575, 1
      %v9577 = vadd.f32 %v9575, %v9576
      %v9578 = vsel %vm5444, %v8895, 0.0
      %v9579 = vsel %vm5444, %v8896, 0.0
      %v9580 = vadd.f32 %v9578, %v9579
      %v9581 = vrot.slane %v9580, 4
      %v9582 = vadd.f32 %v9580, %v9581
      %v9583 = vrot.slane %v9582, 2
      %v9584 = vadd.f32 %v9582, %v9583
      %v9585 = vrot.slane %v9584, 1
      %v9586 = vadd.f32 %v9584, %v9585
      %v9587 = vsel %vm5444, %v8897, 0.0
      %v9588 = vsel %vm5444, %v8898, 0.0
      %v9589 = vadd.f32 %v9587, %v9588
      %v9590 = vrot.slane %v9589, 4
      %v9591 = vadd.f32 %v9589, %v9590
      %v9592 = vrot.slane %v9591, 2
      %v9593 = vadd.f32 %v9591, %v9592
      %v9594 = vrot.slane %v9593, 1
      %v9595 = vadd.f32 %v9593, %v9594
      %v9596 = vsel %vm5444, %v8899, 0.0
      %v9597 = vsel %vm5444, %v8900, 0.0
      %v9598 = vadd.f32 %v9596, %v9597
      %v9599 = vrot.slane %v9598, 4
      %v9600 = vadd.f32 %v9598, %v9599
      %v9601 = vrot.slane %v9600, 2
      %v9602 = vadd.f32 %v9600, %v9601
      %v9603 = vrot.slane %v9602, 1
      %v9604 = vadd.f32 %v9602, %v9603
      %v9605 = vsel %vm5444, %v8901, 0.0
      %v9606 = vsel %vm5444, %v8902, 0.0
      %v9607 = vadd.f32 %v9605, %v9606
      %v9608 = vrot.slane %v9607, 4
      %v9609 = vadd.f32 %v9607, %v9608
      %v9610 = vrot.slane %v9609, 2
      %v9611 = vadd.f32 %v9609, %v9610
      %v9612 = vrot.slane %v9611, 1
      %v9613 = vadd.f32 %v9611, %v9612
      %v9614 = vsel %vm5444, %v8903, 0.0
      %v9615 = vsel %vm5444, %v8904, 0.0
      %v9616 = vadd.f32 %v9614, %v9615
      %v9617 = vrot.slane %v9616, 4
      %v9618 = vadd.f32 %v9616, %v9617
      %v9619 = vrot.slane %v9618, 2
      %v9620 = vadd.f32 %v9618, %v9619
      %v9621 = vrot.slane %v9620, 1
      %v9622 = vadd.f32 %v9620, %v9621
      %v9623 = vsel %vm5444, %v8905, 0.0
      %v9624 = vsel %vm5444, %v8906, 0.0
      %v9625 = vadd.f32 %v9623, %v9624
      %v9626 = vrot.slane %v9625, 4
      %v9627 = vadd.f32 %v9625, %v9626
      %v9628 = vrot.slane %v9627, 2
      %v9629 = vadd.f32 %v9627, %v9628
      %v9630 = vrot.slane %v9629, 1
      %v9631 = vadd.f32 %v9629, %v9630
      %v9632 = vsel %vm5444, %v8907, 0.0
      %v9633 = vsel %vm5444, %v8908, 0.0
      %v9634 = vadd.f32 %v9632, %v9633
      %v9635 = vrot.slane %v9634, 4
      %v9636 = vadd.f32 %v9634, %v9635
      %v9637 = vrot.slane %v9636, 2
      %v9638 = vadd.f32 %v9636, %v9637
      %v9639 = vrot.slane %v9638, 1
      %v9640 = vadd.f32 %v9638, %v9639
      %v9641 = vsel %vm5444, %v8909, 0.0
      %v9642 = vsel %vm5444, %v8910, 0.0
      %v9643 = vadd.f32 %v9641, %v9642
      %v9644 = vrot.slane %v9643, 4
      %v9645 = vadd.f32 %v9643, %v9644
      %v9646 = vrot.slane %v9645, 2
      %v9647 = vadd.f32 %v9645, %v9646
      %v9648 = vrot.slane %v9647, 1
      %v9649 = vadd.f32 %v9647, %v9648
      %v9650 = vsel %vm5444, %v8911, 0.0
      %v9651 = vsel %vm5444, %v8912, 0.0
      %v9652 = vadd.f32 %v9650, %v9651
      %v9653 = vrot.slane %v9652, 4
      %v9654 = vadd.f32 %v9652, %v9653
      %v9655 = vrot.slane %v9654, 2
      %v9656 = vadd.f32 %v9654, %v9655
      %v9657 = vrot.slane %v9656, 1
      %v9658 = vadd.f32 %v9656, %v9657
      %v9659 = vsel %vm5444, %v8913, 0.0
      %v9660 = vsel %vm5444, %v8914, 0.0
      %v9661 = vadd.f32 %v9659, %v9660
      %v9662 = vrot.slane %v9661, 4
      %v9663 = vadd.f32 %v9661, %v9662
      %v9664 = vrot.slane %v9663, 2
      %v9665 = vadd.f32 %v9663, %v9664
      %v9666 = vrot.slane %v9665, 1
      %v9667 = vadd.f32 %v9665, %v9666
      %v9668 = vsel %vm5444, %v8915, 0.0
      %v9669 = vsel %vm5444, %v8916, 0.0
      %v9670 = vadd.f32 %v9668, %v9669
      %v9671 = vrot.slane %v9670, 4
      %v9672 = vadd.f32 %v9670, %v9671
      %v9673 = vrot.slane %v9672, 2
      %v9674 = vadd.f32 %v9672, %v9673
      %v9675 = vrot.slane %v9674, 1
      %v9676 = vadd.f32 %v9674, %v9675
      %v9677 = vsel %vm5444, %v8917, 0.0
      %v9678 = vsel %vm5444, %v8918, 0.0
      %v9679 = vadd.f32 %v9677, %v9678
      %v9680 = vrot.slane %v9679, 4
      %v9681 = vadd.f32 %v9679, %v9680
      %v9682 = vrot.slane %v9681, 2
      %v9683 = vadd.f32 %v9681, %v9682
      %v9684 = vrot.slane %v9683, 1
      %v9685 = vadd.f32 %v9683, %v9684
      %v9686 = vsel %vm5444, %v8919, 0.0
      %v9687 = vsel %vm5444, %v8920, 0.0
      %v9688 = vadd.f32 %v9686, %v9687
      %v9689 = vrot.slane %v9688, 4
      %v9690 = vadd.f32 %v9688, %v9689
      %v9691 = vrot.slane %v9690, 2
      %v9692 = vadd.f32 %v9690, %v9691
      %v9693 = vrot.slane %v9692, 1
      %v9694 = vadd.f32 %v9692, %v9693
      %v9695 = vsel %vm5444, %v8921, 0.0
      %v9696 = vsel %vm5444, %v8922, 0.0
      %v9697 = vadd.f32 %v9695, %v9696
      %v9698 = vrot.slane %v9697, 4
      %v9699 = vadd.f32 %v9697, %v9698
      %v9700 = vrot.slane %v9699, 2
      %v9701 = vadd.f32 %v9699, %v9700
      %v9702 = vrot.slane %v9701, 1
      %v9703 = vadd.f32 %v9701, %v9702
      %v9704 = vsel %vm5444, %v8923, 0.0
      %v9705 = vsel %vm5444, %v8924, 0.0
      %v9706 = vadd.f32 %v9704, %v9705
      %v9707 = vrot.slane %v9706, 4
      %v9708 = vadd.f32 %v9706, %v9707
      %v9709 = vrot.slane %v9708, 2
      %v9710 = vadd.f32 %v9708, %v9709
      %v9711 = vrot.slane %v9710, 1
      %v9712 = vadd.f32 %v9710, %v9711
      %v9713 = vsel %vm5444, %v8925, 0.0
      %v9714 = vsel %vm5444, %v8926, 0.0
      %v9715 = vadd.f32 %v9713, %v9714
      %v9716 = vrot.slane %v9715, 4
      %v9717 = vadd.f32 %v9715, %v9716
      %v9718 = vrot.slane %v9717, 2
      %v9719 = vadd.f32 %v9717, %v9718
      %v9720 = vrot.slane %v9719, 1
      %v9721 = vadd.f32 %v9719, %v9720
      %v9722 = vsel %vm5444, %v8927, 0.0
      %v9723 = vsel %vm5444, %v8928, 0.0
      %v9724 = vadd.f32 %v9722, %v9723
      %v9725 = vrot.slane %v9724, 4
      %v9726 = vadd.f32 %v9724, %v9725
      %v9727 = vrot.slane %v9726, 2
      %v9728 = vadd.f32 %v9726, %v9727
      %v9729 = vrot.slane %v9728, 1
      %v9730 = vadd.f32 %v9728, %v9729
      %v9731 = vsel %vm5444, %v8929, 0.0
      %v9732 = vsel %vm5444, %v8930, 0.0
      %v9733 = vadd.f32 %v9731, %v9732
      %v9734 = vrot.slane %v9733, 4
      %v9735 = vadd.f32 %v9733, %v9734
      %v9736 = vrot.slane %v9735, 2
      %v9737 = vadd.f32 %v9735, %v9736
      %v9738 = vrot.slane %v9737, 1
      %v9739 = vadd.f32 %v9737, %v9738
      %v9740 = vsel %vm5444, %v8931, 0.0
      %v9741 = vsel %vm5444, %v8932, 0.0
      %v9742 = vadd.f32 %v9740, %v9741
      %v9743 = vrot.slane %v9742, 4
      %v9744 = vadd.f32 %v9742, %v9743
      %v9745 = vrot.slane %v9744, 2
      %v9746 = vadd.f32 %v9744, %v9745
      %v9747 = vrot.slane %v9746, 1
      %v9748 = vadd.f32 %v9746, %v9747
      %v9749 = vsel %vm5444, %v8933, 0.0
      %v9750 = vsel %vm5444, %v8934, 0.0
      %v9751 = vadd.f32 %v9749, %v9750
      %v9752 = vrot.slane %v9751, 4
      %v9753 = vadd.f32 %v9751, %v9752
      %v9754 = vrot.slane %v9753, 2
      %v9755 = vadd.f32 %v9753, %v9754
      %v9756 = vrot.slane %v9755, 1
      %v9757 = vadd.f32 %v9755, %v9756
      %v9758 = vsel %vm5444, %v8935, 0.0
      %v9759 = vsel %vm5444, %v8936, 0.0
      %v9760 = vadd.f32 %v9758, %v9759
      %v9761 = vrot.slane %v9760, 4
      %v9762 = vadd.f32 %v9760, %v9761
      %v9763 = vrot.slane %v9762, 2
      %v9764 = vadd.f32 %v9762, %v9763
      %v9765 = vrot.slane %v9764, 1
      %v9766 = vadd.f32 %v9764, %v9765
      %v9767 = vsel %vm5444, %v8937, 0.0
      %v9768 = vsel %vm5444, %v8938, 0.0
      %v9769 = vadd.f32 %v9767, %v9768
      %v9770 = vrot.slane %v9769, 4
      %v9771 = vadd.f32 %v9769, %v9770
      %v9772 = vrot.slane %v9771, 2
      %v9773 = vadd.f32 %v9771, %v9772
      %v9774 = vrot.slane %v9773, 1
      %v9775 = vadd.f32 %v9773, %v9774
      %v9776 = vsel %vm5444, %v8939, 0.0
      %v9777 = vsel %vm5444, %v8940, 0.0
      %v9778 = vadd.f32 %v9776, %v9777
      %v9779 = vrot.slane %v9778, 4
      %v9780 = vadd.f32 %v9778, %v9779
      %v9781 = vrot.slane %v9780, 2
      %v9782 = vadd.f32 %v9780, %v9781
      %v9783 = vrot.slane %v9782, 1
      %v9784 = vadd.f32 %v9782, %v9783
      %v9785 = vsel %vm5444, %v8941, 0.0
      %v9786 = vsel %vm5444, %v8942, 0.0
      %v9787 = vadd.f32 %v9785, %v9786
      %v9788 = vrot.slane %v9787, 4
      %v9789 = vadd.f32 %v9787, %v9788
      %v9790 = vrot.slane %v9789, 2
      %v9791 = vadd.f32 %v9789, %v9790
      %v9792 = vrot.slane %v9791, 1
      %v9793 = vadd.f32 %v9791, %v9792
      %v9794 = vsel %vm5444, %v8943, 0.0
      %v9795 = vsel %vm5444, %v8944, 0.0
      %v9796 = vadd.f32 %v9794, %v9795
      %v9797 = vrot.slane %v9796, 4
      %v9798 = vadd.f32 %v9796, %v9797
      %v9799 = vrot.slane %v9798, 2
      %v9800 = vadd.f32 %v9798, %v9799
      %v9801 = vrot.slane %v9800, 1
      %v9802 = vadd.f32 %v9800, %v9801
      %v9803 = vsel %vm5444, %v8945, 0.0
      %v9804 = vsel %vm5444, %v8946, 0.0
      %v9805 = vadd.f32 %v9803, %v9804
      %v9806 = vrot.slane %v9805, 4
      %v9807 = vadd.f32 %v9805, %v9806
      %v9808 = vrot.slane %v9807, 2
      %v9809 = vadd.f32 %v9807, %v9808
      %v9810 = vrot.slane %v9809, 1
      %v9811 = vadd.f32 %v9809, %v9810
      %v9812 = vsel %vm5444, %v8947, 0.0
      %v9813 = vsel %vm5444, %v8948, 0.0
      %v9814 = vadd.f32 %v9812, %v9813
      %v9815 = vrot.slane %v9814, 4
      %v9816 = vadd.f32 %v9814, %v9815
      %v9817 = vrot.slane %v9816, 2
      %v9818 = vadd.f32 %v9816, %v9817
      %v9819 = vrot.slane %v9818, 1
      %v9820 = vadd.f32 %v9818, %v9819
      %v9821 = vsel %vm5444, %v8949, 0.0
      %v9822 = vsel %vm5444, %v8950, 0.0
      %v9823 = vadd.f32 %v9821, %v9822
      %v9824 = vrot.slane %v9823, 4
      %v9825 = vadd.f32 %v9823, %v9824
      %v9826 = vrot.slane %v9825, 2
      %v9827 = vadd.f32 %v9825, %v9826
      %v9828 = vrot.slane %v9827, 1
      %v9829 = vadd.f32 %v9827, %v9828
      %v9830 = vsel %vm5444, %v8951, 0.0
      %v9831 = vsel %vm5444, %v8952, 0.0
      %v9832 = vadd.f32 %v9830, %v9831
      %v9833 = vrot.slane %v9832, 4
      %v9834 = vadd.f32 %v9832, %v9833
      %v9835 = vrot.slane %v9834, 2
      %v9836 = vadd.f32 %v9834, %v9835
      %v9837 = vrot.slane %v9836, 1
      %v9838 = vadd.f32 %v9836, %v9837
      %v9839 = vsel %vm5444, %v8953, 0.0
      %v9840 = vsel %vm5444, %v8954, 0.0
      %v9841 = vadd.f32 %v9839, %v9840
      %v9842 = vrot.slane %v9841, 4
      %v9843 = vadd.f32 %v9841, %v9842
      %v9844 = vrot.slane %v9843, 2
      %v9845 = vadd.f32 %v9843, %v9844
      %v9846 = vrot.slane %v9845, 1
      %v9847 = vadd.f32 %v9845, %v9846
      %v9848 = vsel %vm5444, %v8955, 0.0
      %v9849 = vsel %vm5444, %v8956, 0.0
      %v9850 = vadd.f32 %v9848, %v9849
      %v9851 = vrot.slane %v9850, 4
      %v9852 = vadd.f32 %v9850, %v9851
      %v9853 = vrot.slane %v9852, 2
      %v9854 = vadd.f32 %v9852, %v9853
      %v9855 = vrot.slane %v9854, 1
      %v9856 = vadd.f32 %v9854, %v9855
      %v9857 = vsel %vm5444, %v8957, 0.0
      %v9858 = vsel %vm5444, %v8958, 0.0
      %v9859 = vadd.f32 %v9857, %v9858
      %v9860 = vrot.slane %v9859, 4
      %v9861 = vadd.f32 %v9859, %v9860
      %v9862 = vrot.slane %v9861, 2
      %v9863 = vadd.f32 %v9861, %v9862
      %v9864 = vrot.slane %v9863, 1
      %v9865 = vadd.f32 %v9863, %v9864
      %v9866 = vsel %vm5444, %v8959, 0.0
      %v9867 = vsel %vm5444, %v8960, 0.0
      %v9868 = vadd.f32 %v9866, %v9867
      %v9869 = vrot.slane %v9868, 4
      %v9870 = vadd.f32 %v9868, %v9869
      %v9871 = vrot.slane %v9870, 2
      %v9872 = vadd.f32 %v9870, %v9871
      %v9873 = vrot.slane %v9872, 1
      %v9874 = vadd.f32 %v9872, %v9873
      %v9875 = vsel %vm5444, %v8961, 0.0
      %v9876 = vsel %vm5444, %v8962, 0.0
      %v9877 = vadd.f32 %v9875, %v9876
      %v9878 = vrot.slane %v9877, 4
      %v9879 = vadd.f32 %v9877, %v9878
      %v9880 = vrot.slane %v9879, 2
      %v9881 = vadd.f32 %v9879, %v9880
      %v9882 = vrot.slane %v9881, 1
      %v9883 = vadd.f32 %v9881, %v9882
      %v9884 = vsel %vm5444, %v8963, 0.0
      %v9885 = vsel %vm5444, %v8964, 0.0
      %v9886 = vadd.f32 %v9884, %v9885
      %v9887 = vrot.slane %v9886, 4
      %v9888 = vadd.f32 %v9886, %v9887
      %v9889 = vrot.slane %v9888, 2
      %v9890 = vadd.f32 %v9888, %v9889
      %v9891 = vrot.slane %v9890, 1
      %v9892 = vadd.f32 %v9890, %v9891
      %v9893 = vsel %vm5444, %v8965, 0.0
      %v9894 = vsel %vm5444, %v8966, 0.0
      %v9895 = vadd.f32 %v9893, %v9894
      %v9896 = vrot.slane %v9895, 4
      %v9897 = vadd.f32 %v9895, %v9896
      %v9898 = vrot.slane %v9897, 2
      %v9899 = vadd.f32 %v9897, %v9898
      %v9900 = vrot.slane %v9899, 1
      %v9901 = vadd.f32 %v9899, %v9900
      %v9902 = vsel %vm5444, %v8967, 0.0
      %v9903 = vsel %vm5444, %v8968, 0.0
      %v9904 = vadd.f32 %v9902, %v9903
      %v9905 = vrot.slane %v9904, 4
      %v9906 = vadd.f32 %v9904, %v9905
      %v9907 = vrot.slane %v9906, 2
      %v9908 = vadd.f32 %v9906, %v9907
      %v9909 = vrot.slane %v9908, 1
      %v9910 = vadd.f32 %v9908, %v9909
      %v9911 = vsel %vm5444, %v8969, 0.0
      %v9912 = vsel %vm5444, %v8970, 0.0
      %v9913 = vadd.f32 %v9911, %v9912
      %v9914 = vrot.slane %v9913, 4
      %v9915 = vadd.f32 %v9913, %v9914
      %v9916 = vrot.slane %v9915, 2
      %v9917 = vadd.f32 %v9915, %v9916
      %v9918 = vrot.slane %v9917, 1
      %v9919 = vadd.f32 %v9917, %v9918
      %v9920 = vsel %vm5444, %v8971, 0.0
      %v9921 = vsel %vm5444, %v8972, 0.0
      %v9922 = vadd.f32 %v9920, %v9921
      %v9923 = vrot.slane %v9922, 4
      %v9924 = vadd.f32 %v9922, %v9923
      %v9925 = vrot.slane %v9924, 2
      %v9926 = vadd.f32 %v9924, %v9925
      %v9927 = vrot.slane %v9926, 1
      %v9928 = vadd.f32 %v9926, %v9927
      %v9929 = vsel %vm5444, %v8973, 0.0
      %v9930 = vsel %vm5444, %v8974, 0.0
      %v9931 = vadd.f32 %v9929, %v9930
      %v9932 = vrot.slane %v9931, 4
      %v9933 = vadd.f32 %v9931, %v9932
      %v9934 = vrot.slane %v9933, 2
      %v9935 = vadd.f32 %v9933, %v9934
      %v9936 = vrot.slane %v9935, 1
      %v9937 = vadd.f32 %v9935, %v9936
      %v9938 = vsel %vm5444, %v8975, 0.0
      %v9939 = vsel %vm5444, %v8976, 0.0
      %v9940 = vadd.f32 %v9938, %v9939
      %v9941 = vrot.slane %v9940, 4
      %v9942 = vadd.f32 %v9940, %v9941
      %v9943 = vrot.slane %v9942, 2
      %v9944 = vadd.f32 %v9942, %v9943
      %v9945 = vrot.slane %v9944, 1
      %v9946 = vadd.f32 %v9944, %v9945
      %v9947 = vsel %vm5444, %v8977, 0.0
      %v9948 = vsel %vm5444, %v8978, 0.0
      %v9949 = vadd.f32 %v9947, %v9948
      %v9950 = vrot.slane %v9949, 4
      %v9951 = vadd.f32 %v9949, %v9950
      %v9952 = vrot.slane %v9951, 2
      %v9953 = vadd.f32 %v9951, %v9952
      %v9954 = vrot.slane %v9953, 1
      %v9955 = vadd.f32 %v9953, %v9954
      %v9956 = vsel %vm5444, %v8979, 0.0
      %v9957 = vsel %vm5444, %v8980, 0.0
      %v9958 = vadd.f32 %v9956, %v9957
      %v9959 = vrot.slane %v9958, 4
      %v9960 = vadd.f32 %v9958, %v9959
      %v9961 = vrot.slane %v9960, 2
      %v9962 = vadd.f32 %v9960, %v9961
      %v9963 = vrot.slane %v9962, 1
      %v9964 = vadd.f32 %v9962, %v9963
      %v9965 = vsel %vm5444, %v8981, 0.0
      %v9966 = vsel %vm5444, %v8982, 0.0
      %v9967 = vadd.f32 %v9965, %v9966
      %v9968 = vrot.slane %v9967, 4
      %v9969 = vadd.f32 %v9967, %v9968
      %v9970 = vrot.slane %v9969, 2
      %v9971 = vadd.f32 %v9969, %v9970
      %v9972 = vrot.slane %v9971, 1
      %v9973 = vadd.f32 %v9971, %v9972
      %v9974 = vsel %vm5444, %v8983, 0.0
      %v9975 = vsel %vm5444, %v8984, 0.0
      %v9976 = vadd.f32 %v9974, %v9975
      %v9977 = vrot.slane %v9976, 4
      %v9978 = vadd.f32 %v9976, %v9977
      %v9979 = vrot.slane %v9978, 2
      %v9980 = vadd.f32 %v9978, %v9979
      %v9981 = vrot.slane %v9980, 1
      %v9982 = vadd.f32 %v9980, %v9981
      %v9983 = vsel %vm5444, %v8985, 0.0
      %v9984 = vsel %vm5444, %v8986, 0.0
      %v9985 = vadd.f32 %v9983, %v9984
      %v9986 = vrot.slane %v9985, 4
      %v9987 = vadd.f32 %v9985, %v9986
      %v9988 = vrot.slane %v9987, 2
      %v9989 = vadd.f32 %v9987, %v9988
      %v9990 = vrot.slane %v9989, 1
      %v9991 = vadd.f32 %v9989, %v9990
      %v9992 = vsel %vm5444, %v8987, 0.0
      %v9993 = vsel %vm5444, %v8988, 0.0
      %v9994 = vadd.f32 %v9992, %v9993
      %v9995 = vrot.slane %v9994, 4
      %v9996 = vadd.f32 %v9994, %v9995
      %v9997 = vrot.slane %v9996, 2
      %v9998 = vadd.f32 %v9996, %v9997
      %v9999 = vrot.slane %v9998, 1
      %v10000 = vadd.f32 %v9998, %v9999
      %v10001 = vsel %vm5444, %v8989, 0.0
      %v10002 = vsel %vm5444, %v8990, 0.0
      %v10003 = vadd.f32 %v10001, %v10002
      %v10004 = vrot.slane %v10003, 4
      %v10005 = vadd.f32 %v10003, %v10004
      %v10006 = vrot.slane %v10005, 2
      %v10007 = vadd.f32 %v10005, %v10006
      %v10008 = vrot.slane %v10007, 1
      %v10009 = vadd.f32 %v10007, %v10008
      %v10010 = vsel %vm5444, %v8991, 0.0
      %v10011 = vsel %vm5444, %v8992, 0.0
      %v10012 = vadd.f32 %v10010, %v10011
      %v10013 = vrot.slane %v10012, 4
      %v10014 = vadd.f32 %v10012, %v10013
      %v10015 = vrot.slane %v10014, 2
      %v10016 = vadd.f32 %v10014, %v10015
      %v10017 = vrot.slane %v10016, 1
      %v10018 = vadd.f32 %v10016, %v10017
      %v10019 = vsel %vm5444, %v8993, 0.0
      %v10020 = vsel %vm5444, %v8994, 0.0
      %v10021 = vadd.f32 %v10019, %v10020
      %v10022 = vrot.slane %v10021, 4
      %v10023 = vadd.f32 %v10021, %v10022
      %v10024 = vrot.slane %v10023, 2
      %v10025 = vadd.f32 %v10023, %v10024
      %v10026 = vrot.slane %v10025, 1
      %v10027 = vadd.f32 %v10025, %v10026
      %v10028 = vsel %vm5444, %v8995, 0.0
      %v10029 = vsel %vm5444, %v8996, 0.0
      %v10030 = vadd.f32 %v10028, %v10029
      %v10031 = vrot.slane %v10030, 4
      %v10032 = vadd.f32 %v10030, %v10031
      %v10033 = vrot.slane %v10032, 2
      %v10034 = vadd.f32 %v10032, %v10033
      %v10035 = vrot.slane %v10034, 1
      %v10036 = vadd.f32 %v10034, %v10035
      %v10037 = vsel %vm5444, %v8997, 0.0
      %v10038 = vsel %vm5444, %v8998, 0.0
      %v10039 = vadd.f32 %v10037, %v10038
      %v10040 = vrot.slane %v10039, 4
      %v10041 = vadd.f32 %v10039, %v10040
      %v10042 = vrot.slane %v10041, 2
      %v10043 = vadd.f32 %v10041, %v10042
      %v10044 = vrot.slane %v10043, 1
      %v10045 = vadd.f32 %v10043, %v10044
      %v10046 = vsel %vm5444, %v8999, 0.0
      %v10047 = vsel %vm5444, %v9000, 0.0
      %v10048 = vadd.f32 %v10046, %v10047
      %v10049 = vrot.slane %v10048, 4
      %v10050 = vadd.f32 %v10048, %v10049
      %v10051 = vrot.slane %v10050, 2
      %v10052 = vadd.f32 %v10050, %v10051
      %v10053 = vrot.slane %v10052, 1
      %v10054 = vadd.f32 %v10052, %v10053
      %v10055 = vsel %vm5444, %v9001, 0.0
      %v10056 = vsel %vm5444, %v9002, 0.0
      %v10057 = vadd.f32 %v10055, %v10056
      %v10058 = vrot.slane %v10057, 4
      %v10059 = vadd.f32 %v10057, %v10058
      %v10060 = vrot.slane %v10059, 2
      %v10061 = vadd.f32 %v10059, %v10060
      %v10062 = vrot.slane %v10061, 1
      %v10063 = vadd.f32 %v10061, %v10062
      %v10064 = vsel %vm5444, %v9003, 0.0
      %v10065 = vsel %vm5444, %v9004, 0.0
      %v10066 = vadd.f32 %v10064, %v10065
      %v10067 = vrot.slane %v10066, 4
      %v10068 = vadd.f32 %v10066, %v10067
      %v10069 = vrot.slane %v10068, 2
      %v10070 = vadd.f32 %v10068, %v10069
      %v10071 = vrot.slane %v10070, 1
      %v10072 = vadd.f32 %v10070, %v10071
      %v10073 = vsel %vm5444, %v9005, 0.0
      %v10074 = vsel %vm5444, %v9006, 0.0
      %v10075 = vadd.f32 %v10073, %v10074
      %v10076 = vrot.slane %v10075, 4
      %v10077 = vadd.f32 %v10075, %v10076
      %v10078 = vrot.slane %v10077, 2
      %v10079 = vadd.f32 %v10077, %v10078
      %v10080 = vrot.slane %v10079, 1
      %v10081 = vadd.f32 %v10079, %v10080
      %v10082 = vsel %vm5444, %v9007, 0.0
      %v10083 = vsel %vm5444, %v9008, 0.0
      %v10084 = vadd.f32 %v10082, %v10083
      %v10085 = vrot.slane %v10084, 4
      %v10086 = vadd.f32 %v10084, %v10085
      %v10087 = vrot.slane %v10086, 2
      %v10088 = vadd.f32 %v10086, %v10087
      %v10089 = vrot.slane %v10088, 1
      %v10090 = vadd.f32 %v10088, %v10089
      %v10091 = vsel %vm5444, %v9009, 0.0
      %v10092 = vsel %vm5444, %v9010, 0.0
      %v10093 = vadd.f32 %v10091, %v10092
      %v10094 = vrot.slane %v10093, 4
      %v10095 = vadd.f32 %v10093, %v10094
      %v10096 = vrot.slane %v10095, 2
      %v10097 = vadd.f32 %v10095, %v10096
      %v10098 = vrot.slane %v10097, 1
      %v10099 = vadd.f32 %v10097, %v10098
      %v10100 = vsel %vm5444, %v9011, 0.0
      %v10101 = vsel %vm5444, %v9012, 0.0
      %v10102 = vadd.f32 %v10100, %v10101
      %v10103 = vrot.slane %v10102, 4
      %v10104 = vadd.f32 %v10102, %v10103
      %v10105 = vrot.slane %v10104, 2
      %v10106 = vadd.f32 %v10104, %v10105
      %v10107 = vrot.slane %v10106, 1
      %v10108 = vadd.f32 %v10106, %v10107
      %v10109 = vsel %vm5444, %v9013, 0.0
      %v10110 = vsel %vm5444, %v9014, 0.0
      %v10111 = vadd.f32 %v10109, %v10110
      %v10112 = vrot.slane %v10111, 4
      %v10113 = vadd.f32 %v10111, %v10112
      %v10114 = vrot.slane %v10113, 2
      %v10115 = vadd.f32 %v10113, %v10114
      %v10116 = vrot.slane %v10115, 1
      %v10117 = vadd.f32 %v10115, %v10116
      %v10118 = vsel %vm5444, %v9015, 0.0
      %v10119 = vsel %vm5444, %v9016, 0.0
      %v10120 = vadd.f32 %v10118, %v10119
      %v10121 = vrot.slane %v10120, 4
      %v10122 = vadd.f32 %v10120, %v10121
      %v10123 = vrot.slane %v10122, 2
      %v10124 = vadd.f32 %v10122, %v10123
      %v10125 = vrot.slane %v10124, 1
      %v10126 = vadd.f32 %v10124, %v10125
      %v10127 = vsel %vm5444, %v9017, 0.0
      %v10128 = vsel %vm5444, %v9018, 0.0
      %v10129 = vadd.f32 %v10127, %v10128
      %v10130 = vrot.slane %v10129, 4
      %v10131 = vadd.f32 %v10129, %v10130
      %v10132 = vrot.slane %v10131, 2
      %v10133 = vadd.f32 %v10131, %v10132
      %v10134 = vrot.slane %v10133, 1
      %v10135 = vadd.f32 %v10133, %v10134
      %v10136 = vsel %vm5444, %v9019, 0.0
      %v10137 = vsel %vm5444, %v9020, 0.0
      %v10138 = vadd.f32 %v10136, %v10137
      %v10139 = vrot.slane %v10138, 4
      %v10140 = vadd.f32 %v10138, %v10139
      %v10141 = vrot.slane %v10140, 2
      %v10142 = vadd.f32 %v10140, %v10141
      %v10143 = vrot.slane %v10142, 1
      %v10144 = vadd.f32 %v10142, %v10143
      %v10145 = vsel %vm5444, %v9021, 0.0
      %v10146 = vsel %vm5444, %v9022, 0.0
      %v10147 = vadd.f32 %v10145, %v10146
      %v10148 = vrot.slane %v10147, 4
      %v10149 = vadd.f32 %v10147, %v10148
      %v10150 = vrot.slane %v10149, 2
      %v10151 = vadd.f32 %v10149, %v10150
      %v10152 = vrot.slane %v10151, 1
      %v10153 = vadd.f32 %v10151, %v10152
      %v10154 = vsel %vm5444, %v9023, 0.0
      %v10155 = vsel %vm5444, %v9024, 0.0
      %v10156 = vadd.f32 %v10154, %v10155
      %v10157 = vrot.slane %v10156, 4
      %v10158 = vadd.f32 %v10156, %v10157
      %v10159 = vrot.slane %v10158, 2
      %v10160 = vadd.f32 %v10158, %v10159
      %v10161 = vrot.slane %v10160, 1
      %v10162 = vadd.f32 %v10160, %v10161
      %v10163 = vsel %vm5444, %v9025, 0.0
      %v10164 = vsel %vm5444, %v9026, 0.0
      %v10165 = vadd.f32 %v10163, %v10164
      %v10166 = vrot.slane %v10165, 4
      %v10167 = vadd.f32 %v10165, %v10166
      %v10168 = vrot.slane %v10167, 2
      %v10169 = vadd.f32 %v10167, %v10168
      %v10170 = vrot.slane %v10169, 1
      %v10171 = vadd.f32 %v10169, %v10170
      %v10172 = vsel %vm5444, %v9027, 0.0
      %v10173 = vsel %vm5444, %v9028, 0.0
      %v10174 = vadd.f32 %v10172, %v10173
      %v10175 = vrot.slane %v10174, 4
      %v10176 = vadd.f32 %v10174, %v10175
      %v10177 = vrot.slane %v10176, 2
      %v10178 = vadd.f32 %v10176, %v10177
      %v10179 = vrot.slane %v10178, 1
      %v10180 = vadd.f32 %v10178, %v10179
      %v10181 = vrcp.pop %v7373
      %v10182 = vmul.f32 %v7373, %v10181
      %v10183 = vsub.f32 1.0, %v10182
      %v10184 = vmul.f32 %v10181, %v10183
      %v10185 = vadd.f32 %v10181, %v10184
      %vm10186 = vweird.f32 %v7373
      %vm10187 = vweird.f32 %v10181
      %vm10188 = vmor %vm10186, %vm10187
      %v10189 = vsel %vm10188, %v10181, %v10185
      %v10190 = vand.u32 2147483647, %v7373
      %vm10191 = vcmp.eq.f32.partialorder %v10190, 8.507059e+37
      %v10192 = vand.u32 %v7373, 2147483648
      %v10193 = vor.u32 1.1754944e-38, %v10192
      %v10194 = vsel %vm10191, %v10193, %v10189
      %v10195 = vmul.f32 %v9037, %v10194
      %v10196 = vrcp.pop %v7382
      %v10197 = vmul.f32 %v7382, %v10196
      %v10198 = vsub.f32 1.0, %v10197
      %v10199 = vmul.f32 %v10196, %v10198
      %v10200 = vadd.f32 %v10196, %v10199
      %vm10201 = vweird.f32 %v7382
      %vm10202 = vweird.f32 %v10196
      %vm10203 = vmor %vm10201, %vm10202
      %v10204 = vsel %vm10203, %v10196, %v10200
      %v10205 = vand.u32 2147483647, %v7382
      %vm10206 = vcmp.eq.f32.partialorder %v10205, 8.507059e+37
      %v10207 = vand.u32 %v7382, 2147483648
      %v10208 = vor.u32 1.1754944e-38, %v10207
      %v10209 = vsel %vm10206, %v10208, %v10204
      %v10210 = vmul.f32 %v9046, %v10209
      %v10211 = vrcp.pop %v7391
      %v10212 = vmul.f32 %v7391, %v10211
      %v10213 = vsub.f32 1.0, %v10212
      %v10214 = vmul.f32 %v10211, %v10213
      %v10215 = vadd.f32 %v10211, %v10214
      %vm10216 = vweird.f32 %v7391
      %vm10217 = vweird.f32 %v10211
      %vm10218 = vmor %vm10216, %vm10217
      %v10219 = vsel %vm10218, %v10211, %v10215
      %v10220 = vand.u32 2147483647, %v7391
      %vm10221 = vcmp.eq.f32.partialorder %v10220, 8.507059e+37
      %v10222 = vand.u32 %v7391, 2147483648
      %v10223 = vor.u32 1.1754944e-38, %v10222
      %v10224 = vsel %vm10221, %v10223, %v10219
      %v10225 = vmul.f32 %v9055, %v10224
      %v10226 = vrcp.pop %v7400
      %v10227 = vmul.f32 %v7400, %v10226
      %v10228 = vsub.f32 1.0, %v10227
      %v10229 = vmul.f32 %v10226, %v10228
      %v10230 = vadd.f32 %v10226, %v10229
      %vm10231 = vweird.f32 %v7400
      %vm10232 = vweird.f32 %v10226
      %vm10233 = vmor %vm10231, %vm10232
      %v10234 = vsel %vm10233, %v10226, %v10230
      %v10235 = vand.u32 2147483647, %v7400
      %vm10236 = vcmp.eq.f32.partialorder %v10235, 8.507059e+37
      %v10237 = vand.u32 %v7400, 2147483648
      %v10238 = vor.u32 1.1754944e-38, %v10237
      %v10239 = vsel %vm10236, %v10238, %v10234
      %v10240 = vmul.f32 %v9064, %v10239
      %v10241 = vrcp.pop %v7409
      %v10242 = vmul.f32 %v7409, %v10241
      %v10243 = vsub.f32 1.0, %v10242
      %v10244 = vmul.f32 %v10241, %v10243
      %v10245 = vadd.f32 %v10241, %v10244
      %vm10246 = vweird.f32 %v7409
      %vm10247 = vweird.f32 %v10241
      %vm10248 = vmor %vm10246, %vm10247
      %v10249 = vsel %vm10248, %v10241, %v10245
      %v10250 = vand.u32 2147483647, %v7409
      %vm10251 = vcmp.eq.f32.partialorder %v10250, 8.507059e+37
      %v10252 = vand.u32 %v7409, 2147483648
      %v10253 = vor.u32 1.1754944e-38, %v10252
      %v10254 = vsel %vm10251, %v10253, %v10249
      %v10255 = vmul.f32 %v9073, %v10254
      %v10256 = vrcp.pop %v7418
      %v10257 = vmul.f32 %v7418, %v10256
      %v10258 = vsub.f32 1.0, %v10257
      %v10259 = vmul.f32 %v10256, %v10258
      %v10260 = vadd.f32 %v10256, %v10259
      %vm10261 = vweird.f32 %v7418
      %vm10262 = vweird.f32 %v10256
      %vm10263 = vmor %vm10261, %vm10262
      %v10264 = vsel %vm10263, %v10256, %v10260
      %v10265 = vand.u32 2147483647, %v7418
      %vm10266 = vcmp.eq.f32.partialorder %v10265, 8.507059e+37
      %v10267 = vand.u32 %v7418, 2147483648
      %v10268 = vor.u32 1.1754944e-38, %v10267
      %v10269 = vsel %vm10266, %v10268, %v10264
      %v10270 = vmul.f32 %v9082, %v10269
      %v10271 = vrcp.pop %v7427
      %v10272 = vmul.f32 %v7427, %v10271
      %v10273 = vsub.f32 1.0, %v10272
      %v10274 = vmul.f32 %v10271, %v10273
      %v10275 = vadd.f32 %v10271, %v10274
      %vm10276 = vweird.f32 %v7427
      %vm10277 = vweird.f32 %v10271
      %vm10278 = vmor %vm10276, %vm10277
      %v10279 = vsel %vm10278, %v10271, %v10275
      %v10280 = vand.u32 2147483647, %v7427
      %vm10281 = vcmp.eq.f32.partialorder %v10280, 8.507059e+37
      %v10282 = vand.u32 %v7427, 2147483648
      %v10283 = vor.u32 1.1754944e-38, %v10282
      %v10284 = vsel %vm10281, %v10283, %v10279
      %v10285 = vmul.f32 %v9091, %v10284
      %v10286 = vrcp.pop %v7436
      %v10287 = vmul.f32 %v7436, %v10286
      %v10288 = vsub.f32 1.0, %v10287
      %v10289 = vmul.f32 %v10286, %v10288
      %v10290 = vadd.f32 %v10286, %v10289
      %vm10291 = vweird.f32 %v7436
      %vm10292 = vweird.f32 %v10286
      %vm10293 = vmor %vm10291, %vm10292
      %v10294 = vsel %vm10293, %v10286, %v10290
      %v10295 = vand.u32 2147483647, %v7436
      %vm10296 = vcmp.eq.f32.partialorder %v10295, 8.507059e+37
      %v10297 = vand.u32 %v7436, 2147483648
      %v10298 = vor.u32 1.1754944e-38, %v10297
      %v10299 = vsel %vm10296, %v10298, %v10294
      %v10300 = vmul.f32 %v9100, %v10299
      %v10301 = vrcp.pop %v7445
      %v10302 = vmul.f32 %v7445, %v10301
      %v10303 = vsub.f32 1.0, %v10302
      %v10304 = vmul.f32 %v10301, %v10303
      %v10305 = vadd.f32 %v10301, %v10304
      %vm10306 = vweird.f32 %v7445
      %vm10307 = vweird.f32 %v10301
      %vm10308 = vmor %vm10306, %vm10307
      %v10309 = vsel %vm10308, %v10301, %v10305
      %v10310 = vand.u32 2147483647, %v7445
      %vm10311 = vcmp.eq.f32.partialorder %v10310, 8.507059e+37
      %v10312 = vand.u32 %v7445, 2147483648
      %v10313 = vor.u32 1.1754944e-38, %v10312
      %v10314 = vsel %vm10311, %v10313, %v10309
      %v10315 = vmul.f32 %v9109, %v10314
      %v10316 = vrcp.pop %v7454
      %v10317 = vmul.f32 %v7454, %v10316
      %v10318 = vsub.f32 1.0, %v10317
      %v10319 = vmul.f32 %v10316, %v10318
      %v10320 = vadd.f32 %v10316, %v10319
      %vm10321 = vweird.f32 %v7454
      %vm10322 = vweird.f32 %v10316
      %vm10323 = vmor %vm10321, %vm10322
      %v10324 = vsel %vm10323, %v10316, %v10320
      %v10325 = vand.u32 2147483647, %v7454
      %vm10326 = vcmp.eq.f32.partialorder %v10325, 8.507059e+37
      %v10327 = vand.u32 %v7454, 2147483648
      %v10328 = vor.u32 1.1754944e-38, %v10327
      %v10329 = vsel %vm10326, %v10328, %v10324
      %v10330 = vmul.f32 %v9118, %v10329
      %v10331 = vrcp.pop %v7463
      %v10332 = vmul.f32 %v7463, %v10331
      %v10333 = vsub.f32 1.0, %v10332
      %v10334 = vmul.f32 %v10331, %v10333
      %v10335 = vadd.f32 %v10331, %v10334
      %vm10336 = vweird.f32 %v7463
      %vm10337 = vweird.f32 %v10331
      %vm10338 = vmor %vm10336, %vm10337
      %v10339 = vsel %vm10338, %v10331, %v10335
      %v10340 = vand.u32 2147483647, %v7463
      %vm10341 = vcmp.eq.f32.partialorder %v10340, 8.507059e+37
      %v10342 = vand.u32 %v7463, 2147483648
      %v10343 = vor.u32 1.1754944e-38, %v10342
      %v10344 = vsel %vm10341, %v10343, %v10339
      %v10345 = vmul.f32 %v9127, %v10344
      %v10346 = vrcp.pop %v7472
      %v10347 = vmul.f32 %v7472, %v10346
      %v10348 = vsub.f32 1.0, %v10347
      %v10349 = vmul.f32 %v10346, %v10348
      %v10350 = vadd.f32 %v10346, %v10349
      %vm10351 = vweird.f32 %v7472
      %vm10352 = vweird.f32 %v10346
      %vm10353 = vmor %vm10351, %vm10352
      %v10354 = vsel %vm10353, %v10346, %v10350
      %v10355 = vand.u32 2147483647, %v7472
      %vm10356 = vcmp.eq.f32.partialorder %v10355, 8.507059e+37
      %v10357 = vand.u32 %v7472, 2147483648
      %v10358 = vor.u32 1.1754944e-38, %v10357
      %v10359 = vsel %vm10356, %v10358, %v10354
      %v10360 = vmul.f32 %v9136, %v10359
      %v10361 = vrcp.pop %v7481
      %v10362 = vmul.f32 %v7481, %v10361
      %v10363 = vsub.f32 1.0, %v10362
      %v10364 = vmul.f32 %v10361, %v10363
      %v10365 = vadd.f32 %v10361, %v10364
      %vm10366 = vweird.f32 %v7481
      %vm10367 = vweird.f32 %v10361
      %vm10368 = vmor %vm10366, %vm10367
      %v10369 = vsel %vm10368, %v10361, %v10365
      %v10370 = vand.u32 2147483647, %v7481
      %vm10371 = vcmp.eq.f32.partialorder %v10370, 8.507059e+37
      %v10372 = vand.u32 %v7481, 2147483648
      %v10373 = vor.u32 1.1754944e-38, %v10372
      %v10374 = vsel %vm10371, %v10373, %v10369
      %v10375 = vmul.f32 %v9145, %v10374
      %v10376 = vrcp.pop %v7490
      %v10377 = vmul.f32 %v7490, %v10376
      %v10378 = vsub.f32 1.0, %v10377
      %v10379 = vmul.f32 %v10376, %v10378
      %v10380 = vadd.f32 %v10376, %v10379
      %vm10381 = vweird.f32 %v7490
      %vm10382 = vweird.f32 %v10376
      %vm10383 = vmor %vm10381, %vm10382
      %v10384 = vsel %vm10383, %v10376, %v10380
      %v10385 = vand.u32 2147483647, %v7490
      %vm10386 = vcmp.eq.f32.partialorder %v10385, 8.507059e+37
      %v10387 = vand.u32 %v7490, 2147483648
      %v10388 = vor.u32 1.1754944e-38, %v10387
      %v10389 = vsel %vm10386, %v10388, %v10384
      %v10390 = vmul.f32 %v9154, %v10389
      %v10391 = vrcp.pop %v7499
      %v10392 = vmul.f32 %v7499, %v10391
      %v10393 = vsub.f32 1.0, %v10392
      %v10394 = vmul.f32 %v10391, %v10393
      %v10395 = vadd.f32 %v10391, %v10394
      %vm10396 = vweird.f32 %v7499
      %vm10397 = vweird.f32 %v10391
      %vm10398 = vmor %vm10396, %vm10397
      %v10399 = vsel %vm10398, %v10391, %v10395
      %v10400 = vand.u32 2147483647, %v7499
      %vm10401 = vcmp.eq.f32.partialorder %v10400, 8.507059e+37
      %v10402 = vand.u32 %v7499, 2147483648
      %v10403 = vor.u32 1.1754944e-38, %v10402
      %v10404 = vsel %vm10401, %v10403, %v10399
      %v10405 = vmul.f32 %v9163, %v10404
      %v10406 = vrcp.pop %v7508
      %v10407 = vmul.f32 %v7508, %v10406
      %v10408 = vsub.f32 1.0, %v10407
      %v10409 = vmul.f32 %v10406, %v10408
      %v10410 = vadd.f32 %v10406, %v10409
      %vm10411 = vweird.f32 %v7508
      %vm10412 = vweird.f32 %v10406
      %vm10413 = vmor %vm10411, %vm10412
      %v10414 = vsel %vm10413, %v10406, %v10410
      %v10415 = vand.u32 2147483647, %v7508
      %vm10416 = vcmp.eq.f32.partialorder %v10415, 8.507059e+37
      %v10417 = vand.u32 %v7508, 2147483648
      %v10418 = vor.u32 1.1754944e-38, %v10417
      %v10419 = vsel %vm10416, %v10418, %v10414
      %v10420 = vmul.f32 %v9172, %v10419
      %v10421 = vrcp.pop %v7517
      %v10422 = vmul.f32 %v7517, %v10421
      %v10423 = vsub.f32 1.0, %v10422
      %v10424 = vmul.f32 %v10421, %v10423
      %v10425 = vadd.f32 %v10421, %v10424
      %vm10426 = vweird.f32 %v7517
      %vm10427 = vweird.f32 %v10421
      %vm10428 = vmor %vm10426, %vm10427
      %v10429 = vsel %vm10428, %v10421, %v10425
      %v10430 = vand.u32 2147483647, %v7517
      %vm10431 = vcmp.eq.f32.partialorder %v10430, 8.507059e+37
      %v10432 = vand.u32 %v7517, 2147483648
      %v10433 = vor.u32 1.1754944e-38, %v10432
      %v10434 = vsel %vm10431, %v10433, %v10429
      %v10435 = vmul.f32 %v9181, %v10434
      %v10436 = vrcp.pop %v7526
      %v10437 = vmul.f32 %v7526, %v10436
      %v10438 = vsub.f32 1.0, %v10437
      %v10439 = vmul.f32 %v10436, %v10438
      %v10440 = vadd.f32 %v10436, %v10439
      %vm10441 = vweird.f32 %v7526
      %vm10442 = vweird.f32 %v10436
      %vm10443 = vmor %vm10441, %vm10442
      %v10444 = vsel %vm10443, %v10436, %v10440
      %v10445 = vand.u32 2147483647, %v7526
      %vm10446 = vcmp.eq.f32.partialorder %v10445, 8.507059e+37
      %v10447 = vand.u32 %v7526, 2147483648
      %v10448 = vor.u32 1.1754944e-38, %v10447
      %v10449 = vsel %vm10446, %v10448, %v10444
      %v10450 = vmul.f32 %v9190, %v10449
      %v10451 = vrcp.pop %v7535
      %v10452 = vmul.f32 %v7535, %v10451
      %v10453 = vsub.f32 1.0, %v10452
      %v10454 = vmul.f32 %v10451, %v10453
      %v10455 = vadd.f32 %v10451, %v10454
      %vm10456 = vweird.f32 %v7535
      %vm10457 = vweird.f32 %v10451
      %vm10458 = vmor %vm10456, %vm10457
      %v10459 = vsel %vm10458, %v10451, %v10455
      %v10460 = vand.u32 2147483647, %v7535
      %vm10461 = vcmp.eq.f32.partialorder %v10460, 8.507059e+37
      %v10462 = vand.u32 %v7535, 2147483648
      %v10463 = vor.u32 1.1754944e-38, %v10462
      %v10464 = vsel %vm10461, %v10463, %v10459
      %v10465 = vmul.f32 %v9199, %v10464
      %v10466 = vrcp.pop %v7544
      %v10467 = vmul.f32 %v7544, %v10466
      %v10468 = vsub.f32 1.0, %v10467
      %v10469 = vmul.f32 %v10466, %v10468
      %v10470 = vadd.f32 %v10466, %v10469
      %vm10471 = vweird.f32 %v7544
      %vm10472 = vweird.f32 %v10466
      %vm10473 = vmor %vm10471, %vm10472
      %v10474 = vsel %vm10473, %v10466, %v10470
      %v10475 = vand.u32 2147483647, %v7544
      %vm10476 = vcmp.eq.f32.partialorder %v10475, 8.507059e+37
      %v10477 = vand.u32 %v7544, 2147483648
      %v10478 = vor.u32 1.1754944e-38, %v10477
      %v10479 = vsel %vm10476, %v10478, %v10474
      %v10480 = vmul.f32 %v9208, %v10479
      %v10481 = vrcp.pop %v7553
      %v10482 = vmul.f32 %v7553, %v10481
      %v10483 = vsub.f32 1.0, %v10482
      %v10484 = vmul.f32 %v10481, %v10483
      %v10485 = vadd.f32 %v10481, %v10484
      %vm10486 = vweird.f32 %v7553
      %vm10487 = vweird.f32 %v10481
      %vm10488 = vmor %vm10486, %vm10487
      %v10489 = vsel %vm10488, %v10481, %v10485
      %v10490 = vand.u32 2147483647, %v7553
      %vm10491 = vcmp.eq.f32.partialorder %v10490, 8.507059e+37
      %v10492 = vand.u32 %v7553, 2147483648
      %v10493 = vor.u32 1.1754944e-38, %v10492
      %v10494 = vsel %vm10491, %v10493, %v10489
      %v10495 = vmul.f32 %v9217, %v10494
      %v10496 = vrcp.pop %v7562
      %v10497 = vmul.f32 %v7562, %v10496
      %v10498 = vsub.f32 1.0, %v10497
      %v10499 = vmul.f32 %v10496, %v10498
      %v10500 = vadd.f32 %v10496, %v10499
      %vm10501 = vweird.f32 %v7562
      %vm10502 = vweird.f32 %v10496
      %vm10503 = vmor %vm10501, %vm10502
      %v10504 = vsel %vm10503, %v10496, %v10500
      %v10505 = vand.u32 2147483647, %v7562
      %vm10506 = vcmp.eq.f32.partialorder %v10505, 8.507059e+37
      %v10507 = vand.u32 %v7562, 2147483648
      %v10508 = vor.u32 1.1754944e-38, %v10507
      %v10509 = vsel %vm10506, %v10508, %v10504
      %v10510 = vmul.f32 %v9226, %v10509
      %v10511 = vrcp.pop %v7571
      %v10512 = vmul.f32 %v7571, %v10511
      %v10513 = vsub.f32 1.0, %v10512
      %v10514 = vmul.f32 %v10511, %v10513
      %v10515 = vadd.f32 %v10511, %v10514
      %vm10516 = vweird.f32 %v7571
      %vm10517 = vweird.f32 %v10511
      %vm10518 = vmor %vm10516, %vm10517
      %v10519 = vsel %vm10518, %v10511, %v10515
      %v10520 = vand.u32 2147483647, %v7571
      %vm10521 = vcmp.eq.f32.partialorder %v10520, 8.507059e+37
      %v10522 = vand.u32 %v7571, 2147483648
      %v10523 = vor.u32 1.1754944e-38, %v10522
      %v10524 = vsel %vm10521, %v10523, %v10519
      %v10525 = vmul.f32 %v9235, %v10524
      %v10526 = vrcp.pop %v7580
      %v10527 = vmul.f32 %v7580, %v10526
      %v10528 = vsub.f32 1.0, %v10527
      %v10529 = vmul.f32 %v10526, %v10528
      %v10530 = vadd.f32 %v10526, %v10529
      %vm10531 = vweird.f32 %v7580
      %vm10532 = vweird.f32 %v10526
      %vm10533 = vmor %vm10531, %vm10532
      %v10534 = vsel %vm10533, %v10526, %v10530
      %v10535 = vand.u32 2147483647, %v7580
      %vm10536 = vcmp.eq.f32.partialorder %v10535, 8.507059e+37
      %v10537 = vand.u32 %v7580, 2147483648
      %v10538 = vor.u32 1.1754944e-38, %v10537
      %v10539 = vsel %vm10536, %v10538, %v10534
      %v10540 = vmul.f32 %v9244, %v10539
      %v10541 = vrcp.pop %v7589
      %v10542 = vmul.f32 %v7589, %v10541
      %v10543 = vsub.f32 1.0, %v10542
      %v10544 = vmul.f32 %v10541, %v10543
      %v10545 = vadd.f32 %v10541, %v10544
      %vm10546 = vweird.f32 %v7589
      %vm10547 = vweird.f32 %v10541
      %vm10548 = vmor %vm10546, %vm10547
      %v10549 = vsel %vm10548, %v10541, %v10545
      %v10550 = vand.u32 2147483647, %v7589
      %vm10551 = vcmp.eq.f32.partialorder %v10550, 8.507059e+37
      %v10552 = vand.u32 %v7589, 2147483648
      %v10553 = vor.u32 1.1754944e-38, %v10552
      %v10554 = vsel %vm10551, %v10553, %v10549
      %v10555 = vmul.f32 %v9253, %v10554
      %v10556 = vrcp.pop %v7598
      %v10557 = vmul.f32 %v7598, %v10556
      %v10558 = vsub.f32 1.0, %v10557
      %v10559 = vmul.f32 %v10556, %v10558
      %v10560 = vadd.f32 %v10556, %v10559
      %vm10561 = vweird.f32 %v7598
      %vm10562 = vweird.f32 %v10556
      %vm10563 = vmor %vm10561, %vm10562
      %v10564 = vsel %vm10563, %v10556, %v10560
      %v10565 = vand.u32 2147483647, %v7598
      %vm10566 = vcmp.eq.f32.partialorder %v10565, 8.507059e+37
      %v10567 = vand.u32 %v7598, 2147483648
      %v10568 = vor.u32 1.1754944e-38, %v10567
      %v10569 = vsel %vm10566, %v10568, %v10564
      %v10570 = vmul.f32 %v9262, %v10569
      %v10571 = vrcp.pop %v7607
      %v10572 = vmul.f32 %v7607, %v10571
      %v10573 = vsub.f32 1.0, %v10572
      %v10574 = vmul.f32 %v10571, %v10573
      %v10575 = vadd.f32 %v10571, %v10574
      %vm10576 = vweird.f32 %v7607
      %vm10577 = vweird.f32 %v10571
      %vm10578 = vmor %vm10576, %vm10577
      %v10579 = vsel %vm10578, %v10571, %v10575
      %v10580 = vand.u32 2147483647, %v7607
      %vm10581 = vcmp.eq.f32.partialorder %v10580, 8.507059e+37
      %v10582 = vand.u32 %v7607, 2147483648
      %v10583 = vor.u32 1.1754944e-38, %v10582
      %v10584 = vsel %vm10581, %v10583, %v10579
      %v10585 = vmul.f32 %v9271, %v10584
      %v10586 = vrcp.pop %v7616
      %v10587 = vmul.f32 %v7616, %v10586
      %v10588 = vsub.f32 1.0, %v10587
      %v10589 = vmul.f32 %v10586, %v10588
      %v10590 = vadd.f32 %v10586, %v10589
      %vm10591 = vweird.f32 %v7616
      %vm10592 = vweird.f32 %v10586
      %vm10593 = vmor %vm10591, %vm10592
      %v10594 = vsel %vm10593, %v10586, %v10590
      %v10595 = vand.u32 2147483647, %v7616
      %vm10596 = vcmp.eq.f32.partialorder %v10595, 8.507059e+37
      %v10597 = vand.u32 %v7616, 2147483648
      %v10598 = vor.u32 1.1754944e-38, %v10597
      %v10599 = vsel %vm10596, %v10598, %v10594
      %v10600 = vmul.f32 %v9280, %v10599
      %v10601 = vrcp.pop %v7625
      %v10602 = vmul.f32 %v7625, %v10601
      %v10603 = vsub.f32 1.0, %v10602
      %v10604 = vmul.f32 %v10601, %v10603
      %v10605 = vadd.f32 %v10601, %v10604
      %vm10606 = vweird.f32 %v7625
      %vm10607 = vweird.f32 %v10601
      %vm10608 = vmor %vm10606, %vm10607
      %v10609 = vsel %vm10608, %v10601, %v10605
      %v10610 = vand.u32 2147483647, %v7625
      %vm10611 = vcmp.eq.f32.partialorder %v10610, 8.507059e+37
      %v10612 = vand.u32 %v7625, 2147483648
      %v10613 = vor.u32 1.1754944e-38, %v10612
      %v10614 = vsel %vm10611, %v10613, %v10609
      %v10615 = vmul.f32 %v9289, %v10614
      %v10616 = vrcp.pop %v7634
      %v10617 = vmul.f32 %v7634, %v10616
      %v10618 = vsub.f32 1.0, %v10617
      %v10619 = vmul.f32 %v10616, %v10618
      %v10620 = vadd.f32 %v10616, %v10619
      %vm10621 = vweird.f32 %v7634
      %vm10622 = vweird.f32 %v10616
      %vm10623 = vmor %vm10621, %vm10622
      %v10624 = vsel %vm10623, %v10616, %v10620
      %v10625 = vand.u32 2147483647, %v7634
      %vm10626 = vcmp.eq.f32.partialorder %v10625, 8.507059e+37
      %v10627 = vand.u32 %v7634, 2147483648
      %v10628 = vor.u32 1.1754944e-38, %v10627
      %v10629 = vsel %vm10626, %v10628, %v10624
      %v10630 = vmul.f32 %v9298, %v10629
      %v10631 = vrcp.pop %v7643
      %v10632 = vmul.f32 %v7643, %v10631
      %v10633 = vsub.f32 1.0, %v10632
      %v10634 = vmul.f32 %v10631, %v10633
      %v10635 = vadd.f32 %v10631, %v10634
      %vm10636 = vweird.f32 %v7643
      %vm10637 = vweird.f32 %v10631
      %vm10638 = vmor %vm10636, %vm10637
      %v10639 = vsel %vm10638, %v10631, %v10635
      %v10640 = vand.u32 2147483647, %v7643
      %vm10641 = vcmp.eq.f32.partialorder %v10640, 8.507059e+37
      %v10642 = vand.u32 %v7643, 2147483648
      %v10643 = vor.u32 1.1754944e-38, %v10642
      %v10644 = vsel %vm10641, %v10643, %v10639
      %v10645 = vmul.f32 %v9307, %v10644
      %v10646 = vrcp.pop %v7652
      %v10647 = vmul.f32 %v7652, %v10646
      %v10648 = vsub.f32 1.0, %v10647
      %v10649 = vmul.f32 %v10646, %v10648
      %v10650 = vadd.f32 %v10646, %v10649
      %vm10651 = vweird.f32 %v7652
      %vm10652 = vweird.f32 %v10646
      %vm10653 = vmor %vm10651, %vm10652
      %v10654 = vsel %vm10653, %v10646, %v10650
      %v10655 = vand.u32 2147483647, %v7652
      %vm10656 = vcmp.eq.f32.partialorder %v10655, 8.507059e+37
      %v10657 = vand.u32 %v7652, 2147483648
      %v10658 = vor.u32 1.1754944e-38, %v10657
      %v10659 = vsel %vm10656, %v10658, %v10654
      %v10660 = vmul.f32 %v9316, %v10659
      %v10661 = vrcp.pop %v7661
      %v10662 = vmul.f32 %v7661, %v10661
      %v10663 = vsub.f32 1.0, %v10662
      %v10664 = vmul.f32 %v10661, %v10663
      %v10665 = vadd.f32 %v10661, %v10664
      %vm10666 = vweird.f32 %v7661
      %vm10667 = vweird.f32 %v10661
      %vm10668 = vmor %vm10666, %vm10667
      %v10669 = vsel %vm10668, %v10661, %v10665
      %v10670 = vand.u32 2147483647, %v7661
      %vm10671 = vcmp.eq.f32.partialorder %v10670, 8.507059e+37
      %v10672 = vand.u32 %v7661, 2147483648
      %v10673 = vor.u32 1.1754944e-38, %v10672
      %v10674 = vsel %vm10671, %v10673, %v10669
      %v10675 = vmul.f32 %v9325, %v10674
      %v10676 = vrcp.pop %v7670
      %v10677 = vmul.f32 %v7670, %v10676
      %v10678 = vsub.f32 1.0, %v10677
      %v10679 = vmul.f32 %v10676, %v10678
      %v10680 = vadd.f32 %v10676, %v10679
      %vm10681 = vweird.f32 %v7670
      %vm10682 = vweird.f32 %v10676
      %vm10683 = vmor %vm10681, %vm10682
      %v10684 = vsel %vm10683, %v10676, %v10680
      %v10685 = vand.u32 2147483647, %v7670
      %vm10686 = vcmp.eq.f32.partialorder %v10685, 8.507059e+37
      %v10687 = vand.u32 %v7670, 2147483648
      %v10688 = vor.u32 1.1754944e-38, %v10687
      %v10689 = vsel %vm10686, %v10688, %v10684
      %v10690 = vmul.f32 %v9334, %v10689
      %v10691 = vrcp.pop %v7679
      %v10692 = vmul.f32 %v7679, %v10691
      %v10693 = vsub.f32 1.0, %v10692
      %v10694 = vmul.f32 %v10691, %v10693
      %v10695 = vadd.f32 %v10691, %v10694
      %vm10696 = vweird.f32 %v7679
      %vm10697 = vweird.f32 %v10691
      %vm10698 = vmor %vm10696, %vm10697
      %v10699 = vsel %vm10698, %v10691, %v10695
      %v10700 = vand.u32 2147483647, %v7679
      %vm10701 = vcmp.eq.f32.partialorder %v10700, 8.507059e+37
      %v10702 = vand.u32 %v7679, 2147483648
      %v10703 = vor.u32 1.1754944e-38, %v10702
      %v10704 = vsel %vm10701, %v10703, %v10699
      %v10705 = vmul.f32 %v9343, %v10704
      %v10706 = vrcp.pop %v7688
      %v10707 = vmul.f32 %v7688, %v10706
      %v10708 = vsub.f32 1.0, %v10707
      %v10709 = vmul.f32 %v10706, %v10708
      %v10710 = vadd.f32 %v10706, %v10709
      %vm10711 = vweird.f32 %v7688
      %vm10712 = vweird.f32 %v10706
      %vm10713 = vmor %vm10711, %vm10712
      %v10714 = vsel %vm10713, %v10706, %v10710
      %v10715 = vand.u32 2147483647, %v7688
      %vm10716 = vcmp.eq.f32.partialorder %v10715, 8.507059e+37
      %v10717 = vand.u32 %v7688, 2147483648
      %v10718 = vor.u32 1.1754944e-38, %v10717
      %v10719 = vsel %vm10716, %v10718, %v10714
      %v10720 = vmul.f32 %v9352, %v10719
      %v10721 = vrcp.pop %v7697
      %v10722 = vmul.f32 %v7697, %v10721
      %v10723 = vsub.f32 1.0, %v10722
      %v10724 = vmul.f32 %v10721, %v10723
      %v10725 = vadd.f32 %v10721, %v10724
      %vm10726 = vweird.f32 %v7697
      %vm10727 = vweird.f32 %v10721
      %vm10728 = vmor %vm10726, %vm10727
      %v10729 = vsel %vm10728, %v10721, %v10725
      %v10730 = vand.u32 2147483647, %v7697
      %vm10731 = vcmp.eq.f32.partialorder %v10730, 8.507059e+37
      %v10732 = vand.u32 %v7697, 2147483648
      %v10733 = vor.u32 1.1754944e-38, %v10732
      %v10734 = vsel %vm10731, %v10733, %v10729
      %v10735 = vmul.f32 %v9361, %v10734
      %v10736 = vrcp.pop %v7706
      %v10737 = vmul.f32 %v7706, %v10736
      %v10738 = vsub.f32 1.0, %v10737
      %v10739 = vmul.f32 %v10736, %v10738
      %v10740 = vadd.f32 %v10736, %v10739
      %vm10741 = vweird.f32 %v7706
      %vm10742 = vweird.f32 %v10736
      %vm10743 = vmor %vm10741, %vm10742
      %v10744 = vsel %vm10743, %v10736, %v10740
      %v10745 = vand.u32 2147483647, %v7706
      %vm10746 = vcmp.eq.f32.partialorder %v10745, 8.507059e+37
      %v10747 = vand.u32 %v7706, 2147483648
      %v10748 = vor.u32 1.1754944e-38, %v10747
      %v10749 = vsel %vm10746, %v10748, %v10744
      %v10750 = vmul.f32 %v9370, %v10749
      %v10751 = vrcp.pop %v7715
      %v10752 = vmul.f32 %v7715, %v10751
      %v10753 = vsub.f32 1.0, %v10752
      %v10754 = vmul.f32 %v10751, %v10753
      %v10755 = vadd.f32 %v10751, %v10754
      %vm10756 = vweird.f32 %v7715
      %vm10757 = vweird.f32 %v10751
      %vm10758 = vmor %vm10756, %vm10757
      %v10759 = vsel %vm10758, %v10751, %v10755
      %v10760 = vand.u32 2147483647, %v7715
      %vm10761 = vcmp.eq.f32.partialorder %v10760, 8.507059e+37
      %v10762 = vand.u32 %v7715, 2147483648
      %v10763 = vor.u32 1.1754944e-38, %v10762
      %v10764 = vsel %vm10761, %v10763, %v10759
      %v10765 = vmul.f32 %v9379, %v10764
      %v10766 = vrcp.pop %v7724
      %v10767 = vmul.f32 %v7724, %v10766
      %v10768 = vsub.f32 1.0, %v10767
      %v10769 = vmul.f32 %v10766, %v10768
      %v10770 = vadd.f32 %v10766, %v10769
      %vm10771 = vweird.f32 %v7724
      %vm10772 = vweird.f32 %v10766
      %vm10773 = vmor %vm10771, %vm10772
      %v10774 = vsel %vm10773, %v10766, %v10770
      %v10775 = vand.u32 2147483647, %v7724
      %vm10776 = vcmp.eq.f32.partialorder %v10775, 8.507059e+37
      %v10777 = vand.u32 %v7724, 2147483648
      %v10778 = vor.u32 1.1754944e-38, %v10777
      %v10779 = vsel %vm10776, %v10778, %v10774
      %v10780 = vmul.f32 %v9388, %v10779
      %v10781 = vrcp.pop %v7733
      %v10782 = vmul.f32 %v7733, %v10781
      %v10783 = vsub.f32 1.0, %v10782
      %v10784 = vmul.f32 %v10781, %v10783
      %v10785 = vadd.f32 %v10781, %v10784
      %vm10786 = vweird.f32 %v7733
      %vm10787 = vweird.f32 %v10781
      %vm10788 = vmor %vm10786, %vm10787
      %v10789 = vsel %vm10788, %v10781, %v10785
      %v10790 = vand.u32 2147483647, %v7733
      %vm10791 = vcmp.eq.f32.partialorder %v10790, 8.507059e+37
      %v10792 = vand.u32 %v7733, 2147483648
      %v10793 = vor.u32 1.1754944e-38, %v10792
      %v10794 = vsel %vm10791, %v10793, %v10789
      %v10795 = vmul.f32 %v9397, %v10794
      %v10796 = vrcp.pop %v7742
      %v10797 = vmul.f32 %v7742, %v10796
      %v10798 = vsub.f32 1.0, %v10797
      %v10799 = vmul.f32 %v10796, %v10798
      %v10800 = vadd.f32 %v10796, %v10799
      %vm10801 = vweird.f32 %v7742
      %vm10802 = vweird.f32 %v10796
      %vm10803 = vmor %vm10801, %vm10802
      %v10804 = vsel %vm10803, %v10796, %v10800
      %v10805 = vand.u32 2147483647, %v7742
      %vm10806 = vcmp.eq.f32.partialorder %v10805, 8.507059e+37
      %v10807 = vand.u32 %v7742, 2147483648
      %v10808 = vor.u32 1.1754944e-38, %v10807
      %v10809 = vsel %vm10806, %v10808, %v10804
      %v10810 = vmul.f32 %v9406, %v10809
      %v10811 = vrcp.pop %v7751
      %v10812 = vmul.f32 %v7751, %v10811
      %v10813 = vsub.f32 1.0, %v10812
      %v10814 = vmul.f32 %v10811, %v10813
      %v10815 = vadd.f32 %v10811, %v10814
      %vm10816 = vweird.f32 %v7751
      %vm10817 = vweird.f32 %v10811
      %vm10818 = vmor %vm10816, %vm10817
      %v10819 = vsel %vm10818, %v10811, %v10815
      %v10820 = vand.u32 2147483647, %v7751
      %vm10821 = vcmp.eq.f32.partialorder %v10820, 8.507059e+37
      %v10822 = vand.u32 %v7751, 2147483648
      %v10823 = vor.u32 1.1754944e-38, %v10822
      %v10824 = vsel %vm10821, %v10823, %v10819
      %v10825 = vmul.f32 %v9415, %v10824
      %v10826 = vrcp.pop %v7760
      %v10827 = vmul.f32 %v7760, %v10826
      %v10828 = vsub.f32 1.0, %v10827
      %v10829 = vmul.f32 %v10826, %v10828
      %v10830 = vadd.f32 %v10826, %v10829
      %vm10831 = vweird.f32 %v7760
      %vm10832 = vweird.f32 %v10826
      %vm10833 = vmor %vm10831, %vm10832
      %v10834 = vsel %vm10833, %v10826, %v10830
      %v10835 = vand.u32 2147483647, %v7760
      %vm10836 = vcmp.eq.f32.partialorder %v10835, 8.507059e+37
      %v10837 = vand.u32 %v7760, 2147483648
      %v10838 = vor.u32 1.1754944e-38, %v10837
      %v10839 = vsel %vm10836, %v10838, %v10834
      %v10840 = vmul.f32 %v9424, %v10839
      %v10841 = vrcp.pop %v7769
      %v10842 = vmul.f32 %v7769, %v10841
      %v10843 = vsub.f32 1.0, %v10842
      %v10844 = vmul.f32 %v10841, %v10843
      %v10845 = vadd.f32 %v10841, %v10844
      %vm10846 = vweird.f32 %v7769
      %vm10847 = vweird.f32 %v10841
      %vm10848 = vmor %vm10846, %vm10847
      %v10849 = vsel %vm10848, %v10841, %v10845
      %v10850 = vand.u32 2147483647, %v7769
      %vm10851 = vcmp.eq.f32.partialorder %v10850, 8.507059e+37
      %v10852 = vand.u32 %v7769, 2147483648
      %v10853 = vor.u32 1.1754944e-38, %v10852
      %v10854 = vsel %vm10851, %v10853, %v10849
      %v10855 = vmul.f32 %v9433, %v10854
      %v10856 = vrcp.pop %v7778
      %v10857 = vmul.f32 %v7778, %v10856
      %v10858 = vsub.f32 1.0, %v10857
      %v10859 = vmul.f32 %v10856, %v10858
      %v10860 = vadd.f32 %v10856, %v10859
      %vm10861 = vweird.f32 %v7778
      %vm10862 = vweird.f32 %v10856
      %vm10863 = vmor %vm10861, %vm10862
      %v10864 = vsel %vm10863, %v10856, %v10860
      %v10865 = vand.u32 2147483647, %v7778
      %vm10866 = vcmp.eq.f32.partialorder %v10865, 8.507059e+37
      %v10867 = vand.u32 %v7778, 2147483648
      %v10868 = vor.u32 1.1754944e-38, %v10867
      %v10869 = vsel %vm10866, %v10868, %v10864
      %v10870 = vmul.f32 %v9442, %v10869
      %v10871 = vrcp.pop %v7787
      %v10872 = vmul.f32 %v7787, %v10871
      %v10873 = vsub.f32 1.0, %v10872
      %v10874 = vmul.f32 %v10871, %v10873
      %v10875 = vadd.f32 %v10871, %v10874
      %vm10876 = vweird.f32 %v7787
      %vm10877 = vweird.f32 %v10871
      %vm10878 = vmor %vm10876, %vm10877
      %v10879 = vsel %vm10878, %v10871, %v10875
      %v10880 = vand.u32 2147483647, %v7787
      %vm10881 = vcmp.eq.f32.partialorder %v10880, 8.507059e+37
      %v10882 = vand.u32 %v7787, 2147483648
      %v10883 = vor.u32 1.1754944e-38, %v10882
      %v10884 = vsel %vm10881, %v10883, %v10879
      %v10885 = vmul.f32 %v9451, %v10884
      %v10886 = vrcp.pop %v7796
      %v10887 = vmul.f32 %v7796, %v10886
      %v10888 = vsub.f32 1.0, %v10887
      %v10889 = vmul.f32 %v10886, %v10888
      %v10890 = vadd.f32 %v10886, %v10889
      %vm10891 = vweird.f32 %v7796
      %vm10892 = vweird.f32 %v10886
      %vm10893 = vmor %vm10891, %vm10892
      %v10894 = vsel %vm10893, %v10886, %v10890
      %v10895 = vand.u32 2147483647, %v7796
      %vm10896 = vcmp.eq.f32.partialorder %v10895, 8.507059e+37
      %v10897 = vand.u32 %v7796, 2147483648
      %v10898 = vor.u32 1.1754944e-38, %v10897
      %v10899 = vsel %vm10896, %v10898, %v10894
      %v10900 = vmul.f32 %v9460, %v10899
      %v10901 = vrcp.pop %v7805
      %v10902 = vmul.f32 %v7805, %v10901
      %v10903 = vsub.f32 1.0, %v10902
      %v10904 = vmul.f32 %v10901, %v10903
      %v10905 = vadd.f32 %v10901, %v10904
      %vm10906 = vweird.f32 %v7805
      %vm10907 = vweird.f32 %v10901
      %vm10908 = vmor %vm10906, %vm10907
      %v10909 = vsel %vm10908, %v10901, %v10905
      %v10910 = vand.u32 2147483647, %v7805
      %vm10911 = vcmp.eq.f32.partialorder %v10910, 8.507059e+37
      %v10912 = vand.u32 %v7805, 2147483648
      %v10913 = vor.u32 1.1754944e-38, %v10912
      %v10914 = vsel %vm10911, %v10913, %v10909
      %v10915 = vmul.f32 %v9469, %v10914
      %v10916 = vrcp.pop %v7814
      %v10917 = vmul.f32 %v7814, %v10916
      %v10918 = vsub.f32 1.0, %v10917
      %v10919 = vmul.f32 %v10916, %v10918
      %v10920 = vadd.f32 %v10916, %v10919
      %vm10921 = vweird.f32 %v7814
      %vm10922 = vweird.f32 %v10916
      %vm10923 = vmor %vm10921, %vm10922
      %v10924 = vsel %vm10923, %v10916, %v10920
      %v10925 = vand.u32 2147483647, %v7814
      %vm10926 = vcmp.eq.f32.partialorder %v10925, 8.507059e+37
      %v10927 = vand.u32 %v7814, 2147483648
      %v10928 = vor.u32 1.1754944e-38, %v10927
      %v10929 = vsel %vm10926, %v10928, %v10924
      %v10930 = vmul.f32 %v9478, %v10929
      %v10931 = vrcp.pop %v7823
      %v10932 = vmul.f32 %v7823, %v10931
      %v10933 = vsub.f32 1.0, %v10932
      %v10934 = vmul.f32 %v10931, %v10933
      %v10935 = vadd.f32 %v10931, %v10934
      %vm10936 = vweird.f32 %v7823
      %vm10937 = vweird.f32 %v10931
      %vm10938 = vmor %vm10936, %vm10937
      %v10939 = vsel %vm10938, %v10931, %v10935
      %v10940 = vand.u32 2147483647, %v7823
      %vm10941 = vcmp.eq.f32.partialorder %v10940, 8.507059e+37
      %v10942 = vand.u32 %v7823, 2147483648
      %v10943 = vor.u32 1.1754944e-38, %v10942
      %v10944 = vsel %vm10941, %v10943, %v10939
      %v10945 = vmul.f32 %v9487, %v10944
      %v10946 = vrcp.pop %v7832
      %v10947 = vmul.f32 %v7832, %v10946
      %v10948 = vsub.f32 1.0, %v10947
      %v10949 = vmul.f32 %v10946, %v10948
      %v10950 = vadd.f32 %v10946, %v10949
      %vm10951 = vweird.f32 %v7832
      %vm10952 = vweird.f32 %v10946
      %vm10953 = vmor %vm10951, %vm10952
      %v10954 = vsel %vm10953, %v10946, %v10950
      %v10955 = vand.u32 2147483647, %v7832
      %vm10956 = vcmp.eq.f32.partialorder %v10955, 8.507059e+37
      %v10957 = vand.u32 %v7832, 2147483648
      %v10958 = vor.u32 1.1754944e-38, %v10957
      %v10959 = vsel %vm10956, %v10958, %v10954
      %v10960 = vmul.f32 %v9496, %v10959
      %v10961 = vrcp.pop %v7841
      %v10962 = vmul.f32 %v7841, %v10961
      %v10963 = vsub.f32 1.0, %v10962
      %v10964 = vmul.f32 %v10961, %v10963
      %v10965 = vadd.f32 %v10961, %v10964
      %vm10966 = vweird.f32 %v7841
      %vm10967 = vweird.f32 %v10961
      %vm10968 = vmor %vm10966, %vm10967
      %v10969 = vsel %vm10968, %v10961, %v10965
      %v10970 = vand.u32 2147483647, %v7841
      %vm10971 = vcmp.eq.f32.partialorder %v10970, 8.507059e+37
      %v10972 = vand.u32 %v7841, 2147483648
      %v10973 = vor.u32 1.1754944e-38, %v10972
      %v10974 = vsel %vm10971, %v10973, %v10969
      %v10975 = vmul.f32 %v9505, %v10974
      %v10976 = vrcp.pop %v7850
      %v10977 = vmul.f32 %v7850, %v10976
      %v10978 = vsub.f32 1.0, %v10977
      %v10979 = vmul.f32 %v10976, %v10978
      %v10980 = vadd.f32 %v10976, %v10979
      %vm10981 = vweird.f32 %v7850
      %vm10982 = vweird.f32 %v10976
      %vm10983 = vmor %vm10981, %vm10982
      %v10984 = vsel %vm10983, %v10976, %v10980
      %v10985 = vand.u32 2147483647, %v7850
      %vm10986 = vcmp.eq.f32.partialorder %v10985, 8.507059e+37
      %v10987 = vand.u32 %v7850, 2147483648
      %v10988 = vor.u32 1.1754944e-38, %v10987
      %v10989 = vsel %vm10986, %v10988, %v10984
      %v10990 = vmul.f32 %v9514, %v10989
      %v10991 = vrcp.pop %v7859
      %v10992 = vmul.f32 %v7859, %v10991
      %v10993 = vsub.f32 1.0, %v10992
      %v10994 = vmul.f32 %v10991, %v10993
      %v10995 = vadd.f32 %v10991, %v10994
      %vm10996 = vweird.f32 %v7859
      %vm10997 = vweird.f32 %v10991
      %vm10998 = vmor %vm10996, %vm10997
      %v10999 = vsel %vm10998, %v10991, %v10995
      %v11000 = vand.u32 2147483647, %v7859
      %vm11001 = vcmp.eq.f32.partialorder %v11000, 8.507059e+37
      %v11002 = vand.u32 %v7859, 2147483648
      %v11003 = vor.u32 1.1754944e-38, %v11002
      %v11004 = vsel %vm11001, %v11003, %v10999
      %v11005 = vmul.f32 %v9523, %v11004
      %v11006 = vrcp.pop %v7868
      %v11007 = vmul.f32 %v7868, %v11006
      %v11008 = vsub.f32 1.0, %v11007
      %v11009 = vmul.f32 %v11006, %v11008
      %v11010 = vadd.f32 %v11006, %v11009
      %vm11011 = vweird.f32 %v7868
      %vm11012 = vweird.f32 %v11006
      %vm11013 = vmor %vm11011, %vm11012
      %v11014 = vsel %vm11013, %v11006, %v11010
      %v11015 = vand.u32 2147483647, %v7868
      %vm11016 = vcmp.eq.f32.partialorder %v11015, 8.507059e+37
      %v11017 = vand.u32 %v7868, 2147483648
      %v11018 = vor.u32 1.1754944e-38, %v11017
      %v11019 = vsel %vm11016, %v11018, %v11014
      %v11020 = vmul.f32 %v9532, %v11019
      %v11021 = vrcp.pop %v7877
      %v11022 = vmul.f32 %v7877, %v11021
      %v11023 = vsub.f32 1.0, %v11022
      %v11024 = vmul.f32 %v11021, %v11023
      %v11025 = vadd.f32 %v11021, %v11024
      %vm11026 = vweird.f32 %v7877
      %vm11027 = vweird.f32 %v11021
      %vm11028 = vmor %vm11026, %vm11027
      %v11029 = vsel %vm11028, %v11021, %v11025
      %v11030 = vand.u32 2147483647, %v7877
      %vm11031 = vcmp.eq.f32.partialorder %v11030, 8.507059e+37
      %v11032 = vand.u32 %v7877, 2147483648
      %v11033 = vor.u32 1.1754944e-38, %v11032
      %v11034 = vsel %vm11031, %v11033, %v11029
      %v11035 = vmul.f32 %v9541, %v11034
      %v11036 = vrcp.pop %v7886
      %v11037 = vmul.f32 %v7886, %v11036
      %v11038 = vsub.f32 1.0, %v11037
      %v11039 = vmul.f32 %v11036, %v11038
      %v11040 = vadd.f32 %v11036, %v11039
      %vm11041 = vweird.f32 %v7886
      %vm11042 = vweird.f32 %v11036
      %vm11043 = vmor %vm11041, %vm11042
      %v11044 = vsel %vm11043, %v11036, %v11040
      %v11045 = vand.u32 2147483647, %v7886
      %vm11046 = vcmp.eq.f32.partialorder %v11045, 8.507059e+37
      %v11047 = vand.u32 %v7886, 2147483648
      %v11048 = vor.u32 1.1754944e-38, %v11047
      %v11049 = vsel %vm11046, %v11048, %v11044
      %v11050 = vmul.f32 %v9550, %v11049
      %v11051 = vrcp.pop %v7895
      %v11052 = vmul.f32 %v7895, %v11051
      %v11053 = vsub.f32 1.0, %v11052
      %v11054 = vmul.f32 %v11051, %v11053
      %v11055 = vadd.f32 %v11051, %v11054
      %vm11056 = vweird.f32 %v7895
      %vm11057 = vweird.f32 %v11051
      %vm11058 = vmor %vm11056, %vm11057
      %v11059 = vsel %vm11058, %v11051, %v11055
      %v11060 = vand.u32 2147483647, %v7895
      %vm11061 = vcmp.eq.f32.partialorder %v11060, 8.507059e+37
      %v11062 = vand.u32 %v7895, 2147483648
      %v11063 = vor.u32 1.1754944e-38, %v11062
      %v11064 = vsel %vm11061, %v11063, %v11059
      %v11065 = vmul.f32 %v9559, %v11064
      %v11066 = vrcp.pop %v7904
      %v11067 = vmul.f32 %v7904, %v11066
      %v11068 = vsub.f32 1.0, %v11067
      %v11069 = vmul.f32 %v11066, %v11068
      %v11070 = vadd.f32 %v11066, %v11069
      %vm11071 = vweird.f32 %v7904
      %vm11072 = vweird.f32 %v11066
      %vm11073 = vmor %vm11071, %vm11072
      %v11074 = vsel %vm11073, %v11066, %v11070
      %v11075 = vand.u32 2147483647, %v7904
      %vm11076 = vcmp.eq.f32.partialorder %v11075, 8.507059e+37
      %v11077 = vand.u32 %v7904, 2147483648
      %v11078 = vor.u32 1.1754944e-38, %v11077
      %v11079 = vsel %vm11076, %v11078, %v11074
      %v11080 = vmul.f32 %v9568, %v11079
      %v11081 = vrcp.pop %v7913
      %v11082 = vmul.f32 %v7913, %v11081
      %v11083 = vsub.f32 1.0, %v11082
      %v11084 = vmul.f32 %v11081, %v11083
      %v11085 = vadd.f32 %v11081, %v11084
      %vm11086 = vweird.f32 %v7913
      %vm11087 = vweird.f32 %v11081
      %vm11088 = vmor %vm11086, %vm11087
      %v11089 = vsel %vm11088, %v11081, %v11085
      %v11090 = vand.u32 2147483647, %v7913
      %vm11091 = vcmp.eq.f32.partialorder %v11090, 8.507059e+37
      %v11092 = vand.u32 %v7913, 2147483648
      %v11093 = vor.u32 1.1754944e-38, %v11092
      %v11094 = vsel %vm11091, %v11093, %v11089
      %v11095 = vmul.f32 %v9577, %v11094
      %v11096 = vrcp.pop %v7922
      %v11097 = vmul.f32 %v7922, %v11096
      %v11098 = vsub.f32 1.0, %v11097
      %v11099 = vmul.f32 %v11096, %v11098
      %v11100 = vadd.f32 %v11096, %v11099
      %vm11101 = vweird.f32 %v7922
      %vm11102 = vweird.f32 %v11096
      %vm11103 = vmor %vm11101, %vm11102
      %v11104 = vsel %vm11103, %v11096, %v11100
      %v11105 = vand.u32 2147483647, %v7922
      %vm11106 = vcmp.eq.f32.partialorder %v11105, 8.507059e+37
      %v11107 = vand.u32 %v7922, 2147483648
      %v11108 = vor.u32 1.1754944e-38, %v11107
      %v11109 = vsel %vm11106, %v11108, %v11104
      %v11110 = vmul.f32 %v9586, %v11109
      %v11111 = vrcp.pop %v7931
      %v11112 = vmul.f32 %v7931, %v11111
      %v11113 = vsub.f32 1.0, %v11112
      %v11114 = vmul.f32 %v11111, %v11113
      %v11115 = vadd.f32 %v11111, %v11114
      %vm11116 = vweird.f32 %v7931
      %vm11117 = vweird.f32 %v11111
      %vm11118 = vmor %vm11116, %vm11117
      %v11119 = vsel %vm11118, %v11111, %v11115
      %v11120 = vand.u32 2147483647, %v7931
      %vm11121 = vcmp.eq.f32.partialorder %v11120, 8.507059e+37
      %v11122 = vand.u32 %v7931, 2147483648
      %v11123 = vor.u32 1.1754944e-38, %v11122
      %v11124 = vsel %vm11121, %v11123, %v11119
      %v11125 = vmul.f32 %v9595, %v11124
      %v11126 = vrcp.pop %v7940
      %v11127 = vmul.f32 %v7940, %v11126
      %v11128 = vsub.f32 1.0, %v11127
      %v11129 = vmul.f32 %v11126, %v11128
      %v11130 = vadd.f32 %v11126, %v11129
      %vm11131 = vweird.f32 %v7940
      %vm11132 = vweird.f32 %v11126
      %vm11133 = vmor %vm11131, %vm11132
      %v11134 = vsel %vm11133, %v11126, %v11130
      %v11135 = vand.u32 2147483647, %v7940
      %vm11136 = vcmp.eq.f32.partialorder %v11135, 8.507059e+37
      %v11137 = vand.u32 %v7940, 2147483648
      %v11138 = vor.u32 1.1754944e-38, %v11137
      %v11139 = vsel %vm11136, %v11138, %v11134
      %v11140 = vmul.f32 %v9604, %v11139
      %v11141 = vrcp.pop %v7949
      %v11142 = vmul.f32 %v7949, %v11141
      %v11143 = vsub.f32 1.0, %v11142
      %v11144 = vmul.f32 %v11141, %v11143
      %v11145 = vadd.f32 %v11141, %v11144
      %vm11146 = vweird.f32 %v7949
      %vm11147 = vweird.f32 %v11141
      %vm11148 = vmor %vm11146, %vm11147
      %v11149 = vsel %vm11148, %v11141, %v11145
      %v11150 = vand.u32 2147483647, %v7949
      %vm11151 = vcmp.eq.f32.partialorder %v11150, 8.507059e+37
      %v11152 = vand.u32 %v7949, 2147483648
      %v11153 = vor.u32 1.1754944e-38, %v11152
      %v11154 = vsel %vm11151, %v11153, %v11149
      %v11155 = vmul.f32 %v9613, %v11154
      %v11156 = vrcp.pop %v7958
      %v11157 = vmul.f32 %v7958, %v11156
      %v11158 = vsub.f32 1.0, %v11157
      %v11159 = vmul.f32 %v11156, %v11158
      %v11160 = vadd.f32 %v11156, %v11159
      %vm11161 = vweird.f32 %v7958
      %vm11162 = vweird.f32 %v11156
      %vm11163 = vmor %vm11161, %vm11162
      %v11164 = vsel %vm11163, %v11156, %v11160
      %v11165 = vand.u32 2147483647, %v7958
      %vm11166 = vcmp.eq.f32.partialorder %v11165, 8.507059e+37
      %v11167 = vand.u32 %v7958, 2147483648
      %v11168 = vor.u32 1.1754944e-38, %v11167
      %v11169 = vsel %vm11166, %v11168, %v11164
      %v11170 = vmul.f32 %v9622, %v11169
      %v11171 = vrcp.pop %v7967
      %v11172 = vmul.f32 %v7967, %v11171
      %v11173 = vsub.f32 1.0, %v11172
      %v11174 = vmul.f32 %v11171, %v11173
      %v11175 = vadd.f32 %v11171, %v11174
      %vm11176 = vweird.f32 %v7967
      %vm11177 = vweird.f32 %v11171
      %vm11178 = vmor %vm11176, %vm11177
      %v11179 = vsel %vm11178, %v11171, %v11175
      %v11180 = vand.u32 2147483647, %v7967
      %vm11181 = vcmp.eq.f32.partialorder %v11180, 8.507059e+37
      %v11182 = vand.u32 %v7967, 2147483648
      %v11183 = vor.u32 1.1754944e-38, %v11182
      %v11184 = vsel %vm11181, %v11183, %v11179
      %v11185 = vmul.f32 %v9631, %v11184
      %v11186 = vrcp.pop %v7976
      %v11187 = vmul.f32 %v7976, %v11186
      %v11188 = vsub.f32 1.0, %v11187
      %v11189 = vmul.f32 %v11186, %v11188
      %v11190 = vadd.f32 %v11186, %v11189
      %vm11191 = vweird.f32 %v7976
      %vm11192 = vweird.f32 %v11186
      %vm11193 = vmor %vm11191, %vm11192
      %v11194 = vsel %vm11193, %v11186, %v11190
      %v11195 = vand.u32 2147483647, %v7976
      %vm11196 = vcmp.eq.f32.partialorder %v11195, 8.507059e+37
      %v11197 = vand.u32 %v7976, 2147483648
      %v11198 = vor.u32 1.1754944e-38, %v11197
      %v11199 = vsel %vm11196, %v11198, %v11194
      %v11200 = vmul.f32 %v9640, %v11199
      %v11201 = vrcp.pop %v7985
      %v11202 = vmul.f32 %v7985, %v11201
      %v11203 = vsub.f32 1.0, %v11202
      %v11204 = vmul.f32 %v11201, %v11203
      %v11205 = vadd.f32 %v11201, %v11204
      %vm11206 = vweird.f32 %v7985
      %vm11207 = vweird.f32 %v11201
      %vm11208 = vmor %vm11206, %vm11207
      %v11209 = vsel %vm11208, %v11201, %v11205
      %v11210 = vand.u32 2147483647, %v7985
      %vm11211 = vcmp.eq.f32.partialorder %v11210, 8.507059e+37
      %v11212 = vand.u32 %v7985, 2147483648
      %v11213 = vor.u32 1.1754944e-38, %v11212
      %v11214 = vsel %vm11211, %v11213, %v11209
      %v11215 = vmul.f32 %v9649, %v11214
      %v11216 = vrcp.pop %v7994
      %v11217 = vmul.f32 %v7994, %v11216
      %v11218 = vsub.f32 1.0, %v11217
      %v11219 = vmul.f32 %v11216, %v11218
      %v11220 = vadd.f32 %v11216, %v11219
      %vm11221 = vweird.f32 %v7994
      %vm11222 = vweird.f32 %v11216
      %vm11223 = vmor %vm11221, %vm11222
      %v11224 = vsel %vm11223, %v11216, %v11220
      %v11225 = vand.u32 2147483647, %v7994
      %vm11226 = vcmp.eq.f32.partialorder %v11225, 8.507059e+37
      %v11227 = vand.u32 %v7994, 2147483648
      %v11228 = vor.u32 1.1754944e-38, %v11227
      %v11229 = vsel %vm11226, %v11228, %v11224
      %v11230 = vmul.f32 %v9658, %v11229
      %v11231 = vrcp.pop %v8003
      %v11232 = vmul.f32 %v8003, %v11231
      %v11233 = vsub.f32 1.0, %v11232
      %v11234 = vmul.f32 %v11231, %v11233
      %v11235 = vadd.f32 %v11231, %v11234
      %vm11236 = vweird.f32 %v8003
      %vm11237 = vweird.f32 %v11231
      %vm11238 = vmor %vm11236, %vm11237
      %v11239 = vsel %vm11238, %v11231, %v11235
      %v11240 = vand.u32 2147483647, %v8003
      %vm11241 = vcmp.eq.f32.partialorder %v11240, 8.507059e+37
      %v11242 = vand.u32 %v8003, 2147483648
      %v11243 = vor.u32 1.1754944e-38, %v11242
      %v11244 = vsel %vm11241, %v11243, %v11239
      %v11245 = vmul.f32 %v9667, %v11244
      %v11246 = vrcp.pop %v8012
      %v11247 = vmul.f32 %v8012, %v11246
      %v11248 = vsub.f32 1.0, %v11247
      %v11249 = vmul.f32 %v11246, %v11248
      %v11250 = vadd.f32 %v11246, %v11249
      %vm11251 = vweird.f32 %v8012
      %vm11252 = vweird.f32 %v11246
      %vm11253 = vmor %vm11251, %vm11252
      %v11254 = vsel %vm11253, %v11246, %v11250
      %v11255 = vand.u32 2147483647, %v8012
      %vm11256 = vcmp.eq.f32.partialorder %v11255, 8.507059e+37
      %v11257 = vand.u32 %v8012, 2147483648
      %v11258 = vor.u32 1.1754944e-38, %v11257
      %v11259 = vsel %vm11256, %v11258, %v11254
      %v11260 = vmul.f32 %v9676, %v11259
      %v11261 = vrcp.pop %v8021
      %v11262 = vmul.f32 %v8021, %v11261
      %v11263 = vsub.f32 1.0, %v11262
      %v11264 = vmul.f32 %v11261, %v11263
      %v11265 = vadd.f32 %v11261, %v11264
      %vm11266 = vweird.f32 %v8021
      %vm11267 = vweird.f32 %v11261
      %vm11268 = vmor %vm11266, %vm11267
      %v11269 = vsel %vm11268, %v11261, %v11265
      %v11270 = vand.u32 2147483647, %v8021
      %vm11271 = vcmp.eq.f32.partialorder %v11270, 8.507059e+37
      %v11272 = vand.u32 %v8021, 2147483648
      %v11273 = vor.u32 1.1754944e-38, %v11272
      %v11274 = vsel %vm11271, %v11273, %v11269
      %v11275 = vmul.f32 %v9685, %v11274
      %v11276 = vrcp.pop %v8030
      %v11277 = vmul.f32 %v8030, %v11276
      %v11278 = vsub.f32 1.0, %v11277
      %v11279 = vmul.f32 %v11276, %v11278
      %v11280 = vadd.f32 %v11276, %v11279
      %vm11281 = vweird.f32 %v8030
      %vm11282 = vweird.f32 %v11276
      %vm11283 = vmor %vm11281, %vm11282
      %v11284 = vsel %vm11283, %v11276, %v11280
      %v11285 = vand.u32 2147483647, %v8030
      %vm11286 = vcmp.eq.f32.partialorder %v11285, 8.507059e+37
      %v11287 = vand.u32 %v8030, 2147483648
      %v11288 = vor.u32 1.1754944e-38, %v11287
      %v11289 = vsel %vm11286, %v11288, %v11284
      %v11290 = vmul.f32 %v9694, %v11289
      %v11291 = vrcp.pop %v8039
      %v11292 = vmul.f32 %v8039, %v11291
      %v11293 = vsub.f32 1.0, %v11292
      %v11294 = vmul.f32 %v11291, %v11293
      %v11295 = vadd.f32 %v11291, %v11294
      %vm11296 = vweird.f32 %v8039
      %vm11297 = vweird.f32 %v11291
      %vm11298 = vmor %vm11296, %vm11297
      %v11299 = vsel %vm11298, %v11291, %v11295
      %v11300 = vand.u32 2147483647, %v8039
      %vm11301 = vcmp.eq.f32.partialorder %v11300, 8.507059e+37
      %v11302 = vand.u32 %v8039, 2147483648
      %v11303 = vor.u32 1.1754944e-38, %v11302
      %v11304 = vsel %vm11301, %v11303, %v11299
      %v11305 = vmul.f32 %v9703, %v11304
      %v11306 = vrcp.pop %v8048
      %v11307 = vmul.f32 %v8048, %v11306
      %v11308 = vsub.f32 1.0, %v11307
      %v11309 = vmul.f32 %v11306, %v11308
      %v11310 = vadd.f32 %v11306, %v11309
      %vm11311 = vweird.f32 %v8048
      %vm11312 = vweird.f32 %v11306
      %vm11313 = vmor %vm11311, %vm11312
      %v11314 = vsel %vm11313, %v11306, %v11310
      %v11315 = vand.u32 2147483647, %v8048
      %vm11316 = vcmp.eq.f32.partialorder %v11315, 8.507059e+37
      %v11317 = vand.u32 %v8048, 2147483648
      %v11318 = vor.u32 1.1754944e-38, %v11317
      %v11319 = vsel %vm11316, %v11318, %v11314
      %v11320 = vmul.f32 %v9712, %v11319
      %v11321 = vrcp.pop %v8057
      %v11322 = vmul.f32 %v8057, %v11321
      %v11323 = vsub.f32 1.0, %v11322
      %v11324 = vmul.f32 %v11321, %v11323
      %v11325 = vadd.f32 %v11321, %v11324
      %vm11326 = vweird.f32 %v8057
      %vm11327 = vweird.f32 %v11321
      %vm11328 = vmor %vm11326, %vm11327
      %v11329 = vsel %vm11328, %v11321, %v11325
      %v11330 = vand.u32 2147483647, %v8057
      %vm11331 = vcmp.eq.f32.partialorder %v11330, 8.507059e+37
      %v11332 = vand.u32 %v8057, 2147483648
      %v11333 = vor.u32 1.1754944e-38, %v11332
      %v11334 = vsel %vm11331, %v11333, %v11329
      %v11335 = vmul.f32 %v9721, %v11334
      %v11336 = vrcp.pop %v8066
      %v11337 = vmul.f32 %v8066, %v11336
      %v11338 = vsub.f32 1.0, %v11337
      %v11339 = vmul.f32 %v11336, %v11338
      %v11340 = vadd.f32 %v11336, %v11339
      %vm11341 = vweird.f32 %v8066
      %vm11342 = vweird.f32 %v11336
      %vm11343 = vmor %vm11341, %vm11342
      %v11344 = vsel %vm11343, %v11336, %v11340
      %v11345 = vand.u32 2147483647, %v8066
      %vm11346 = vcmp.eq.f32.partialorder %v11345, 8.507059e+37
      %v11347 = vand.u32 %v8066, 2147483648
      %v11348 = vor.u32 1.1754944e-38, %v11347
      %v11349 = vsel %vm11346, %v11348, %v11344
      %v11350 = vmul.f32 %v9730, %v11349
      %v11351 = vrcp.pop %v8075
      %v11352 = vmul.f32 %v8075, %v11351
      %v11353 = vsub.f32 1.0, %v11352
      %v11354 = vmul.f32 %v11351, %v11353
      %v11355 = vadd.f32 %v11351, %v11354
      %vm11356 = vweird.f32 %v8075
      %vm11357 = vweird.f32 %v11351
      %vm11358 = vmor %vm11356, %vm11357
      %v11359 = vsel %vm11358, %v11351, %v11355
      %v11360 = vand.u32 2147483647, %v8075
      %vm11361 = vcmp.eq.f32.partialorder %v11360, 8.507059e+37
      %v11362 = vand.u32 %v8075, 2147483648
      %v11363 = vor.u32 1.1754944e-38, %v11362
      %v11364 = vsel %vm11361, %v11363, %v11359
      %v11365 = vmul.f32 %v9739, %v11364
      %v11366 = vrcp.pop %v8084
      %v11367 = vmul.f32 %v8084, %v11366
      %v11368 = vsub.f32 1.0, %v11367
      %v11369 = vmul.f32 %v11366, %v11368
      %v11370 = vadd.f32 %v11366, %v11369
      %vm11371 = vweird.f32 %v8084
      %vm11372 = vweird.f32 %v11366
      %vm11373 = vmor %vm11371, %vm11372
      %v11374 = vsel %vm11373, %v11366, %v11370
      %v11375 = vand.u32 2147483647, %v8084
      %vm11376 = vcmp.eq.f32.partialorder %v11375, 8.507059e+37
      %v11377 = vand.u32 %v8084, 2147483648
      %v11378 = vor.u32 1.1754944e-38, %v11377
      %v11379 = vsel %vm11376, %v11378, %v11374
      %v11380 = vmul.f32 %v9748, %v11379
      %v11381 = vrcp.pop %v8093
      %v11382 = vmul.f32 %v8093, %v11381
      %v11383 = vsub.f32 1.0, %v11382
      %v11384 = vmul.f32 %v11381, %v11383
      %v11385 = vadd.f32 %v11381, %v11384
      %vm11386 = vweird.f32 %v8093
      %vm11387 = vweird.f32 %v11381
      %vm11388 = vmor %vm11386, %vm11387
      %v11389 = vsel %vm11388, %v11381, %v11385
      %v11390 = vand.u32 2147483647, %v8093
      %vm11391 = vcmp.eq.f32.partialorder %v11390, 8.507059e+37
      %v11392 = vand.u32 %v8093, 2147483648
      %v11393 = vor.u32 1.1754944e-38, %v11392
      %v11394 = vsel %vm11391, %v11393, %v11389
      %v11395 = vmul.f32 %v9757, %v11394
      %v11396 = vrcp.pop %v8102
      %v11397 = vmul.f32 %v8102, %v11396
      %v11398 = vsub.f32 1.0, %v11397
      %v11399 = vmul.f32 %v11396, %v11398
      %v11400 = vadd.f32 %v11396, %v11399
      %vm11401 = vweird.f32 %v8102
      %vm11402 = vweird.f32 %v11396
      %vm11403 = vmor %vm11401, %vm11402
      %v11404 = vsel %vm11403, %v11396, %v11400
      %v11405 = vand.u32 2147483647, %v8102
      %vm11406 = vcmp.eq.f32.partialorder %v11405, 8.507059e+37
      %v11407 = vand.u32 %v8102, 2147483648
      %v11408 = vor.u32 1.1754944e-38, %v11407
      %v11409 = vsel %vm11406, %v11408, %v11404
      %v11410 = vmul.f32 %v9766, %v11409
      %v11411 = vrcp.pop %v8111
      %v11412 = vmul.f32 %v8111, %v11411
      %v11413 = vsub.f32 1.0, %v11412
      %v11414 = vmul.f32 %v11411, %v11413
      %v11415 = vadd.f32 %v11411, %v11414
      %vm11416 = vweird.f32 %v8111
      %vm11417 = vweird.f32 %v11411
      %vm11418 = vmor %vm11416, %vm11417
      %v11419 = vsel %vm11418, %v11411, %v11415
      %v11420 = vand.u32 2147483647, %v8111
      %vm11421 = vcmp.eq.f32.partialorder %v11420, 8.507059e+37
      %v11422 = vand.u32 %v8111, 2147483648
      %v11423 = vor.u32 1.1754944e-38, %v11422
      %v11424 = vsel %vm11421, %v11423, %v11419
      %v11425 = vmul.f32 %v9775, %v11424
      %v11426 = vrcp.pop %v8120
      %v11427 = vmul.f32 %v8120, %v11426
      %v11428 = vsub.f32 1.0, %v11427
      %v11429 = vmul.f32 %v11426, %v11428
      %v11430 = vadd.f32 %v11426, %v11429
      %vm11431 = vweird.f32 %v8120
      %vm11432 = vweird.f32 %v11426
      %vm11433 = vmor %vm11431, %vm11432
      %v11434 = vsel %vm11433, %v11426, %v11430
      %v11435 = vand.u32 2147483647, %v8120
      %vm11436 = vcmp.eq.f32.partialorder %v11435, 8.507059e+37
      %v11437 = vand.u32 %v8120, 2147483648
      %v11438 = vor.u32 1.1754944e-38, %v11437
      %v11439 = vsel %vm11436, %v11438, %v11434
      %v11440 = vmul.f32 %v9784, %v11439
      %v11441 = vrcp.pop %v8129
      %v11442 = vmul.f32 %v8129, %v11441
      %v11443 = vsub.f32 1.0, %v11442
      %v11444 = vmul.f32 %v11441, %v11443
      %v11445 = vadd.f32 %v11441, %v11444
      %vm11446 = vweird.f32 %v8129
      %vm11447 = vweird.f32 %v11441
      %vm11448 = vmor %vm11446, %vm11447
      %v11449 = vsel %vm11448, %v11441, %v11445
      %v11450 = vand.u32 2147483647, %v8129
      %vm11451 = vcmp.eq.f32.partialorder %v11450, 8.507059e+37
      %v11452 = vand.u32 %v8129, 2147483648
      %v11453 = vor.u32 1.1754944e-38, %v11452
      %v11454 = vsel %vm11451, %v11453, %v11449
      %v11455 = vmul.f32 %v9793, %v11454
      %v11456 = vrcp.pop %v8138
      %v11457 = vmul.f32 %v8138, %v11456
      %v11458 = vsub.f32 1.0, %v11457
      %v11459 = vmul.f32 %v11456, %v11458
      %v11460 = vadd.f32 %v11456, %v11459
      %vm11461 = vweird.f32 %v8138
      %vm11462 = vweird.f32 %v11456
      %vm11463 = vmor %vm11461, %vm11462
      %v11464 = vsel %vm11463, %v11456, %v11460
      %v11465 = vand.u32 2147483647, %v8138
      %vm11466 = vcmp.eq.f32.partialorder %v11465, 8.507059e+37
      %v11467 = vand.u32 %v8138, 2147483648
      %v11468 = vor.u32 1.1754944e-38, %v11467
      %v11469 = vsel %vm11466, %v11468, %v11464
      %v11470 = vmul.f32 %v9802, %v11469
      %v11471 = vrcp.pop %v8147
      %v11472 = vmul.f32 %v8147, %v11471
      %v11473 = vsub.f32 1.0, %v11472
      %v11474 = vmul.f32 %v11471, %v11473
      %v11475 = vadd.f32 %v11471, %v11474
      %vm11476 = vweird.f32 %v8147
      %vm11477 = vweird.f32 %v11471
      %vm11478 = vmor %vm11476, %vm11477
      %v11479 = vsel %vm11478, %v11471, %v11475
      %v11480 = vand.u32 2147483647, %v8147
      %vm11481 = vcmp.eq.f32.partialorder %v11480, 8.507059e+37
      %v11482 = vand.u32 %v8147, 2147483648
      %v11483 = vor.u32 1.1754944e-38, %v11482
      %v11484 = vsel %vm11481, %v11483, %v11479
      %v11485 = vmul.f32 %v9811, %v11484
      %v11486 = vrcp.pop %v8156
      %v11487 = vmul.f32 %v8156, %v11486
      %v11488 = vsub.f32 1.0, %v11487
      %v11489 = vmul.f32 %v11486, %v11488
      %v11490 = vadd.f32 %v11486, %v11489
      %vm11491 = vweird.f32 %v8156
      %vm11492 = vweird.f32 %v11486
      %vm11493 = vmor %vm11491, %vm11492
      %v11494 = vsel %vm11493, %v11486, %v11490
      %v11495 = vand.u32 2147483647, %v8156
      %vm11496 = vcmp.eq.f32.partialorder %v11495, 8.507059e+37
      %v11497 = vand.u32 %v8156, 2147483648
      %v11498 = vor.u32 1.1754944e-38, %v11497
      %v11499 = vsel %vm11496, %v11498, %v11494
      %v11500 = vmul.f32 %v9820, %v11499
      %v11501 = vrcp.pop %v8165
      %v11502 = vmul.f32 %v8165, %v11501
      %v11503 = vsub.f32 1.0, %v11502
      %v11504 = vmul.f32 %v11501, %v11503
      %v11505 = vadd.f32 %v11501, %v11504
      %vm11506 = vweird.f32 %v8165
      %vm11507 = vweird.f32 %v11501
      %vm11508 = vmor %vm11506, %vm11507
      %v11509 = vsel %vm11508, %v11501, %v11505
      %v11510 = vand.u32 2147483647, %v8165
      %vm11511 = vcmp.eq.f32.partialorder %v11510, 8.507059e+37
      %v11512 = vand.u32 %v8165, 2147483648
      %v11513 = vor.u32 1.1754944e-38, %v11512
      %v11514 = vsel %vm11511, %v11513, %v11509
      %v11515 = vmul.f32 %v9829, %v11514
      %v11516 = vrcp.pop %v8174
      %v11517 = vmul.f32 %v8174, %v11516
      %v11518 = vsub.f32 1.0, %v11517
      %v11519 = vmul.f32 %v11516, %v11518
      %v11520 = vadd.f32 %v11516, %v11519
      %vm11521 = vweird.f32 %v8174
      %vm11522 = vweird.f32 %v11516
      %vm11523 = vmor %vm11521, %vm11522
      %v11524 = vsel %vm11523, %v11516, %v11520
      %v11525 = vand.u32 2147483647, %v8174
      %vm11526 = vcmp.eq.f32.partialorder %v11525, 8.507059e+37
      %v11527 = vand.u32 %v8174, 2147483648
      %v11528 = vor.u32 1.1754944e-38, %v11527
      %v11529 = vsel %vm11526, %v11528, %v11524
      %v11530 = vmul.f32 %v9838, %v11529
      %v11531 = vrcp.pop %v8183
      %v11532 = vmul.f32 %v8183, %v11531
      %v11533 = vsub.f32 1.0, %v11532
      %v11534 = vmul.f32 %v11531, %v11533
      %v11535 = vadd.f32 %v11531, %v11534
      %vm11536 = vweird.f32 %v8183
      %vm11537 = vweird.f32 %v11531
      %vm11538 = vmor %vm11536, %vm11537
      %v11539 = vsel %vm11538, %v11531, %v11535
      %v11540 = vand.u32 2147483647, %v8183
      %vm11541 = vcmp.eq.f32.partialorder %v11540, 8.507059e+37
      %v11542 = vand.u32 %v8183, 2147483648
      %v11543 = vor.u32 1.1754944e-38, %v11542
      %v11544 = vsel %vm11541, %v11543, %v11539
      %v11545 = vmul.f32 %v9847, %v11544
      %v11546 = vrcp.pop %v8192
      %v11547 = vmul.f32 %v8192, %v11546
      %v11548 = vsub.f32 1.0, %v11547
      %v11549 = vmul.f32 %v11546, %v11548
      %v11550 = vadd.f32 %v11546, %v11549
      %vm11551 = vweird.f32 %v8192
      %vm11552 = vweird.f32 %v11546
      %vm11553 = vmor %vm11551, %vm11552
      %v11554 = vsel %vm11553, %v11546, %v11550
      %v11555 = vand.u32 2147483647, %v8192
      %vm11556 = vcmp.eq.f32.partialorder %v11555, 8.507059e+37
      %v11557 = vand.u32 %v8192, 2147483648
      %v11558 = vor.u32 1.1754944e-38, %v11557
      %v11559 = vsel %vm11556, %v11558, %v11554
      %v11560 = vmul.f32 %v9856, %v11559
      %v11561 = vrcp.pop %v8201
      %v11562 = vmul.f32 %v8201, %v11561
      %v11563 = vsub.f32 1.0, %v11562
      %v11564 = vmul.f32 %v11561, %v11563
      %v11565 = vadd.f32 %v11561, %v11564
      %vm11566 = vweird.f32 %v8201
      %vm11567 = vweird.f32 %v11561
      %vm11568 = vmor %vm11566, %vm11567
      %v11569 = vsel %vm11568, %v11561, %v11565
      %v11570 = vand.u32 2147483647, %v8201
      %vm11571 = vcmp.eq.f32.partialorder %v11570, 8.507059e+37
      %v11572 = vand.u32 %v8201, 2147483648
      %v11573 = vor.u32 1.1754944e-38, %v11572
      %v11574 = vsel %vm11571, %v11573, %v11569
      %v11575 = vmul.f32 %v9865, %v11574
      %v11576 = vrcp.pop %v8210
      %v11577 = vmul.f32 %v8210, %v11576
      %v11578 = vsub.f32 1.0, %v11577
      %v11579 = vmul.f32 %v11576, %v11578
      %v11580 = vadd.f32 %v11576, %v11579
      %vm11581 = vweird.f32 %v8210
      %vm11582 = vweird.f32 %v11576
      %vm11583 = vmor %vm11581, %vm11582
      %v11584 = vsel %vm11583, %v11576, %v11580
      %v11585 = vand.u32 2147483647, %v8210
      %vm11586 = vcmp.eq.f32.partialorder %v11585, 8.507059e+37
      %v11587 = vand.u32 %v8210, 2147483648
      %v11588 = vor.u32 1.1754944e-38, %v11587
      %v11589 = vsel %vm11586, %v11588, %v11584
      %v11590 = vmul.f32 %v9874, %v11589
      %v11591 = vrcp.pop %v8219
      %v11592 = vmul.f32 %v8219, %v11591
      %v11593 = vsub.f32 1.0, %v11592
      %v11594 = vmul.f32 %v11591, %v11593
      %v11595 = vadd.f32 %v11591, %v11594
      %vm11596 = vweird.f32 %v8219
      %vm11597 = vweird.f32 %v11591
      %vm11598 = vmor %vm11596, %vm11597
      %v11599 = vsel %vm11598, %v11591, %v11595
      %v11600 = vand.u32 2147483647, %v8219
      %vm11601 = vcmp.eq.f32.partialorder %v11600, 8.507059e+37
      %v11602 = vand.u32 %v8219, 2147483648
      %v11603 = vor.u32 1.1754944e-38, %v11602
      %v11604 = vsel %vm11601, %v11603, %v11599
      %v11605 = vmul.f32 %v9883, %v11604
      %v11606 = vrcp.pop %v8228
      %v11607 = vmul.f32 %v8228, %v11606
      %v11608 = vsub.f32 1.0, %v11607
      %v11609 = vmul.f32 %v11606, %v11608
      %v11610 = vadd.f32 %v11606, %v11609
      %vm11611 = vweird.f32 %v8228
      %vm11612 = vweird.f32 %v11606
      %vm11613 = vmor %vm11611, %vm11612
      %v11614 = vsel %vm11613, %v11606, %v11610
      %v11615 = vand.u32 2147483647, %v8228
      %vm11616 = vcmp.eq.f32.partialorder %v11615, 8.507059e+37
      %v11617 = vand.u32 %v8228, 2147483648
      %v11618 = vor.u32 1.1754944e-38, %v11617
      %v11619 = vsel %vm11616, %v11618, %v11614
      %v11620 = vmul.f32 %v9892, %v11619
      %v11621 = vrcp.pop %v8237
      %v11622 = vmul.f32 %v8237, %v11621
      %v11623 = vsub.f32 1.0, %v11622
      %v11624 = vmul.f32 %v11621, %v11623
      %v11625 = vadd.f32 %v11621, %v11624
      %vm11626 = vweird.f32 %v8237
      %vm11627 = vweird.f32 %v11621
      %vm11628 = vmor %vm11626, %vm11627
      %v11629 = vsel %vm11628, %v11621, %v11625
      %v11630 = vand.u32 2147483647, %v8237
      %vm11631 = vcmp.eq.f32.partialorder %v11630, 8.507059e+37
      %v11632 = vand.u32 %v8237, 2147483648
      %v11633 = vor.u32 1.1754944e-38, %v11632
      %v11634 = vsel %vm11631, %v11633, %v11629
      %v11635 = vmul.f32 %v9901, %v11634
      %v11636 = vrcp.pop %v8246
      %v11637 = vmul.f32 %v8246, %v11636
      %v11638 = vsub.f32 1.0, %v11637
      %v11639 = vmul.f32 %v11636, %v11638
      %v11640 = vadd.f32 %v11636, %v11639
      %vm11641 = vweird.f32 %v8246
      %vm11642 = vweird.f32 %v11636
      %vm11643 = vmor %vm11641, %vm11642
      %v11644 = vsel %vm11643, %v11636, %v11640
      %v11645 = vand.u32 2147483647, %v8246
      %vm11646 = vcmp.eq.f32.partialorder %v11645, 8.507059e+37
      %v11647 = vand.u32 %v8246, 2147483648
      %v11648 = vor.u32 1.1754944e-38, %v11647
      %v11649 = vsel %vm11646, %v11648, %v11644
      %v11650 = vmul.f32 %v9910, %v11649
      %v11651 = vrcp.pop %v8255
      %v11652 = vmul.f32 %v8255, %v11651
      %v11653 = vsub.f32 1.0, %v11652
      %v11654 = vmul.f32 %v11651, %v11653
      %v11655 = vadd.f32 %v11651, %v11654
      %vm11656 = vweird.f32 %v8255
      %vm11657 = vweird.f32 %v11651
      %vm11658 = vmor %vm11656, %vm11657
      %v11659 = vsel %vm11658, %v11651, %v11655
      %v11660 = vand.u32 2147483647, %v8255
      %vm11661 = vcmp.eq.f32.partialorder %v11660, 8.507059e+37
      %v11662 = vand.u32 %v8255, 2147483648
      %v11663 = vor.u32 1.1754944e-38, %v11662
      %v11664 = vsel %vm11661, %v11663, %v11659
      %v11665 = vmul.f32 %v9919, %v11664
      %v11666 = vrcp.pop %v8264
      %v11667 = vmul.f32 %v8264, %v11666
      %v11668 = vsub.f32 1.0, %v11667
      %v11669 = vmul.f32 %v11666, %v11668
      %v11670 = vadd.f32 %v11666, %v11669
      %vm11671 = vweird.f32 %v8264
      %vm11672 = vweird.f32 %v11666
      %vm11673 = vmor %vm11671, %vm11672
      %v11674 = vsel %vm11673, %v11666, %v11670
      %v11675 = vand.u32 2147483647, %v8264
      %vm11676 = vcmp.eq.f32.partialorder %v11675, 8.507059e+37
      %v11677 = vand.u32 %v8264, 2147483648
      %v11678 = vor.u32 1.1754944e-38, %v11677
      %v11679 = vsel %vm11676, %v11678, %v11674
      %v11680 = vmul.f32 %v9928, %v11679
      %v11681 = vrcp.pop %v8273
      %v11682 = vmul.f32 %v8273, %v11681
      %v11683 = vsub.f32 1.0, %v11682
      %v11684 = vmul.f32 %v11681, %v11683
      %v11685 = vadd.f32 %v11681, %v11684
      %vm11686 = vweird.f32 %v8273
      %vm11687 = vweird.f32 %v11681
      %vm11688 = vmor %vm11686, %vm11687
      %v11689 = vsel %vm11688, %v11681, %v11685
      %v11690 = vand.u32 2147483647, %v8273
      %vm11691 = vcmp.eq.f32.partialorder %v11690, 8.507059e+37
      %v11692 = vand.u32 %v8273, 2147483648
      %v11693 = vor.u32 1.1754944e-38, %v11692
      %v11694 = vsel %vm11691, %v11693, %v11689
      %v11695 = vmul.f32 %v9937, %v11694
      %v11696 = vrcp.pop %v8282
      %v11697 = vmul.f32 %v8282, %v11696
      %v11698 = vsub.f32 1.0, %v11697
      %v11699 = vmul.f32 %v11696, %v11698
      %v11700 = vadd.f32 %v11696, %v11699
      %vm11701 = vweird.f32 %v8282
      %vm11702 = vweird.f32 %v11696
      %vm11703 = vmor %vm11701, %vm11702
      %v11704 = vsel %vm11703, %v11696, %v11700
      %v11705 = vand.u32 2147483647, %v8282
      %vm11706 = vcmp.eq.f32.partialorder %v11705, 8.507059e+37
      %v11707 = vand.u32 %v8282, 2147483648
      %v11708 = vor.u32 1.1754944e-38, %v11707
      %v11709 = vsel %vm11706, %v11708, %v11704
      %v11710 = vmul.f32 %v9946, %v11709
      %v11711 = vrcp.pop %v8291
      %v11712 = vmul.f32 %v8291, %v11711
      %v11713 = vsub.f32 1.0, %v11712
      %v11714 = vmul.f32 %v11711, %v11713
      %v11715 = vadd.f32 %v11711, %v11714
      %vm11716 = vweird.f32 %v8291
      %vm11717 = vweird.f32 %v11711
      %vm11718 = vmor %vm11716, %vm11717
      %v11719 = vsel %vm11718, %v11711, %v11715
      %v11720 = vand.u32 2147483647, %v8291
      %vm11721 = vcmp.eq.f32.partialorder %v11720, 8.507059e+37
      %v11722 = vand.u32 %v8291, 2147483648
      %v11723 = vor.u32 1.1754944e-38, %v11722
      %v11724 = vsel %vm11721, %v11723, %v11719
      %v11725 = vmul.f32 %v9955, %v11724
      %v11726 = vrcp.pop %v8300
      %v11727 = vmul.f32 %v8300, %v11726
      %v11728 = vsub.f32 1.0, %v11727
      %v11729 = vmul.f32 %v11726, %v11728
      %v11730 = vadd.f32 %v11726, %v11729
      %vm11731 = vweird.f32 %v8300
      %vm11732 = vweird.f32 %v11726
      %vm11733 = vmor %vm11731, %vm11732
      %v11734 = vsel %vm11733, %v11726, %v11730
      %v11735 = vand.u32 2147483647, %v8300
      %vm11736 = vcmp.eq.f32.partialorder %v11735, 8.507059e+37
      %v11737 = vand.u32 %v8300, 2147483648
      %v11738 = vor.u32 1.1754944e-38, %v11737
      %v11739 = vsel %vm11736, %v11738, %v11734
      %v11740 = vmul.f32 %v9964, %v11739
      %v11741 = vrcp.pop %v8309
      %v11742 = vmul.f32 %v8309, %v11741
      %v11743 = vsub.f32 1.0, %v11742
      %v11744 = vmul.f32 %v11741, %v11743
      %v11745 = vadd.f32 %v11741, %v11744
      %vm11746 = vweird.f32 %v8309
      %vm11747 = vweird.f32 %v11741
      %vm11748 = vmor %vm11746, %vm11747
      %v11749 = vsel %vm11748, %v11741, %v11745
      %v11750 = vand.u32 2147483647, %v8309
      %vm11751 = vcmp.eq.f32.partialorder %v11750, 8.507059e+37
      %v11752 = vand.u32 %v8309, 2147483648
      %v11753 = vor.u32 1.1754944e-38, %v11752
      %v11754 = vsel %vm11751, %v11753, %v11749
      %v11755 = vmul.f32 %v9973, %v11754
      %v11756 = vrcp.pop %v8318
      %v11757 = vmul.f32 %v8318, %v11756
      %v11758 = vsub.f32 1.0, %v11757
      %v11759 = vmul.f32 %v11756, %v11758
      %v11760 = vadd.f32 %v11756, %v11759
      %vm11761 = vweird.f32 %v8318
      %vm11762 = vweird.f32 %v11756
      %vm11763 = vmor %vm11761, %vm11762
      %v11764 = vsel %vm11763, %v11756, %v11760
      %v11765 = vand.u32 2147483647, %v8318
      %vm11766 = vcmp.eq.f32.partialorder %v11765, 8.507059e+37
      %v11767 = vand.u32 %v8318, 2147483648
      %v11768 = vor.u32 1.1754944e-38, %v11767
      %v11769 = vsel %vm11766, %v11768, %v11764
      %v11770 = vmul.f32 %v9982, %v11769
      %v11771 = vrcp.pop %v8327
      %v11772 = vmul.f32 %v8327, %v11771
      %v11773 = vsub.f32 1.0, %v11772
      %v11774 = vmul.f32 %v11771, %v11773
      %v11775 = vadd.f32 %v11771, %v11774
      %vm11776 = vweird.f32 %v8327
      %vm11777 = vweird.f32 %v11771
      %vm11778 = vmor %vm11776, %vm11777
      %v11779 = vsel %vm11778, %v11771, %v11775
      %v11780 = vand.u32 2147483647, %v8327
      %vm11781 = vcmp.eq.f32.partialorder %v11780, 8.507059e+37
      %v11782 = vand.u32 %v8327, 2147483648
      %v11783 = vor.u32 1.1754944e-38, %v11782
      %v11784 = vsel %vm11781, %v11783, %v11779
      %v11785 = vmul.f32 %v9991, %v11784
      %v11786 = vrcp.pop %v8336
      %v11787 = vmul.f32 %v8336, %v11786
      %v11788 = vsub.f32 1.0, %v11787
      %v11789 = vmul.f32 %v11786, %v11788
      %v11790 = vadd.f32 %v11786, %v11789
      %vm11791 = vweird.f32 %v8336
      %vm11792 = vweird.f32 %v11786
      %vm11793 = vmor %vm11791, %vm11792
      %v11794 = vsel %vm11793, %v11786, %v11790
      %v11795 = vand.u32 2147483647, %v8336
      %vm11796 = vcmp.eq.f32.partialorder %v11795, 8.507059e+37
      %v11797 = vand.u32 %v8336, 2147483648
      %v11798 = vor.u32 1.1754944e-38, %v11797
      %v11799 = vsel %vm11796, %v11798, %v11794
      %v11800 = vmul.f32 %v10000, %v11799
      %v11801 = vrcp.pop %v8345
      %v11802 = vmul.f32 %v8345, %v11801
      %v11803 = vsub.f32 1.0, %v11802
      %v11804 = vmul.f32 %v11801, %v11803
      %v11805 = vadd.f32 %v11801, %v11804
      %vm11806 = vweird.f32 %v8345
      %vm11807 = vweird.f32 %v11801
      %vm11808 = vmor %vm11806, %vm11807
      %v11809 = vsel %vm11808, %v11801, %v11805
      %v11810 = vand.u32 2147483647, %v8345
      %vm11811 = vcmp.eq.f32.partialorder %v11810, 8.507059e+37
      %v11812 = vand.u32 %v8345, 2147483648
      %v11813 = vor.u32 1.1754944e-38, %v11812
      %v11814 = vsel %vm11811, %v11813, %v11809
      %v11815 = vmul.f32 %v10009, %v11814
      %v11816 = vrcp.pop %v8354
      %v11817 = vmul.f32 %v8354, %v11816
      %v11818 = vsub.f32 1.0, %v11817
      %v11819 = vmul.f32 %v11816, %v11818
      %v11820 = vadd.f32 %v11816, %v11819
      %vm11821 = vweird.f32 %v8354
      %vm11822 = vweird.f32 %v11816
      %vm11823 = vmor %vm11821, %vm11822
      %v11824 = vsel %vm11823, %v11816, %v11820
      %v11825 = vand.u32 2147483647, %v8354
      %vm11826 = vcmp.eq.f32.partialorder %v11825, 8.507059e+37
      %v11827 = vand.u32 %v8354, 2147483648
      %v11828 = vor.u32 1.1754944e-38, %v11827
      %v11829 = vsel %vm11826, %v11828, %v11824
      %v11830 = vmul.f32 %v10018, %v11829
      %v11831 = vrcp.pop %v8363
      %v11832 = vmul.f32 %v8363, %v11831
      %v11833 = vsub.f32 1.0, %v11832
      %v11834 = vmul.f32 %v11831, %v11833
      %v11835 = vadd.f32 %v11831, %v11834
      %vm11836 = vweird.f32 %v8363
      %vm11837 = vweird.f32 %v11831
      %vm11838 = vmor %vm11836, %vm11837
      %v11839 = vsel %vm11838, %v11831, %v11835
      %v11840 = vand.u32 2147483647, %v8363
      %vm11841 = vcmp.eq.f32.partialorder %v11840, 8.507059e+37
      %v11842 = vand.u32 %v8363, 2147483648
      %v11843 = vor.u32 1.1754944e-38, %v11842
      %v11844 = vsel %vm11841, %v11843, %v11839
      %v11845 = vmul.f32 %v10027, %v11844
      %v11846 = vrcp.pop %v8372
      %v11847 = vmul.f32 %v8372, %v11846
      %v11848 = vsub.f32 1.0, %v11847
      %v11849 = vmul.f32 %v11846, %v11848
      %v11850 = vadd.f32 %v11846, %v11849
      %vm11851 = vweird.f32 %v8372
      %vm11852 = vweird.f32 %v11846
      %vm11853 = vmor %vm11851, %vm11852
      %v11854 = vsel %vm11853, %v11846, %v11850
      %v11855 = vand.u32 2147483647, %v8372
      %vm11856 = vcmp.eq.f32.partialorder %v11855, 8.507059e+37
      %v11857 = vand.u32 %v8372, 2147483648
      %v11858 = vor.u32 1.1754944e-38, %v11857
      %v11859 = vsel %vm11856, %v11858, %v11854
      %v11860 = vmul.f32 %v10036, %v11859
      %v11861 = vrcp.pop %v8381
      %v11862 = vmul.f32 %v8381, %v11861
      %v11863 = vsub.f32 1.0, %v11862
      %v11864 = vmul.f32 %v11861, %v11863
      %v11865 = vadd.f32 %v11861, %v11864
      %vm11866 = vweird.f32 %v8381
      %vm11867 = vweird.f32 %v11861
      %vm11868 = vmor %vm11866, %vm11867
      %v11869 = vsel %vm11868, %v11861, %v11865
      %v11870 = vand.u32 2147483647, %v8381
      %vm11871 = vcmp.eq.f32.partialorder %v11870, 8.507059e+37
      %v11872 = vand.u32 %v8381, 2147483648
      %v11873 = vor.u32 1.1754944e-38, %v11872
      %v11874 = vsel %vm11871, %v11873, %v11869
      %v11875 = vmul.f32 %v10045, %v11874
      %v11876 = vrcp.pop %v8390
      %v11877 = vmul.f32 %v8390, %v11876
      %v11878 = vsub.f32 1.0, %v11877
      %v11879 = vmul.f32 %v11876, %v11878
      %v11880 = vadd.f32 %v11876, %v11879
      %vm11881 = vweird.f32 %v8390
      %vm11882 = vweird.f32 %v11876
      %vm11883 = vmor %vm11881, %vm11882
      %v11884 = vsel %vm11883, %v11876, %v11880
      %v11885 = vand.u32 2147483647, %v8390
      %vm11886 = vcmp.eq.f32.partialorder %v11885, 8.507059e+37
      %v11887 = vand.u32 %v8390, 2147483648
      %v11888 = vor.u32 1.1754944e-38, %v11887
      %v11889 = vsel %vm11886, %v11888, %v11884
      %v11890 = vmul.f32 %v10054, %v11889
      %v11891 = vrcp.pop %v8399
      %v11892 = vmul.f32 %v8399, %v11891
      %v11893 = vsub.f32 1.0, %v11892
      %v11894 = vmul.f32 %v11891, %v11893
      %v11895 = vadd.f32 %v11891, %v11894
      %vm11896 = vweird.f32 %v8399
      %vm11897 = vweird.f32 %v11891
      %vm11898 = vmor %vm11896, %vm11897
      %v11899 = vsel %vm11898, %v11891, %v11895
      %v11900 = vand.u32 2147483647, %v8399
      %vm11901 = vcmp.eq.f32.partialorder %v11900, 8.507059e+37
      %v11902 = vand.u32 %v8399, 2147483648
      %v11903 = vor.u32 1.1754944e-38, %v11902
      %v11904 = vsel %vm11901, %v11903, %v11899
      %v11905 = vmul.f32 %v10063, %v11904
      %v11906 = vrcp.pop %v8408
      %v11907 = vmul.f32 %v8408, %v11906
      %v11908 = vsub.f32 1.0, %v11907
      %v11909 = vmul.f32 %v11906, %v11908
      %v11910 = vadd.f32 %v11906, %v11909
      %vm11911 = vweird.f32 %v8408
      %vm11912 = vweird.f32 %v11906
      %vm11913 = vmor %vm11911, %vm11912
      %v11914 = vsel %vm11913, %v11906, %v11910
      %v11915 = vand.u32 2147483647, %v8408
      %vm11916 = vcmp.eq.f32.partialorder %v11915, 8.507059e+37
      %v11917 = vand.u32 %v8408, 2147483648
      %v11918 = vor.u32 1.1754944e-38, %v11917
      %v11919 = vsel %vm11916, %v11918, %v11914
      %v11920 = vmul.f32 %v10072, %v11919
      %v11921 = vrcp.pop %v8417
      %v11922 = vmul.f32 %v8417, %v11921
      %v11923 = vsub.f32 1.0, %v11922
      %v11924 = vmul.f32 %v11921, %v11923
      %v11925 = vadd.f32 %v11921, %v11924
      %vm11926 = vweird.f32 %v8417
      %vm11927 = vweird.f32 %v11921
      %vm11928 = vmor %vm11926, %vm11927
      %v11929 = vsel %vm11928, %v11921, %v11925
      %v11930 = vand.u32 2147483647, %v8417
      %vm11931 = vcmp.eq.f32.partialorder %v11930, 8.507059e+37
      %v11932 = vand.u32 %v8417, 2147483648
      %v11933 = vor.u32 1.1754944e-38, %v11932
      %v11934 = vsel %vm11931, %v11933, %v11929
      %v11935 = vmul.f32 %v10081, %v11934
      %v11936 = vrcp.pop %v8426
      %v11937 = vmul.f32 %v8426, %v11936
      %v11938 = vsub.f32 1.0, %v11937
      %v11939 = vmul.f32 %v11936, %v11938
      %v11940 = vadd.f32 %v11936, %v11939
      %vm11941 = vweird.f32 %v8426
      %vm11942 = vweird.f32 %v11936
      %vm11943 = vmor %vm11941, %vm11942
      %v11944 = vsel %vm11943, %v11936, %v11940
      %v11945 = vand.u32 2147483647, %v8426
      %vm11946 = vcmp.eq.f32.partialorder %v11945, 8.507059e+37
      %v11947 = vand.u32 %v8426, 2147483648
      %v11948 = vor.u32 1.1754944e-38, %v11947
      %v11949 = vsel %vm11946, %v11948, %v11944
      %v11950 = vmul.f32 %v10090, %v11949
      %v11951 = vrcp.pop %v8435
      %v11952 = vmul.f32 %v8435, %v11951
      %v11953 = vsub.f32 1.0, %v11952
      %v11954 = vmul.f32 %v11951, %v11953
      %v11955 = vadd.f32 %v11951, %v11954
      %vm11956 = vweird.f32 %v8435
      %vm11957 = vweird.f32 %v11951
      %vm11958 = vmor %vm11956, %vm11957
      %v11959 = vsel %vm11958, %v11951, %v11955
      %v11960 = vand.u32 2147483647, %v8435
      %vm11961 = vcmp.eq.f32.partialorder %v11960, 8.507059e+37
      %v11962 = vand.u32 %v8435, 2147483648
      %v11963 = vor.u32 1.1754944e-38, %v11962
      %v11964 = vsel %vm11961, %v11963, %v11959
      %v11965 = vmul.f32 %v10099, %v11964
      %v11966 = vrcp.pop %v8444
      %v11967 = vmul.f32 %v8444, %v11966
      %v11968 = vsub.f32 1.0, %v11967
      %v11969 = vmul.f32 %v11966, %v11968
      %v11970 = vadd.f32 %v11966, %v11969
      %vm11971 = vweird.f32 %v8444
      %vm11972 = vweird.f32 %v11966
      %vm11973 = vmor %vm11971, %vm11972
      %v11974 = vsel %vm11973, %v11966, %v11970
      %v11975 = vand.u32 2147483647, %v8444
      %vm11976 = vcmp.eq.f32.partialorder %v11975, 8.507059e+37
      %v11977 = vand.u32 %v8444, 2147483648
      %v11978 = vor.u32 1.1754944e-38, %v11977
      %v11979 = vsel %vm11976, %v11978, %v11974
      %v11980 = vmul.f32 %v10108, %v11979
      %v11981 = vrcp.pop %v8453
      %v11982 = vmul.f32 %v8453, %v11981
      %v11983 = vsub.f32 1.0, %v11982
      %v11984 = vmul.f32 %v11981, %v11983
      %v11985 = vadd.f32 %v11981, %v11984
      %vm11986 = vweird.f32 %v8453
      %vm11987 = vweird.f32 %v11981
      %vm11988 = vmor %vm11986, %vm11987
      %v11989 = vsel %vm11988, %v11981, %v11985
      %v11990 = vand.u32 2147483647, %v8453
      %vm11991 = vcmp.eq.f32.partialorder %v11990, 8.507059e+37
      %v11992 = vand.u32 %v8453, 2147483648
      %v11993 = vor.u32 1.1754944e-38, %v11992
      %v11994 = vsel %vm11991, %v11993, %v11989
      %v11995 = vmul.f32 %v10117, %v11994
      %v11996 = vrcp.pop %v8462
      %v11997 = vmul.f32 %v8462, %v11996
      %v11998 = vsub.f32 1.0, %v11997
      %v11999 = vmul.f32 %v11996, %v11998
      %v12000 = vadd.f32 %v11996, %v11999
      %vm12001 = vweird.f32 %v8462
      %vm12002 = vweird.f32 %v11996
      %vm12003 = vmor %vm12001, %vm12002
      %v12004 = vsel %vm12003, %v11996, %v12000
      %v12005 = vand.u32 2147483647, %v8462
      %vm12006 = vcmp.eq.f32.partialorder %v12005, 8.507059e+37
      %v12007 = vand.u32 %v8462, 2147483648
      %v12008 = vor.u32 1.1754944e-38, %v12007
      %v12009 = vsel %vm12006, %v12008, %v12004
      %v12010 = vmul.f32 %v10126, %v12009
      %v12011 = vrcp.pop %v8471
      %v12012 = vmul.f32 %v8471, %v12011
      %v12013 = vsub.f32 1.0, %v12012
      %v12014 = vmul.f32 %v12011, %v12013
      %v12015 = vadd.f32 %v12011, %v12014
      %vm12016 = vweird.f32 %v8471
      %vm12017 = vweird.f32 %v12011
      %vm12018 = vmor %vm12016, %vm12017
      %v12019 = vsel %vm12018, %v12011, %v12015
      %v12020 = vand.u32 2147483647, %v8471
      %vm12021 = vcmp.eq.f32.partialorder %v12020, 8.507059e+37
      %v12022 = vand.u32 %v8471, 2147483648
      %v12023 = vor.u32 1.1754944e-38, %v12022
      %v12024 = vsel %vm12021, %v12023, %v12019
      %v12025 = vmul.f32 %v10135, %v12024
      %v12026 = vrcp.pop %v8480
      %v12027 = vmul.f32 %v8480, %v12026
      %v12028 = vsub.f32 1.0, %v12027
      %v12029 = vmul.f32 %v12026, %v12028
      %v12030 = vadd.f32 %v12026, %v12029
      %vm12031 = vweird.f32 %v8480
      %vm12032 = vweird.f32 %v12026
      %vm12033 = vmor %vm12031, %vm12032
      %v12034 = vsel %vm12033, %v12026, %v12030
      %v12035 = vand.u32 2147483647, %v8480
      %vm12036 = vcmp.eq.f32.partialorder %v12035, 8.507059e+37
      %v12037 = vand.u32 %v8480, 2147483648
      %v12038 = vor.u32 1.1754944e-38, %v12037
      %v12039 = vsel %vm12036, %v12038, %v12034
      %v12040 = vmul.f32 %v10144, %v12039
      %v12041 = vrcp.pop %v8489
      %v12042 = vmul.f32 %v8489, %v12041
      %v12043 = vsub.f32 1.0, %v12042
      %v12044 = vmul.f32 %v12041, %v12043
      %v12045 = vadd.f32 %v12041, %v12044
      %vm12046 = vweird.f32 %v8489
      %vm12047 = vweird.f32 %v12041
      %vm12048 = vmor %vm12046, %vm12047
      %v12049 = vsel %vm12048, %v12041, %v12045
      %v12050 = vand.u32 2147483647, %v8489
      %vm12051 = vcmp.eq.f32.partialorder %v12050, 8.507059e+37
      %v12052 = vand.u32 %v8489, 2147483648
      %v12053 = vor.u32 1.1754944e-38, %v12052
      %v12054 = vsel %vm12051, %v12053, %v12049
      %v12055 = vmul.f32 %v10153, %v12054
      %v12056 = vrcp.pop %v8498
      %v12057 = vmul.f32 %v8498, %v12056
      %v12058 = vsub.f32 1.0, %v12057
      %v12059 = vmul.f32 %v12056, %v12058
      %v12060 = vadd.f32 %v12056, %v12059
      %vm12061 = vweird.f32 %v8498
      %vm12062 = vweird.f32 %v12056
      %vm12063 = vmor %vm12061, %vm12062
      %v12064 = vsel %vm12063, %v12056, %v12060
      %v12065 = vand.u32 2147483647, %v8498
      %vm12066 = vcmp.eq.f32.partialorder %v12065, 8.507059e+37
      %v12067 = vand.u32 %v8498, 2147483648
      %v12068 = vor.u32 1.1754944e-38, %v12067
      %v12069 = vsel %vm12066, %v12068, %v12064
      %v12070 = vmul.f32 %v10162, %v12069
      %v12071 = vrcp.pop %v8507
      %v12072 = vmul.f32 %v8507, %v12071
      %v12073 = vsub.f32 1.0, %v12072
      %v12074 = vmul.f32 %v12071, %v12073
      %v12075 = vadd.f32 %v12071, %v12074
      %vm12076 = vweird.f32 %v8507
      %vm12077 = vweird.f32 %v12071
      %vm12078 = vmor %vm12076, %vm12077
      %v12079 = vsel %vm12078, %v12071, %v12075
      %v12080 = vand.u32 2147483647, %v8507
      %vm12081 = vcmp.eq.f32.partialorder %v12080, 8.507059e+37
      %v12082 = vand.u32 %v8507, 2147483648
      %v12083 = vor.u32 1.1754944e-38, %v12082
      %v12084 = vsel %vm12081, %v12083, %v12079
      %v12085 = vmul.f32 %v10171, %v12084
      %v12086 = vrcp.pop %v8516
      %v12087 = vmul.f32 %v8516, %v12086
      %v12088 = vsub.f32 1.0, %v12087
      %v12089 = vmul.f32 %v12086, %v12088
      %v12090 = vadd.f32 %v12086, %v12089
      %vm12091 = vweird.f32 %v8516
      %vm12092 = vweird.f32 %v12086
      %vm12093 = vmor %vm12091, %vm12092
      %v12094 = vsel %vm12093, %v12086, %v12090
      %v12095 = vand.u32 2147483647, %v8516
      %vm12096 = vcmp.eq.f32.partialorder %v12095, 8.507059e+37
      %v12097 = vand.u32 %v8516, 2147483648
      %v12098 = vor.u32 1.1754944e-38, %v12097
      %v12099 = vsel %vm12096, %v12098, %v12094
      %v12100 = vmul.f32 %v10180, %v12099
      %v12101 = vperm.slane %v1120, 1
      %v12102 = vadd.f32 %v10195, %v12101
      %v12103 = vadd.f32 %v10210, %v12101
      %v12104 = vadd.f32 %v10225, %v12101
      %v12105 = vadd.f32 %v10240, %v12101
      %v12106 = vadd.f32 %v10255, %v12101
      %v12107 = vadd.f32 %v10270, %v12101
      %v12108 = vadd.f32 %v10285, %v12101
      %v12109 = vadd.f32 %v10300, %v12101
      %v12110 = vadd.f32 %v10315, %v12101
      %v12111 = vadd.f32 %v10330, %v12101
      %v12112 = vadd.f32 %v10345, %v12101
      %v12113 = vadd.f32 %v10360, %v12101
      %v12114 = vadd.f32 %v10375, %v12101
      %v12115 = vadd.f32 %v10390, %v12101
      %v12116 = vadd.f32 %v10405, %v12101
      %v12117 = vadd.f32 %v10420, %v12101
      %v12118 = vadd.f32 %v10435, %v12101
      %v12119 = vadd.f32 %v10450, %v12101
      %v12120 = vadd.f32 %v10465, %v12101
      %v12121 = vadd.f32 %v10480, %v12101
      %v12122 = vadd.f32 %v10495, %v12101
      %v12123 = vadd.f32 %v10510, %v12101
      %v12124 = vadd.f32 %v10525, %v12101
      %v12125 = vadd.f32 %v10540, %v12101
      %v12126 = vadd.f32 %v10555, %v12101
      %v12127 = vadd.f32 %v10570, %v12101
      %v12128 = vadd.f32 %v10585, %v12101
      %v12129 = vadd.f32 %v10600, %v12101
      %v12130 = vadd.f32 %v10615, %v12101
      %v12131 = vadd.f32 %v10630, %v12101
      %v12132 = vadd.f32 %v10645, %v12101
      %v12133 = vadd.f32 %v10660, %v12101
      %v12134 = vadd.f32 %v10675, %v12101
      %v12135 = vadd.f32 %v10690, %v12101
      %v12136 = vadd.f32 %v10705, %v12101
      %v12137 = vadd.f32 %v10720, %v12101
      %v12138 = vadd.f32 %v10735, %v12101
      %v12139 = vadd.f32 %v10750, %v12101
      %v12140 = vadd.f32 %v10765, %v12101
      %v12141 = vadd.f32 %v10780, %v12101
      %v12142 = vadd.f32 %v10795, %v12101
      %v12143 = vadd.f32 %v10810, %v12101
      %v12144 = vadd.f32 %v10825, %v12101
      %v12145 = vadd.f32 %v10840, %v12101
      %v12146 = vadd.f32 %v10855, %v12101
      %v12147 = vadd.f32 %v10870, %v12101
      %v12148 = vadd.f32 %v10885, %v12101
      %v12149 = vadd.f32 %v10900, %v12101
      %v12150 = vadd.f32 %v10915, %v12101
      %v12151 = vadd.f32 %v10930, %v12101
      %v12152 = vadd.f32 %v10945, %v12101
      %v12153 = vadd.f32 %v10960, %v12101
      %v12154 = vadd.f32 %v10975, %v12101
      %v12155 = vadd.f32 %v10990, %v12101
      %v12156 = vadd.f32 %v11005, %v12101
      %v12157 = vadd.f32 %v11020, %v12101
      %v12158 = vadd.f32 %v11035, %v12101
      %v12159 = vadd.f32 %v11050, %v12101
      %v12160 = vadd.f32 %v11065, %v12101
      %v12161 = vadd.f32 %v11080, %v12101
      %v12162 = vadd.f32 %v11095, %v12101
      %v12163 = vadd.f32 %v11110, %v12101
      %v12164 = vadd.f32 %v11125, %v12101
      %v12165 = vadd.f32 %v11140, %v12101
      %v12166 = vadd.f32 %v11155, %v12101
      %v12167 = vadd.f32 %v11170, %v12101
      %v12168 = vadd.f32 %v11185, %v12101
      %v12169 = vadd.f32 %v11200, %v12101
      %v12170 = vadd.f32 %v11215, %v12101
      %v12171 = vadd.f32 %v11230, %v12101
      %v12172 = vadd.f32 %v11245, %v12101
      %v12173 = vadd.f32 %v11260, %v12101
      %v12174 = vadd.f32 %v11275, %v12101
      %v12175 = vadd.f32 %v11290, %v12101
      %v12176 = vadd.f32 %v11305, %v12101
      %v12177 = vadd.f32 %v11320, %v12101
      %v12178 = vadd.f32 %v11335, %v12101
      %v12179 = vadd.f32 %v11350, %v12101
      %v12180 = vadd.f32 %v11365, %v12101
      %v12181 = vadd.f32 %v11380, %v12101
      %v12182 = vadd.f32 %v11395, %v12101
      %v12183 = vadd.f32 %v11410, %v12101
      %v12184 = vadd.f32 %v11425, %v12101
      %v12185 = vadd.f32 %v11440, %v12101
      %v12186 = vadd.f32 %v11455, %v12101
      %v12187 = vadd.f32 %v11470, %v12101
      %v12188 = vadd.f32 %v11485, %v12101
      %v12189 = vadd.f32 %v11500, %v12101
      %v12190 = vadd.f32 %v11515, %v12101
      %v12191 = vadd.f32 %v11530, %v12101
      %v12192 = vadd.f32 %v11545, %v12101
      %v12193 = vadd.f32 %v11560, %v12101
      %v12194 = vadd.f32 %v11575, %v12101
      %v12195 = vadd.f32 %v11590, %v12101
      %v12196 = vadd.f32 %v11605, %v12101
      %v12197 = vadd.f32 %v11620, %v12101
      %v12198 = vadd.f32 %v11635, %v12101
      %v12199 = vadd.f32 %v11650, %v12101
      %v12200 = vadd.f32 %v11665, %v12101
      %v12201 = vadd.f32 %v11680, %v12101
      %v12202 = vadd.f32 %v11695, %v12101
      %v12203 = vadd.f32 %v11710, %v12101
      %v12204 = vadd.f32 %v11725, %v12101
      %v12205 = vadd.f32 %v11740, %v12101
      %v12206 = vadd.f32 %v11755, %v12101
      %v12207 = vadd.f32 %v11770, %v12101
      %v12208 = vadd.f32 %v11785, %v12101
      %v12209 = vadd.f32 %v11800, %v12101
      %v12210 = vadd.f32 %v11815, %v12101
      %v12211 = vadd.f32 %v11830, %v12101
      %v12212 = vadd.f32 %v11845, %v12101
      %v12213 = vadd.f32 %v11860, %v12101
      %v12214 = vadd.f32 %v11875, %v12101
      %v12215 = vadd.f32 %v11890, %v12101
      %v12216 = vadd.f32 %v11905, %v12101
      %v12217 = vadd.f32 %v11920, %v12101
      %v12218 = vadd.f32 %v11935, %v12101
      %v12219 = vadd.f32 %v11950, %v12101
      %v12220 = vadd.f32 %v11965, %v12101
      %v12221 = vadd.f32 %v11980, %v12101
      %v12222 = vadd.f32 %v11995, %v12101
      %v12223 = vadd.f32 %v12010, %v12101
      %v12224 = vadd.f32 %v12025, %v12101
      %v12225 = vadd.f32 %v12040, %v12101
      %v12226 = vadd.f32 %v12055, %v12101
      %v12227 = vadd.f32 %v12070, %v12101
      %v12228 = vadd.f32 %v12085, %v12101
      %v12229 = vadd.f32 %v12100, %v12101
      %v12358 = vrot.slane %v12103, 7
      %vm12359 = vcmask 1041409
      %v12360 = vsel %vm12359, %v12358, %v12102
      %v12361 = vrot.slane %v12104, 6
      %vm12362 = vcmask 1042434
      %v12363 = vsel %vm12362, %v12361, %v12360
      %v12364 = vrot.slane %v12105, 5
      %vm12365 = vcmask 1043459
      %v12366 = vsel %vm12365, %v12364, %v12363
      %v12367 = vrot.slane %v12106, 4
      %vm12368 = vcmask 1044484
      %v12369 = vsel %vm12368, %v12367, %v12366
      %v12370 = vrot.slane %v12107, 3
      %vm12371 = vcmask 1045509
      %v12372 = vsel %vm12371, %v12370, %v12369
      %v12373 = vrot.slane %v12108, 2
      %vm12374 = vcmask 1046534
      %v12375 = vsel %vm12374, %v12373, %v12372
      %v12376 = vrot.slane %v12109, 1
      %vm12377 = vcmask 1047559
      %v12378 = vsel %vm12377, %v12376, %v12375
      %v12379 = vrot.slane %v12111, 7
      %v12380 = vsel %vm12359, %v12379, %v12110
      %v12381 = vrot.slane %v12112, 6
      %v12382 = vsel %vm12362, %v12381, %v12380
      %v12383 = vrot.slane %v12113, 5
      %v12384 = vsel %vm12365, %v12383, %v12382
      %v12385 = vrot.slane %v12114, 4
      %v12386 = vsel %vm12368, %v12385, %v12384
      %v12387 = vrot.slane %v12115, 3
      %v12388 = vsel %vm12371, %v12387, %v12386
      %v12389 = vrot.slane %v12116, 2
      %v12390 = vsel %vm12374, %v12389, %v12388
      %v12391 = vrot.slane %v12117, 1
      %v12392 = vsel %vm12377, %v12391, %v12390
      %v12393 = vrot.slane %v12119, 7
      %v12394 = vsel %vm12359, %v12393, %v12118
      %v12395 = vrot.slane %v12120, 6
      %v12396 = vsel %vm12362, %v12395, %v12394
      %v12397 = vrot.slane %v12121, 5
      %v12398 = vsel %vm12365, %v12397, %v12396
      %v12399 = vrot.slane %v12122, 4
      %v12400 = vsel %vm12368, %v12399, %v12398
      %v12401 = vrot.slane %v12123, 3
      %v12402 = vsel %vm12371, %v12401, %v12400
      %v12403 = vrot.slane %v12124, 2
      %v12404 = vsel %vm12374, %v12403, %v12402
      %v12405 = vrot.slane %v12125, 1
      %v12406 = vsel %vm12377, %v12405, %v12404
      %v12407 = vrot.slane %v12127, 7
      %v12408 = vsel %vm12359, %v12407, %v12126
      %v12409 = vrot.slane %v12128, 6
      %v12410 = vsel %vm12362, %v12409, %v12408
      %v12411 = vrot.slane %v12129, 5
      %v12412 = vsel %vm12365, %v12411, %v12410
      %v12413 = vrot.slane %v12130, 4
      %v12414 = vsel %vm12368, %v12413, %v12412
      %v12415 = vrot.slane %v12131, 3
      %v12416 = vsel %vm12371, %v12415, %v12414
      %v12417 = vrot.slane %v12132, 2
      %v12418 = vsel %vm12374, %v12417, %v12416
      %v12419 = vrot.slane %v12133, 1
      %v12420 = vsel %vm12377, %v12419, %v12418
      %v12421 = vrot.slane %v12135, 7
      %v12422 = vsel %vm12359, %v12421, %v12134
      %v12423 = vrot.slane %v12136, 6
      %v12424 = vsel %vm12362, %v12423, %v12422
      %v12425 = vrot.slane %v12137, 5
      %v12426 = vsel %vm12365, %v12425, %v12424
      %v12427 = vrot.slane %v12138, 4
      %v12428 = vsel %vm12368, %v12427, %v12426
      %v12429 = vrot.slane %v12139, 3
      %v12430 = vsel %vm12371, %v12429, %v12428
      %v12431 = vrot.slane %v12140, 2
      %v12432 = vsel %vm12374, %v12431, %v12430
      %v12433 = vrot.slane %v12141, 1
      %v12434 = vsel %vm12377, %v12433, %v12432
      %v12435 = vrot.slane %v12143, 7
      %v12436 = vsel %vm12359, %v12435, %v12142
      %v12437 = vrot.slane %v12144, 6
      %v12438 = vsel %vm12362, %v12437, %v12436
      %v12439 = vrot.slane %v12145, 5
      %v12440 = vsel %vm12365, %v12439, %v12438
      %v12441 = vrot.slane %v12146, 4
      %v12442 = vsel %vm12368, %v12441, %v12440
      %v12443 = vrot.slane %v12147, 3
      %v12444 = vsel %vm12371, %v12443, %v12442
      %v12445 = vrot.slane %v12148, 2
      %v12446 = vsel %vm12374, %v12445, %v12444
      %v12447 = vrot.slane %v12149, 1
      %v12448 = vsel %vm12377, %v12447, %v12446
      %v12449 = vrot.slane %v12151, 7
      %v12450 = vsel %vm12359, %v12449, %v12150
      %v12451 = vrot.slane %v12152, 6
      %v12452 = vsel %vm12362, %v12451, %v12450
      %v12453 = vrot.slane %v12153, 5
      %v12454 = vsel %vm12365, %v12453, %v12452
      %v12455 = vrot.slane %v12154, 4
      %v12456 = vsel %vm12368, %v12455, %v12454
      %v12457 = vrot.slane %v12155, 3
      %v12458 = vsel %vm12371, %v12457, %v12456
      %v12459 = vrot.slane %v12156, 2
      %v12460 = vsel %vm12374, %v12459, %v12458
      %v12461 = vrot.slane %v12157, 1
      %v12462 = vsel %vm12377, %v12461, %v12460
      %v12463 = vrot.slane %v12159, 7
      %v12464 = vsel %vm12359, %v12463, %v12158
      %v12465 = vrot.slane %v12160, 6
      %v12466 = vsel %vm12362, %v12465, %v12464
      %v12467 = vrot.slane %v12161, 5
      %v12468 = vsel %vm12365, %v12467, %v12466
      %v12469 = vrot.slane %v12162, 4
      %v12470 = vsel %vm12368, %v12469, %v12468
      %v12471 = vrot.slane %v12163, 3
      %v12472 = vsel %vm12371, %v12471, %v12470
      %v12473 = vrot.slane %v12164, 2
      %v12474 = vsel %vm12374, %v12473, %v12472
      %v12475 = vrot.slane %v12165, 1
      %v12476 = vsel %vm12377, %v12475, %v12474
      %v12477 = vrot.slane %v12167, 7
      %v12478 = vsel %vm12359, %v12477, %v12166
      %v12479 = vrot.slane %v12168, 6
      %v12480 = vsel %vm12362, %v12479, %v12478
      %v12481 = vrot.slane %v12169, 5
      %v12482 = vsel %vm12365, %v12481, %v12480
      %v12483 = vrot.slane %v12170, 4
      %v12484 = vsel %vm12368, %v12483, %v12482
      %v12485 = vrot.slane %v12171, 3
      %v12486 = vsel %vm12371, %v12485, %v12484
      %v12487 = vrot.slane %v12172, 2
      %v12488 = vsel %vm12374, %v12487, %v12486
      %v12489 = vrot.slane %v12173, 1
      %v12490 = vsel %vm12377, %v12489, %v12488
      %v12491 = vrot.slane %v12175, 7
      %v12492 = vsel %vm12359, %v12491, %v12174
      %v12493 = vrot.slane %v12176, 6
      %v12494 = vsel %vm12362, %v12493, %v12492
      %v12495 = vrot.slane %v12177, 5
      %v12496 = vsel %vm12365, %v12495, %v12494
      %v12497 = vrot.slane %v12178, 4
      %v12498 = vsel %vm12368, %v12497, %v12496
      %v12499 = vrot.slane %v12179, 3
      %v12500 = vsel %vm12371, %v12499, %v12498
      %v12501 = vrot.slane %v12180, 2
      %v12502 = vsel %vm12374, %v12501, %v12500
      %v12503 = vrot.slane %v12181, 1
      %v12504 = vsel %vm12377, %v12503, %v12502
      %v12505 = vrot.slane %v12183, 7
      %v12506 = vsel %vm12359, %v12505, %v12182
      %v12507 = vrot.slane %v12184, 6
      %v12508 = vsel %vm12362, %v12507, %v12506
      %v12509 = vrot.slane %v12185, 5
      %v12510 = vsel %vm12365, %v12509, %v12508
      %v12511 = vrot.slane %v12186, 4
      %v12512 = vsel %vm12368, %v12511, %v12510
      %v12513 = vrot.slane %v12187, 3
      %v12514 = vsel %vm12371, %v12513, %v12512
      %v12515 = vrot.slane %v12188, 2
      %v12516 = vsel %vm12374, %v12515, %v12514
      %v12517 = vrot.slane %v12189, 1
      %v12518 = vsel %vm12377, %v12517, %v12516
      %v12519 = vrot.slane %v12191, 7
      %v12520 = vsel %vm12359, %v12519, %v12190
      %v12521 = vrot.slane %v12192, 6
      %v12522 = vsel %vm12362, %v12521, %v12520
      %v12523 = vrot.slane %v12193, 5
      %v12524 = vsel %vm12365, %v12523, %v12522
      %v12525 = vrot.slane %v12194, 4
      %v12526 = vsel %vm12368, %v12525, %v12524
      %v12527 = vrot.slane %v12195, 3
      %v12528 = vsel %vm12371, %v12527, %v12526
      %v12529 = vrot.slane %v12196, 2
      %v12530 = vsel %vm12374, %v12529, %v12528
      %v12531 = vrot.slane %v12197, 1
      %v12532 = vsel %vm12377, %v12531, %v12530
      %v12533 = vrot.slane %v12199, 7
      %v12534 = vsel %vm12359, %v12533, %v12198
      %v12535 = vrot.slane %v12200, 6
      %v12536 = vsel %vm12362, %v12535, %v12534
      %v12537 = vrot.slane %v12201, 5
      %v12538 = vsel %vm12365, %v12537, %v12536
      %v12539 = vrot.slane %v12202, 4
      %v12540 = vsel %vm12368, %v12539, %v12538
      %v12541 = vrot.slane %v12203, 3
      %v12542 = vsel %vm12371, %v12541, %v12540
      %v12543 = vrot.slane %v12204, 2
      %v12544 = vsel %vm12374, %v12543, %v12542
      %v12545 = vrot.slane %v12205, 1
      %v12546 = vsel %vm12377, %v12545, %v12544
      %v12547 = vrot.slane %v12207, 7
      %v12548 = vsel %vm12359, %v12547, %v12206
      %v12549 = vrot.slane %v12208, 6
      %v12550 = vsel %vm12362, %v12549, %v12548
      %v12551 = vrot.slane %v12209, 5
      %v12552 = vsel %vm12365, %v12551, %v12550
      %v12553 = vrot.slane %v12210, 4
      %v12554 = vsel %vm12368, %v12553, %v12552
      %v12555 = vrot.slane %v12211, 3
      %v12556 = vsel %vm12371, %v12555, %v12554
      %v12557 = vrot.slane %v12212, 2
      %v12558 = vsel %vm12374, %v12557, %v12556
      %v12559 = vrot.slane %v12213, 1
      %v12560 = vsel %vm12377, %v12559, %v12558
      %v12561 = vrot.slane %v12215, 7
      %v12562 = vsel %vm12359, %v12561, %v12214
      %v12563 = vrot.slane %v12216, 6
      %v12564 = vsel %vm12362, %v12563, %v12562
      %v12565 = vrot.slane %v12217, 5
      %v12566 = vsel %vm12365, %v12565, %v12564
      %v12567 = vrot.slane %v12218, 4
      %v12568 = vsel %vm12368, %v12567, %v12566
      %v12569 = vrot.slane %v12219, 3
      %v12570 = vsel %vm12371, %v12569, %v12568
      %v12571 = vrot.slane %v12220, 2
      %v12572 = vsel %vm12374, %v12571, %v12570
      %v12573 = vrot.slane %v12221, 1
      %v12574 = vsel %vm12377, %v12573, %v12572
      %v12575 = vrot.slane %v12223, 7
      %v12576 = vsel %vm12359, %v12575, %v12222
      %v12577 = vrot.slane %v12224, 6
      %v12578 = vsel %vm12362, %v12577, %v12576
      %v12579 = vrot.slane %v12225, 5
      %v12580 = vsel %vm12365, %v12579, %v12578
      %v12581 = vrot.slane %v12226, 4
      %v12582 = vsel %vm12368, %v12581, %v12580
      %v12583 = vrot.slane %v12227, 3
      %v12584 = vsel %vm12371, %v12583, %v12582
      %v12585 = vrot.slane %v12228, 2
      %v12586 = vsel %vm12374, %v12585, %v12584
      %v12587 = vrot.slane %v12229, 1
      %v12588 = vsel %vm12377, %v12587, %v12586
      %12605 = vst.msk [vmem:[%s324] sm:$0xff] %vm5444, %v12378
      %12606 = vst.msk [vmem:[%s324 + $0x8] sm:$0xff] %vm5444, %v12392
      %12607 = vst.msk [vmem:[%s324 + $0x10] sm:$0xff] %vm5444, %v12406
      %12608 = vst.msk [vmem:[%s324 + $0x18] sm:$0xff] %vm5444, %v12420
      %12609 = vst.msk [vmem:[%s324 + $0x20] sm:$0xff] %vm5444, %v12434
      %12610 = vst.msk [vmem:[%s324 + $0x28] sm:$0xff] %vm5444, %v12448
      %12611 = vst.msk [vmem:[%s324 + $0x30] sm:$0xff] %vm5444, %v12462
      %12612 = vst.msk [vmem:[%s324 + $0x38] sm:$0xff] %vm5444, %v12476
      %12613 = vst.msk [vmem:[%s324 + $0x40] sm:$0xff] %vm5444, %v12490
      %12614 = vst.msk [vmem:[%s324 + $0x48] sm:$0xff] %vm5444, %v12504
      %12615 = vst.msk [vmem:[%s324 + $0x50] sm:$0xff] %vm5444, %v12518
      %12616 = vst.msk [vmem:[%s324 + $0x58] sm:$0xff] %vm5444, %v12532
      %12617 = vst.msk [vmem:[%s324 + $0x60] sm:$0xff] %vm5444, %v12546
      %12618 = vst.msk [vmem:[%s324 + $0x68] sm:$0xff] %vm5444, %v12560
      %12619 = vst.msk [vmem:[%s324 + $0x70] sm:$0xff] %vm5444, %v12574
      %12620 = vst.msk [vmem:[%s324 + $0x78] sm:$0xff] %vm5444, %v12588
      %s12621 = smul.u32 16, %s18
      %p12622 = scmp.lt.s32.totalorder %s12621, 31
      %s12623 = scalar_select %p12622, %s12621, 31
      %s12624 = smul.addr %s12623, 8
      %s12625 = scalar_lea.vmem %s7, %s12624
      // Predicated region
      $region49: #{gatconv_forward.1} parent=47 // pred_check
        %p12626 = pneg %p198
      $region50: #{gatconv_forward.1} parent=47 // pred_check_branch
        %12628 = sbr.rel (%p12626) target = $region52
      $region51: #{gatconv_forward.1} parent=47 // pred_region
        %s12629 = smul.u32 16, %s18
      $region52: #{gatconv_forward.1} parent=47 // pred_fallthru
        _
    $region48: #{gatconv_forward.1} parent=5 // pred_fallthru
      _
    %p12630 = scmp.le.s32.totalorder 2, %s13
    // Predicated region
    $region53: #{gatconv_forward.1} parent=5 // pred_check
      %p12631 = pneg %p12630
    $region54: #{gatconv_forward.1} parent=5 // pred_check_branch
      %12633 = sbr.rel (%p12631) target = $region56
    $region55: #{gatconv_forward.1} parent=5 // pred_region
      %s12634 = ssub.s32 %s13, 2
      // Predicated region
      $region57: #{gatconv_forward.1} parent=55 // pred_check
        %p12635 = pneg %p204
      $region58: #{gatconv_forward.1} parent=55 // pred_check_branch
        %12637 = sbr.rel (%p12635) target = $region60
      $region59: #{gatconv_forward.1} parent=55 // pred_region
        %s12638 = smul.u32 16, %s19
        %p12639 = scmp.lt.s32.totalorder %s12638, 31
        %s12640 = scalar_select %p12639, %s12638, 31
        %s12641 = smul.addr %s12640, 8
        %s12642 = scalar_lea.vmem %s7, %s12641
      $region60: #{gatconv_forward.1} parent=55 // pred_fallthru
        _
    $region56: #{gatconv_forward.1} parent=5 // pred_fallthru
      _
  $region6: #{gatconv_forward.1} parent=0 // loop_footer
    %s17 = sadd.s32 1, %s13
  $region7: #{gatconv_forward.1} parent=0 // loop_footer_branch
    %12 = sbr.rel target = $region3
  $region8: #{gatconv_forward.1} parent=0 // loop_exit
    _

</llo_original>
